<compile_context>
chip_gen: v5e
topology: v5e:2x2
jax: 0.10.0
libtpu: 0.0.40
codegen_flags: <defaults>
</compile_context>

<pallas_src>
import math
from functools import partial

import jax
import jax.numpy as jnp
from jax.experimental import pallas as pl
from jax.experimental.pallas import tpu as pltpu


_PRELU_ALPHA = 0.25       # nn.PReLU() default init (learnable in torch; static here)
_BN_EPS = 1e-5


def _tpu_vmem_capacity():
    try:
        return int(pltpu.get_tpu_info().vmem_capacity_bytes)
    except Exception:
        return 64 * 1024 * 1024


_VMEM_CAP = _tpu_vmem_capacity()
# ~half of physical VMEM: 32 MiB on v7x (64 MiB), 64 MiB on v5e/v6e (128 MiB).
_VMEM_LIMIT = max(32 * 1024 * 1024, min(_VMEM_CAP // 2, 96 * 1024 * 1024))
_TM_MAX = 1024 if _VMEM_CAP >= 100 * 1024 * 1024 else 512


def _round_up(x, m):
    return ((x + m - 1) // m) * m


# ===================================================================== kernels
def _mm_fused_kernel(*refs, has_bias, has_res, act, clamp_max, compute_stats,
                     prelu_alpha):
    """y = act(A@B [+bias] [+res]) [clamp]; optional per-tile column sum/sumsq."""
    refs = list(refs)
    a_ref = refs.pop(0)
    b_ref = refs.pop(0)
    bias_ref = refs.pop(0) if has_bias else None
    res_ref = refs.pop(0) if has_res else None
    o_ref = refs.pop(0)
    sum_ref = sq_ref = None
    if compute_stats:
        sum_ref = refs.pop(0)
        sq_ref = refs.pop(0)

    y = jnp.dot(a_ref[...], b_ref[...], preferred_element_type=jnp.float32)
    if has_bias:
        y = y + bias_ref[...]

    if compute_stats:
        # Per-tile partial stats of the raw (pre-residual / pre-activation) conv
        # output, written to this tile's own (1, 8, N) block ("parallel" grid).
        s = jnp.sum(y, axis=0, keepdims=True)
        q = jnp.sum(y * y, axis=0, keepdims=True)
        sum_ref[...] = jnp.broadcast_to(s, sum_ref.shape)
        sq_ref[...] = jnp.broadcast_to(q, sq_ref.shape)

    if has_res:
        y = y + res_ref[...].astype(jnp.float32)
    if act == "relu":
        y = jnp.maximum(y, 0.0)
    elif act == "prelu":
        y = jnp.where(y >= 0.0, y, prelu_alpha * y)
    if clamp_max is not None:
        y = jnp.minimum(y, clamp_max)
    o_ref[...] = y.astype(o_ref.dtype)


def _bn_act_kernel(y_ref, scale_ref, shift_ref, o_ref, *, act, prelu_alpha):
    """out = act(y*scale + shift)   (row-tiled, f32 math, bf16 in/out)."""
    z = y_ref[...].astype(jnp.float32) * scale_ref[...] + shift_ref[...]
    if act == "relu":
        z = jnp.maximum(z, 0.0)
    elif act == "prelu":
        z = jnp.where(z >= 0.0, z, prelu_alpha * z)
    o_ref[...] = z.astype(o_ref.dtype)


def _skipconv_kernel(w_ref, b_ref, x_ref, o_ref, buf, *, n_layers):
    """Fused chain of 3x3 conv(+bias)+ReLU layers, channel-planar, VPU only.

    x_ref: (C, N, H, W) f32 VMEM.  w_ref/b_ref: flat f32 SMEM scalars.
    buf:   (C*N, H+2, W+2) f32 VMEM scratch (zero border = padding=1).
    """
    C, Nb, H, W = x_ref.shape
    chans = [x_ref[ci] for ci in range(C)]                 # each (Nb, H, W) f32
    for layer in range(n_layers):
        buf[...] = jnp.zeros_like(buf)
        for ci in range(C):
            buf[ci * Nb:(ci + 1) * Nb, 1:H + 1, 1:W + 1] = chans[ci]
        accs = [jnp.zeros((Nb, H, W), jnp.float32) + b_ref[layer * C + co]
                for co in range(C)]
        for ci in range(C):
            for ki in range(3):
                for kj in range(3):
                    pc = buf[ci * Nb:(ci + 1) * Nb, ki:ki + H, kj:kj + W]
                    for co in range(C):
                        idx = (layer * 9 + ki * 3 + kj) * C * C + ci * C + co
                        accs[co] = accs[co] + w_ref[idx] * pc
        chans = [jnp.maximum(a, 0.0) for a in accs]        # ReLU after each layer
    for co in range(C):
        o_ref[co] = chans[co].astype(o_ref.dtype)


def _res1_kernel(x_ref, w1_ref, w2_ref, g1_ref, be1_ref, g2_ref, be2_ref,
                 o_ref, buf, *, eps, prelu_alpha):
    """Fused residual_block(128): conv3x3 -> BN(train) -> PReLU -> conv3x3 -> BN -> +x.

    x_ref: (N, h, w, C) bf16.  w*_ref: (9, C, C) bf16 (tap-major, cin x cout).
    buf:   (N, h+2, w+2, C) bf16 scratch (zero border = padding=1).
    BN-fed conv biases are dropped (cancelled exactly by BN's mean subtraction).
    """
    Nb, h, w, C = x_ref.shape
    M = Nb * h * w
    x = x_ref[...]                                         # bf16 (Nb, h, w, C)

    def conv3x3(w_taps):
        acc = jnp.zeros((M, C), jnp.float32)
        for t in range(9):
            ki, kj = t // 3, t % 3
            patch = buf[:, ki:ki + h, kj:kj + w, :].reshape(M, C)
            acc = acc + jnp.dot(patch, w_taps[t],
                                preferred_element_type=jnp.float32)
        return acc

    def bn_train(y, g_ref, be_ref):
        mean = jnp.mean(y, axis=0, keepdims=True)
        var = jnp.maximum(jnp.mean(y * y, axis=0, keepdims=True) - mean * mean, 0.0)
        return (y - mean) * (g_ref[...] * jax.lax.rsqrt(var + eps)) + be_ref[...]

    # conv1 -> BN1 -> PReLU
    buf[...] = jnp.zeros_like(buf)
    buf[:, 1:h + 1, 1:w + 1, :] = x
    z = bn_train(conv3x3(w1_ref), g1_ref, be1_ref)
    z = jnp.where(z >= 0.0, z, prelu_alpha * z)

    # conv2 -> BN2
    buf[...] = jnp.zeros_like(buf)
    buf[:, 1:h + 1, 1:w + 1, :] = z.reshape(Nb, h, w, C).astype(buf.dtype)
    z2 = bn_train(conv3x3(w2_ref), g2_ref, be2_ref)

    out = x.reshape(M, C).astype(jnp.float32) + z2
    o_ref[...] = out.reshape(Nb, h, w, C).astype(o_ref.dtype)


# ==================================================================== wrappers
def matmul_fused(a, b, bias=None, res=None, act="none", clamp_max=None,
                 compute_stats=False, out_dtype=jnp.bfloat16):
    """Fused matmul: bf16 operands, f32 accumulation, fused epilogue.

    K and N are NOT padded (full-extent blocks); only M is tiled.  When
    compute_stats=True also returns per-tile partial (sum, sumsq) of the raw
    f32 output, shape (G, 8, N) each (rows replicated; reduce via bn_fold).
    """
    assert not (compute_stats and bias is not None)
    M, K = a.shape
    N = b.shape[1]

    TM = min(_TM_MAX, _round_up(M, 8))
    Mp = _round_up(M, TM)
    G = Mp // TM

    a = a.astype(jnp.bfloat16)
    b = b.astype(jnp.bfloat16)
    if res is not None:
        res = res.astype(jnp.bfloat16)
    if Mp != M:
        a = jnp.pad(a, ((0, Mp - M), (0, 0)))
        if res is not None:
            res = jnp.pad(res, ((0, Mp - M), (0, 0)))

    inputs = [a, b]
    in_specs = [
        pl.BlockSpec((TM, K), lambda i: (i, 0)),
        pl.BlockSpec((K, N), lambda i: (0, 0)),
    ]
    if bias is not None:
        inputs.append(bias.astype(jnp.float32).reshape(1, N))
        in_specs.append(pl.BlockSpec((1, N), lambda i: (0, 0)))
    if res is not None:
        inputs.append(res)
        in_specs.append(pl.BlockSpec((TM, N), lambda i: (i, 0)))

    out_shape = [jax.ShapeDtypeStruct((Mp, N), out_dtype)]
    out_specs = [pl.BlockSpec((TM, N), lambda i: (i, 0))]
    if compute_stats:
        out_shape += [jax.ShapeDtypeStruct((G, 8, N), jnp.float32)] * 2
        out_specs += [pl.BlockSpec((1, 8, N), lambda i: (i, 0, 0))] * 2

    outs = pl.pallas_call(
        partial(_mm_fused_kernel, has_bias=bias is not None,
                has_res=res is not None, act=act, clamp_max=clamp_max,
                compute_stats=compute_stats, prelu_alpha=_PRELU_ALPHA),
        out_shape=tuple(out_shape),
        grid_spec=pl.GridSpec(grid=(G,), in_specs=in_specs,
                              out_specs=tuple(out_specs)),
        compiler_params=pltpu.CompilerParams(
            dimension_semantics=("parallel",), vmem_limit_bytes=_VMEM_LIMIT),
    )(*inputs)

    if not isinstance(outs, (list, tuple)):
        outs = (outs,)
    y = outs[0]
    if Mp != M:
        y = y[:M]
    if compute_stats:
        return y, outs[1], outs[2]
    return y


def bn_affine_act(y, scale, shift, act="none", out_dtype=jnp.bfloat16):
    """out = act(y*scale + shift), row-tiled ("parallel"), bf16 in/out."""
    M, C = y.shape
    TM = min(_TM_MAX, _round_up(M, 8))
    Mp = _round_up(M, TM)
    if Mp != M:
        y = jnp.pad(y, ((0, Mp - M), (0, 0)))

    out = pl.pallas_call(
        partial(_bn_act_kernel, act=act, prelu_alpha=_PRELU_ALPHA),
        out_shape=jax.ShapeDtypeStruct((Mp, C), out_dtype),
        grid_spec=pl.GridSpec(
            grid=(Mp // TM,),
            in_specs=[pl.BlockSpec((TM, C), lambda i: (i, 0)),
                      pl.BlockSpec((1, C), lambda i: (0, 0)),
                      pl.BlockSpec((1, C), lambda i: (0, 0))],
            out_specs=pl.BlockSpec((TM, C), lambda i: (i, 0))),
        compiler_params=pltpu.CompilerParams(
            dimension_semantics=("parallel",), vmem_limit_bytes=_VMEM_LIMIT),
    )(y, scale.astype(jnp.float32).reshape(1, C),
      shift.astype(jnp.float32).reshape(1, C))
    return out[:M] if Mp != M else out


def skipconv_fused(x_nhwc, Ws, bs):
    """Whole skipConv chain (3x conv3x3(3->3)+ReLU) in one VPU pallas_call."""
    Nb, H, W, C = x_nhwc.shape
    w_flat = jnp.concatenate(
        [jnp.transpose(Wl, (2, 3, 1, 0)).reshape(-1) for Wl in Ws]
    ).astype(jnp.float32)                                   # (layer, ki, kj, ci, co)
    b_flat = jnp.concatenate([b.astype(jnp.float32) for b in bs])
    x_cp = jnp.transpose(x_nhwc, (3, 0, 1, 2)).astype(jnp.float32)   # (C, N, H, W)

    out = pl.pallas_call(
        partial(_skipconv_kernel, n_layers=len(Ws)),
        out_shape=jax.ShapeDtypeStruct((C, Nb, H, W), jnp.bfloat16),
        in_specs=[pl.BlockSpec(memory_space=pltpu.MemorySpace.SMEM),
                  pl.BlockSpec(memory_space=pltpu.MemorySpace.SMEM),
                  pl.BlockSpec(memory_space=pltpu.MemorySpace.VMEM)],
        out_specs=pl.BlockSpec(memory_space=pltpu.MemorySpace.VMEM),
        scratch_shapes=[pltpu.VMEM((C * Nb, H + 2, W + 2), jnp.float32)],
        compiler_params=pltpu.CompilerParams(vmem_limit_bytes=_VMEM_LIMIT),
    )(w_flat, b_flat, x_cp)
    return jnp.transpose(out, (1, 2, 3, 0))                 # (N, H, W, C) bf16


def residual_block_fused(x_nhwc, W1, W2, g1, be1, g2, be2, eps=_BN_EPS):
    """res1: conv->BN->PReLU->conv->BN->(+x) as ONE pallas_call (bottleneck fits VMEM)."""
    Nb, h, w, C = x_nhwc.shape
    W1m = jnp.transpose(W1, (2, 3, 1, 0)).reshape(9, C, C).astype(jnp.bfloat16)
    W2m = jnp.transpose(W2, (2, 3, 1, 0)).reshape(9, C, C).astype(jnp.bfloat16)
    vspec = pl.BlockSpec(memory_space=pltpu.MemorySpace.VMEM)
    return pl.pallas_call(
        partial(_res1_kernel, eps=eps, prelu_alpha=_PRELU_ALPHA),
        out_shape=jax.ShapeDtypeStruct((Nb, h, w, C), jnp.bfloat16),
        in_specs=[vspec] * 7,
        out_specs=vspec,
        scratch_shapes=[pltpu.VMEM((Nb, h + 2, w + 2, C), jnp.bfloat16)],
        compiler_params=pltpu.CompilerParams(vmem_limit_bytes=_VMEM_LIMIT),
    )(x_nhwc.astype(jnp.bfloat16), W1m, W2m,
      g1.astype(jnp.float32).reshape(1, C), be1.astype(jnp.float32).reshape(1, C),
      g2.astype(jnp.float32).reshape(1, C), be2.astype(jnp.float32).reshape(1, C))


# --------------------------------------------------------------- conv helpers
def _im2col(x, k, stride, pad):
    """NHWC (bf16) -> (N*OH*OW, k*k*C) patches, column order (ki, kj, cin)."""
    N, H, W, C = x.shape
    xp = jnp.pad(x, ((0, 0), (pad, pad), (pad, pad), (0, 0)))
    OH = (H + 2 * pad - k) // stride + 1
    OW = (W + 2 * pad - k) // stride + 1
    cols = []
    for ki in range(k):
        for kj in range(k):
            cols.append(
                xp[:, ki:ki + stride * OH:stride, kj:kj + stride * OW:stride, :])
    patches = jnp.concatenate(cols, axis=-1)
    return patches.reshape(N * OH * OW, k * k * C), (N, OH, OW)


def conv2d_bn_stats(x, W, stride, pad):
    """Bias-free conv (im2col -> fused matmul) with fused per-tile BN statistics."""
    Cout, Cin, k, _ = W.shape
    patches, (N, OH, OW) = _im2col(x.astype(jnp.bfloat16), k, stride, pad)
    Wm = jnp.transpose(W, (2, 3, 1, 0)).reshape(k * k * Cin, Cout)
    y, ps, pq = matmul_fused(patches, Wm, compute_stats=True)
    return y, ps, pq, (N, OH, OW, Cout)


def conv_transpose_2x2(x_nhwc, W, b, res_nhwc=None, act="none", clamp_max=None,
                       out_dtype=jnp.bfloat16):
    """ConvTranspose2d(k=2,s=2,p=0) with fused residual/act/clamp epilogue."""
    N, H, Wd, Cin = x_nhwc.shape
    Cout = W.shape[1]
    Wm = W.reshape(Cin, Cout * 4)                  # columns ordered (cout, ki, kj)
    bias_cols = jnp.repeat(b, 4)

    res_flat = None
    if res_nhwc is not None:
        r = res_nhwc.astype(jnp.bfloat16).reshape(N, H, 2, Wd, 2, Cout)
        res_flat = jnp.transpose(r, (0, 1, 3, 5, 2, 4)).reshape(N * H * Wd, Cout * 4)

    y = matmul_fused(x_nhwc.reshape(N * H * Wd, Cin), Wm, bias=bias_cols,
                     res=res_flat, act=act, clamp_max=clamp_max,
                     out_dtype=out_dtype)
    y = y.reshape(N, H, Wd, Cout, 2, 2)
    y = jnp.transpose(y, (0, 1, 4, 2, 5, 3)).reshape(N, 2 * H, 2 * Wd, Cout)
    return y


def bn_fold(part_sum, part_sq, m_rows, gamma, beta, eps=_BN_EPS):
    """Training-mode BatchNorm2d folded to per-channel scale/shift.

    part_sum / part_sq are (G, 8, N) per-tile partials (rows replicated).
    """
    # TODO(synk): one-pass sumsq variance is cancellation-prone for very large
    #             activations; a shifted/Welford reduction would be safer.
    s = jnp.sum(part_sum[:, 0, :], axis=0)
    q = jnp.sum(part_sq[:, 0, :], axis=0)
    mean = s / m_rows
    var = jnp.maximum(q / m_rows - mean * mean, 0.0)
    scale = gamma * jax.lax.rsqrt(var + eps)
    shift = beta - mean * scale
    return scale, shift


# ----------------------------------------------------------------- parameters
def _conv_init(key, cout, cin, k):
    k1, k2 = jax.random.split(key)
    bound = 1.0 / math.sqrt(cin * k * k)
    W = jax.random.uniform(k1, (cout, cin, k, k), jnp.float32, -bound, bound)
    b = jax.random.uniform(k2, (cout,), jnp.float32, -bound, bound)
    return W, b


def _convT_init(key, cin, cout, k):
    k1, k2 = jax.random.split(key)
    bound = 1.0 / math.sqrt(cout * k * k)
    W = jax.random.uniform(k1, (cin, cout, k, k), jnp.float32, -bound, bound)
    b = jax.random.uniform(k2, (cout,), jnp.float32, -bound, bound)
    return W, b


def init_params(seed=0):
    keys = jax.random.split(jax.random.PRNGKey(seed), 11)
    p = {}
    p["skip_W"], p["skip_b"] = [], []
    for i in range(3):
        W, b = _conv_init(keys[i], 3, 3, 3)
        p["skip_W"].append(W)
        p["skip_b"].append(b)
    # Biases of BN-fed convs exist in the torch module but BatchNorm's mean
    # subtraction cancels them exactly, so the forward below never reads them.
    p["d1_W"], p["d1_b"] = _conv_init(keys[3], 32, 3, 3)
    p["d2_W"], p["d2_b"] = _conv_init(keys[4], 64, 32, 3)
    p["d3_W"], p["d3_b"] = _conv_init(keys[5], 128, 64, 3)
    p["r1c1_W"], p["r1c1_b"] = _conv_init(keys[6], 128, 128, 3)
    p["r1c2_W"], p["r1c2_b"] = _conv_init(keys[7], 128, 128, 3)
    p["u1_W"], p["u1_b"] = _convT_init(keys[8], 128, 64, 2)
    p["u2_W"], p["u2_b"] = _convT_init(keys[9], 64, 32, 2)
    p["u3_W"], p["u3_b"] = _convT_init(keys[10], 32, 3, 2)
    for name, c in [("d1", 32), ("d2", 64), ("d3", 128),
                    ("r1bn1", 128), ("r1bn2", 128)]:
        p[name + "_g"] = jnp.ones((c,), jnp.float32)
        p[name + "_be"] = jnp.zeros((c,), jnp.float32)
    return p


# -------------------------------------------------------------------- forward
def bccn_sub_net_forward(x_nchw, p):
    x = jnp.transpose(x_nchw, (0, 2, 3, 1)).astype(jnp.float32)  # NCHW -> NHWC

    # ---- skipConv: single fused VPU kernel (3 conv+ReLU layers)
    x_in = skipconv_fused(x, p["skip_W"], p["skip_b"])           # bf16 NHWC

    # ---- down blocks: conv s2 (no bias, fused stats) + BN(train) + ReLU
    def down(xin, W, gamma, beta):
        y, ps, pq, (n, oh, ow, c) = conv2d_bn_stats(xin, W, stride=2, pad=1)
        scale, shift = bn_fold(ps, pq, n * oh * ow, gamma, beta)
        return bn_affine_act(y, scale, shift, act="relu").reshape(n, oh, ow, c)

    x1 = down(x, p["d1_W"], p["d1_g"], p["d1_be"])     # (N, H/2, W/2, 32)
    x2 = down(x1, p["d2_W"], p["d2_g"], p["d2_be"])    # (N, H/4, W/4, 64)
    x3 = down(x2, p["d3_W"], p["d3_g"], p["d3_be"])    # (N, H/8, W/8, 128)

    # ---- res1: single fused kernel (conv->BN->PReLU->conv->BN->+x3)
    # TODO(synk): PReLU alpha is the static nn.PReLU() init (0.25), not a learnable param.
    xr = residual_block_fused(x3, p["r1c1_W"], p["r1c2_W"],
                              p["r1bn1_g"], p["r1bn1_be"],
                              p["r1bn2_g"], p["r1bn2_be"])

    # ---- up path: ConvTranspose2d + skip-add + ReLU (+ clamp) fully fused
    u1 = conv_transpose_2x2(xr, p["u1_W"], p["u1_b"], res_nhwc=x2, act="relu")
    u2 = conv_transpose_2x2(u1, p["u2_W"], p["u2_b"], res_nhwc=x1, act="relu")
    u3 = conv_transpose_2x2(u2, p["u3_W"], p["u3_b"], res_nhwc=x_in, act="relu",
                            clamp_max=1.0, out_dtype=jnp.float32)

    return jnp.transpose(u3, (0, 3, 1, 2))  # NHWC -> NCHW


# ------------------------------------------------------------------------ run
if __name__ == "__main__":
    params = init_params(seed=0)
    x = jax.random.uniform(jax.random.PRNGKey(0), (2, 3, 16, 16), jnp.float32)

    fwd = jax.jit(lambda inp: bccn_sub_net_forward(inp, params))
    out = jax.block_until_ready(fwd(x))
    assert out.shape == (2, 3, 16, 16), out.shape
    assert bool(jnp.all(jnp.isfinite(out)))
    print("KERNEL_OK")
</pallas_src>

<mosaic_0001>
module attributes {stable_mosaic.version = 11 : i64} {
  func.func @_mm_fused_kernel(%arg0: i32, %arg1: memref<128x27xbf16, #tpu.memory_space<vmem>>, %arg2: memref<27x32xbf16, #tpu.memory_space<vmem>>, %arg3: memref<128x32xbf16, #tpu.memory_space<vmem>>, %arg4: memref<1x8x32xf32, #tpu.memory_space<vmem>>, %arg5: memref<1x8x32xf32, #tpu.memory_space<vmem>>) attributes {dimension_semantics = [#tpu.dimension_semantics<parallel>], iteration_bounds = array<i64: 1>, scalar_prefetch = 0 : i64, scratch_operands = 0 : i64, tpu.core_type = #tpu.core_type<tc>, window_params = [{transform_indices = @transform_0, window_bounds = array<i64: 128, 27>}, {pipeline_mode = #tpu.pipeline_mode<synchronous>, transform_indices = @transform_1, window_bounds = array<i64: 27, 32>}, {transform_indices = @transform_2, window_bounds = array<i64: 128, 32>}, {transform_indices = @transform_3, window_bounds = array<i64: 1, 8, 32>}, {transform_indices = @transform_4, window_bounds = array<i64: 1, 8, 32>}]} {
    %c0 = arith.constant 0 : index
    %c0_0 = arith.constant 0 : index
    %0 = vector.load %arg1[%c0, %c0_0] : memref<128x27xbf16, #tpu.memory_space<vmem>>, vector<128x27xbf16>
    %c0_1 = arith.constant 0 : index
    %c0_2 = arith.constant 0 : index
    %1 = vector.load %arg2[%c0_1, %c0_2] : memref<27x32xbf16, #tpu.memory_space<vmem>>, vector<27x32xbf16>
    %cst = arith.constant dense<0.000000e+00> : vector<128x32xf32>
    %2 = tpu.matmul %0, %1, %cst {dimension_numbers = #tpu.dot_dimension_numbers<[1], [0], [0], [1], [0, 0, 1, 1], [], []>} : vector<128x27xbf16>, vector<27x32xbf16>, vector<128x32xf32> -> vector<128x32xf32>
    %cst_3 = arith.constant dense<0.000000e+00> : vector<32xf32>
    %3 = vector.multi_reduction <add>, %2, %cst_3 [0] : vector<128x32xf32> to vector<32xf32>
    %4 = vector.shape_cast %3 : vector<32xf32> to vector<1x32xf32>
    %5 = arith.mulf %2, %2 : vector<128x32xf32>
    %cst_4 = arith.constant dense<0.000000e+00> : vector<32xf32>
    %6 = vector.multi_reduction <add>, %5, %cst_4 [0] : vector<128x32xf32> to vector<32xf32>
    %7 = vector.shape_cast %6 : vector<32xf32> to vector<1x32xf32>
    %8 = vector.shape_cast %4 : vector<1x32xf32> to vector<1x1x32xf32>
    %9 = vector.broadcast %8 : vector<1x1x32xf32> to vector<1x8x32xf32>
    %c0_5 = arith.constant 0 : index
    %c0_6 = arith.constant 0 : index
    %c0_7 = arith.constant 0 : index
    %10 = vector.load %arg4[%c0_5, %c0_6, %c0_7] : memref<1x8x32xf32, #tpu.memory_space<vmem>>, vector<1x8x32xf32>
    tpu.vector_store %arg4[%c0_5, %c0_6, %c0_7], %9 {strides = array<i32>} : memref<1x8x32xf32, #tpu.memory_space<vmem>>, vector<1x8x32xf32>,
    %11 = vector.shape_cast %7 : vector<1x32xf32> to vector<1x1x32xf32>
    %12 = vector.broadcast %11 : vector<1x1x32xf32> to vector<1x8x32xf32>
    %c0_8 = arith.constant 0 : index
    %c0_9 = arith.constant 0 : index
    %c0_10 = arith.constant 0 : index
    %13 = vector.load %arg5[%c0_8, %c0_9, %c0_10] : memref<1x8x32xf32, #tpu.memory_space<vmem>>, vector<1x8x32xf32>
    tpu.vector_store %arg5[%c0_8, %c0_9, %c0_10], %12 {strides = array<i32>} : memref<1x8x32xf32, #tpu.memory_space<vmem>>, vector<1x8x32xf32>,
    %14 = arith.truncf %2 : vector<128x32xf32> to vector<128x32xbf16>
    %c0_11 = arith.constant 0 : index
    %c0_12 = arith.constant 0 : index
    %15 = vector.load %arg3[%c0_11, %c0_12] : memref<128x32xbf16, #tpu.memory_space<vmem>>, vector<128x32xbf16>
    tpu.vector_store %arg3[%c0_11, %c0_12], %14 {strides = array<i32>} : memref<128x32xbf16, #tpu.memory_space<vmem>>, vector<128x32xbf16>,
    return
  }
  func.func @transform_0(%arg0: i32) -> (i32, i32) {
    %c0_i32 = arith.constant 0 : i32
    %c0_i32_0 = arith.constant 0 : i32
    return %arg0, %c0_i32 : i32, i32
  }
  func.func @transform_1(%arg0: i32) -> (i32, i32) {
    %c0_i32 = arith.constant 0 : i32
    %c0_i32_0 = arith.constant 0 : i32
    %c0_i32_1 = arith.constant 0 : i32
    return %c0_i32, %c0_i32_0 : i32, i32
  }
  func.func @transform_2(%arg0: i32) -> (i32, i32) {
    %c0_i32 = arith.constant 0 : i32
    %c0_i32_0 = arith.constant 0 : i32
    return %arg0, %c0_i32 : i32, i32
  }
  func.func @transform_3(%arg0: i32) -> (i32, i32, i32) {
    %c0_i32 = arith.constant 0 : i32
    %c0_i32_0 = arith.constant 0 : i32
    %c0_i32_1 = arith.constant 0 : i32
    return %arg0, %c0_i32, %c0_i32_0 : i32, i32, i32
  }
  func.func @transform_4(%arg0: i32) -> (i32, i32, i32) {
    %c0_i32 = arith.constant 0 : i32
    %c0_i32_0 = arith.constant 0 : i32
    %c0_i32_1 = arith.constant 0 : i32
    return %arg0, %c0_i32, %c0_i32_0 : i32, i32, i32
  }
}

module attributes {stable_mosaic.version = 11 : i64} {
  func.func @_bn_act_kernel(%arg0: i32, %arg1: memref<128x32xbf16, #tpu.memory_space<vmem>>, %arg2: memref<1x32xf32, #tpu.memory_space<vmem>>, %arg3: memref<1x32xf32, #tpu.memory_space<vmem>>, %arg4: memref<128x32xbf16, #tpu.memory_space<vmem>>) attributes {dimension_semantics = [#tpu.dimension_semantics<parallel>], iteration_bounds = array<i64: 1>, scalar_prefetch = 0 : i64, scratch_operands = 0 : i64, tpu.core_type = #tpu.core_type<tc>, window_params = [{transform_indices = @transform_0, window_bounds = array<i64: 128, 32>}, {pipeline_mode = #tpu.pipeline_mode<synchronous>, transform_indices = @transform_1, window_bounds = array<i64: 1, 32>}, {pipeline_mode = #tpu.pipeline_mode<synchronous>, transform_indices = @transform_2, window_bounds = array<i64: 1, 32>}, {transform_indices = @transform_3, window_bounds = array<i64: 128, 32>}]} {
    %c0 = arith.constant 0 : index
    %c0_0 = arith.constant 0 : index
    %0 = vector.load %arg1[%c0, %c0_0] : memref<128x32xbf16, #tpu.memory_space<vmem>>, vector<128x32xbf16>
    %1 = arith.extf %0 : vector<128x32xbf16> to vector<128x32xf32>
    %c0_1 = arith.constant 0 : index
    %c0_2 = arith.constant 0 : index
    %2 = vector.load %arg2[%c0_1, %c0_2] : memref<1x32xf32, #tpu.memory_space<vmem>>, vector<1x32xf32>
    %3 = vector.broadcast %2 : vector<1x32xf32> to vector<128x32xf32>
    %4 = arith.mulf %1, %3 : vector<128x32xf32>
    %c0_3 = arith.constant 0 : index
    %c0_4 = arith.constant 0 : index
    %5 = vector.load %arg3[%c0_3, %c0_4] : memref<1x32xf32, #tpu.memory_space<vmem>>, vector<1x32xf32>
    %6 = vector.broadcast %5 : vector<1x32xf32> to vector<128x32xf32>
    %7 = arith.addf %4, %6 : vector<128x32xf32>
    %cst = arith.constant 0.000000e+00 : f32
    %8 = vector.broadcast %cst : f32 to vector<128x32xf32>
    %9 = arith.maximumf %7, %8 : vector<128x32xf32>
    %10 = arith.truncf %9 : vector<128x32xf32> to vector<128x32xbf16>
    %c0_5 = arith.constant 0 : index
    %c0_6 = arith.constant 0 : index
    %11 = vector.load %arg4[%c0_5, %c0_6] : memref<128x32xbf16, #tpu.memory_space<vmem>>, vector<128x32xbf16>
    tpu.vector_store %arg4[%c0_5, %c0_6], %10 {strides = array<i32>} : memref<128x32xbf16, #tpu.memory_space<vmem>>, vector<128x32xbf16>,
    return
  }
  func.func @transform_0(%arg0: i32) -> (i32, i32) {
    %c0_i32 = arith.constant 0 : i32
    %c0_i32_0 = arith.constant 0 : i32
    return %arg0, %c0_i32 : i32, i32
  }
  func.func @transform_1(%arg0: i32) -> (i32, i32) {
    %c0_i32 = arith.constant 0 : i32
    %c0_i32_0 = arith.constant 0 : i32
    %c0_i32_1 = arith.constant 0 : i32
    return %c0_i32, %c0_i32_0 : i32, i32
  }
  func.func @transform_2(%arg0: i32) -> (i32, i32) {
    %c0_i32 = arith.constant 0 : i32
    %c0_i32_0 = arith.constant 0 : i32
    %c0_i32_1 = arith.constant 0 : i32
    return %c0_i32, %c0_i32_0 : i32, i32
  }
  func.func @transform_3(%arg0: i32) -> (i32, i32) {
    %c0_i32 = arith.constant 0 : i32
    %c0_i32_0 = arith.constant 0 : i32
    return %arg0, %c0_i32 : i32, i32
  }
}

module attributes {stable_mosaic.version = 11 : i64} {
  func.func @_skipconv_kernel(%arg0: memref<243xf32, #tpu.memory_space<smem>>, %arg1: memref<9xf32, #tpu.memory_space<smem>>, %arg2: memref<3x2x16x16xf32, #tpu.memory_space<vmem>>, %arg3: memref<3x2x16x16xbf16, #tpu.memory_space<vmem>>, %arg4: memref<6x18x18xf32, #tpu.memory_space<vmem>>) attributes {dimension_semantics = [], scalar_prefetch = 0 : i64, scratch_operands = 1 : i64, tpu.core_type = #tpu.core_type<tc>} {
    %c0 = arith.constant 0 : index
    %c0_0 = arith.constant 0 : index
    %c0_1 = arith.constant 0 : index
    %c0_2 = arith.constant 0 : index
    %0 = vector.load %arg2[%c0, %c0_0, %c0_1, %c0_2] : memref<3x2x16x16xf32, #tpu.memory_space<vmem>>, vector<1x2x16x16xf32>
    %1 = vector.shape_cast %0 : vector<1x2x16x16xf32> to vector<2x16x16xf32>
    %c1 = arith.constant 1 : index
    %c0_3 = arith.constant 0 : index
    %c0_4 = arith.constant 0 : index
    %c0_5 = arith.constant 0 : index
    %2 = vector.load %arg2[%c1, %c0_3, %c0_4, %c0_5] : memref<3x2x16x16xf32, #tpu.memory_space<vmem>>, vector<1x2x16x16xf32>
    %3 = vector.shape_cast %2 : vector<1x2x16x16xf32> to vector<2x16x16xf32>
    %c2 = arith.constant 2 : index
    %c0_6 = arith.constant 0 : index
    %c0_7 = arith.constant 0 : index
    %c0_8 = arith.constant 0 : index
    %4 = vector.load %arg2[%c2, %c0_6, %c0_7, %c0_8] : memref<3x2x16x16xf32, #tpu.memory_space<vmem>>, vector<1x2x16x16xf32>
    %5 = vector.shape_cast %4 : vector<1x2x16x16xf32> to vector<2x16x16xf32>
    %cst = arith.constant 0.000000e+00 : f32
    %6 = vector.broadcast %cst : f32 to vector<6x18x18xf32>
    %c0_9 = arith.constant 0 : index
    %c0_10 = arith.constant 0 : index
    %c0_11 = arith.constant 0 : index
    %7 = vector.load %arg4[%c0_9, %c0_10, %c0_11] : memref<6x18x18xf32, #tpu.memory_space<vmem>>, vector<6x18x18xf32>
    tpu.vector_store %arg4[%c0_9, %c0_10, %c0_11], %6 {strides = array<i32>} : memref<6x18x18xf32, #tpu.memory_space<vmem>>, vector<6x18x18xf32>,
    %c0_12 = arith.constant 0 : index
    %c1_13 = arith.constant 1 : index
    %c1_14 = arith.constant 1 : index
    %8 = vector.load %arg4[%c0_12, %c1_13, %c1_14] : memref<6x18x18xf32, #tpu.memory_space<vmem>>, vector<2x16x16xf32>
    tpu.vector_store %arg4[%c0_12, %c1_13, %c1_14], %1 {strides = array<i32>} : memref<6x18x18xf32, #tpu.memory_space<vmem>>, vector<2x16x16xf32>,
    %c2_15 = arith.constant 2 : index
    %c1_16 = arith.constant 1 : index
    %c1_17 = arith.constant 1 : index
    %9 = vector.load %arg4[%c2_15, %c1_16, %c1_17] : memref<6x18x18xf32, #tpu.memory_space<vmem>>, vector<2x16x16xf32>
    tpu.vector_store %arg4[%c2_15, %c1_16, %c1_17], %3 {strides = array<i32>} : memref<6x18x18xf32, #tpu.memory_space<vmem>>, vector<2x16x16xf32>,
    %c4 = arith.constant 4 : index
    %c1_18 = arith.constant 1 : index
    %c1_19 = arith.constant 1 : index
    %10 = vector.load %arg4[%c4, %c1_18, %c1_19] : memref<6x18x18xf32, #tpu.memory_space<vmem>>, vector<2x16x16xf32>
    tpu.vector_store %arg4[%c4, %c1_18, %c1_19], %5 {strides = array<i32>} : memref<6x18x18xf32, #tpu.memory_space<vmem>>, vector<2x16x16xf32>,
    %cst_20 = arith.constant 0.000000e+00 : f32
    %11 = vector.broadcast %cst_20 : f32 to vector<2x16x16xf32>
    %c0_21 = arith.constant 0 : index
    %12 = memref.load %arg1[%c0_21] : memref<9xf32, #tpu.memory_space<smem>>
    %13 = vector.broadcast %12 : f32 to vector<2x16x16xf32>
    %14 = arith.addf %11, %13 : vector<2x16x16xf32>
    %cst_22 = arith.constant 0.000000e+00 : f32
    %15 = vector.broadcast %cst_22 : f32 to vector<2x16x16xf32>
    %c1_23 = arith.constant 1 : index
    %16 = memref.load %arg1[%c1_23] : memref<9xf32, #tpu.memory_space<smem>>
    %17 = vector.broadcast %16 : f32 to vector<2x16x16xf32>
    %18 = arith.addf %15, %17 : vector<2x16x16xf32>
    %cst_24 = arith.constant 0.000000e+00 : f32
    %19 = vector.broadcast %cst_24 : f32 to vector<2x16x16xf32>
    %c2_25 = arith.constant 2 : index
    %20 = memref.load %arg1[%c2_25] : memref<9xf32, #tpu.memory_space<smem>>
    %21 = vector.broadcast %20 : f32 to vector<2x16x16xf32>
    %22 = arith.addf %19, %21 : vector<2x16x16xf32>
    %c0_26 = arith.constant 0 : index
    %c0_27 = arith.constant 0 : index
    %c0_28 = arith.constant 0 : index
    %23 = vector.load %arg4[%c0_26, %c0_27, %c0_28] : memref<6x18x18xf32, #tpu.memory_space<vmem>>, vector<2x16x16xf32>
    %c0_29 = arith.constant 0 : index
    %24 = memref.load %arg0[%c0_29] : memref<243xf32, #tpu.memory_space<smem>>
    %25 = vector.broadcast %24 : f32 to vector<2x16x16xf32>
    %26 = arith.mulf %25, %23 : vector<2x16x16xf32>
    %27 = arith.addf %14, %26 : vector<2x16x16xf32>
    %c1_30 = arith.constant 1 : index
    %28 = memref.load %arg0[%c1_30] : memref<243xf32, #tpu.memory_space<smem>>
    %29 = vector.broadcast %28 : f32 to vector<2x16x16xf32>
    %30 = arith.mulf %29, %23 : vector<2x16x16xf32>
    %31 = arith.addf %18, %30 : vector<2x16x16xf32>
    %c2_31 = arith.constant 2 : index
    %32 = memref.load %arg0[%c2_31] : memref<243xf32, #tpu.memory_space<smem>>
    %33 = vector.broadcast %32 : f32 to vector<2x16x16xf32>
    %34 = arith.mulf %33, %23 : vector<2x16x16xf32>
    %35 = arith.addf %22, %34 : vector<2x16x16xf32>
    %c0_32 = arith.constant 0 : index
    %c0_33 = arith.constant 0 : index
    %c1_34 = arith.constant 1 : index
    %36 = vector.load %arg4[%c0_32, %c0_33, %c1_34] : memref<6x18x18xf32, #tpu.memory_space<vmem>>, vector<2x16x16xf32>
    %c9 = arith.constant 9 : index
    %37 = memref.load %arg0[%c9] : memref<243xf32, #tpu.memory_space<smem>>
    %38 = vector.broadcast %37 : f32 to vector<2x16x16xf32>
    %39 = arith.mulf %38, %36 : vector<2x16x16xf32>
    %40 = arith.addf %27, %39 : vector<2x16x16xf32>
    %c10 = arith.constant 10 : index
    %41 = memref.load %arg0[%c10] : memref<243xf32, #tpu.memory_space<smem>>
    %42 = vector.broadcast %41 : f32 to vector<2x16x16xf32>
    %43 = arith.mulf %42, %36 : vector<2x16x16xf32>
    %44 = arith.addf %31, %43 : vector<2x16x16xf32>
    %c11 = arith.constant 11 : index
    %45 = memref.load %arg0[%c11] : memref<243xf32, #tpu.memory_space<smem>>
    %46 = vector.broadcast %45 : f32 to vector<2x16x16xf32>
    %47 = arith.mulf %46, %36 : vector<2x16x16xf32>
    %48 = arith.addf %35, %47 : vector<2x16x16xf32>
    %c0_35 = arith.constant 0 : index
    %c0_36 = arith.constant 0 : index
    %c2_37 = arith.constant 2 : index
    %49 = vector.load %arg4[%c0_35, %c0_36, %c2_37] : memref<6x18x18xf32, #tpu.memory_space<vmem>>, vector<2x16x16xf32>
    %c18 = arith.constant 18 : index
    %50 = memref.load %arg0[%c18] : memref<243xf32, #tpu.memory_space<smem>>
    %51 = vector.broadcast %50 : f32 to vector<2x16x16xf32>
    %52 = arith.mulf %51, %49 : vector<2x16x16xf32>
    %53 = arith.addf %40, %52 : vector<2x16x16xf32>
    %c19 = arith.constant 19 : index
    %54 = memref.load %arg0[%c19] : memref<243xf32, #tpu.memory_space<smem>>
    %55 = vector.broadcast %54 : f32 to vector<2x16x16xf32>
    %56 = arith.mulf %55, %49 : vector<2x16x16xf32>
    %57 = arith.addf %44, %56 : vector<2x16x16xf32>
    %c20 = arith.constant 20 : index
    %58 = memref.load %arg0[%c20] : memref<243xf32, #tpu.memory_space<smem>>
    %59 = vector.broadcast %58 : f32 to vector<2x16x16xf32>
    %60 = arith.mulf %59, %49 : vector<2x16x16xf32>
    %61 = arith.addf %48, %60 : vector<2x16x16xf32>
    %c0_38 = arith.constant 0 : index
    %c1_39 = arith.constant 1 : index
    %c0_40 = arith.constant 0 : index
    %62 = vector.load %arg4[%c0_38, %c1_39, %c0_40] : memref<6x18x18xf32, #tpu.memory_space<vmem>>, vector<2x16x16xf32>
    %c27 = arith.constant 27 : index
    %63 = memref.load %arg0[%c27] : memref<243xf32, #tpu.memory_space<smem>>
    %64 = vector.broadcast %63 : f32 to vector<2x16x16xf32>
    %65 = arith.mulf %64, %62 : vector<2x16x16xf32>
    %66 = arith.addf %53, %65 : vector<2x16x16xf32>
    %c28 = arith.constant 28 : index
    %67 = memref.load %arg0[%c28] : memref<243xf32, #tpu.memory_space<smem>>
    %68 = vector.broadcast %67 : f32 to vector<2x16x16xf32>
    %69 = arith.mulf %68, %62 : vector<2x16x16xf32>
    %70 = arith.addf %57, %69 : vector<2x16x16xf32>
    %c29 = arith.constant 29 : index
    %71 = memref.load %arg0[%c29] : memref<243xf32, #tpu.memory_space<smem>>
    %72 = vector.broadcast %71 : f32 to vector<2x16x16xf32>
    %73 = arith.mulf %72, %62 : vector<2x16x16xf32>
    %74 = arith.addf %61, %73 : vector<2x16x16xf32>
    %c0_41 = arith.constant 0 : index
    %c1_42 = arith.constant 1 : index
    %c1_43 = arith.constant 1 : index
    %75 = vector.load %arg4[%c0_41, %c1_42, %c1_43] : memref<6x18x18xf32, #tpu.memory_space<vmem>>, vector<2x16x16xf32>
    %c36 = arith.constant 36 : index
    %76 = memref.load %arg0[%c36] : memref<243xf32, #tpu.memory_space<smem>>
    %77 = vector.broadcast %76 : f32 to vector<2x16x16xf32>
    %78 = arith.mulf %77, %75 : vector<2x16x16xf32>
    %79 = arith.addf %66, %78 : vector<2x16x16xf32>
    %c37 = arith.constant 37 : index
    %80 = memref.load %arg0[%c37] : memref<243xf32, #tpu.memory_space<smem>>
    %81 = vector.broadcast %80 : f32 to vector<2x16x16xf32>
    %82 = arith.mulf %81, %75 : vector<2x16x16xf32>
    %83 = arith.addf %70, %82 : vector<2x16x16xf32>
    %c38 = arith.constant 38 : index
    %84 = memref.load %arg0[%c38] : memref<243xf32, #tpu.memory_space<smem>>
    %85 = vector.broadcast %84 : f32 to vector<2x16x16xf32>
    %86 = arith.mulf %85, %75 : vector<2x16x16xf32>
    %87 = arith.addf %74, %86 : vector<2x16x16xf32>
    %c0_44 = arith.constant 0 : index
    %c1_45 = arith.constant 1 : index
    %c2_46 = arith.constant 2 : index
    %88 = vector.load %arg4[%c0_44, %c1_45, %c2_46] : memref<6x18x18xf32, #tpu.memory_space<vmem>>, vector<2x16x16xf32>
    %c45 = arith.constant 45 : index
    %89 = memref.load %arg0[%c45] : memref<243xf32, #tpu.memory_space<smem>>
    %90 = vector.broadcast %89 : f32 to vector<2x16x16xf32>
    %91 = arith.mulf %90, %88 : vector<2x16x16xf32>
    %92 = arith.addf %79, %91 : vector<2x16x16xf32>
    %c46 = arith.constant 46 : index
    %93 = memref.load %arg0[%c46] : memref<243xf32, #tpu.memory_space<smem>>
    %94 = vector.broadcast %93 : f32 to vector<2x16x16xf32>
    %95 = arith.mulf %94, %88 : vector<2x16x16xf32>
    %96 = arith.addf %83, %95 : vector<2x16x16xf32>
    %c47 = arith.constant 47 : index
    %97 = memref.load %arg0[%c47] : memref<243xf32, #tpu.memory_space<smem>>
    %98 = vector.broadcast %97 : f32 to vector<2x16x16xf32>
    %99 = arith.mulf %98, %88 : vector<2x16x16xf32>
    %100 = arith.addf %87, %99 : vector<2x16x16xf32>
    %c0_47 = arith.constant 0 : index
    %c2_48 = arith.constant 2 : index
    %c0_49 = arith.constant 0 : index
    %101 = vector.load %arg4[%c0_47, %c2_48, %c0_49] : memref<6x18x18xf32, #tpu.memory_space<vmem>>, vector<2x16x16xf32>
    %c54 = arith.constant 54 : index
    %102 = memref.load %arg0[%c54] : memref<243xf32, #tpu.memory_space<smem>>
    %103 = vector.broadcast %102 : f32 to vector<2x16x16xf32>
    %104 = arith.mulf %103, %101 : vector<2x16x16xf32>
    %105 = arith.addf %92, %104 : vector<2x16x16xf32>
    %c55 = arith.constant 55 : index
    %106 = memref.load %arg0[%c55] : memref<243xf32, #tpu.memory_space<smem>>
    %107 = vector.broadcast %106 : f32 to vector<2x16x16xf32>
    %108 = arith.mulf %107, %101 : vector<2x16x16xf32>
    %109 = arith.addf %96, %108 : vector<2x16x16xf32>
    %c56 = arith.constant 56 : index
    %110 = memref.load %arg0[%c56] : memref<243xf32, #tpu.memory_space<smem>>
    %111 = vector.broadcast %110 : f32 to vector<2x16x16xf32>
    %112 = arith.mulf %111, %101 : vector<2x16x16xf32>
    %113 = arith.addf %100, %112 : vector<2x16x16xf32>
    %c0_50 = arith.constant 0 : index
    %c2_51 = arith.constant 2 : index
    %c1_52 = arith.constant 1 : index
    %114 = vector.load %arg4[%c0_50, %c2_51, %c1_52] : memref<6x18x18xf32, #tpu.memory_space<vmem>>, vector<2x16x16xf32>
    %c63 = arith.constant 63 : index
    %115 = memref.load %arg0[%c63] : memref<243xf32, #tpu.memory_space<smem>>
    %116 = vector.broadcast %115 : f32 to vector<2x16x16xf32>
    %117 = arith.mulf %116, %114 : vector<2x16x16xf32>
    %118 = arith.addf %105, %117 : vector<2x16x16xf32>
    %c64 = arith.constant 64 : index
    %119 = memref.load %arg0[%c64] : memref<243xf32, #tpu.memory_space<smem>>
    %120 = vector.broadcast %119 : f32 to vector<2x16x16xf32>
    %121 = arith.mulf %120, %114 : vector<2x16x16xf32>
    %122 = arith.addf %109, %121 : vector<2x16x16xf32>
    %c65 = arith.constant 65 : index
    %123 = memref.load %arg0[%c65] : memref<243xf32, #tpu.memory_space<smem>>
    %124 = vector.broadcast %123 : f32 to vector<2x16x16xf32>
    %125 = arith.mulf %124, %114 : vector<2x16x16xf32>
    %126 = arith.addf %113, %125 : vector<2x16x16xf32>
    %c0_53 = arith.constant 0 : index
    %c2_54 = arith.constant 2 : index
    %c2_55 = arith.constant 2 : index
    %127 = vector.load %arg4[%c0_53, %c2_54, %c2_55] : memref<6x18x18xf32, #tpu.memory_space<vmem>>, vector<2x16x16xf32>
    %c72 = arith.constant 72 : index
    %128 = memref.load %arg0[%c72] : memref<243xf32, #tpu.memory_space<smem>>
    %129 = vector.broadcast %128 : f32 to vector<2x16x16xf32>
    %130 = arith.mulf %129, %127 : vector<2x16x16xf32>
    %131 = arith.addf %118, %130 : vector<2x16x16xf32>
    %c73 = arith.constant 73 : index
    %132 = memref.load %arg0[%c73] : memref<243xf32, #tpu.memory_space<smem>>
    %133 = vector.broadcast %132 : f32 to vector<2x16x16xf32>
    %134 = arith.mulf %133, %127 : vector<2x16x16xf32>
    %135 = arith.addf %122, %134 : vector<2x16x16xf32>
    %c74 = arith.constant 74 : index
    %136 = memref.load %arg0[%c74] : memref<243xf32, #tpu.memory_space<smem>>
    %137 = vector.broadcast %136 : f32 to vector<2x16x16xf32>
    %138 = arith.mulf %137, %127 : vector<2x16x16xf32>
    %139 = arith.addf %126, %138 : vector<2x16x16xf32>
    %c2_56 = arith.constant 2 : index
    %c0_57 = arith.constant 0 : index
    %c0_58 = arith.constant 0 : index
    %140 = vector.load %arg4[%c2_56, %c0_57, %c0_58] : memref<6x18x18xf32, #tpu.memory_space<vmem>>, vector<2x16x16xf32>
    %c3 = arith.constant 3 : index
    %141 = memref.load %arg0[%c3] : memref<243xf32, #tpu.memory_space<smem>>
    %142 = vector.broadcast %141 : f32 to vector<2x16x16xf32>
    %143 = arith.mulf %142, %140 : vector<2x16x16xf32>
    %144 = arith.addf %131, %143 : vector<2x16x16xf32>
    %c4_59 = arith.constant 4 : index
    %145 = memref.load %arg0[%c4_59] : memref<243xf32, #tpu.memory_space<smem>>
    %146 = vector.broadcast %145 : f32 to vector<2x16x16xf32>
    %147 = arith.mulf %146, %140 : vector<2x16x16xf32>
    %148 = arith.addf %135, %147 : vector<2x16x16xf32>
    %c5 = arith.constant 5 : index
    %149 = memref.load %arg0[%c5] : memref<243xf32, #tpu.memory_space<smem>>
    %150 = vector.broadcast %149 : f32 to vector<2x16x16xf32>
    %151 = arith.mulf %150, %140 : vector<2x16x16xf32>
    %152 = arith.addf %139, %151 : vector<2x16x16xf32>
    %c2_60 = arith.constant 2 : index
    %c0_61 = arith.constant 0 : index
    %c1_62 = arith.constant 1 : index
    %153 = vector.load %arg4[%c2_60, %c0_61, %c1_62] : memref<6x18x18xf32, #tpu.memory_space<vmem>>, vector<2x16x16xf32>
    %c12 = arith.constant 12 : index
    %154 = memref.load %arg0[%c12] : memref<243xf32, #tpu.memory_space<smem>>
    %155 = vector.broadcast %154 : f32 to vector<2x16x16xf32>
    %156 = arith.mulf %155, %153 : vector<2x16x16xf32>
    %157 = arith.addf %144, %156 : vector<2x16x16xf32>
    %c13 = arith.constant 13 : index
    %158 = memref.load %arg0[%c13] : memref<243xf32, #tpu.memory_space<smem>>
    %159 = vector.broadcast %158 : f32 to vector<2x16x16xf32>
    %160 = arith.mulf %159, %153 : vector<2x16x16xf32>
    %161 = arith.addf %148, %160 : vector<2x16x16xf32>
    %c14 = arith.constant 14 : index
    %162 = memref.load %arg0[%c14] : memref<243xf32, #tpu.memory_space<smem>>
    %163 = vector.broadcast %162 : f32 to vector<2x16x16xf32>
    %164 = arith.mulf %163, %153 : vector<2x16x16xf32>
    %165 = arith.addf %152, %164 : vector<2x16x16xf32>
    %c2_63 = arith.constant 2 : index
    %c0_64 = arith.constant 0 : index
    %c2_65 = arith.constant 2 : index
    %166 = vector.load %arg4[%c2_63, %c0_64, %c2_65] : memref<6x18x18xf32, #tpu.memory_space<vmem>>, vector<2x16x16xf32>
    %c21 = arith.constant 21 : index
    %167 = memref.load %arg0[%c21] : memref<243xf32, #tpu.memory_space<smem>>
    %168 = vector.broadcast %167 : f32 to vector<2x16x16xf32>
    %169 = arith.mulf %168, %166 : vector<2x16x16xf32>
    %170 = arith.addf %157, %169 : vector<2x16x16xf32>
    %c22 = arith.constant 22 : index
    %171 = memref.load %arg0[%c22] : memref<243xf32, #tpu.memory_space<smem>>
    %172 = vector.broadcast %171 : f32 to vector<2x16x16xf32>
    %173 = arith.mulf %172, %166 : vector<2x16x16xf32>
    %174 = arith.addf %161, %173 : vector<2x16x16xf32>
    %c23 = arith.constant 23 : index
    %175 = memref.load %arg0[%c23] : memref<243xf32, #tpu.memory_space<smem>>
    %176 = vector.broadcast %175 : f32 to vector<2x16x16xf32>
    %177 = arith.mulf %176, %166 : vector<2x16x16xf32>
    %178 = arith.addf %165, %177 : vector<2x16x16xf32>
    %c2_66 = arith.constant 2 : index
    %c1_67 = arith.constant 1 : index
    %c0_68 = arith.constant 0 : index
    %179 = vector.load %arg4[%c2_66, %c1_67, %c0_68] : memref<6x18x18xf32, #tpu.memory_space<vmem>>, vector<2x16x16xf32>
    %c30 = arith.constant 30 : index
    %180 = memref.load %arg0[%c30] : memref<243xf32, #tpu.memory_space<smem>>
    %181 = vector.broadcast %180 : f32 to vector<2x16x16xf32>
    %182 = arith.mulf %181, %179 : vector<2x16x16xf32>
    %183 = arith.addf %170, %182 : vector<2x16x16xf32>
    %c31 = arith.constant 31 : index
    %184 = memref.load %arg0[%c31] : memref<243xf32, #tpu.memory_space<smem>>
    %185 = vector.broadcast %184 : f32 to vector<2x16x16xf32>
    %186 = arith.mulf %185, %179 : vector<2x16x16xf32>
    %187 = arith.addf %174, %186 : vector<2x16x16xf32>
    %c32 = arith.constant 32 : index
    %188 = memref.load %arg0[%c32] : memref<243xf32, #tpu.memory_space<smem>>
    %189 = vector.broadcast %188 : f32 to vector<2x16x16xf32>
    %190 = arith.mulf %189, %179 : vector<2x16x16xf32>
    %191 = arith.addf %178, %190 : vector<2x16x16xf32>
    %c2_69 = arith.constant 2 : index
    %c1_70 = arith.constant 1 : index
    %c1_71 = arith.constant 1 : index
    %192 = vector.load %arg4[%c2_69, %c1_70, %c1_71] : memref<6x18x18xf32, #tpu.memory_space<vmem>>, vector<2x16x16xf32>
    %c39 = arith.constant 39 : index
    %193 = memref.load %arg0[%c39] : memref<243xf32, #tpu.memory_space<smem>>
    %194 = vector.broadcast %193 : f32 to vector<2x16x16xf32>
    %195 = arith.mulf %194, %192 : vector<2x16x16xf32>
    %196 = arith.addf %183, %195 : vector<2x16x16xf32>
    %c40 = arith.constant 40 : index
    %197 = memref.load %arg0[%c40] : memref<243xf32, #tpu.memory_space<smem>>
    %198 = vector.broadcast %197 : f32 to vector<2x16x16xf32>
    %199 = arith.mulf %198, %192 : vector<2x16x16xf32>
    %200 = arith.addf %187, %199 : vector<2x16x16xf32>
    %c41 = arith.constant 41 : index
    %201 = memref.load %arg0[%c41] : memref<243xf32, #tpu.memory_space<smem>>
    %202 = vector.broadcast %201 : f32 to vector<2x16x16xf32>
    %203 = arith.mulf %202, %192 : vector<2x16x16xf32>
    %204 = arith.addf %191, %203 : vector<2x16x16xf32>
    %c2_72 = arith.constant 2 : index
    %c1_73 = arith.constant 1 : index
    %c2_74 = arith.constant 2 : index
    %205 = vector.load %arg4[%c2_72, %c1_73, %c2_74] : memref<6x18x18xf32, #tpu.memory_space<vmem>>, vector<2x16x16xf32>
    %c48 = arith.constant 48 : index
    %206 = memref.load %arg0[%c48] : memref<243xf32, #tpu.memory_space<smem>>
    %207 = vector.broadcast %206 : f32 to vector<2x16x16xf32>
    %208 = arith.mulf %207, %205 : vector<2x16x16xf32>
    %209 = arith.addf %196, %208 : vector<2x16x16xf32>
    %c49 = arith.constant 49 : index
    %210 = memref.load %arg0[%c49] : memref<243xf32, #tpu.memory_space<smem>>
    %211 = vector.broadcast %210 : f32 to vector<2x16x16xf32>
    %212 = arith.mulf %211, %205 : vector<2x16x16xf32>
    %213 = arith.addf %200, %212 : vector<2x16x16xf32>
    %c50 = arith.constant 50 : index
    %214 = memref.load %arg0[%c50] : memref<243xf32, #tpu.memory_space<smem>>
    %215 = vector.broadcast %214 : f32 to vector<2x16x16xf32>
    %216 = arith.mulf %215, %205 : vector<2x16x16xf32>
    %217 = arith.addf %204, %216 : vector<2x16x16xf32>
    %c2_75 = arith.constant 2 : index
    %c2_76 = arith.constant 2 : index
    %c0_77 = arith.constant 0 : index
    %218 = vector.load %arg4[%c2_75, %c2_76, %c0_77] : memref<6x18x18xf32, #tpu.memory_space<vmem>>, vector<2x16x16xf32>
    %c57 = arith.constant 57 : index
    %219 = memref.load %arg0[%c57] : memref<243xf32, #tpu.memory_space<smem>>
    %220 = vector.broadcast %219 : f32 to vector<2x16x16xf32>
    %221 = arith.mulf %220, %218 : vector<2x16x16xf32>
    %222 = arith.addf %209, %221 : vector<2x16x16xf32>
    %c58 = arith.constant 58 : index
    %223 = memref.load %arg0[%c58] : memref<243xf32, #tpu.memory_space<smem>>
    %224 = vector.broadcast %223 : f32 to vector<2x16x16xf32>
    %225 = arith.mulf %224, %218 : vector<2x16x16xf32>
    %226 = arith.addf %213, %225 : vector<2x16x16xf32>
    %c59 = arith.constant 59 : index
    %227 = memref.load %arg0[%c59] : memref<243xf32, #tpu.memory_space<smem>>
    %228 = vector.broadcast %227 : f32 to vector<2x16x16xf32>
    %229 = arith.mulf %228, %218 : vector<2x16x16xf32>
    %230 = arith.addf %217, %229 : vector<2x16x16xf32>
    %c2_78 = arith.constant 2 : index
    %c2_79 = arith.constant 2 : index
    %c1_80 = arith.constant 1 : index
    %231 = vector.load %arg4[%c2_78, %c2_79, %c1_80] : memref<6x18x18xf32, #tpu.memory_space<vmem>>, vector<2x16x16xf32>
    %c66 = arith.constant 66 : index
    %232 = memref.load %arg0[%c66] : memref<243xf32, #tpu.memory_space<smem>>
    %233 = vector.broadcast %232 : f32 to vector<2x16x16xf32>
    %234 = arith.mulf %233, %231 : vector<2x16x16xf32>
    %235 = arith.addf %222, %234 : vector<2x16x16xf32>
    %c67 = arith.constant 67 : index
    %236 = memref.load %arg0[%c67] : memref<243xf32, #tpu.memory_space<smem>>
    %237 = vector.broadcast %236 : f32 to vector<2x16x16xf32>
    %238 = arith.mulf %237, %231 : vector<2x16x16xf32>
    %239 = arith.addf %226, %238 : vector<2x16x16xf32>
    %c68 = arith.constant 68 : index
    %240 = memref.load %arg0[%c68] : memref<243xf32, #tpu.memory_space<smem>>
    %241 = vector.broadcast %240 : f32 to vector<2x16x16xf32>
    %242 = arith.mulf %241, %231 : vector<2x16x16xf32>
    %243 = arith.addf %230, %242 : vector<2x16x16xf32>
    %c2_81 = arith.constant 2 : index
    %c2_82 = arith.constant 2 : index
    %c2_83 = arith.constant 2 : index
    %244 = vector.load %arg4[%c2_81, %c2_82, %c2_83] : memref<6x18x18xf32, #tpu.memory_space<vmem>>, vector<2x16x16xf32>
    %c75 = arith.constant 75 : index
    %245 = memref.load %arg0[%c75] : memref<243xf32, #tpu.memory_space<smem>>
    %246 = vector.broadcast %245 : f32 to vector<2x16x16xf32>
    %247 = arith.mulf %246, %244 : vector<2x16x16xf32>
    %248 = arith.addf %235, %247 : vector<2x16x16xf32>
    %c76 = arith.constant 76 : index
    %249 = memref.load %arg0[%c76] : memref<243xf32, #tpu.memory_space<smem>>
    %250 = vector.broadcast %249 : f32 to vector<2x16x16xf32>
    %251 = arith.mulf %250, %244 : vector<2x16x16xf32>
    %252 = arith.addf %239, %251 : vector<2x16x16xf32>
    %c77 = arith.constant 77 : index
    %253 = memref.load %arg0[%c77] : memref<243xf32, #tpu.memory_space<smem>>
    %254 = vector.broadcast %253 : f32 to vector<2x16x16xf32>
    %255 = arith.mulf %254, %244 : vector<2x16x16xf32>
    %256 = arith.addf %243, %255 : vector<2x16x16xf32>
    %c4_84 = arith.constant 4 : index
    %c0_85 = arith.constant 0 : index
    %c0_86 = arith.constant 0 : index
    %257 = vector.load %arg4[%c4_84, %c0_85, %c0_86] : memref<6x18x18xf32, #tpu.memory_space<vmem>>, vector<2x16x16xf32>
    %c6 = arith.constant 6 : index
    %258 = memref.load %arg0[%c6] : memref<243xf32, #tpu.memory_space<smem>>
    %259 = vector.broadcast %258 : f32 to vector<2x16x16xf32>
    %260 = arith.mulf %259, %257 : vector<2x16x16xf32>
    %261 = arith.addf %248, %260 : vector<2x16x16xf32>
    %c7 = arith.constant 7 : index
    %262 = memref.load %arg0[%c7] : memref<243xf32, #tpu.memory_space<smem>>
    %263 = vector.broadcast %262 : f32 to vector<2x16x16xf32>
    %264 = arith.mulf %263, %257 : vector<2x16x16xf32>
    %265 = arith.addf %252, %264 : vector<2x16x16xf32>
    %c8 = arith.constant 8 : index
    %266 = memref.load %arg0[%c8] : memref<243xf32, #tpu.memory_space<smem>>
    %267 = vector.broadcast %266 : f32 to vector<2x16x16xf32>
    %268 = arith.mulf %267, %257 : vector<2x16x16xf32>
    %269 = arith.addf %256, %268 : vector<2x16x16xf32>
    %c4_87 = arith.constant 4 : index
    %c0_88 = arith.constant 0 : index
    %c1_89 = arith.constant 1 : index
    %270 = vector.load %arg4[%c4_87, %c0_88, %c1_89] : memref<6x18x18xf32, #tpu.memory_space<vmem>>, vector<2x16x16xf32>
    %c15 = arith.constant 15 : index
    %271 = memref.load %arg0[%c15] : memref<243xf32, #tpu.memory_space<smem>>
    %272 = vector.broadcast %271 : f32 to vector<2x16x16xf32>
    %273 = arith.mulf %272, %270 : vector<2x16x16xf32>
    %274 = arith.addf %261, %273 : vector<2x16x16xf32>
    %c16 = arith.constant 16 : index
    %275 = memref.load %arg0[%c16] : memref<243xf32, #tpu.memory_space<smem>>
    %276 = vector.broadcast %275 : f32 to vector<2x16x16xf32>
    %277 = arith.mulf %276, %270 : vector<2x16x16xf32>
    %278 = arith.addf %265, %277 : vector<2x16x16xf32>
    %c17 = arith.constant 17 : index
    %279 = memref.load %arg0[%c17] : memref<243xf32, #tpu.memory_space<smem>>
    %280 = vector.broadcast %279 : f32 to vector<2x16x16xf32>
    %281 = arith.mulf %280, %270 : vector<2x16x16xf32>
    %282 = arith.addf %269, %281 : vector<2x16x16xf32>
    %c4_90 = arith.constant 4 : index
    %c0_91 = arith.constant 0 : index
    %c2_92 = arith.constant 2 : index
    %283 = vector.load %arg4[%c4_90, %c0_91, %c2_92] : memref<6x18x18xf32, #tpu.memory_space<vmem>>, vector<2x16x16xf32>
    %c24 = arith.constant 24 : index
    %284 = memref.load %arg0[%c24] : memref<243xf32, #tpu.memory_space<smem>>
    %285 = vector.broadcast %284 : f32 to vector<2x16x16xf32>
    %286 = arith.mulf %285, %283 : vector<2x16x16xf32>
    %287 = arith.addf %274, %286 : vector<2x16x16xf32>
    %c25 = arith.constant 25 : index
    %288 = memref.load %arg0[%c25] : memref<243xf32, #tpu.memory_space<smem>>
    %289 = vector.broadcast %288 : f32 to vector<2x16x16xf32>
    %290 = arith.mulf %289, %283 : vector<2x16x16xf32>
    %291 = arith.addf %278, %290 : vector<2x16x16xf32>
    %c26 = arith.constant 26 : index
    %292 = memref.load %arg0[%c26] : memref<243xf32, #tpu.memory_space<smem>>
    %293 = vector.broadcast %292 : f32 to vector<2x16x16xf32>
    %294 = arith.mulf %293, %283 : vector<2x16x16xf32>
    %295 = arith.addf %282, %294 : vector<2x16x16xf32>
    %c4_93 = arith.constant 4 : index
    %c1_94 = arith.constant 1 : index
    %c0_95 = arith.constant 0 : index
    %296 = vector.load %arg4[%c4_93, %c1_94, %c0_95] : memref<6x18x18xf32, #tpu.memory_space<vmem>>, vector<2x16x16xf32>
    %c33 = arith.constant 33 : index
    %297 = memref.load %arg0[%c33] : memref<243xf32, #tpu.memory_space<smem>>
    %298 = vector.broadcast %297 : f32 to vector<2x16x16xf32>
    %299 = arith.mulf %298, %296 : vector<2x16x16xf32>
    %300 = arith.addf %287, %299 : vector<2x16x16xf32>
    %c34 = arith.constant 34 : index
    %301 = memref.load %arg0[%c34] : memref<243xf32, #tpu.memory_space<smem>>
    %302 = vector.broadcast %301 : f32 to vector<2x16x16xf32>
    %303 = arith.mulf %302, %296 : vector<2x16x16xf32>
    %304 = arith.addf %291, %303 : vector<2x16x16xf32>
    %c35 = arith.constant 35 : index
    %305 = memref.load %arg0[%c35] : memref<243xf32, #tpu.memory_space<smem>>
    %306 = vector.broadcast %305 : f32 to vector<2x16x16xf32>
    %307 = arith.mulf %306, %296 : vector<2x16x16xf32>
    %308 = arith.addf %295, %307 : vector<2x16x16xf32>
    %c4_96 = arith.constant 4 : index
    %c1_97 = arith.constant 1 : index
    %c1_98 = arith.constant 1 : index
    %309 = vector.load %arg4[%c4_96, %c1_97, %c1_98] : memref<6x18x18xf32, #tpu.memory_space<vmem>>, vector<2x16x16xf32>
    %c42 = arith.constant 42 : index
    %310 = memref.load %arg0[%c42] : memref<243xf32, #tpu.memory_space<smem>>
    %311 = vector.broadcast %310 : f32 to vector<2x16x16xf32>
    %312 = arith.mulf %311, %309 : vector<2x16x16xf32>
    %313 = arith.addf %300, %312 : vector<2x16x16xf32>
    %c43 = arith.constant 43 : index
    %314 = memref.load %arg0[%c43] : memref<243xf32, #tpu.memory_space<smem>>
    %315 = vector.broadcast %314 : f32 to vector<2x16x16xf32>
    %316 = arith.mulf %315, %309 : vector<2x16x16xf32>
    %317 = arith.addf %304, %316 : vector<2x16x16xf32>
    %c44 = arith.constant 44 : index
    %318 = memref.load %arg0[%c44] : memref<243xf32, #tpu.memory_space<smem>>
    %319 = vector.broadcast %318 : f32 to vector<2x16x16xf32>
    %320 = arith.mulf %319, %309 : vector<2x16x16xf32>
    %321 = arith.addf %308, %320 : vector<2x16x16xf32>
    %c4_99 = arith.constant 4 : index
    %c1_100 = arith.constant 1 : index
    %c2_101 = arith.constant 2 : index
    %322 = vector.load %arg4[%c4_99, %c1_100, %c2_101] : memref<6x18x18xf32, #tpu.memory_space<vmem>>, vector<2x16x16xf32>
    %c51 = arith.constant 51 : index
    %323 = memref.load %arg0[%c51] : memref<243xf32, #tpu.memory_space<smem>>
    %324 = vector.broadcast %323 : f32 to vector<2x16x16xf32>
    %325 = arith.mulf %324, %322 : vector<2x16x16xf32>
    %326 = arith.addf %313, %325 : vector<2x16x16xf32>
    %c52 = arith.constant 52 : index
    %327 = memref.load %arg0[%c52] : memref<243xf32, #tpu.memory_space<smem>>
    %328 = vector.broadcast %327 : f32 to vector<2x16x16xf32>
    %329 = arith.mulf %328, %322 : vector<2x16x16xf32>
    %330 = arith.addf %317, %329 : vector<2x16x16xf32>
    %c53 = arith.constant 53 : index
    %331 = memref.load %arg0[%c53] : memref<243xf32, #tpu.memory_space<smem>>
    %332 = vector.broadcast %331 : f32 to vector<2x16x16xf32>
    %333 = arith.mulf %332, %322 : vector<2x16x16xf32>
    %334 = arith.addf %321, %333 : vector<2x16x16xf32>
    %c4_102 = arith.constant 4 : index
    %c2_103 = arith.constant 2 : index
    %c0_104 = arith.constant 0 : index
    %335 = vector.load %arg4[%c4_102, %c2_103, %c0_104] : memref<6x18x18xf32, #tpu.memory_space<vmem>>, vector<2x16x16xf32>
    %c60 = arith.constant 60 : index
    %336 = memref.load %arg0[%c60] : memref<243xf32, #tpu.memory_space<smem>>
    %337 = vector.broadcast %336 : f32 to vector<2x16x16xf32>
    %338 = arith.mulf %337, %335 : vector<2x16x16xf32>
    %339 = arith.addf %326, %338 : vector<2x16x16xf32>
    %c61 = arith.constant 61 : index
    %340 = memref.load %arg0[%c61] : memref<243xf32, #tpu.memory_space<smem>>
    %341 = vector.broadcast %340 : f32 to vector<2x16x16xf32>
    %342 = arith.mulf %341, %335 : vector<2x16x16xf32>
    %343 = arith.addf %330, %342 : vector<2x16x16xf32>
    %c62 = arith.constant 62 : index
    %344 = memref.load %arg0[%c62] : memref<243xf32, #tpu.memory_space<smem>>
    %345 = vector.broadcast %344 : f32 to vector<2x16x16xf32>
    %346 = arith.mulf %345, %335 : vector<2x16x16xf32>
    %347 = arith.addf %334, %346 : vector<2x16x16xf32>
    %c4_105 = arith.constant 4 : index
    %c2_106 = arith.constant 2 : index
    %c1_107 = arith.constant 1 : index
    %348 = vector.load %arg4[%c4_105, %c2_106, %c1_107] : memref<6x18x18xf32, #tpu.memory_space<vmem>>, vector<2x16x16xf32>
    %c69 = arith.constant 69 : index
    %349 = memref.load %arg0[%c69] : memref<243xf32, #tpu.memory_space<smem>>
    %350 = vector.broadcast %349 : f32 to vector<2x16x16xf32>
    %351 = arith.mulf %350, %348 : vector<2x16x16xf32>
    %352 = arith.addf %339, %351 : vector<2x16x16xf32>
    %c70 = arith.constant 70 : index
    %353 = memref.load %arg0[%c70] : memref<243xf32, #tpu.memory_space<smem>>
    %354 = vector.broadcast %353 : f32 to vector<2x16x16xf32>
    %355 = arith.mulf %354, %348 : vector<2x16x16xf32>
    %356 = arith.addf %343, %355 : vector<2x16x16xf32>
    %c71 = arith.constant 71 : index
    %357 = memref.load %arg0[%c71] : memref<243xf32, #tpu.memory_space<smem>>
    %358 = vector.broadcast %357 : f32 to vector<2x16x16xf32>
    %359 = arith.mulf %358, %348 : vector<2x16x16xf32>
    %360 = arith.addf %347, %359 : vector<2x16x16xf32>
    %c4_108 = arith.constant 4 : index
    %c2_109 = arith.constant 2 : index
    %c2_110 = arith.constant 2 : index
    %361 = vector.load %arg4[%c4_108, %c2_109, %c2_110] : memref<6x18x18xf32, #tpu.memory_space<vmem>>, vector<2x16x16xf32>
    %c78 = arith.constant 78 : index
    %362 = memref.load %arg0[%c78] : memref<243xf32, #tpu.memory_space<smem>>
    %363 = vector.broadcast %362 : f32 to vector<2x16x16xf32>
    %364 = arith.mulf %363, %361 : vector<2x16x16xf32>
    %365 = arith.addf %352, %364 : vector<2x16x16xf32>
    %c79 = arith.constant 79 : index
    %366 = memref.load %arg0[%c79] : memref<243xf32, #tpu.memory_space<smem>>
    %367 = vector.broadcast %366 : f32 to vector<2x16x16xf32>
    %368 = arith.mulf %367, %361 : vector<2x16x16xf32>
    %369 = arith.addf %356, %368 : vector<2x16x16xf32>
    %c80 = arith.constant 80 : index
    %370 = memref.load %arg0[%c80] : memref<243xf32, #tpu.memory_space<smem>>
    %371 = vector.broadcast %370 : f32 to vector<2x16x16xf32>
    %372 = arith.mulf %371, %361 : vector<2x16x16xf32>
    %373 = arith.addf %360, %372 : vector<2x16x16xf32>
    %cst_111 = arith.constant 0.000000e+00 : f32
    %374 = vector.broadcast %cst_111 : f32 to vector<2x16x16xf32>
    %375 = arith.maximumf %365, %374 : vector<2x16x16xf32>
    %cst_112 = arith.constant 0.000000e+00 : f32
    %376 = vector.broadcast %cst_112 : f32 to vector<2x16x16xf32>
    %377 = arith.maximumf %369, %376 : vector<2x16x16xf32>
    %cst_113 = arith.constant 0.000000e+00 : f32
    %378 = vector.broadcast %cst_113 : f32 to vector<2x16x16xf32>
    %379 = arith.maximumf %373, %378 : vector<2x16x16xf32>
    %cst_114 = arith.constant 0.000000e+00 : f32
    %380 = vector.broadcast %cst_114 : f32 to vector<6x18x18xf32>
    %c0_115 = arith.constant 0 : index
    %c0_116 = arith.constant 0 : index
    %c0_117 = arith.constant 0 : index
    %381 = vector.load %arg4[%c0_115, %c0_116, %c0_117] : memref<6x18x18xf32, #tpu.memory_space<vmem>>, vector<6x18x18xf32>
    tpu.vector_store %arg4[%c0_115, %c0_116, %c0_117], %380 {strides = array<i32>} : memref<6x18x18xf32, #tpu.memory_space<vmem>>, vector<6x18x18xf32>,
    %c0_118 = arith.constant 0 : index
    %c1_119 = arith.constant 1 : index
    %c1_120 = arith.constant 1 : index
    %382 = vector.load %arg4[%c0_118, %c1_119, %c1_120] : memref<6x18x18xf32, #tpu.memory_space<vmem>>, vector<2x16x16xf32>
    tpu.vector_store %arg4[%c0_118, %c1_119, %c1_120], %375 {strides = array<i32>} : memref<6x18x18xf32, #tpu.memory_space<vmem>>, vector<2x16x16xf32>,
    %c2_121 = arith.constant 2 : index
    %c1_122 = arith.constant 1 : index
    %c1_123 = arith.constant 1 : index
    %383 = vector.load %arg4[%c2_121, %c1_122, %c1_123] : memref<6x18x18xf32, #tpu.memory_space<vmem>>, vector<2x16x16xf32>
    tpu.vector_store %arg4[%c2_121, %c1_122, %c1_123], %377 {strides = array<i32>} : memref<6x18x18xf32, #tpu.memory_space<vmem>>, vector<2x16x16xf32>,
    %c4_124 = arith.constant 4 : index
    %c1_125 = arith.constant 1 : index
    %c1_126 = arith.constant 1 : index
    %384 = vector.load %arg4[%c4_124, %c1_125, %c1_126] : memref<6x18x18xf32, #tpu.memory_space<vmem>>, vector<2x16x16xf32>
    tpu.vector_store %arg4[%c4_124, %c1_125, %c1_126], %379 {strides = array<i32>} : memref<6x18x18xf32, #tpu.memory_space<vmem>>, vector<2x16x16xf32>,
    %cst_127 = arith.constant 0.000000e+00 : f32
    %385 = vector.broadcast %cst_127 : f32 to vector<2x16x16xf32>
    %c3_128 = arith.constant 3 : index
    %386 = memref.load %arg1[%c3_128] : memref<9xf32, #tpu.memory_space<smem>>
    %387 = vector.broadcast %386 : f32 to vector<2x16x16xf32>
    %388 = arith.addf %385, %387 : vector<2x16x16xf32>
    %cst_129 = arith.constant 0.000000e+00 : f32
    %389 = vector.broadcast %cst_129 : f32 to vector<2x16x16xf32>
    %c4_130 = arith.constant 4 : index
    %390 = memref.load %arg1[%c4_130] : memref<9xf32, #tpu.memory_space<smem>>
    %391 = vector.broadcast %390 : f32 to vector<2x16x16xf32>
    %392 = arith.addf %389, %391 : vector<2x16x16xf32>
    %cst_131 = arith.constant 0.000000e+00 : f32
    %393 = vector.broadcast %cst_131 : f32 to vector<2x16x16xf32>
    %c5_132 = arith.constant 5 : index
    %394 = memref.load %arg1[%c5_132] : memref<9xf32, #tpu.memory_space<smem>>
    %395 = vector.broadcast %394 : f32 to vector<2x16x16xf32>
    %396 = arith.addf %393, %395 : vector<2x16x16xf32>
    %c0_133 = arith.constant 0 : index
    %c0_134 = arith.constant 0 : index
    %c0_135 = arith.constant 0 : index
    %397 = vector.load %arg4[%c0_133, %c0_134, %c0_135] : memref<6x18x18xf32, #tpu.memory_space<vmem>>, vector<2x16x16xf32>
    %c81 = arith.constant 81 : index
    %398 = memref.load %arg0[%c81] : memref<243xf32, #tpu.memory_space<smem>>
    %399 = vector.broadcast %398 : f32 to vector<2x16x16xf32>
    %400 = arith.mulf %399, %397 : vector<2x16x16xf32>
    %401 = arith.addf %388, %400 : vector<2x16x16xf32>
    %c82 = arith.constant 82 : index
    %402 = memref.load %arg0[%c82] : memref<243xf32, #tpu.memory_space<smem>>
    %403 = vector.broadcast %402 : f32 to vector<2x16x16xf32>
    %404 = arith.mulf %403, %397 : vector<2x16x16xf32>
    %405 = arith.addf %392, %404 : vector<2x16x16xf32>
    %c83 = arith.constant 83 : index
    %406 = memref.load %arg0[%c83] : memref<243xf32, #tpu.memory_space<smem>>
    %407 = vector.broadcast %406 : f32 to vector<2x16x16xf32>
    %408 = arith.mulf %407, %397 : vector<2x16x16xf32>
    %409 = arith.addf %396, %408 : vector<2x16x16xf32>
    %c0_136 = arith.constant 0 : index
    %c0_137 = arith.constant 0 : index
    %c1_138 = arith.constant 1 : index
    %410 = vector.load %arg4[%c0_136, %c0_137, %c1_138] : memref<6x18x18xf32, #tpu.memory_space<vmem>>, vector<2x16x16xf32>
    %c90 = arith.constant 90 : index
    %411 = memref.load %arg0[%c90] : memref<243xf32, #tpu.memory_space<smem>>
    %412 = vector.broadcast %411 : f32 to vector<2x16x16xf32>
    %413 = arith.mulf %412, %410 : vector<2x16x16xf32>
    %414 = arith.addf %401, %413 : vector<2x16x16xf32>
    %c91 = arith.constant 91 : index
    %415 = memref.load %arg0[%c91] : memref<243xf32, #tpu.memory_space<smem>>
    %416 = vector.broadcast %415 : f32 to vector<2x16x16xf32>
    %417 = arith.mulf %416, %410 : vector<2x16x16xf32>
    %418 = arith.addf %405, %417 : vector<2x16x16xf32>
    %c92 = arith.constant 92 : index
    %419 = memref.load %arg0[%c92] : memref<243xf32, #tpu.memory_space<smem>>
    %420 = vector.broadcast %419 : f32 to vector<2x16x16xf32>
    %421 = arith.mulf %420, %410 : vector<2x16x16xf32>
    %422 = arith.addf %409, %421 : vector<2x16x16xf32>
    %c0_139 = arith.constant 0 : index
    %c0_140 = arith.constant 0 : index
    %c2_141 = arith.constant 2 : index
    %423 = vector.load %arg4[%c0_139, %c0_140, %c2_141] : memref<6x18x18xf32, #tpu.memory_space<vmem>>, vector<2x16x16xf32>
    %c99 = arith.constant 99 : index
    %424 = memref.load %arg0[%c99] : memref<243xf32, #tpu.memory_space<smem>>
    %425 = vector.broadcast %424 : f32 to vector<2x16x16xf32>
    %426 = arith.mulf %425, %423 : vector<2x16x16xf32>
    %427 = arith.addf %414, %426 : vector<2x16x16xf32>
    %c100 = arith.constant 100 : index
    %428 = memref.load %arg0[%c100] : memref<243xf32, #tpu.memory_space<smem>>
    %429 = vector.broadcast %428 : f32 to vector<2x16x16xf32>
    %430 = arith.mulf %429, %423 : vector<2x16x16xf32>
    %431 = arith.addf %418, %430 : vector<2x16x16xf32>
    %c101 = arith.constant 101 : index
    %432 = memref.load %arg0[%c101] : memref<243xf32, #tpu.memory_space<smem>>
    %433 = vector.broadcast %432 : f32 to vector<2x16x16xf32>
    %434 = arith.mulf %433, %423 : vector<2x16x16xf32>
    %435 = arith.addf %422, %434 : vector<2x16x16xf32>
    %c0_142 = arith.constant 0 : index
    %c1_143 = arith.constant 1 : index
    %c0_144 = arith.constant 0 : index
    %436 = vector.load %arg4[%c0_142, %c1_143, %c0_144] : memref<6x18x18xf32, #tpu.memory_space<vmem>>, vector<2x16x16xf32>
    %c108 = arith.constant 108 : index
    %437 = memref.load %arg0[%c108] : memref<243xf32, #tpu.memory_space<smem>>
    %438 = vector.broadcast %437 : f32 to vector<2x16x16xf32>
    %439 = arith.mulf %438, %436 : vector<2x16x16xf32>
    %440 = arith.addf %427, %439 : vector<2x16x16xf32>
    %c109 = arith.constant 109 : index
    %441 = memref.load %arg0[%c109] : memref<243xf32, #tpu.memory_space<smem>>
    %442 = vector.broadcast %441 : f32 to vector<2x16x16xf32>
    %443 = arith.mulf %442, %436 : vector<2x16x16xf32>
    %444 = arith.addf %431, %443 : vector<2x16x16xf32>
    %c110 = arith.constant 110 : index
    %445 = memref.load %arg0[%c110] : memref<243xf32, #tpu.memory_space<smem>>
    %446 = vector.broadcast %445 : f32 to vector<2x16x16xf32>
    %447 = arith.mulf %446, %436 : vector<2x16x16xf32>
    %448 = arith.addf %435, %447 : vector<2x16x16xf32>
    %c0_145 = arith.constant 0 : index
    %c1_146 = arith.constant 1 : index
    %c1_147 = arith.constant 1 : index
    %449 = vector.load %arg4[%c0_145, %c1_146, %c1_147] : memref<6x18x18xf32, #tpu.memory_space<vmem>>, vector<2x16x16xf32>
    %c117 = arith.constant 117 : index
    %450 = memref.load %arg0[%c117] : memref<243xf32, #tpu.memory_space<smem>>
    %451 = vector.broadcast %450 : f32 to vector<2x16x16xf32>
    %452 = arith.mulf %451, %449 : vector<2x16x16xf32>
    %453 = arith.addf %440, %452 : vector<2x16x16xf32>
    %c118 = arith.constant 118 : index
    %454 = memref.load %arg0[%c118] : memref<243xf32, #tpu.memory_space<smem>>
    %455 = vector.broadcast %454 : f32 to vector<2x16x16xf32>
    %456 = arith.mulf %455, %449 : vector<2x16x16xf32>
    %457 = arith.addf %444, %456 : vector<2x16x16xf32>
    %c119 = arith.constant 119 : index
    %458 = memref.load %arg0[%c119] : memref<243xf32, #tpu.memory_space<smem>>
    %459 = vector.broadcast %458 : f32 to vector<2x16x16xf32>
    %460 = arith.mulf %459, %449 : vector<2x16x16xf32>
    %461 = arith.addf %448, %460 : vector<2x16x16xf32>
    %c0_148 = arith.constant 0 : index
    %c1_149 = arith.constant 1 : index
    %c2_150 = arith.constant 2 : index
    %462 = vector.load %arg4[%c0_148, %c1_149, %c2_150] : memref<6x18x18xf32, #tpu.memory_space<vmem>>, vector<2x16x16xf32>
    %c126 = arith.constant 126 : index
    %463 = memref.load %arg0[%c126] : memref<243xf32, #tpu.memory_space<smem>>
    %464 = vector.broadcast %463 : f32 to vector<2x16x16xf32>
    %465 = arith.mulf %464, %462 : vector<2x16x16xf32>
    %466 = arith.addf %453, %465 : vector<2x16x16xf32>
    %c127 = arith.constant 127 : index
    %467 = memref.load %arg0[%c127] : memref<243xf32, #tpu.memory_space<smem>>
    %468 = vector.broadcast %467 : f32 to vector<2x16x16xf32>
    %469 = arith.mulf %468, %462 : vector<2x16x16xf32>
    %470 = arith.addf %457, %469 : vector<2x16x16xf32>
    %c128 = arith.constant 128 : index
    %471 = memref.load %arg0[%c128] : memref<243xf32, #tpu.memory_space<smem>>
    %472 = vector.broadcast %471 : f32 to vector<2x16x16xf32>
    %473 = arith.mulf %472, %462 : vector<2x16x16xf32>
    %474 = arith.addf %461, %473 : vector<2x16x16xf32>
    %c0_151 = arith.constant 0 : index
    %c2_152 = arith.constant 2 : index
    %c0_153 = arith.constant 0 : index
    %475 = vector.load %arg4[%c0_151, %c2_152, %c0_153] : memref<6x18x18xf32, #tpu.memory_space<vmem>>, vector<2x16x16xf32>
    %c135 = arith.constant 135 : index
    %476 = memref.load %arg0[%c135] : memref<243xf32, #tpu.memory_space<smem>>
    %477 = vector.broadcast %476 : f32 to vector<2x16x16xf32>
    %478 = arith.mulf %477, %475 : vector<2x16x16xf32>
    %479 = arith.addf %466, %478 : vector<2x16x16xf32>
    %c136 = arith.constant 136 : index
    %480 = memref.load %arg0[%c136] : memref<243xf32, #tpu.memory_space<smem>>
    %481 = vector.broadcast %480 : f32 to vector<2x16x16xf32>
    %482 = arith.mulf %481, %475 : vector<2x16x16xf32>
    %483 = arith.addf %470, %482 : vector<2x16x16xf32>
    %c137 = arith.constant 137 : index
    %484 = memref.load %arg0[%c137] : memref<243xf32, #tpu.memory_space<smem>>
    %485 = vector.broadcast %484 : f32 to vector<2x16x16xf32>
    %486 = arith.mulf %485, %475 : vector<2x16x16xf32>
    %487 = arith.addf %474, %486 : vector<2x16x16xf32>
    %c0_154 = arith.constant 0 : index
    %c2_155 = arith.constant 2 : index
    %c1_156 = arith.constant 1 : index
    %488 = vector.load %arg4[%c0_154, %c2_155, %c1_156] : memref<6x18x18xf32, #tpu.memory_space<vmem>>, vector<2x16x16xf32>
    %c144 = arith.constant 144 : index
    %489 = memref.load %arg0[%c144] : memref<243xf32, #tpu.memory_space<smem>>
    %490 = vector.broadcast %489 : f32 to vector<2x16x16xf32>
    %491 = arith.mulf %490, %488 : vector<2x16x16xf32>
    %492 = arith.addf %479, %491 : vector<2x16x16xf32>
    %c145 = arith.constant 145 : index
    %493 = memref.load %arg0[%c145] : memref<243xf32, #tpu.memory_space<smem>>
    %494 = vector.broadcast %493 : f32 to vector<2x16x16xf32>
    %495 = arith.mulf %494, %488 : vector<2x16x16xf32>
    %496 = arith.addf %483, %495 : vector<2x16x16xf32>
    %c146 = arith.constant 146 : index
    %497 = memref.load %arg0[%c146] : memref<243xf32, #tpu.memory_space<smem>>
    %498 = vector.broadcast %497 : f32 to vector<2x16x16xf32>
    %499 = arith.mulf %498, %488 : vector<2x16x16xf32>
    %500 = arith.addf %487, %499 : vector<2x16x16xf32>
    %c0_157 = arith.constant 0 : index
    %c2_158 = arith.constant 2 : index
    %c2_159 = arith.constant 2 : index
    %501 = vector.load %arg4[%c0_157, %c2_158, %c2_159] : memref<6x18x18xf32, #tpu.memory_space<vmem>>, vector<2x16x16xf32>
    %c153 = arith.constant 153 : index
    %502 = memref.load %arg0[%c153] : memref<243xf32, #tpu.memory_space<smem>>
    %503 = vector.broadcast %502 : f32 to vector<2x16x16xf32>
    %504 = arith.mulf %503, %501 : vector<2x16x16xf32>
    %505 = arith.addf %492, %504 : vector<2x16x16xf32>
    %c154 = arith.constant 154 : index
    %506 = memref.load %arg0[%c154] : memref<243xf32, #tpu.memory_space<smem>>
    %507 = vector.broadcast %506 : f32 to vector<2x16x16xf32>
    %508 = arith.mulf %507, %501 : vector<2x16x16xf32>
    %509 = arith.addf %496, %508 : vector<2x16x16xf32>
    %c155 = arith.constant 155 : index
    %510 = memref.load %arg0[%c155] : memref<243xf32, #tpu.memory_space<smem>>
    %511 = vector.broadcast %510 : f32 to vector<2x16x16xf32>
    %512 = arith.mulf %511, %501 : vector<2x16x16xf32>
    %513 = arith.addf %500, %512 : vector<2x16x16xf32>
    %c2_160 = arith.constant 2 : index
    %c0_161 = arith.constant 0 : index
    %c0_162 = arith.constant 0 : index
    %514 = vector.load %arg4[%c2_160, %c0_161, %c0_162] : memref<6x18x18xf32, #tpu.memory_space<vmem>>, vector<2x16x16xf32>
    %c84 = arith.constant 84 : index
    %515 = memref.load %arg0[%c84] : memref<243xf32, #tpu.memory_space<smem>>
    %516 = vector.broadcast %515 : f32 to vector<2x16x16xf32>
    %517 = arith.mulf %516, %514 : vector<2x16x16xf32>
    %518 = arith.addf %505, %517 : vector<2x16x16xf32>
    %c85 = arith.constant 85 : index
    %519 = memref.load %arg0[%c85] : memref<243xf32, #tpu.memory_space<smem>>
    %520 = vector.broadcast %519 : f32 to vector<2x16x16xf32>
    %521 = arith.mulf %520, %514 : vector<2x16x16xf32>
    %522 = arith.addf %509, %521 : vector<2x16x16xf32>
    %c86 = arith.constant 86 : index
    %523 = memref.load %arg0[%c86] : memref<243xf32, #tpu.memory_space<smem>>
    %524 = vector.broadcast %523 : f32 to vector<2x16x16xf32>
    %525 = arith.mulf %524, %514 : vector<2x16x16xf32>
    %526 = arith.addf %513, %525 : vector<2x16x16xf32>
    %c2_163 = arith.constant 2 : index
    %c0_164 = arith.constant 0 : index
    %c1_165 = arith.constant 1 : index
    %527 = vector.load %arg4[%c2_163, %c0_164, %c1_165] : memref<6x18x18xf32, #tpu.memory_space<vmem>>, vector<2x16x16xf32>
    %c93 = arith.constant 93 : index
    %528 = memref.load %arg0[%c93] : memref<243xf32, #tpu.memory_space<smem>>
    %529 = vector.broadcast %528 : f32 to vector<2x16x16xf32>
    %530 = arith.mulf %529, %527 : vector<2x16x16xf32>
    %531 = arith.addf %518, %530 : vector<2x16x16xf32>
    %c94 = arith.constant 94 : index
    %532 = memref.load %arg0[%c94] : memref<243xf32, #tpu.memory_space<smem>>
    %533 = vector.broadcast %532 : f32 to vector<2x16x16xf32>
    %534 = arith.mulf %533, %527 : vector<2x16x16xf32>
    %535 = arith.addf %522, %534 : vector<2x16x16xf32>
    %c95 = arith.constant 95 : index
    %536 = memref.load %arg0[%c95] : memref<243xf32, #tpu.memory_space<smem>>
    %537 = vector.broadcast %536 : f32 to vector<2x16x16xf32>
    %538 = arith.mulf %537, %527 : vector<2x16x16xf32>
    %539 = arith.addf %526, %538 : vector<2x16x16xf32>
    %c2_166 = arith.constant 2 : index
    %c0_167 = arith.constant 0 : index
    %c2_168 = arith.constant 2 : index
    %540 = vector.load %arg4[%c2_166, %c0_167, %c2_168] : memref<6x18x18xf32, #tpu.memory_space<vmem>>, vector<2x16x16xf32>
    %c102 = arith.constant 102 : index
    %541 = memref.load %arg0[%c102] : memref<243xf32, #tpu.memory_space<smem>>
    %542 = vector.broadcast %541 : f32 to vector<2x16x16xf32>
    %543 = arith.mulf %542, %540 : vector<2x16x16xf32>
    %544 = arith.addf %531, %543 : vector<2x16x16xf32>
    %c103 = arith.constant 103 : index
    %545 = memref.load %arg0[%c103] : memref<243xf32, #tpu.memory_space<smem>>
    %546 = vector.broadcast %545 : f32 to vector<2x16x16xf32>
    %547 = arith.mulf %546, %540 : vector<2x16x16xf32>
    %548 = arith.addf %535, %547 : vector<2x16x16xf32>
    %c104 = arith.constant 104 : index
    %549 = memref.load %arg0[%c104] : memref<243xf32, #tpu.memory_space<smem>>
    %550 = vector.broadcast %549 : f32 to vector<2x16x16xf32>
    %551 = arith.mulf %550, %540 : vector<2x16x16xf32>
    %552 = arith.addf %539, %551 : vector<2x16x16xf32>
    %c2_169 = arith.constant 2 : index
    %c1_170 = arith.constant 1 : index
    %c0_171 = arith.constant 0 : index
    %553 = vector.load %arg4[%c2_169, %c1_170, %c0_171] : memref<6x18x18xf32, #tpu.memory_space<vmem>>, vector<2x16x16xf32>
    %c111 = arith.constant 111 : index
    %554 = memref.load %arg0[%c111] : memref<243xf32, #tpu.memory_space<smem>>
    %555 = vector.broadcast %554 : f32 to vector<2x16x16xf32>
    %556 = arith.mulf %555, %553 : vector<2x16x16xf32>
    %557 = arith.addf %544, %556 : vector<2x16x16xf32>
    %c112 = arith.constant 112 : index
    %558 = memref.load %arg0[%c112] : memref<243xf32, #tpu.memory_space<smem>>
    %559 = vector.broadcast %558 : f32 to vector<2x16x16xf32>
    %560 = arith.mulf %559, %553 : vector<2x16x16xf32>
    %561 = arith.addf %548, %560 : vector<2x16x16xf32>
    %c113 = arith.constant 113 : index
    %562 = memref.load %arg0[%c113] : memref<243xf32, #tpu.memory_space<smem>>
    %563 = vector.broadcast %562 : f32 to vector<2x16x16xf32>
    %564 = arith.mulf %563, %553 : vector<2x16x16xf32>
    %565 = arith.addf %552, %564 : vector<2x16x16xf32>
    %c2_172 = arith.constant 2 : index
    %c1_173 = arith.constant 1 : index
    %c1_174 = arith.constant 1 : index
    %566 = vector.load %arg4[%c2_172, %c1_173, %c1_174] : memref<6x18x18xf32, #tpu.memory_space<vmem>>, vector<2x16x16xf32>
    %c120 = arith.constant 120 : index
    %567 = memref.load %arg0[%c120] : memref<243xf32, #tpu.memory_space<smem>>
    %568 = vector.broadcast %567 : f32 to vector<2x16x16xf32>
    %569 = arith.mulf %568, %566 : vector<2x16x16xf32>
    %570 = arith.addf %557, %569 : vector<2x16x16xf32>
    %c121 = arith.constant 121 : index
    %571 = memref.load %arg0[%c121] : memref<243xf32, #tpu.memory_space<smem>>
    %572 = vector.broadcast %571 : f32 to vector<2x16x16xf32>
    %573 = arith.mulf %572, %566 : vector<2x16x16xf32>
    %574 = arith.addf %561, %573 : vector<2x16x16xf32>
    %c122 = arith.constant 122 : index
    %575 = memref.load %arg0[%c122] : memref<243xf32, #tpu.memory_space<smem>>
    %576 = vector.broadcast %575 : f32 to vector<2x16x16xf32>
    %577 = arith.mulf %576, %566 : vector<2x16x16xf32>
    %578 = arith.addf %565, %577 : vector<2x16x16xf32>
    %c2_175 = arith.constant 2 : index
    %c1_176 = arith.constant 1 : index
    %c2_177 = arith.constant 2 : index
    %579 = vector.load %arg4[%c2_175, %c1_176, %c2_177] : memref<6x18x18xf32, #tpu.memory_space<vmem>>, vector<2x16x16xf32>
    %c129 = arith.constant 129 : index
    %580 = memref.load %arg0[%c129] : memref<243xf32, #tpu.memory_space<smem>>
    %581 = vector.broadcast %580 : f32 to vector<2x16x16xf32>
    %582 = arith.mulf %581, %579 : vector<2x16x16xf32>
    %583 = arith.addf %570, %582 : vector<2x16x16xf32>
    %c130 = arith.constant 130 : index
    %584 = memref.load %arg0[%c130] : memref<243xf32, #tpu.memory_space<smem>>
    %585 = vector.broadcast %584 : f32 to vector<2x16x16xf32>
    %586 = arith.mulf %585, %579 : vector<2x16x16xf32>
    %587 = arith.addf %574, %586 : vector<2x16x16xf32>
    %c131 = arith.constant 131 : index
    %588 = memref.load %arg0[%c131] : memref<243xf32, #tpu.memory_space<smem>>
    %589 = vector.broadcast %588 : f32 to vector<2x16x16xf32>
    %590 = arith.mulf %589, %579 : vector<2x16x16xf32>
    %591 = arith.addf %578, %590 : vector<2x16x16xf32>
    %c2_178 = arith.constant 2 : index
    %c2_179 = arith.constant 2 : index
    %c0_180 = arith.constant 0 : index
    %592 = vector.load %arg4[%c2_178, %c2_179, %c0_180] : memref<6x18x18xf32, #tpu.memory_space<vmem>>, vector<2x16x16xf32>
    %c138 = arith.constant 138 : index
    %593 = memref.load %arg0[%c138] : memref<243xf32, #tpu.memory_space<smem>>
    %594 = vector.broadcast %593 : f32 to vector<2x16x16xf32>
    %595 = arith.mulf %594, %592 : vector<2x16x16xf32>
    %596 = arith.addf %583, %595 : vector<2x16x16xf32>
    %c139 = arith.constant 139 : index
    %597 = memref.load %arg0[%c139] : memref<243xf32, #tpu.memory_space<smem>>
    %598 = vector.broadcast %597 : f32 to vector<2x16x16xf32>
    %599 = arith.mulf %598, %592 : vector<2x16x16xf32>
    %600 = arith.addf %587, %599 : vector<2x16x16xf32>
    %c140 = arith.constant 140 : index
    %601 = memref.load %arg0[%c140] : memref<243xf32, #tpu.memory_space<smem>>
    %602 = vector.broadcast %601 : f32 to vector<2x16x16xf32>
    %603 = arith.mulf %602, %592 : vector<2x16x16xf32>
    %604 = arith.addf %591, %603 : vector<2x16x16xf32>
    %c2_181 = arith.constant 2 : index
    %c2_182 = arith.constant 2 : index
    %c1_183 = arith.constant 1 : index
    %605 = vector.load %arg4[%c2_181, %c2_182, %c1_183] : memref<6x18x18xf32, #tpu.memory_space<vmem>>, vector<2x16x16xf32>
    %c147 = arith.constant 147 : index
    %606 = memref.load %arg0[%c147] : memref<243xf32, #tpu.memory_space<smem>>
    %607 = vector.broadcast %606 : f32 to vector<2x16x16xf32>
    %608 = arith.mulf %607, %605 : vector<2x16x16xf32>
    %609 = arith.addf %596, %608 : vector<2x16x16xf32>
    %c148 = arith.constant 148 : index
    %610 = memref.load %arg0[%c148] : memref<243xf32, #tpu.memory_space<smem>>
    %611 = vector.broadcast %610 : f32 to vector<2x16x16xf32>
    %612 = arith.mulf %611, %605 : vector<2x16x16xf32>
    %613 = arith.addf %600, %612 : vector<2x16x16xf32>
    %c149 = arith.constant 149 : index
    %614 = memref.load %arg0[%c149] : memref<243xf32, #tpu.memory_space<smem>>
    %615 = vector.broadcast %614 : f32 to vector<2x16x16xf32>
    %616 = arith.mulf %615, %605 : vector<2x16x16xf32>
    %617 = arith.addf %604, %616 : vector<2x16x16xf32>
    %c2_184 = arith.constant 2 : index
    %c2_185 = arith.constant 2 : index
    %c2_186 = arith.constant 2 : index
    %618 = vector.load %arg4[%c2_184, %c2_185, %c2_186] : memref<6x18x18xf32, #tpu.memory_space<vmem>>, vector<2x16x16xf32>
    %c156 = arith.constant 156 : index
    %619 = memref.load %arg0[%c156] : memref<243xf32, #tpu.memory_space<smem>>
    %620 = vector.broadcast %619 : f32 to vector<2x16x16xf32>
    %621 = arith.mulf %620, %618 : vector<2x16x16xf32>
    %622 = arith.addf %609, %621 : vector<2x16x16xf32>
    %c157 = arith.constant 157 : index
    %623 = memref.load %arg0[%c157] : memref<243xf32, #tpu.memory_space<smem>>
    %624 = vector.broadcast %623 : f32 to vector<2x16x16xf32>
    %625 = arith.mulf %624, %618 : vector<2x16x16xf32>
    %626 = arith.addf %613, %625 : vector<2x16x16xf32>
    %c158 = arith.constant 158 : index
    %627 = memref.load %arg0[%c158] : memref<243xf32, #tpu.memory_space<smem>>
    %628 = vector.broadcast %627 : f32 to vector<2x16x16xf32>
    %629 = arith.mulf %628, %618 : vector<2x16x16xf32>
    %630 = arith.addf %617, %629 : vector<2x16x16xf32>
    %c4_187 = arith.constant 4 : index
    %c0_188 = arith.constant 0 : index
    %c0_189 = arith.constant 0 : index
    %631 = vector.load %arg4[%c4_187, %c0_188, %c0_189] : memref<6x18x18xf32, #tpu.memory_space<vmem>>, vector<2x16x16xf32>
    %c87 = arith.constant 87 : index
    %632 = memref.load %arg0[%c87] : memref<243xf32, #tpu.memory_space<smem>>
    %633 = vector.broadcast %632 : f32 to vector<2x16x16xf32>
    %634 = arith.mulf %633, %631 : vector<2x16x16xf32>
    %635 = arith.addf %622, %634 : vector<2x16x16xf32>
    %c88 = arith.constant 88 : index
    %636 = memref.load %arg0[%c88] : memref<243xf32, #tpu.memory_space<smem>>
    %637 = vector.broadcast %636 : f32 to vector<2x16x16xf32>
    %638 = arith.mulf %637, %631 : vector<2x16x16xf32>
    %639 = arith.addf %626, %638 : vector<2x16x16xf32>
    %c89 = arith.constant 89 : index
    %640 = memref.load %arg0[%c89] : memref<243xf32, #tpu.memory_space<smem>>
    %641 = vector.broadcast %640 : f32 to vector<2x16x16xf32>
    %642 = arith.mulf %641, %631 : vector<2x16x16xf32>
    %643 = arith.addf %630, %642 : vector<2x16x16xf32>
    %c4_190 = arith.constant 4 : index
    %c0_191 = arith.constant 0 : index
    %c1_192 = arith.constant 1 : index
    %644 = vector.load %arg4[%c4_190, %c0_191, %c1_192] : memref<6x18x18xf32, #tpu.memory_space<vmem>>, vector<2x16x16xf32>
    %c96 = arith.constant 96 : index
    %645 = memref.load %arg0[%c96] : memref<243xf32, #tpu.memory_space<smem>>
    %646 = vector.broadcast %645 : f32 to vector<2x16x16xf32>
    %647 = arith.mulf %646, %644 : vector<2x16x16xf32>
    %648 = arith.addf %635, %647 : vector<2x16x16xf32>
    %c97 = arith.constant 97 : index
    %649 = memref.load %arg0[%c97] : memref<243xf32, #tpu.memory_space<smem>>
    %650 = vector.broadcast %649 : f32 to vector<2x16x16xf32>
    %651 = arith.mulf %650, %644 : vector<2x16x16xf32>
    %652 = arith.addf %639, %651 : vector<2x16x16xf32>
    %c98 = arith.constant 98 : index
    %653 = memref.load %arg0[%c98] : memref<243xf32, #tpu.memory_space<smem>>
    %654 = vector.broadcast %653 : f32 to vector<2x16x16xf32>
    %655 = arith.mulf %654, %644 : vector<2x16x16xf32>
    %656 = arith.addf %643, %655 : vector<2x16x16xf32>
    %c4_193 = arith.constant 4 : index
    %c0_194 = arith.constant 0 : index
    %c2_195 = arith.constant 2 : index
    %657 = vector.load %arg4[%c4_193, %c0_194, %c2_195] : memref<6x18x18xf32, #tpu.memory_space<vmem>>, vector<2x16x16xf32>
    %c105 = arith.constant 105 : index
    %658 = memref.load %arg0[%c105] : memref<243xf32, #tpu.memory_space<smem>>
    %659 = vector.broadcast %658 : f32 to vector<2x16x16xf32>
    %660 = arith.mulf %659, %657 : vector<2x16x16xf32>
    %661 = arith.addf %648, %660 : vector<2x16x16xf32>
    %c106 = arith.constant 106 : index
    %662 = memref.load %arg0[%c106] : memref<243xf32, #tpu.memory_space<smem>>
    %663 = vector.broadcast %662 : f32 to vector<2x16x16xf32>
    %664 = arith.mulf %663, %657 : vector<2x16x16xf32>
    %665 = arith.addf %652, %664 : vector<2x16x16xf32>
    %c107 = arith.constant 107 : index
    %666 = memref.load %arg0[%c107] : memref<243xf32, #tpu.memory_space<smem>>
    %667 = vector.broadcast %666 : f32 to vector<2x16x16xf32>
    %668 = arith.mulf %667, %657 : vector<2x16x16xf32>
    %669 = arith.addf %656, %668 : vector<2x16x16xf32>
    %c4_196 = arith.constant 4 : index
    %c1_197 = arith.constant 1 : index
    %c0_198 = arith.constant 0 : index
    %670 = vector.load %arg4[%c4_196, %c1_197, %c0_198] : memref<6x18x18xf32, #tpu.memory_space<vmem>>, vector<2x16x16xf32>
    %c114 = arith.constant 114 : index
    %671 = memref.load %arg0[%c114] : memref<243xf32, #tpu.memory_space<smem>>
    %672 = vector.broadcast %671 : f32 to vector<2x16x16xf32>
    %673 = arith.mulf %672, %670 : vector<2x16x16xf32>
    %674 = arith.addf %661, %673 : vector<2x16x16xf32>
    %c115 = arith.constant 115 : index
    %675 = memref.load %arg0[%c115] : memref<243xf32, #tpu.memory_space<smem>>
    %676 = vector.broadcast %675 : f32 to vector<2x16x16xf32>
    %677 = arith.mulf %676, %670 : vector<2x16x16xf32>
    %678 = arith.addf %665, %677 : vector<2x16x16xf32>
    %c116 = arith.constant 116 : index
    %679 = memref.load %arg0[%c116] : memref<243xf32, #tpu.memory_space<smem>>
    %680 = vector.broadcast %679 : f32 to vector<2x16x16xf32>
    %681 = arith.mulf %680, %670 : vector<2x16x16xf32>
    %682 = arith.addf %669, %681 : vector<2x16x16xf32>
    %c4_199 = arith.constant 4 : index
    %c1_200 = arith.constant 1 : index
    %c1_201 = arith.constant 1 : index
    %683 = vector.load %arg4[%c4_199, %c1_200, %c1_201] : memref<6x18x18xf32, #tpu.memory_space<vmem>>, vector<2x16x16xf32>
    %c123 = arith.constant 123 : index
    %684 = memref.load %arg0[%c123] : memref<243xf32, #tpu.memory_space<smem>>
    %685 = vector.broadcast %684 : f32 to vector<2x16x16xf32>
    %686 = arith.mulf %685, %683 : vector<2x16x16xf32>
    %687 = arith.addf %674, %686 : vector<2x16x16xf32>
    %c124 = arith.constant 124 : index
    %688 = memref.load %arg0[%c124] : memref<243xf32, #tpu.memory_space<smem>>
    %689 = vector.broadcast %688 : f32 to vector<2x16x16xf32>
    %690 = arith.mulf %689, %683 : vector<2x16x16xf32>
    %691 = arith.addf %678, %690 : vector<2x16x16xf32>
    %c125 = arith.constant 125 : index
    %692 = memref.load %arg0[%c125] : memref<243xf32, #tpu.memory_space<smem>>
    %693 = vector.broadcast %692 : f32 to vector<2x16x16xf32>
    %694 = arith.mulf %693, %683 : vector<2x16x16xf32>
    %695 = arith.addf %682, %694 : vector<2x16x16xf32>
    %c4_202 = arith.constant 4 : index
    %c1_203 = arith.constant 1 : index
    %c2_204 = arith.constant 2 : index
    %696 = vector.load %arg4[%c4_202, %c1_203, %c2_204] : memref<6x18x18xf32, #tpu.memory_space<vmem>>, vector<2x16x16xf32>
    %c132 = arith.constant 132 : index
    %697 = memref.load %arg0[%c132] : memref<243xf32, #tpu.memory_space<smem>>
    %698 = vector.broadcast %697 : f32 to vector<2x16x16xf32>
    %699 = arith.mulf %698, %696 : vector<2x16x16xf32>
    %700 = arith.addf %687, %699 : vector<2x16x16xf32>
    %c133 = arith.constant 133 : index
    %701 = memref.load %arg0[%c133] : memref<243xf32, #tpu.memory_space<smem>>
    %702 = vector.broadcast %701 : f32 to vector<2x16x16xf32>
    %703 = arith.mulf %702, %696 : vector<2x16x16xf32>
    %704 = arith.addf %691, %703 : vector<2x16x16xf32>
    %c134 = arith.constant 134 : index
    %705 = memref.load %arg0[%c134] : memref<243xf32, #tpu.memory_space<smem>>
    %706 = vector.broadcast %705 : f32 to vector<2x16x16xf32>
    %707 = arith.mulf %706, %696 : vector<2x16x16xf32>
    %708 = arith.addf %695, %707 : vector<2x16x16xf32>
    %c4_205 = arith.constant 4 : index
    %c2_206 = arith.constant 2 : index
    %c0_207 = arith.constant 0 : index
    %709 = vector.load %arg4[%c4_205, %c2_206, %c0_207] : memref<6x18x18xf32, #tpu.memory_space<vmem>>, vector<2x16x16xf32>
    %c141 = arith.constant 141 : index
    %710 = memref.load %arg0[%c141] : memref<243xf32, #tpu.memory_space<smem>>
    %711 = vector.broadcast %710 : f32 to vector<2x16x16xf32>
    %712 = arith.mulf %711, %709 : vector<2x16x16xf32>
    %713 = arith.addf %700, %712 : vector<2x16x16xf32>
    %c142 = arith.constant 142 : index
    %714 = memref.load %arg0[%c142] : memref<243xf32, #tpu.memory_space<smem>>
    %715 = vector.broadcast %714 : f32 to vector<2x16x16xf32>
    %716 = arith.mulf %715, %709 : vector<2x16x16xf32>
    %717 = arith.addf %704, %716 : vector<2x16x16xf32>
    %c143 = arith.constant 143 : index
    %718 = memref.load %arg0[%c143] : memref<243xf32, #tpu.memory_space<smem>>
    %719 = vector.broadcast %718 : f32 to vector<2x16x16xf32>
    %720 = arith.mulf %719, %709 : vector<2x16x16xf32>
    %721 = arith.addf %708, %720 : vector<2x16x16xf32>
    %c4_208 = arith.constant 4 : index
    %c2_209 = arith.constant 2 : index
    %c1_210 = arith.constant 1 : index
    %722 = vector.load %arg4[%c4_208, %c2_209, %c1_210] : memref<6x18x18xf32, #tpu.memory_space<vmem>>, vector<2x16x16xf32>
    %c150 = arith.constant 150 : index
    %723 = memref.load %arg0[%c150] : memref<243xf32, #tpu.memory_space<smem>>
    %724 = vector.broadcast %723 : f32 to vector<2x16x16xf32>
    %725 = arith.mulf %724, %722 : vector<2x16x16xf32>
    %726 = arith.addf %713, %725 : vector<2x16x16xf32>
    %c151 = arith.constant 151 : index
    %727 = memref.load %arg0[%c151] : memref<243xf32, #tpu.memory_space<smem>>
    %728 = vector.broadcast %727 : f32 to vector<2x16x16xf32>
    %729 = arith.mulf %728, %722 : vector<2x16x16xf32>
    %730 = arith.addf %717, %729 : vector<2x16x16xf32>
    %c152 = arith.constant 152 : index
    %731 = memref.load %arg0[%c152] : memref<243xf32, #tpu.memory_space<smem>>
    %732 = vector.broadcast %731 : f32 to vector<2x16x16xf32>
    %733 = arith.mulf %732, %722 : vector<2x16x16xf32>
    %734 = arith.addf %721, %733 : vector<2x16x16xf32>
    %c4_211 = arith.constant 4 : index
    %c2_212 = arith.constant 2 : index
    %c2_213 = arith.constant 2 : index
    %735 = vector.load %arg4[%c4_211, %c2_212, %c2_213] : memref<6x18x18xf32, #tpu.memory_space<vmem>>, vector<2x16x16xf32>
    %c159 = arith.constant 159 : index
    %736 = memref.load %arg0[%c159] : memref<243xf32, #tpu.memory_space<smem>>
    %737 = vector.broadcast %736 : f32 to vector<2x16x16xf32>
    %738 = arith.mulf %737, %735 : vector<2x16x16xf32>
    %739 = arith.addf %726, %738 : vector<2x16x16xf32>
    %c160 = arith.constant 160 : index
    %740 = memref.load %arg0[%c160] : memref<243xf32, #tpu.memory_space<smem>>
    %741 = vector.broadcast %740 : f32 to vector<2x16x16xf32>
    %742 = arith.mulf %741, %735 : vector<2x16x16xf32>
    %743 = arith.addf %730, %742 : vector<2x16x16xf32>
    %c161 = arith.constant 161 : index
    %744 = memref.load %arg0[%c161] : memref<243xf32, #tpu.memory_space<smem>>
    %745 = vector.broadcast %744 : f32 to vector<2x16x16xf32>
    %746 = arith.mulf %745, %735 : vector<2x16x16xf32>
    %747 = arith.addf %734, %746 : vector<2x16x16xf32>
    %cst_214 = arith.constant 0.000000e+00 : f32
    %748 = vector.broadcast %cst_214 : f32 to vector<2x16x16xf32>
    %749 = arith.maximumf %739, %748 : vector<2x16x16xf32>
    %cst_215 = arith.constant 0.000000e+00 : f32
    %750 = vector.broadcast %cst_215 : f32 to vector<2x16x16xf32>
    %751 = arith.maximumf %743, %750 : vector<2x16x16xf32>
    %cst_216 = arith.constant 0.000000e+00 : f32
    %752 = vector.broadcast %cst_216 : f32 to vector<2x16x16xf32>
    %753 = arith.maximumf %747, %752 : vector<2x16x16xf32>
    %cst_217 = arith.constant 0.000000e+00 : f32
    %754 = vector.broadcast %cst_217 : f32 to vector<6x18x18xf32>
    %c0_218 = arith.constant 0 : index
    %c0_219 = arith.constant 0 : index
    %c0_220 = arith.constant 0 : index
    %755 = vector.load %arg4[%c0_218, %c0_219, %c0_220] : memref<6x18x18xf32, #tpu.memory_space<vmem>>, vector<6x18x18xf32>
    tpu.vector_store %arg4[%c0_218, %c0_219, %c0_220], %754 {strides = array<i32>} : memref<6x18x18xf32, #tpu.memory_space<vmem>>, vector<6x18x18xf32>,
    %c0_221 = arith.constant 0 : index
    %c1_222 = arith.constant 1 : index
    %c1_223 = arith.constant 1 : index
    %756 = vector.load %arg4[%c0_221, %c1_222, %c1_223] : memref<6x18x18xf32, #tpu.memory_space<vmem>>, vector<2x16x16xf32>
    tpu.vector_store %arg4[%c0_221, %c1_222, %c1_223], %749 {strides = array<i32>} : memref<6x18x18xf32, #tpu.memory_space<vmem>>, vector<2x16x16xf32>,
    %c2_224 = arith.constant 2 : index
    %c1_225 = arith.constant 1 : index
    %c1_226 = arith.constant 1 : index
    %757 = vector.load %arg4[%c2_224, %c1_225, %c1_226] : memref<6x18x18xf32, #tpu.memory_space<vmem>>, vector<2x16x16xf32>
    tpu.vector_store %arg4[%c2_224, %c1_225, %c1_226], %751 {strides = array<i32>} : memref<6x18x18xf32, #tpu.memory_space<vmem>>, vector<2x16x16xf32>,
    %c4_227 = arith.constant 4 : index
    %c1_228 = arith.constant 1 : index
    %c1_229 = arith.constant 1 : index
    %758 = vector.load %arg4[%c4_227, %c1_228, %c1_229] : memref<6x18x18xf32, #tpu.memory_space<vmem>>, vector<2x16x16xf32>
    tpu.vector_store %arg4[%c4_227, %c1_228, %c1_229], %753 {strides = array<i32>} : memref<6x18x18xf32, #tpu.memory_space<vmem>>, vector<2x16x16xf32>,
    %cst_230 = arith.constant 0.000000e+00 : f32
    %759 = vector.broadcast %cst_230 : f32 to vector<2x16x16xf32>
    %c6_231 = arith.constant 6 : index
    %760 = memref.load %arg1[%c6_231] : memref<9xf32, #tpu.memory_space<smem>>
    %761 = vector.broadcast %760 : f32 to vector<2x16x16xf32>
    %762 = arith.addf %759, %761 : vector<2x16x16xf32>
    %cst_232 = arith.constant 0.000000e+00 : f32
    %763 = vector.broadcast %cst_232 : f32 to vector<2x16x16xf32>
    %c7_233 = arith.constant 7 : index
    %764 = memref.load %arg1[%c7_233] : memref<9xf32, #tpu.memory_space<smem>>
    %765 = vector.broadcast %764 : f32 to vector<2x16x16xf32>
    %766 = arith.addf %763, %765 : vector<2x16x16xf32>
    %cst_234 = arith.constant 0.000000e+00 : f32
    %767 = vector.broadcast %cst_234 : f32 to vector<2x16x16xf32>
    %c8_235 = arith.constant 8 : index
    %768 = memref.load %arg1[%c8_235] : memref<9xf32, #tpu.memory_space<smem>>
    %769 = vector.broadcast %768 : f32 to vector<2x16x16xf32>
    %770 = arith.addf %767, %769 : vector<2x16x16xf32>
    %c0_236 = arith.constant 0 : index
    %c0_237 = arith.constant 0 : index
    %c0_238 = arith.constant 0 : index
    %771 = vector.load %arg4[%c0_236, %c0_237, %c0_238] : memref<6x18x18xf32, #tpu.memory_space<vmem>>, vector<2x16x16xf32>
    %c162 = arith.constant 162 : index
    %772 = memref.load %arg0[%c162] : memref<243xf32, #tpu.memory_space<smem>>
    %773 = vector.broadcast %772 : f32 to vector<2x16x16xf32>
    %774 = arith.mulf %773, %771 : vector<2x16x16xf32>
    %775 = arith.addf %762, %774 : vector<2x16x16xf32>
    %c163 = arith.constant 163 : index
    %776 = memref.load %arg0[%c163] : memref<243xf32, #tpu.memory_space<smem>>
    %777 = vector.broadcast %776 : f32 to vector<2x16x16xf32>
    %778 = arith.mulf %777, %771 : vector<2x16x16xf32>
    %779 = arith.addf %766, %778 : vector<2x16x16xf32>
    %c164 = arith.constant 164 : index
    %780 = memref.load %arg0[%c164] : memref<243xf32, #tpu.memory_space<smem>>
    %781 = vector.broadcast %780 : f32 to vector<2x16x16xf32>
    %782 = arith.mulf %781, %771 : vector<2x16x16xf32>
    %783 = arith.addf %770, %782 : vector<2x16x16xf32>
    %c0_239 = arith.constant 0 : index
    %c0_240 = arith.constant 0 : index
    %c1_241 = arith.constant 1 : index
    %784 = vector.load %arg4[%c0_239, %c0_240, %c1_241] : memref<6x18x18xf32, #tpu.memory_space<vmem>>, vector<2x16x16xf32>
    %c171 = arith.constant 171 : index
    %785 = memref.load %arg0[%c171] : memref<243xf32, #tpu.memory_space<smem>>
    %786 = vector.broadcast %785 : f32 to vector<2x16x16xf32>
    %787 = arith.mulf %786, %784 : vector<2x16x16xf32>
    %788 = arith.addf %775, %787 : vector<2x16x16xf32>
    %c172 = arith.constant 172 : index
    %789 = memref.load %arg0[%c172] : memref<243xf32, #tpu.memory_space<smem>>
    %790 = vector.broadcast %789 : f32 to vector<2x16x16xf32>
    %791 = arith.mulf %790, %784 : vector<2x16x16xf32>
    %792 = arith.addf %779, %791 : vector<2x16x16xf32>
    %c173 = arith.constant 173 : index
    %793 = memref.load %arg0[%c173] : memref<243xf32, #tpu.memory_space<smem>>
    %794 = vector.broadcast %793 : f32 to vector<2x16x16xf32>
    %795 = arith.mulf %794, %784 : vector<2x16x16xf32>
    %796 = arith.addf %783, %795 : vector<2x16x16xf32>
    %c0_242 = arith.constant 0 : index
    %c0_243 = arith.constant 0 : index
    %c2_244 = arith.constant 2 : index
    %797 = vector.load %arg4[%c0_242, %c0_243, %c2_244] : memref<6x18x18xf32, #tpu.memory_space<vmem>>, vector<2x16x16xf32>
    %c180 = arith.constant 180 : index
    %798 = memref.load %arg0[%c180] : memref<243xf32, #tpu.memory_space<smem>>
    %799 = vector.broadcast %798 : f32 to vector<2x16x16xf32>
    %800 = arith.mulf %799, %797 : vector<2x16x16xf32>
    %801 = arith.addf %788, %800 : vector<2x16x16xf32>
    %c181 = arith.constant 181 : index
    %802 = memref.load %arg0[%c181] : memref<243xf32, #tpu.memory_space<smem>>
    %803 = vector.broadcast %802 : f32 to vector<2x16x16xf32>
    %804 = arith.mulf %803, %797 : vector<2x16x16xf32>
    %805 = arith.addf %792, %804 : vector<2x16x16xf32>
    %c182 = arith.constant 182 : index
    %806 = memref.load %arg0[%c182] : memref<243xf32, #tpu.memory_space<smem>>
    %807 = vector.broadcast %806 : f32 to vector<2x16x16xf32>
    %808 = arith.mulf %807, %797 : vector<2x16x16xf32>
    %809 = arith.addf %796, %808 : vector<2x16x16xf32>
    %c0_245 = arith.constant 0 : index
    %c1_246 = arith.constant 1 : index
    %c0_247 = arith.constant 0 : index
    %810 = vector.load %arg4[%c0_245, %c1_246, %c0_247] : memref<6x18x18xf32, #tpu.memory_space<vmem>>, vector<2x16x16xf32>
    %c189 = arith.constant 189 : index
    %811 = memref.load %arg0[%c189] : memref<243xf32, #tpu.memory_space<smem>>
    %812 = vector.broadcast %811 : f32 to vector<2x16x16xf32>
    %813 = arith.mulf %812, %810 : vector<2x16x16xf32>
    %814 = arith.addf %801, %813 : vector<2x16x16xf32>
    %c190 = arith.constant 190 : index
    %815 = memref.load %arg0[%c190] : memref<243xf32, #tpu.memory_space<smem>>
    %816 = vector.broadcast %815 : f32 to vector<2x16x16xf32>
    %817 = arith.mulf %816, %810 : vector<2x16x16xf32>
    %818 = arith.addf %805, %817 : vector<2x16x16xf32>
    %c191 = arith.constant 191 : index
    %819 = memref.load %arg0[%c191] : memref<243xf32, #tpu.memory_space<smem>>
    %820 = vector.broadcast %819 : f32 to vector<2x16x16xf32>
    %821 = arith.mulf %820, %810 : vector<2x16x16xf32>
    %822 = arith.addf %809, %821 : vector<2x16x16xf32>
    %c0_248 = arith.constant 0 : index
    %c1_249 = arith.constant 1 : index
    %c1_250 = arith.constant 1 : index
    %823 = vector.load %arg4[%c0_248, %c1_249, %c1_250] : memref<6x18x18xf32, #tpu.memory_space<vmem>>, vector<2x16x16xf32>
    %c198 = arith.constant 198 : index
    %824 = memref.load %arg0[%c198] : memref<243xf32, #tpu.memory_space<smem>>
    %825 = vector.broadcast %824 : f32 to vector<2x16x16xf32>
    %826 = arith.mulf %825, %823 : vector<2x16x16xf32>
    %827 = arith.addf %814, %826 : vector<2x16x16xf32>
    %c199 = arith.constant 199 : index
    %828 = memref.load %arg0[%c199] : memref<243xf32, #tpu.memory_space<smem>>
    %829 = vector.broadcast %828 : f32 to vector<2x16x16xf32>
    %830 = arith.mulf %829, %823 : vector<2x16x16xf32>
    %831 = arith.addf %818, %830 : vector<2x16x16xf32>
    %c200 = arith.constant 200 : index
    %832 = memref.load %arg0[%c200] : memref<243xf32, #tpu.memory_space<smem>>
    %833 = vector.broadcast %832 : f32 to vector<2x16x16xf32>
    %834 = arith.mulf %833, %823 : vector<2x16x16xf32>
    %835 = arith.addf %822, %834 : vector<2x16x16xf32>
    %c0_251 = arith.constant 0 : index
    %c1_252 = arith.constant 1 : index
    %c2_253 = arith.constant 2 : index
    %836 = vector.load %arg4[%c0_251, %c1_252, %c2_253] : memref<6x18x18xf32, #tpu.memory_space<vmem>>, vector<2x16x16xf32>
    %c207 = arith.constant 207 : index
    %837 = memref.load %arg0[%c207] : memref<243xf32, #tpu.memory_space<smem>>
    %838 = vector.broadcast %837 : f32 to vector<2x16x16xf32>
    %839 = arith.mulf %838, %836 : vector<2x16x16xf32>
    %840 = arith.addf %827, %839 : vector<2x16x16xf32>
    %c208 = arith.constant 208 : index
    %841 = memref.load %arg0[%c208] : memref<243xf32, #tpu.memory_space<smem>>
    %842 = vector.broadcast %841 : f32 to vector<2x16x16xf32>
    %843 = arith.mulf %842, %836 : vector<2x16x16xf32>
    %844 = arith.addf %831, %843 : vector<2x16x16xf32>
    %c209 = arith.constant 209 : index
    %845 = memref.load %arg0[%c209] : memref<243xf32, #tpu.memory_space<smem>>
    %846 = vector.broadcast %845 : f32 to vector<2x16x16xf32>
    %847 = arith.mulf %846, %836 : vector<2x16x16xf32>
    %848 = arith.addf %835, %847 : vector<2x16x16xf32>
    %c0_254 = arith.constant 0 : index
    %c2_255 = arith.constant 2 : index
    %c0_256 = arith.constant 0 : index
    %849 = vector.load %arg4[%c0_254, %c2_255, %c0_256] : memref<6x18x18xf32, #tpu.memory_space<vmem>>, vector<2x16x16xf32>
    %c216 = arith.constant 216 : index
    %850 = memref.load %arg0[%c216] : memref<243xf32, #tpu.memory_space<smem>>
    %851 = vector.broadcast %850 : f32 to vector<2x16x16xf32>
    %852 = arith.mulf %851, %849 : vector<2x16x16xf32>
    %853 = arith.addf %840, %852 : vector<2x16x16xf32>
    %c217 = arith.constant 217 : index
    %854 = memref.load %arg0[%c217] : memref<243xf32, #tpu.memory_space<smem>>
    %855 = vector.broadcast %854 : f32 to vector<2x16x16xf32>
    %856 = arith.mulf %855, %849 : vector<2x16x16xf32>
    %857 = arith.addf %844, %856 : vector<2x16x16xf32>
    %c218 = arith.constant 218 : index
    %858 = memref.load %arg0[%c218] : memref<243xf32, #tpu.memory_space<smem>>
    %859 = vector.broadcast %858 : f32 to vector<2x16x16xf32>
    %860 = arith.mulf %859, %849 : vector<2x16x16xf32>
    %861 = arith.addf %848, %860 : vector<2x16x16xf32>
    %c0_257 = arith.constant 0 : index
    %c2_258 = arith.constant 2 : index
    %c1_259 = arith.constant 1 : index
    %862 = vector.load %arg4[%c0_257, %c2_258, %c1_259] : memref<6x18x18xf32, #tpu.memory_space<vmem>>, vector<2x16x16xf32>
    %c225 = arith.constant 225 : index
    %863 = memref.load %arg0[%c225] : memref<243xf32, #tpu.memory_space<smem>>
    %864 = vector.broadcast %863 : f32 to vector<2x16x16xf32>
    %865 = arith.mulf %864, %862 : vector<2x16x16xf32>
    %866 = arith.addf %853, %865 : vector<2x16x16xf32>
    %c226 = arith.constant 226 : index
    %867 = memref.load %arg0[%c226] : memref<243xf32, #tpu.memory_space<smem>>
    %868 = vector.broadcast %867 : f32 to vector<2x16x16xf32>
    %869 = arith.mulf %868, %862 : vector<2x16x16xf32>
    %870 = arith.addf %857, %869 : vector<2x16x16xf32>
    %c227 = arith.constant 227 : index
    %871 = memref.load %arg0[%c227] : memref<243xf32, #tpu.memory_space<smem>>
    %872 = vector.broadcast %871 : f32 to vector<2x16x16xf32>
    %873 = arith.mulf %872, %862 : vector<2x16x16xf32>
    %874 = arith.addf %861, %873 : vector<2x16x16xf32>
    %c0_260 = arith.constant 0 : index
    %c2_261 = arith.constant 2 : index
    %c2_262 = arith.constant 2 : index
    %875 = vector.load %arg4[%c0_260, %c2_261, %c2_262] : memref<6x18x18xf32, #tpu.memory_space<vmem>>, vector<2x16x16xf32>
    %c234 = arith.constant 234 : index
    %876 = memref.load %arg0[%c234] : memref<243xf32, #tpu.memory_space<smem>>
    %877 = vector.broadcast %876 : f32 to vector<2x16x16xf32>
    %878 = arith.mulf %877, %875 : vector<2x16x16xf32>
    %879 = arith.addf %866, %878 : vector<2x16x16xf32>
    %c235 = arith.constant 235 : index
    %880 = memref.load %arg0[%c235] : memref<243xf32, #tpu.memory_space<smem>>
    %881 = vector.broadcast %880 : f32 to vector<2x16x16xf32>
    %882 = arith.mulf %881, %875 : vector<2x16x16xf32>
    %883 = arith.addf %870, %882 : vector<2x16x16xf32>
    %c236 = arith.constant 236 : index
    %884 = memref.load %arg0[%c236] : memref<243xf32, #tpu.memory_space<smem>>
    %885 = vector.broadcast %884 : f32 to vector<2x16x16xf32>
    %886 = arith.mulf %885, %875 : vector<2x16x16xf32>
    %887 = arith.addf %874, %886 : vector<2x16x16xf32>
    %c2_263 = arith.constant 2 : index
    %c0_264 = arith.constant 0 : index
    %c0_265 = arith.constant 0 : index
    %888 = vector.load %arg4[%c2_263, %c0_264, %c0_265] : memref<6x18x18xf32, #tpu.memory_space<vmem>>, vector<2x16x16xf32>
    %c165 = arith.constant 165 : index
    %889 = memref.load %arg0[%c165] : memref<243xf32, #tpu.memory_space<smem>>
    %890 = vector.broadcast %889 : f32 to vector<2x16x16xf32>
    %891 = arith.mulf %890, %888 : vector<2x16x16xf32>
    %892 = arith.addf %879, %891 : vector<2x16x16xf32>
    %c166 = arith.constant 166 : index
    %893 = memref.load %arg0[%c166] : memref<243xf32, #tpu.memory_space<smem>>
    %894 = vector.broadcast %893 : f32 to vector<2x16x16xf32>
    %895 = arith.mulf %894, %888 : vector<2x16x16xf32>
    %896 = arith.addf %883, %895 : vector<2x16x16xf32>
    %c167 = arith.constant 167 : index
    %897 = memref.load %arg0[%c167] : memref<243xf32, #tpu.memory_space<smem>>
    %898 = vector.broadcast %897 : f32 to vector<2x16x16xf32>
    %899 = arith.mulf %898, %888 : vector<2x16x16xf32>
    %900 = arith.addf %887, %899 : vector<2x16x16xf32>
    %c2_266 = arith.constant 2 : index
    %c0_267 = arith.constant 0 : index
    %c1_268 = arith.constant 1 : index
    %901 = vector.load %arg4[%c2_266, %c0_267, %c1_268] : memref<6x18x18xf32, #tpu.memory_space<vmem>>, vector<2x16x16xf32>
    %c174 = arith.constant 174 : index
    %902 = memref.load %arg0[%c174] : memref<243xf32, #tpu.memory_space<smem>>
    %903 = vector.broadcast %902 : f32 to vector<2x16x16xf32>
    %904 = arith.mulf %903, %901 : vector<2x16x16xf32>
    %905 = arith.addf %892, %904 : vector<2x16x16xf32>
    %c175 = arith.constant 175 : index
    %906 = memref.load %arg0[%c175] : memref<243xf32, #tpu.memory_space<smem>>
    %907 = vector.broadcast %906 : f32 to vector<2x16x16xf32>
    %908 = arith.mulf %907, %901 : vector<2x16x16xf32>
    %909 = arith.addf %896, %908 : vector<2x16x16xf32>
    %c176 = arith.constant 176 : index
    %910 = memref.load %arg0[%c176] : memref<243xf32, #tpu.memory_space<smem>>
    %911 = vector.broadcast %910 : f32 to vector<2x16x16xf32>
    %912 = arith.mulf %911, %901 : vector<2x16x16xf32>
    %913 = arith.addf %900, %912 : vector<2x16x16xf32>
    %c2_269 = arith.constant 2 : index
    %c0_270 = arith.constant 0 : index
    %c2_271 = arith.constant 2 : index
    %914 = vector.load %arg4[%c2_269, %c0_270, %c2_271] : memref<6x18x18xf32, #tpu.memory_space<vmem>>, vector<2x16x16xf32>
    %c183 = arith.constant 183 : index
    %915 = memref.load %arg0[%c183] : memref<243xf32, #tpu.memory_space<smem>>
    %916 = vector.broadcast %915 : f32 to vector<2x16x16xf32>
    %917 = arith.mulf %916, %914 : vector<2x16x16xf32>
    %918 = arith.addf %905, %917 : vector<2x16x16xf32>
    %c184 = arith.constant 184 : index
    %919 = memref.load %arg0[%c184] : memref<243xf32, #tpu.memory_space<smem>>
    %920 = vector.broadcast %919 : f32 to vector<2x16x16xf32>
    %921 = arith.mulf %920, %914 : vector<2x16x16xf32>
    %922 = arith.addf %909, %921 : vector<2x16x16xf32>
    %c185 = arith.constant 185 : index
    %923 = memref.load %arg0[%c185] : memref<243xf32, #tpu.memory_space<smem>>
    %924 = vector.broadcast %923 : f32 to vector<2x16x16xf32>
    %925 = arith.mulf %924, %914 : vector<2x16x16xf32>
    %926 = arith.addf %913, %925 : vector<2x16x16xf32>
    %c2_272 = arith.constant 2 : index
    %c1_273 = arith.constant 1 : index
    %c0_274 = arith.constant 0 : index
    %927 = vector.load %arg4[%c2_272, %c1_273, %c0_274] : memref<6x18x18xf32, #tpu.memory_space<vmem>>, vector<2x16x16xf32>
    %c192 = arith.constant 192 : index
    %928 = memref.load %arg0[%c192] : memref<243xf32, #tpu.memory_space<smem>>
    %929 = vector.broadcast %928 : f32 to vector<2x16x16xf32>
    %930 = arith.mulf %929, %927 : vector<2x16x16xf32>
    %931 = arith.addf %918, %930 : vector<2x16x16xf32>
    %c193 = arith.constant 193 : index
    %932 = memref.load %arg0[%c193] : memref<243xf32, #tpu.memory_space<smem>>
    %933 = vector.broadcast %932 : f32 to vector<2x16x16xf32>
    %934 = arith.mulf %933, %927 : vector<2x16x16xf32>
    %935 = arith.addf %922, %934 : vector<2x16x16xf32>
    %c194 = arith.constant 194 : index
    %936 = memref.load %arg0[%c194] : memref<243xf32, #tpu.memory_space<smem>>
    %937 = vector.broadcast %936 : f32 to vector<2x16x16xf32>
    %938 = arith.mulf %937, %927 : vector<2x16x16xf32>
    %939 = arith.addf %926, %938 : vector<2x16x16xf32>
    %c2_275 = arith.constant 2 : index
    %c1_276 = arith.constant 1 : index
    %c1_277 = arith.constant 1 : index
    %940 = vector.load %arg4[%c2_275, %c1_276, %c1_277] : memref<6x18x18xf32, #tpu.memory_space<vmem>>, vector<2x16x16xf32>
    %c201 = arith.constant 201 : index
    %941 = memref.load %arg0[%c201] : memref<243xf32, #tpu.memory_space<smem>>
    %942 = vector.broadcast %941 : f32 to vector<2x16x16xf32>
    %943 = arith.mulf %942, %940 : vector<2x16x16xf32>
    %944 = arith.addf %931, %943 : vector<2x16x16xf32>
    %c202 = arith.constant 202 : index
    %945 = memref.load %arg0[%c202] : memref<243xf32, #tpu.memory_space<smem>>
    %946 = vector.broadcast %945 : f32 to vector<2x16x16xf32>
    %947 = arith.mulf %946, %940 : vector<2x16x16xf32>
    %948 = arith.addf %935, %947 : vector<2x16x16xf32>
    %c203 = arith.constant 203 : index
    %949 = memref.load %arg0[%c203] : memref<243xf32, #tpu.memory_space<smem>>
    %950 = vector.broadcast %949 : f32 to vector<2x16x16xf32>
    %951 = arith.mulf %950, %940 : vector<2x16x16xf32>
    %952 = arith.addf %939, %951 : vector<2x16x16xf32>
    %c2_278 = arith.constant 2 : index
    %c1_279 = arith.constant 1 : index
    %c2_280 = arith.constant 2 : index
    %953 = vector.load %arg4[%c2_278, %c1_279, %c2_280] : memref<6x18x18xf32, #tpu.memory_space<vmem>>, vector<2x16x16xf32>
    %c210 = arith.constant 210 : index
    %954 = memref.load %arg0[%c210] : memref<243xf32, #tpu.memory_space<smem>>
    %955 = vector.broadcast %954 : f32 to vector<2x16x16xf32>
    %956 = arith.mulf %955, %953 : vector<2x16x16xf32>
    %957 = arith.addf %944, %956 : vector<2x16x16xf32>
    %c211 = arith.constant 211 : index
    %958 = memref.load %arg0[%c211] : memref<243xf32, #tpu.memory_space<smem>>
    %959 = vector.broadcast %958 : f32 to vector<2x16x16xf32>
    %960 = arith.mulf %959, %953 : vector<2x16x16xf32>
    %961 = arith.addf %948, %960 : vector<2x16x16xf32>
    %c212 = arith.constant 212 : index
    %962 = memref.load %arg0[%c212] : memref<243xf32, #tpu.memory_space<smem>>
    %963 = vector.broadcast %962 : f32 to vector<2x16x16xf32>
    %964 = arith.mulf %963, %953 : vector<2x16x16xf32>
    %965 = arith.addf %952, %964 : vector<2x16x16xf32>
    %c2_281 = arith.constant 2 : index
    %c2_282 = arith.constant 2 : index
    %c0_283 = arith.constant 0 : index
    %966 = vector.load %arg4[%c2_281, %c2_282, %c0_283] : memref<6x18x18xf32, #tpu.memory_space<vmem>>, vector<2x16x16xf32>
    %c219 = arith.constant 219 : index
    %967 = memref.load %arg0[%c219] : memref<243xf32, #tpu.memory_space<smem>>
    %968 = vector.broadcast %967 : f32 to vector<2x16x16xf32>
    %969 = arith.mulf %968, %966 : vector<2x16x16xf32>
    %970 = arith.addf %957, %969 : vector<2x16x16xf32>
    %c220 = arith.constant 220 : index
    %971 = memref.load %arg0[%c220] : memref<243xf32, #tpu.memory_space<smem>>
    %972 = vector.broadcast %971 : f32 to vector<2x16x16xf32>
    %973 = arith.mulf %972, %966 : vector<2x16x16xf32>
    %974 = arith.addf %961, %973 : vector<2x16x16xf32>
    %c221 = arith.constant 221 : index
    %975 = memref.load %arg0[%c221] : memref<243xf32, #tpu.memory_space<smem>>
    %976 = vector.broadcast %975 : f32 to vector<2x16x16xf32>
    %977 = arith.mulf %976, %966 : vector<2x16x16xf32>
    %978 = arith.addf %965, %977 : vector<2x16x16xf32>
    %c2_284 = arith.constant 2 : index
    %c2_285 = arith.constant 2 : index
    %c1_286 = arith.constant 1 : index
    %979 = vector.load %arg4[%c2_284, %c2_285, %c1_286] : memref<6x18x18xf32, #tpu.memory_space<vmem>>, vector<2x16x16xf32>
    %c228 = arith.constant 228 : index
    %980 = memref.load %arg0[%c228] : memref<243xf32, #tpu.memory_space<smem>>
    %981 = vector.broadcast %980 : f32 to vector<2x16x16xf32>
    %982 = arith.mulf %981, %979 : vector<2x16x16xf32>
    %983 = arith.addf %970, %982 : vector<2x16x16xf32>
    %c229 = arith.constant 229 : index
    %984 = memref.load %arg0[%c229] : memref<243xf32, #tpu.memory_space<smem>>
    %985 = vector.broadcast %984 : f32 to vector<2x16x16xf32>
    %986 = arith.mulf %985, %979 : vector<2x16x16xf32>
    %987 = arith.addf %974, %986 : vector<2x16x16xf32>
    %c230 = arith.constant 230 : index
    %988 = memref.load %arg0[%c230] : memref<243xf32, #tpu.memory_space<smem>>
    %989 = vector.broadcast %988 : f32 to vector<2x16x16xf32>
    %990 = arith.mulf %989, %979 : vector<2x16x16xf32>
    %991 = arith.addf %978, %990 : vector<2x16x16xf32>
    %c2_287 = arith.constant 2 : index
    %c2_288 = arith.constant 2 : index
    %c2_289 = arith.constant 2 : index
    %992 = vector.load %arg4[%c2_287, %c2_288, %c2_289] : memref<6x18x18xf32, #tpu.memory_space<vmem>>, vector<2x16x16xf32>
    %c237 = arith.constant 237 : index
    %993 = memref.load %arg0[%c237] : memref<243xf32, #tpu.memory_space<smem>>
    %994 = vector.broadcast %993 : f32 to vector<2x16x16xf32>
    %995 = arith.mulf %994, %992 : vector<2x16x16xf32>
    %996 = arith.addf %983, %995 : vector<2x16x16xf32>
    %c238 = arith.constant 238 : index
    %997 = memref.load %arg0[%c238] : memref<243xf32, #tpu.memory_space<smem>>
    %998 = vector.broadcast %997 : f32 to vector<2x16x16xf32>
    %999 = arith.mulf %998, %992 : vector<2x16x16xf32>
    %1000 = arith.addf %987, %999 : vector<2x16x16xf32>
    %c239 = arith.constant 239 : index
    %1001 = memref.load %arg0[%c239] : memref<243xf32, #tpu.memory_space<smem>>
    %1002 = vector.broadcast %1001 : f32 to vector<2x16x16xf32>
    %1003 = arith.mulf %1002, %992 : vector<2x16x16xf32>
    %1004 = arith.addf %991, %1003 : vector<2x16x16xf32>
    %c4_290 = arith.constant 4 : index
    %c0_291 = arith.constant 0 : index
    %c0_292 = arith.constant 0 : index
    %1005 = vector.load %arg4[%c4_290, %c0_291, %c0_292] : memref<6x18x18xf32, #tpu.memory_space<vmem>>, vector<2x16x16xf32>
    %c168 = arith.constant 168 : index
    %1006 = memref.load %arg0[%c168] : memref<243xf32, #tpu.memory_space<smem>>
    %1007 = vector.broadcast %1006 : f32 to vector<2x16x16xf32>
    %1008 = arith.mulf %1007, %1005 : vector<2x16x16xf32>
    %1009 = arith.addf %996, %1008 : vector<2x16x16xf32>
    %c169 = arith.constant 169 : index
    %1010 = memref.load %arg0[%c169] : memref<243xf32, #tpu.memory_space<smem>>
    %1011 = vector.broadcast %1010 : f32 to vector<2x16x16xf32>
    %1012 = arith.mulf %1011, %1005 : vector<2x16x16xf32>
    %1013 = arith.addf %1000, %1012 : vector<2x16x16xf32>
    %c170 = arith.constant 170 : index
    %1014 = memref.load %arg0[%c170] : memref<243xf32, #tpu.memory_space<smem>>
    %1015 = vector.broadcast %1014 : f32 to vector<2x16x16xf32>
    %1016 = arith.mulf %1015, %1005 : vector<2x16x16xf32>
    %1017 = arith.addf %1004, %1016 : vector<2x16x16xf32>
    %c4_293 = arith.constant 4 : index
    %c0_294 = arith.constant 0 : index
    %c1_295 = arith.constant 1 : index
    %1018 = vector.load %arg4[%c4_293, %c0_294, %c1_295] : memref<6x18x18xf32, #tpu.memory_space<vmem>>, vector<2x16x16xf32>
    %c177 = arith.constant 177 : index
    %1019 = memref.load %arg0[%c177] : memref<243xf32, #tpu.memory_space<smem>>
    %1020 = vector.broadcast %1019 : f32 to vector<2x16x16xf32>
    %1021 = arith.mulf %1020, %1018 : vector<2x16x16xf32>
    %1022 = arith.addf %1009, %1021 : vector<2x16x16xf32>
    %c178 = arith.constant 178 : index
    %1023 = memref.load %arg0[%c178] : memref<243xf32, #tpu.memory_space<smem>>
    %1024 = vector.broadcast %1023 : f32 to vector<2x16x16xf32>
    %1025 = arith.mulf %1024, %1018 : vector<2x16x16xf32>
    %1026 = arith.addf %1013, %1025 : vector<2x16x16xf32>
    %c179 = arith.constant 179 : index
    %1027 = memref.load %arg0[%c179] : memref<243xf32, #tpu.memory_space<smem>>
    %1028 = vector.broadcast %1027 : f32 to vector<2x16x16xf32>
    %1029 = arith.mulf %1028, %1018 : vector<2x16x16xf32>
    %1030 = arith.addf %1017, %1029 : vector<2x16x16xf32>
    %c4_296 = arith.constant 4 : index
    %c0_297 = arith.constant 0 : index
    %c2_298 = arith.constant 2 : index
    %1031 = vector.load %arg4[%c4_296, %c0_297, %c2_298] : memref<6x18x18xf32, #tpu.memory_space<vmem>>, vector<2x16x16xf32>
    %c186 = arith.constant 186 : index
    %1032 = memref.load %arg0[%c186] : memref<243xf32, #tpu.memory_space<smem>>
    %1033 = vector.broadcast %1032 : f32 to vector<2x16x16xf32>
    %1034 = arith.mulf %1033, %1031 : vector<2x16x16xf32>
    %1035 = arith.addf %1022, %1034 : vector<2x16x16xf32>
    %c187 = arith.constant 187 : index
    %1036 = memref.load %arg0[%c187] : memref<243xf32, #tpu.memory_space<smem>>
    %1037 = vector.broadcast %1036 : f32 to vector<2x16x16xf32>
    %1038 = arith.mulf %1037, %1031 : vector<2x16x16xf32>
    %1039 = arith.addf %1026, %1038 : vector<2x16x16xf32>
    %c188 = arith.constant 188 : index
    %1040 = memref.load %arg0[%c188] : memref<243xf32, #tpu.memory_space<smem>>
    %1041 = vector.broadcast %1040 : f32 to vector<2x16x16xf32>
    %1042 = arith.mulf %1041, %1031 : vector<2x16x16xf32>
    %1043 = arith.addf %1030, %1042 : vector<2x16x16xf32>
    %c4_299 = arith.constant 4 : index
    %c1_300 = arith.constant 1 : index
    %c0_301 = arith.constant 0 : index
    %1044 = vector.load %arg4[%c4_299, %c1_300, %c0_301] : memref<6x18x18xf32, #tpu.memory_space<vmem>>, vector<2x16x16xf32>
    %c195 = arith.constant 195 : index
    %1045 = memref.load %arg0[%c195] : memref<243xf32, #tpu.memory_space<smem>>
    %1046 = vector.broadcast %1045 : f32 to vector<2x16x16xf32>
    %1047 = arith.mulf %1046, %1044 : vector<2x16x16xf32>
    %1048 = arith.addf %1035, %1047 : vector<2x16x16xf32>
    %c196 = arith.constant 196 : index
    %1049 = memref.load %arg0[%c196] : memref<243xf32, #tpu.memory_space<smem>>
    %1050 = vector.broadcast %1049 : f32 to vector<2x16x16xf32>
    %1051 = arith.mulf %1050, %1044 : vector<2x16x16xf32>
    %1052 = arith.addf %1039, %1051 : vector<2x16x16xf32>
    %c197 = arith.constant 197 : index
    %1053 = memref.load %arg0[%c197] : memref<243xf32, #tpu.memory_space<smem>>
    %1054 = vector.broadcast %1053 : f32 to vector<2x16x16xf32>
    %1055 = arith.mulf %1054, %1044 : vector<2x16x16xf32>
    %1056 = arith.addf %1043, %1055 : vector<2x16x16xf32>
    %c4_302 = arith.constant 4 : index
    %c1_303 = arith.constant 1 : index
    %c1_304 = arith.constant 1 : index
    %1057 = vector.load %arg4[%c4_302, %c1_303, %c1_304] : memref<6x18x18xf32, #tpu.memory_space<vmem>>, vector<2x16x16xf32>
    %c204 = arith.constant 204 : index
    %1058 = memref.load %arg0[%c204] : memref<243xf32, #tpu.memory_space<smem>>
    %1059 = vector.broadcast %1058 : f32 to vector<2x16x16xf32>
    %1060 = arith.mulf %1059, %1057 : vector<2x16x16xf32>
    %1061 = arith.addf %1048, %1060 : vector<2x16x16xf32>
    %c205 = arith.constant 205 : index
    %1062 = memref.load %arg0[%c205] : memref<243xf32, #tpu.memory_space<smem>>
    %1063 = vector.broadcast %1062 : f32 to vector<2x16x16xf32>
    %1064 = arith.mulf %1063, %1057 : vector<2x16x16xf32>
    %1065 = arith.addf %1052, %1064 : vector<2x16x16xf32>
    %c206 = arith.constant 206 : index
    %1066 = memref.load %arg0[%c206] : memref<243xf32, #tpu.memory_space<smem>>
    %1067 = vector.broadcast %1066 : f32 to vector<2x16x16xf32>
    %1068 = arith.mulf %1067, %1057 : vector<2x16x16xf32>
    %1069 = arith.addf %1056, %1068 : vector<2x16x16xf32>
    %c4_305 = arith.constant 4 : index
    %c1_306 = arith.constant 1 : index
    %c2_307 = arith.constant 2 : index
    %1070 = vector.load %arg4[%c4_305, %c1_306, %c2_307] : memref<6x18x18xf32, #tpu.memory_space<vmem>>, vector<2x16x16xf32>
    %c213 = arith.constant 213 : index
    %1071 = memref.load %arg0[%c213] : memref<243xf32, #tpu.memory_space<smem>>
    %1072 = vector.broadcast %1071 : f32 to vector<2x16x16xf32>
    %1073 = arith.mulf %1072, %1070 : vector<2x16x16xf32>
    %1074 = arith.addf %1061, %1073 : vector<2x16x16xf32>
    %c214 = arith.constant 214 : index
    %1075 = memref.load %arg0[%c214] : memref<243xf32, #tpu.memory_space<smem>>
    %1076 = vector.broadcast %1075 : f32 to vector<2x16x16xf32>
    %1077 = arith.mulf %1076, %1070 : vector<2x16x16xf32>
    %1078 = arith.addf %1065, %1077 : vector<2x16x16xf32>
    %c215 = arith.constant 215 : index
    %1079 = memref.load %arg0[%c215] : memref<243xf32, #tpu.memory_space<smem>>
    %1080 = vector.broadcast %1079 : f32 to vector<2x16x16xf32>
    %1081 = arith.mulf %1080, %1070 : vector<2x16x16xf32>
    %1082 = arith.addf %1069, %1081 : vector<2x16x16xf32>
    %c4_308 = arith.constant 4 : index
    %c2_309 = arith.constant 2 : index
    %c0_310 = arith.constant 0 : index
    %1083 = vector.load %arg4[%c4_308, %c2_309, %c0_310] : memref<6x18x18xf32, #tpu.memory_space<vmem>>, vector<2x16x16xf32>
    %c222 = arith.constant 222 : index
    %1084 = memref.load %arg0[%c222] : memref<243xf32, #tpu.memory_space<smem>>
    %1085 = vector.broadcast %1084 : f32 to vector<2x16x16xf32>
    %1086 = arith.mulf %1085, %1083 : vector<2x16x16xf32>
    %1087 = arith.addf %1074, %1086 : vector<2x16x16xf32>
    %c223 = arith.constant 223 : index
    %1088 = memref.load %arg0[%c223] : memref<243xf32, #tpu.memory_space<smem>>
    %1089 = vector.broadcast %1088 : f32 to vector<2x16x16xf32>
    %1090 = arith.mulf %1089, %1083 : vector<2x16x16xf32>
    %1091 = arith.addf %1078, %1090 : vector<2x16x16xf32>
    %c224 = arith.constant 224 : index
    %1092 = memref.load %arg0[%c224] : memref<243xf32, #tpu.memory_space<smem>>
    %1093 = vector.broadcast %1092 : f32 to vector<2x16x16xf32>
    %1094 = arith.mulf %1093, %1083 : vector<2x16x16xf32>
    %1095 = arith.addf %1082, %1094 : vector<2x16x16xf32>
    %c4_311 = arith.constant 4 : index
    %c2_312 = arith.constant 2 : index
    %c1_313 = arith.constant 1 : index
    %1096 = vector.load %arg4[%c4_311, %c2_312, %c1_313] : memref<6x18x18xf32, #tpu.memory_space<vmem>>, vector<2x16x16xf32>
    %c231 = arith.constant 231 : index
    %1097 = memref.load %arg0[%c231] : memref<243xf32, #tpu.memory_space<smem>>
    %1098 = vector.broadcast %1097 : f32 to vector<2x16x16xf32>
    %1099 = arith.mulf %1098, %1096 : vector<2x16x16xf32>
    %1100 = arith.addf %1087, %1099 : vector<2x16x16xf32>
    %c232 = arith.constant 232 : index
    %1101 = memref.load %arg0[%c232] : memref<243xf32, #tpu.memory_space<smem>>
    %1102 = vector.broadcast %1101 : f32 to vector<2x16x16xf32>
    %1103 = arith.mulf %1102, %1096 : vector<2x16x16xf32>
    %1104 = arith.addf %1091, %1103 : vector<2x16x16xf32>
    %c233 = arith.constant 233 : index
    %1105 = memref.load %arg0[%c233] : memref<243xf32, #tpu.memory_space<smem>>
    %1106 = vector.broadcast %1105 : f32 to vector<2x16x16xf32>
    %1107 = arith.mulf %1106, %1096 : vector<2x16x16xf32>
    %1108 = arith.addf %1095, %1107 : vector<2x16x16xf32>
    %c4_314 = arith.constant 4 : index
    %c2_315 = arith.constant 2 : index
    %c2_316 = arith.constant 2 : index
    %1109 = vector.load %arg4[%c4_314, %c2_315, %c2_316] : memref<6x18x18xf32, #tpu.memory_space<vmem>>, vector<2x16x16xf32>
    %c240 = arith.constant 240 : index
    %1110 = memref.load %arg0[%c240] : memref<243xf32, #tpu.memory_space<smem>>
    %1111 = vector.broadcast %1110 : f32 to vector<2x16x16xf32>
    %1112 = arith.mulf %1111, %1109 : vector<2x16x16xf32>
    %1113 = arith.addf %1100, %1112 : vector<2x16x16xf32>
    %c241 = arith.constant 241 : index
    %1114 = memref.load %arg0[%c241] : memref<243xf32, #tpu.memory_space<smem>>
    %1115 = vector.broadcast %1114 : f32 to vector<2x16x16xf32>
    %1116 = arith.mulf %1115, %1109 : vector<2x16x16xf32>
    %1117 = arith.addf %1104, %1116 : vector<2x16x16xf32>
    %c242 = arith.constant 242 : index
    %1118 = memref.load %arg0[%c242] : memref<243xf32, #tpu.memory_space<smem>>
    %1119 = vector.broadcast %1118 : f32 to vector<2x16x16xf32>
    %1120 = arith.mulf %1119, %1109 : vector<2x16x16xf32>
    %1121 = arith.addf %1108, %1120 : vector<2x16x16xf32>
    %cst_317 = arith.constant 0.000000e+00 : f32
    %1122 = vector.broadcast %cst_317 : f32 to vector<2x16x16xf32>
    %1123 = arith.maximumf %1113, %1122 : vector<2x16x16xf32>
    %cst_318 = arith.constant 0.000000e+00 : f32
    %1124 = vector.broadcast %cst_318 : f32 to vector<2x16x16xf32>
    %1125 = arith.maximumf %1117, %1124 : vector<2x16x16xf32>
    %cst_319 = arith.constant 0.000000e+00 : f32
    %1126 = vector.broadcast %cst_319 : f32 to vector<2x16x16xf32>
    %1127 = arith.maximumf %1121, %1126 : vector<2x16x16xf32>
    %1128 = arith.truncf %1123 : vector<2x16x16xf32> to vector<2x16x16xbf16>
    %c0_320 = arith.constant 0 : index
    %c0_321 = arith.constant 0 : index
    %c0_322 = arith.constant 0 : index
    %c0_323 = arith.constant 0 : index
    %1129 = vector.load %arg3[%c0_320, %c0_321, %c0_322, %c0_323] : memref<3x2x16x16xbf16, #tpu.memory_space<vmem>>, vector<1x2x16x16xbf16>
    %1130 = vector.shape_cast %1129 : vector<1x2x16x16xbf16> to vector<2x16x16xbf16>
    %1131 = vector.shape_cast %1128 : vector<2x16x16xbf16> to vector<1x2x16x16xbf16>
    tpu.vector_store %arg3[%c0_320, %c0_321, %c0_322, %c0_323], %1131 {strides = array<i32>} : memref<3x2x16x16xbf16, #tpu.memory_space<vmem>>, vector<1x2x16x16xbf16>,
    %1132 = arith.truncf %1125 : vector<2x16x16xf32> to vector<2x16x16xbf16>
    %c1_324 = arith.constant 1 : index
    %c0_325 = arith.constant 0 : index
    %c0_326 = arith.constant 0 : index
    %c0_327 = arith.constant 0 : index
    %1133 = vector.load %arg3[%c1_324, %c0_325, %c0_326, %c0_327] : memref<3x2x16x16xbf16, #tpu.memory_space<vmem>>, vector<1x2x16x16xbf16>
    %1134 = vector.shape_cast %1133 : vector<1x2x16x16xbf16> to vector<2x16x16xbf16>
    %1135 = vector.shape_cast %1132 : vector<2x16x16xbf16> to vector<1x2x16x16xbf16>
    tpu.vector_store %arg3[%c1_324, %c0_325, %c0_326, %c0_327], %1135 {strides = array<i32>} : memref<3x2x16x16xbf16, #tpu.memory_space<vmem>>, vector<1x2x16x16xbf16>,
    %1136 = arith.truncf %1127 : vector<2x16x16xf32> to vector<2x16x16xbf16>
    %c2_328 = arith.constant 2 : index
    %c0_329 = arith.constant 0 : index
    %c0_330 = arith.constant 0 : index
    %c0_331 = arith.constant 0 : index
    %1137 = vector.load %arg3[%c2_328, %c0_329, %c0_330, %c0_331] : memref<3x2x16x16xbf16, #tpu.memory_space<vmem>>, vector<1x2x16x16xbf16>
    %1138 = vector.shape_cast %1137 : vector<1x2x16x16xbf16> to vector<2x16x16xbf16>
    %1139 = vector.shape_cast %1136 : vector<2x16x16xbf16> to vector<1x2x16x16xbf16>
    tpu.vector_store %arg3[%c2_328, %c0_329, %c0_330, %c0_331], %1139 {strides = array<i32>} : memref<3x2x16x16xbf16, #tpu.memory_space<vmem>>, vector<1x2x16x16xbf16>,
    return
  }
}

module attributes {stable_mosaic.version = 11 : i64} {
  func.func @_bn_act_kernel(%arg0: i32, %arg1: memref<32x64xbf16, #tpu.memory_space<vmem>>, %arg2: memref<1x64xf32, #tpu.memory_space<vmem>>, %arg3: memref<1x64xf32, #tpu.memory_space<vmem>>, %arg4: memref<32x64xbf16, #tpu.memory_space<vmem>>) attributes {dimension_semantics = [#tpu.dimension_semantics<parallel>], iteration_bounds = array<i64: 1>, scalar_prefetch = 0 : i64, scratch_operands = 0 : i64, tpu.core_type = #tpu.core_type<tc>, window_params = [{transform_indices = @transform_0, window_bounds = array<i64: 32, 64>}, {pipeline_mode = #tpu.pipeline_mode<synchronous>, transform_indices = @transform_1, window_bounds = array<i64: 1, 64>}, {pipeline_mode = #tpu.pipeline_mode<synchronous>, transform_indices = @transform_2, window_bounds = array<i64: 1, 64>}, {transform_indices = @transform_3, window_bounds = array<i64: 32, 64>}]} {
    %c0 = arith.constant 0 : index
    %c0_0 = arith.constant 0 : index
    %0 = vector.load %arg1[%c0, %c0_0] : memref<32x64xbf16, #tpu.memory_space<vmem>>, vector<32x64xbf16>
    %1 = arith.extf %0 : vector<32x64xbf16> to vector<32x64xf32>
    %c0_1 = arith.constant 0 : index
    %c0_2 = arith.constant 0 : index
    %2 = vector.load %arg2[%c0_1, %c0_2] : memref<1x64xf32, #tpu.memory_space<vmem>>, vector<1x64xf32>
    %3 = vector.broadcast %2 : vector<1x64xf32> to vector<32x64xf32>
    %4 = arith.mulf %1, %3 : vector<32x64xf32>
    %c0_3 = arith.constant 0 : index
    %c0_4 = arith.constant 0 : index
    %5 = vector.load %arg3[%c0_3, %c0_4] : memref<1x64xf32, #tpu.memory_space<vmem>>, vector<1x64xf32>
    %6 = vector.broadcast %5 : vector<1x64xf32> to vector<32x64xf32>
    %7 = arith.addf %4, %6 : vector<32x64xf32>
    %cst = arith.constant 0.000000e+00 : f32
    %8 = vector.broadcast %cst : f32 to vector<32x64xf32>
    %9 = arith.maximumf %7, %8 : vector<32x64xf32>
    %10 = arith.truncf %9 : vector<32x64xf32> to vector<32x64xbf16>
    %c0_5 = arith.constant 0 : index
    %c0_6 = arith.constant 0 : index
    %11 = vector.load %arg4[%c0_5, %c0_6] : memref<32x64xbf16, #tpu.memory_space<vmem>>, vector<32x64xbf16>
    tpu.vector_store %arg4[%c0_5, %c0_6], %10 {strides = array<i32>} : memref<32x64xbf16, #tpu.memory_space<vmem>>, vector<32x64xbf16>,
    return
  }
  func.func @transform_0(%arg0: i32) -> (i32, i32) {
    %c0_i32 = arith.constant 0 : i32
    %c0_i32_0 = arith.constant 0 : i32
    return %arg0, %c0_i32 : i32, i32
  }
  func.func @transform_1(%arg0: i32) -> (i32, i32) {
    %c0_i32 = arith.constant 0 : i32
    %c0_i32_0 = arith.constant 0 : i32
    %c0_i32_1 = arith.constant 0 : i32
    return %c0_i32, %c0_i32_0 : i32, i32
  }
  func.func @transform_2(%arg0: i32) -> (i32, i32) {
    %c0_i32 = arith.constant 0 : i32
    %c0_i32_0 = arith.constant 0 : i32
    %c0_i32_1 = arith.constant 0 : i32
    return %c0_i32, %c0_i32_0 : i32, i32
  }
  func.func @transform_3(%arg0: i32) -> (i32, i32) {
    %c0_i32 = arith.constant 0 : i32
    %c0_i32_0 = arith.constant 0 : i32
    return %arg0, %c0_i32 : i32, i32
  }
}

module attributes {stable_mosaic.version = 11 : i64} {
  func.func @_mm_fused_kernel(%arg0: i32, %arg1: memref<32x288xbf16, #tpu.memory_space<vmem>>, %arg2: memref<288x64xbf16, #tpu.memory_space<vmem>>, %arg3: memref<32x64xbf16, #tpu.memory_space<vmem>>, %arg4: memref<1x8x64xf32, #tpu.memory_space<vmem>>, %arg5: memref<1x8x64xf32, #tpu.memory_space<vmem>>) attributes {dimension_semantics = [#tpu.dimension_semantics<parallel>], iteration_bounds = array<i64: 1>, scalar_prefetch = 0 : i64, scratch_operands = 0 : i64, tpu.core_type = #tpu.core_type<tc>, window_params = [{transform_indices = @transform_0, window_bounds = array<i64: 32, 288>}, {pipeline_mode = #tpu.pipeline_mode<synchronous>, transform_indices = @transform_1, window_bounds = array<i64: 288, 64>}, {transform_indices = @transform_2, window_bounds = array<i64: 32, 64>}, {transform_indices = @transform_3, window_bounds = array<i64: 1, 8, 64>}, {transform_indices = @transform_4, window_bounds = array<i64: 1, 8, 64>}]} {
    %c0 = arith.constant 0 : index
    %c0_0 = arith.constant 0 : index
    %0 = vector.load %arg1[%c0, %c0_0] : memref<32x288xbf16, #tpu.memory_space<vmem>>, vector<32x288xbf16>
    %c0_1 = arith.constant 0 : index
    %c0_2 = arith.constant 0 : index
    %1 = vector.load %arg2[%c0_1, %c0_2] : memref<288x64xbf16, #tpu.memory_space<vmem>>, vector<288x64xbf16>
    %cst = arith.constant dense<0.000000e+00> : vector<32x64xf32>
    %2 = tpu.matmul %0, %1, %cst {dimension_numbers = #tpu.dot_dimension_numbers<[1], [0], [0], [1], [0, 0, 1, 1], [], []>} : vector<32x288xbf16>, vector<288x64xbf16>, vector<32x64xf32> -> vector<32x64xf32>
    %cst_3 = arith.constant dense<0.000000e+00> : vector<64xf32>
    %3 = vector.multi_reduction <add>, %2, %cst_3 [0] : vector<32x64xf32> to vector<64xf32>
    %4 = vector.shape_cast %3 : vector<64xf32> to vector<1x64xf32>
    %5 = arith.mulf %2, %2 : vector<32x64xf32>
    %cst_4 = arith.constant dense<0.000000e+00> : vector<64xf32>
    %6 = vector.multi_reduction <add>, %5, %cst_4 [0] : vector<32x64xf32> to vector<64xf32>
    %7 = vector.shape_cast %6 : vector<64xf32> to vector<1x64xf32>
    %8 = vector.shape_cast %4 : vector<1x64xf32> to vector<1x1x64xf32>
    %9 = vector.broadcast %8 : vector<1x1x64xf32> to vector<1x8x64xf32>
    %c0_5 = arith.constant 0 : index
    %c0_6 = arith.constant 0 : index
    %c0_7 = arith.constant 0 : index
    %10 = vector.load %arg4[%c0_5, %c0_6, %c0_7] : memref<1x8x64xf32, #tpu.memory_space<vmem>>, vector<1x8x64xf32>
    tpu.vector_store %arg4[%c0_5, %c0_6, %c0_7], %9 {strides = array<i32>} : memref<1x8x64xf32, #tpu.memory_space<vmem>>, vector<1x8x64xf32>,
    %11 = vector.shape_cast %7 : vector<1x64xf32> to vector<1x1x64xf32>
    %12 = vector.broadcast %11 : vector<1x1x64xf32> to vector<1x8x64xf32>
    %c0_8 = arith.constant 0 : index
    %c0_9 = arith.constant 0 : index
    %c0_10 = arith.constant 0 : index
    %13 = vector.load %arg5[%c0_8, %c0_9, %c0_10] : memref<1x8x64xf32, #tpu.memory_space<vmem>>, vector<1x8x64xf32>
    tpu.vector_store %arg5[%c0_8, %c0_9, %c0_10], %12 {strides = array<i32>} : memref<1x8x64xf32, #tpu.memory_space<vmem>>, vector<1x8x64xf32>,
    %14 = arith.truncf %2 : vector<32x64xf32> to vector<32x64xbf16>
    %c0_11 = arith.constant 0 : index
    %c0_12 = arith.constant 0 : index
    %15 = vector.load %arg3[%c0_11, %c0_12] : memref<32x64xbf16, #tpu.memory_space<vmem>>, vector<32x64xbf16>
    tpu.vector_store %arg3[%c0_11, %c0_12], %14 {strides = array<i32>} : memref<32x64xbf16, #tpu.memory_space<vmem>>, vector<32x64xbf16>,
    return
  }
  func.func @transform_0(%arg0: i32) -> (i32, i32) {
    %c0_i32 = arith.constant 0 : i32
    %c0_i32_0 = arith.constant 0 : i32
    return %arg0, %c0_i32 : i32, i32
  }
  func.func @transform_1(%arg0: i32) -> (i32, i32) {
    %c0_i32 = arith.constant 0 : i32
    %c0_i32_0 = arith.constant 0 : i32
    %c0_i32_1 = arith.constant 0 : i32
    return %c0_i32, %c0_i32_0 : i32, i32
  }
  func.func @transform_2(%arg0: i32) -> (i32, i32) {
    %c0_i32 = arith.constant 0 : i32
    %c0_i32_0 = arith.constant 0 : i32
    return %arg0, %c0_i32 : i32, i32
  }
  func.func @transform_3(%arg0: i32) -> (i32, i32, i32) {
    %c0_i32 = arith.constant 0 : i32
    %c0_i32_0 = arith.constant 0 : i32
    %c0_i32_1 = arith.constant 0 : i32
    return %arg0, %c0_i32, %c0_i32_0 : i32, i32, i32
  }
  func.func @transform_4(%arg0: i32) -> (i32, i32, i32) {
    %c0_i32 = arith.constant 0 : i32
    %c0_i32_0 = arith.constant 0 : i32
    %c0_i32_1 = arith.constant 0 : i32
    return %arg0, %c0_i32, %c0_i32_0 : i32, i32, i32
  }
}

module attributes {stable_mosaic.version = 11 : i64} {
  func.func @_bn_act_kernel(%arg0: i32, %arg1: memref<8x128xbf16, #tpu.memory_space<vmem>>, %arg2: memref<1x128xf32, #tpu.memory_space<vmem>>, %arg3: memref<1x128xf32, #tpu.memory_space<vmem>>, %arg4: memref<8x128xbf16, #tpu.memory_space<vmem>>) attributes {dimension_semantics = [#tpu.dimension_semantics<parallel>], iteration_bounds = array<i64: 1>, scalar_prefetch = 0 : i64, scratch_operands = 0 : i64, tpu.core_type = #tpu.core_type<tc>, window_params = [{transform_indices = @transform_0, window_bounds = array<i64: 8, 128>}, {pipeline_mode = #tpu.pipeline_mode<synchronous>, transform_indices = @transform_1, window_bounds = array<i64: 1, 128>}, {pipeline_mode = #tpu.pipeline_mode<synchronous>, transform_indices = @transform_2, window_bounds = array<i64: 1, 128>}, {transform_indices = @transform_3, window_bounds = array<i64: 8, 128>}]} {
    %c0 = arith.constant 0 : index
    %c0_0 = arith.constant 0 : index
    %0 = vector.load %arg1[%c0, %c0_0] : memref<8x128xbf16, #tpu.memory_space<vmem>>, vector<8x128xbf16>
    %1 = arith.extf %0 : vector<8x128xbf16> to vector<8x128xf32>
    %c0_1 = arith.constant 0 : index
    %c0_2 = arith.constant 0 : index
    %2 = vector.load %arg2[%c0_1, %c0_2] : memref<1x128xf32, #tpu.memory_space<vmem>>, vector<1x128xf32>
    %3 = vector.broadcast %2 : vector<1x128xf32> to vector<8x128xf32>
    %4 = arith.mulf %1, %3 : vector<8x128xf32>
    %c0_3 = arith.constant 0 : index
    %c0_4 = arith.constant 0 : index
    %5 = vector.load %arg3[%c0_3, %c0_4] : memref<1x128xf32, #tpu.memory_space<vmem>>, vector<1x128xf32>
    %6 = vector.broadcast %5 : vector<1x128xf32> to vector<8x128xf32>
    %7 = arith.addf %4, %6 : vector<8x128xf32>
    %cst = arith.constant 0.000000e+00 : f32
    %8 = vector.broadcast %cst : f32 to vector<8x128xf32>
    %9 = arith.maximumf %7, %8 : vector<8x128xf32>
    %10 = arith.truncf %9 : vector<8x128xf32> to vector<8x128xbf16>
    %c0_5 = arith.constant 0 : index
    %c0_6 = arith.constant 0 : index
    %11 = vector.load %arg4[%c0_5, %c0_6] : memref<8x128xbf16, #tpu.memory_space<vmem>>, vector<8x128xbf16>
    tpu.vector_store %arg4[%c0_5, %c0_6], %10 {strides = array<i32>} : memref<8x128xbf16, #tpu.memory_space<vmem>>, vector<8x128xbf16>,
    return
  }
  func.func @transform_0(%arg0: i32) -> (i32, i32) {
    %c0_i32 = arith.constant 0 : i32
    %c0_i32_0 = arith.constant 0 : i32
    return %arg0, %c0_i32 : i32, i32
  }
  func.func @transform_1(%arg0: i32) -> (i32, i32) {
    %c0_i32 = arith.constant 0 : i32
    %c0_i32_0 = arith.constant 0 : i32
    %c0_i32_1 = arith.constant 0 : i32
    return %c0_i32, %c0_i32_0 : i32, i32
  }
  func.func @transform_2(%arg0: i32) -> (i32, i32) {
    %c0_i32 = arith.constant 0 : i32
    %c0_i32_0 = arith.constant 0 : i32
    %c0_i32_1 = arith.constant 0 : i32
    return %c0_i32, %c0_i32_0 : i32, i32
  }
  func.func @transform_3(%arg0: i32) -> (i32, i32) {
    %c0_i32 = arith.constant 0 : i32
    %c0_i32_0 = arith.constant 0 : i32
    return %arg0, %c0_i32 : i32, i32
  }
}

module attributes {stable_mosaic.version = 11 : i64} {
  func.func @_mm_fused_kernel(%arg0: i32, %arg1: memref<8x576xbf16, #tpu.memory_space<vmem>>, %arg2: memref<576x128xbf16, #tpu.memory_space<vmem>>, %arg3: memref<8x128xbf16, #tpu.memory_space<vmem>>, %arg4: memref<1x8x128xf32, #tpu.memory_space<vmem>>, %arg5: memref<1x8x128xf32, #tpu.memory_space<vmem>>) attributes {dimension_semantics = [#tpu.dimension_semantics<parallel>], iteration_bounds = array<i64: 1>, scalar_prefetch = 0 : i64, scratch_operands = 0 : i64, tpu.core_type = #tpu.core_type<tc>, window_params = [{transform_indices = @transform_0, window_bounds = array<i64: 8, 576>}, {pipeline_mode = #tpu.pipeline_mode<synchronous>, transform_indices = @transform_1, window_bounds = array<i64: 576, 128>}, {transform_indices = @transform_2, window_bounds = array<i64: 8, 128>}, {transform_indices = @transform_3, window_bounds = array<i64: 1, 8, 128>}, {transform_indices = @transform_4, window_bounds = array<i64: 1, 8, 128>}]} {
    %c0 = arith.constant 0 : index
    %c0_0 = arith.constant 0 : index
    %0 = vector.load %arg1[%c0, %c0_0] : memref<8x576xbf16, #tpu.memory_space<vmem>>, vector<8x576xbf16>
    %c0_1 = arith.constant 0 : index
    %c0_2 = arith.constant 0 : index
    %1 = vector.load %arg2[%c0_1, %c0_2] : memref<576x128xbf16, #tpu.memory_space<vmem>>, vector<576x128xbf16>
    %cst = arith.constant dense<0.000000e+00> : vector<8x128xf32>
    %2 = tpu.matmul %0, %1, %cst {dimension_numbers = #tpu.dot_dimension_numbers<[1], [0], [0], [1], [0, 0, 1, 1], [], []>} : vector<8x576xbf16>, vector<576x128xbf16>, vector<8x128xf32> -> vector<8x128xf32>
    %cst_3 = arith.constant dense<0.000000e+00> : vector<128xf32>
    %3 = vector.multi_reduction <add>, %2, %cst_3 [0] : vector<8x128xf32> to vector<128xf32>
    %4 = vector.shape_cast %3 : vector<128xf32> to vector<1x128xf32>
    %5 = arith.mulf %2, %2 : vector<8x128xf32>
    %cst_4 = arith.constant dense<0.000000e+00> : vector<128xf32>
    %6 = vector.multi_reduction <add>, %5, %cst_4 [0] : vector<8x128xf32> to vector<128xf32>
    %7 = vector.shape_cast %6 : vector<128xf32> to vector<1x128xf32>
    %8 = vector.shape_cast %4 : vector<1x128xf32> to vector<1x1x128xf32>
    %9 = vector.broadcast %8 : vector<1x1x128xf32> to vector<1x8x128xf32>
    %c0_5 = arith.constant 0 : index
    %c0_6 = arith.constant 0 : index
    %c0_7 = arith.constant 0 : index
    %10 = vector.load %arg4[%c0_5, %c0_6, %c0_7] : memref<1x8x128xf32, #tpu.memory_space<vmem>>, vector<1x8x128xf32>
    tpu.vector_store %arg4[%c0_5, %c0_6, %c0_7], %9 {strides = array<i32>} : memref<1x8x128xf32, #tpu.memory_space<vmem>>, vector<1x8x128xf32>,
    %11 = vector.shape_cast %7 : vector<1x128xf32> to vector<1x1x128xf32>
    %12 = vector.broadcast %11 : vector<1x1x128xf32> to vector<1x8x128xf32>
    %c0_8 = arith.constant 0 : index
    %c0_9 = arith.constant 0 : index
    %c0_10 = arith.constant 0 : index
    %13 = vector.load %arg5[%c0_8, %c0_9, %c0_10] : memref<1x8x128xf32, #tpu.memory_space<vmem>>, vector<1x8x128xf32>
    tpu.vector_store %arg5[%c0_8, %c0_9, %c0_10], %12 {strides = array<i32>} : memref<1x8x128xf32, #tpu.memory_space<vmem>>, vector<1x8x128xf32>,
    %14 = arith.truncf %2 : vector<8x128xf32> to vector<8x128xbf16>
    %c0_11 = arith.constant 0 : index
    %c0_12 = arith.constant 0 : index
    %15 = vector.load %arg3[%c0_11, %c0_12] : memref<8x128xbf16, #tpu.memory_space<vmem>>, vector<8x128xbf16>
    tpu.vector_store %arg3[%c0_11, %c0_12], %14 {strides = array<i32>} : memref<8x128xbf16, #tpu.memory_space<vmem>>, vector<8x128xbf16>,
    return
  }
  func.func @transform_0(%arg0: i32) -> (i32, i32) {
    %c0_i32 = arith.constant 0 : i32
    %c0_i32_0 = arith.constant 0 : i32
    return %arg0, %c0_i32 : i32, i32
  }
  func.func @transform_1(%arg0: i32) -> (i32, i32) {
    %c0_i32 = arith.constant 0 : i32
    %c0_i32_0 = arith.constant 0 : i32
    %c0_i32_1 = arith.constant 0 : i32
    return %c0_i32, %c0_i32_0 : i32, i32
  }
  func.func @transform_2(%arg0: i32) -> (i32, i32) {
    %c0_i32 = arith.constant 0 : i32
    %c0_i32_0 = arith.constant 0 : i32
    return %arg0, %c0_i32 : i32, i32
  }
  func.func @transform_3(%arg0: i32) -> (i32, i32, i32) {
    %c0_i32 = arith.constant 0 : i32
    %c0_i32_0 = arith.constant 0 : i32
    %c0_i32_1 = arith.constant 0 : i32
    return %arg0, %c0_i32, %c0_i32_0 : i32, i32, i32
  }
  func.func @transform_4(%arg0: i32) -> (i32, i32, i32) {
    %c0_i32 = arith.constant 0 : i32
    %c0_i32_0 = arith.constant 0 : i32
    %c0_i32_1 = arith.constant 0 : i32
    return %arg0, %c0_i32, %c0_i32_0 : i32, i32, i32
  }
}

module attributes {stable_mosaic.version = 11 : i64} {
  func.func @_res1_kernel(%arg0: memref<2x2x2x128xbf16, #tpu.memory_space<vmem>>, %arg1: memref<9x128x128xbf16, #tpu.memory_space<vmem>>, %arg2: memref<9x128x128xbf16, #tpu.memory_space<vmem>>, %arg3: memref<1x128xf32, #tpu.memory_space<vmem>>, %arg4: memref<1x128xf32, #tpu.memory_space<vmem>>, %arg5: memref<1x128xf32, #tpu.memory_space<vmem>>, %arg6: memref<1x128xf32, #tpu.memory_space<vmem>>, %arg7: memref<2x2x2x128xbf16, #tpu.memory_space<vmem>>, %arg8: memref<2x4x4x128xbf16, #tpu.memory_space<vmem>>) attributes {dimension_semantics = [], scalar_prefetch = 0 : i64, scratch_operands = 1 : i64, tpu.core_type = #tpu.core_type<tc>} {
    %c0 = arith.constant 0 : index
    %c0_0 = arith.constant 0 : index
    %c0_1 = arith.constant 0 : index
    %c0_2 = arith.constant 0 : index
    %0 = vector.load %arg0[%c0, %c0_0, %c0_1, %c0_2] : memref<2x2x2x128xbf16, #tpu.memory_space<vmem>>, vector<2x2x2x128xbf16>
    %cst = arith.constant 0.000000e+00 : bf16
    %1 = vector.broadcast %cst : bf16 to vector<2x4x4x128xbf16>
    %c0_3 = arith.constant 0 : index
    %c0_4 = arith.constant 0 : index
    %c0_5 = arith.constant 0 : index
    %c0_6 = arith.constant 0 : index
    %2 = vector.load %arg8[%c0_3, %c0_4, %c0_5, %c0_6] : memref<2x4x4x128xbf16, #tpu.memory_space<vmem>>, vector<2x4x4x128xbf16>
    tpu.vector_store %arg8[%c0_3, %c0_4, %c0_5, %c0_6], %1 {strides = array<i32>} : memref<2x4x4x128xbf16, #tpu.memory_space<vmem>>, vector<2x4x4x128xbf16>,
    %c0_7 = arith.constant 0 : index
    %c1 = arith.constant 1 : index
    %c1_8 = arith.constant 1 : index
    %c0_9 = arith.constant 0 : index
    %3 = vector.load %arg8[%c0_7, %c1, %c1_8, %c0_9] : memref<2x4x4x128xbf16, #tpu.memory_space<vmem>>, vector<2x2x2x128xbf16>
    tpu.vector_store %arg8[%c0_7, %c1, %c1_8, %c0_9], %0 {strides = array<i32>} : memref<2x4x4x128xbf16, #tpu.memory_space<vmem>>, vector<2x2x2x128xbf16>,
    %cst_10 = arith.constant 0.000000e+00 : f32
    %4 = vector.broadcast %cst_10 : f32 to vector<8x128xf32>
    %c0_11 = arith.constant 0 : index
    %c0_12 = arith.constant 0 : index
    %c0_13 = arith.constant 0 : index
    %c0_14 = arith.constant 0 : index
    %5 = vector.load %arg8[%c0_11, %c0_12, %c0_13, %c0_14] : memref<2x4x4x128xbf16, #tpu.memory_space<vmem>>, vector<2x2x2x128xbf16>
    %6 = vector.shape_cast %5 : vector<2x2x2x128xbf16> to vector<8x128xbf16>
    %c0_15 = arith.constant 0 : index
    %c0_16 = arith.constant 0 : index
    %c0_17 = arith.constant 0 : index
    %7 = vector.load %arg1[%c0_15, %c0_16, %c0_17] : memref<9x128x128xbf16, #tpu.memory_space<vmem>>, vector<1x128x128xbf16>
    %8 = vector.shape_cast %7 : vector<1x128x128xbf16> to vector<128x128xbf16>
    %cst_18 = arith.constant dense<0.000000e+00> : vector<8x128xf32>
    %9 = tpu.matmul %6, %8, %cst_18 {dimension_numbers = #tpu.dot_dimension_numbers<[1], [0], [0], [1], [0, 0, 1, 1], [], []>} : vector<8x128xbf16>, vector<128x128xbf16>, vector<8x128xf32> -> vector<8x128xf32>
    %10 = arith.addf %4, %9 : vector<8x128xf32>
    %c0_19 = arith.constant 0 : index
    %c0_20 = arith.constant 0 : index
    %c1_21 = arith.constant 1 : index
    %c0_22 = arith.constant 0 : index
    %11 = vector.load %arg8[%c0_19, %c0_20, %c1_21, %c0_22] : memref<2x4x4x128xbf16, #tpu.memory_space<vmem>>, vector<2x2x2x128xbf16>
    %12 = vector.shape_cast %11 : vector<2x2x2x128xbf16> to vector<8x128xbf16>
    %c1_23 = arith.constant 1 : index
    %c0_24 = arith.constant 0 : index
    %c0_25 = arith.constant 0 : index
    %13 = vector.load %arg1[%c1_23, %c0_24, %c0_25] : memref<9x128x128xbf16, #tpu.memory_space<vmem>>, vector<1x128x128xbf16>
    %14 = vector.shape_cast %13 : vector<1x128x128xbf16> to vector<128x128xbf16>
    %cst_26 = arith.constant dense<0.000000e+00> : vector<8x128xf32>
    %15 = tpu.matmul %12, %14, %cst_26 {dimension_numbers = #tpu.dot_dimension_numbers<[1], [0], [0], [1], [0, 0, 1, 1], [], []>} : vector<8x128xbf16>, vector<128x128xbf16>, vector<8x128xf32> -> vector<8x128xf32>
    %16 = arith.addf %10, %15 : vector<8x128xf32>
    %c0_27 = arith.constant 0 : index
    %c0_28 = arith.constant 0 : index
    %c2 = arith.constant 2 : index
    %c0_29 = arith.constant 0 : index
    %17 = vector.load %arg8[%c0_27, %c0_28, %c2, %c0_29] : memref<2x4x4x128xbf16, #tpu.memory_space<vmem>>, vector<2x2x2x128xbf16>
    %18 = vector.shape_cast %17 : vector<2x2x2x128xbf16> to vector<8x128xbf16>
    %c2_30 = arith.constant 2 : index
    %c0_31 = arith.constant 0 : index
    %c0_32 = arith.constant 0 : index
    %19 = vector.load %arg1[%c2_30, %c0_31, %c0_32] : memref<9x128x128xbf16, #tpu.memory_space<vmem>>, vector<1x128x128xbf16>
    %20 = vector.shape_cast %19 : vector<1x128x128xbf16> to vector<128x128xbf16>
    %cst_33 = arith.constant dense<0.000000e+00> : vector<8x128xf32>
    %21 = tpu.matmul %18, %20, %cst_33 {dimension_numbers = #tpu.dot_dimension_numbers<[1], [0], [0], [1], [0, 0, 1, 1], [], []>} : vector<8x128xbf16>, vector<128x128xbf16>, vector<8x128xf32> -> vector<8x128xf32>
    %22 = arith.addf %16, %21 : vector<8x128xf32>
    %c0_34 = arith.constant 0 : index
    %c1_35 = arith.constant 1 : index
    %c0_36 = arith.constant 0 : index
    %c0_37 = arith.constant 0 : index
    %23 = vector.load %arg8[%c0_34, %c1_35, %c0_36, %c0_37] : memref<2x4x4x128xbf16, #tpu.memory_space<vmem>>, vector<2x2x2x128xbf16>
    %24 = vector.shape_cast %23 : vector<2x2x2x128xbf16> to vector<8x128xbf16>
    %c3 = arith.constant 3 : index
    %c0_38 = arith.constant 0 : index
    %c0_39 = arith.constant 0 : index
    %25 = vector.load %arg1[%c3, %c0_38, %c0_39] : memref<9x128x128xbf16, #tpu.memory_space<vmem>>, vector<1x128x128xbf16>
    %26 = vector.shape_cast %25 : vector<1x128x128xbf16> to vector<128x128xbf16>
    %cst_40 = arith.constant dense<0.000000e+00> : vector<8x128xf32>
    %27 = tpu.matmul %24, %26, %cst_40 {dimension_numbers = #tpu.dot_dimension_numbers<[1], [0], [0], [1], [0, 0, 1, 1], [], []>} : vector<8x128xbf16>, vector<128x128xbf16>, vector<8x128xf32> -> vector<8x128xf32>
    %28 = arith.addf %22, %27 : vector<8x128xf32>
    %c0_41 = arith.constant 0 : index
    %c1_42 = arith.constant 1 : index
    %c1_43 = arith.constant 1 : index
    %c0_44 = arith.constant 0 : index
    %29 = vector.load %arg8[%c0_41, %c1_42, %c1_43, %c0_44] : memref<2x4x4x128xbf16, #tpu.memory_space<vmem>>, vector<2x2x2x128xbf16>
    %30 = vector.shape_cast %29 : vector<2x2x2x128xbf16> to vector<8x128xbf16>
    %c4 = arith.constant 4 : index
    %c0_45 = arith.constant 0 : index
    %c0_46 = arith.constant 0 : index
    %31 = vector.load %arg1[%c4, %c0_45, %c0_46] : memref<9x128x128xbf16, #tpu.memory_space<vmem>>, vector<1x128x128xbf16>
    %32 = vector.shape_cast %31 : vector<1x128x128xbf16> to vector<128x128xbf16>
    %cst_47 = arith.constant dense<0.000000e+00> : vector<8x128xf32>
    %33 = tpu.matmul %30, %32, %cst_47 {dimension_numbers = #tpu.dot_dimension_numbers<[1], [0], [0], [1], [0, 0, 1, 1], [], []>} : vector<8x128xbf16>, vector<128x128xbf16>, vector<8x128xf32> -> vector<8x128xf32>
    %34 = arith.addf %28, %33 : vector<8x128xf32>
    %c0_48 = arith.constant 0 : index
    %c1_49 = arith.constant 1 : index
    %c2_50 = arith.constant 2 : index
    %c0_51 = arith.constant 0 : index
    %35 = vector.load %arg8[%c0_48, %c1_49, %c2_50, %c0_51] : memref<2x4x4x128xbf16, #tpu.memory_space<vmem>>, vector<2x2x2x128xbf16>
    %36 = vector.shape_cast %35 : vector<2x2x2x128xbf16> to vector<8x128xbf16>
    %c5 = arith.constant 5 : index
    %c0_52 = arith.constant 0 : index
    %c0_53 = arith.constant 0 : index
    %37 = vector.load %arg1[%c5, %c0_52, %c0_53] : memref<9x128x128xbf16, #tpu.memory_space<vmem>>, vector<1x128x128xbf16>
    %38 = vector.shape_cast %37 : vector<1x128x128xbf16> to vector<128x128xbf16>
    %cst_54 = arith.constant dense<0.000000e+00> : vector<8x128xf32>
    %39 = tpu.matmul %36, %38, %cst_54 {dimension_numbers = #tpu.dot_dimension_numbers<[1], [0], [0], [1], [0, 0, 1, 1], [], []>} : vector<8x128xbf16>, vector<128x128xbf16>, vector<8x128xf32> -> vector<8x128xf32>
    %40 = arith.addf %34, %39 : vector<8x128xf32>
    %c0_55 = arith.constant 0 : index
    %c2_56 = arith.constant 2 : index
    %c0_57 = arith.constant 0 : index
    %c0_58 = arith.constant 0 : index
    %41 = vector.load %arg8[%c0_55, %c2_56, %c0_57, %c0_58] : memref<2x4x4x128xbf16, #tpu.memory_space<vmem>>, vector<2x2x2x128xbf16>
    %42 = vector.shape_cast %41 : vector<2x2x2x128xbf16> to vector<8x128xbf16>
    %c6 = arith.constant 6 : index
    %c0_59 = arith.constant 0 : index
    %c0_60 = arith.constant 0 : index
    %43 = vector.load %arg1[%c6, %c0_59, %c0_60] : memref<9x128x128xbf16, #tpu.memory_space<vmem>>, vector<1x128x128xbf16>
    %44 = vector.shape_cast %43 : vector<1x128x128xbf16> to vector<128x128xbf16>
    %cst_61 = arith.constant dense<0.000000e+00> : vector<8x128xf32>
    %45 = tpu.matmul %42, %44, %cst_61 {dimension_numbers = #tpu.dot_dimension_numbers<[1], [0], [0], [1], [0, 0, 1, 1], [], []>} : vector<8x128xbf16>, vector<128x128xbf16>, vector<8x128xf32> -> vector<8x128xf32>
    %46 = arith.addf %40, %45 : vector<8x128xf32>
    %c0_62 = arith.constant 0 : index
    %c2_63 = arith.constant 2 : index
    %c1_64 = arith.constant 1 : index
    %c0_65 = arith.constant 0 : index
    %47 = vector.load %arg8[%c0_62, %c2_63, %c1_64, %c0_65] : memref<2x4x4x128xbf16, #tpu.memory_space<vmem>>, vector<2x2x2x128xbf16>
    %48 = vector.shape_cast %47 : vector<2x2x2x128xbf16> to vector<8x128xbf16>
    %c7 = arith.constant 7 : index
    %c0_66 = arith.constant 0 : index
    %c0_67 = arith.constant 0 : index
    %49 = vector.load %arg1[%c7, %c0_66, %c0_67] : memref<9x128x128xbf16, #tpu.memory_space<vmem>>, vector<1x128x128xbf16>
    %50 = vector.shape_cast %49 : vector<1x128x128xbf16> to vector<128x128xbf16>
    %cst_68 = arith.constant dense<0.000000e+00> : vector<8x128xf32>
    %51 = tpu.matmul %48, %50, %cst_68 {dimension_numbers = #tpu.dot_dimension_numbers<[1], [0], [0], [1], [0, 0, 1, 1], [], []>} : vector<8x128xbf16>, vector<128x128xbf16>, vector<8x128xf32> -> vector<8x128xf32>
    %52 = arith.addf %46, %51 : vector<8x128xf32>
    %c0_69 = arith.constant 0 : index
    %c2_70 = arith.constant 2 : index
    %c2_71 = arith.constant 2 : index
    %c0_72 = arith.constant 0 : index
    %53 = vector.load %arg8[%c0_69, %c2_70, %c2_71, %c0_72] : memref<2x4x4x128xbf16, #tpu.memory_space<vmem>>, vector<2x2x2x128xbf16>
    %54 = vector.shape_cast %53 : vector<2x2x2x128xbf16> to vector<8x128xbf16>
    %c8 = arith.constant 8 : index
    %c0_73 = arith.constant 0 : index
    %c0_74 = arith.constant 0 : index
    %55 = vector.load %arg1[%c8, %c0_73, %c0_74] : memref<9x128x128xbf16, #tpu.memory_space<vmem>>, vector<1x128x128xbf16>
    %56 = vector.shape_cast %55 : vector<1x128x128xbf16> to vector<128x128xbf16>
    %cst_75 = arith.constant dense<0.000000e+00> : vector<8x128xf32>
    %57 = tpu.matmul %54, %56, %cst_75 {dimension_numbers = #tpu.dot_dimension_numbers<[1], [0], [0], [1], [0, 0, 1, 1], [], []>} : vector<8x128xbf16>, vector<128x128xbf16>, vector<8x128xf32> -> vector<8x128xf32>
    %58 = arith.addf %52, %57 : vector<8x128xf32>
    %cst_76 = arith.constant dense<0.000000e+00> : vector<128xf32>
    %59 = vector.multi_reduction <add>, %58, %cst_76 [0] : vector<8x128xf32> to vector<128xf32>
    %60 = vector.shape_cast %59 : vector<128xf32> to vector<1x128xf32>
    %cst_77 = arith.constant 8.000000e+00 : f32
    %61 = vector.broadcast %cst_77 : f32 to vector<1x128xf32>
    %62 = arith.divf %60, %61 : vector<1x128xf32>
    %63 = arith.mulf %58, %58 : vector<8x128xf32>
    %cst_78 = arith.constant dense<0.000000e+00> : vector<128xf32>
    %64 = vector.multi_reduction <add>, %63, %cst_78 [0] : vector<8x128xf32> to vector<128xf32>
    %65 = vector.shape_cast %64 : vector<128xf32> to vector<1x128xf32>
    %cst_79 = arith.constant 8.000000e+00 : f32
    %66 = vector.broadcast %cst_79 : f32 to vector<1x128xf32>
    %67 = arith.divf %65, %66 : vector<1x128xf32>
    %68 = arith.mulf %62, %62 : vector<1x128xf32>
    %69 = arith.subf %67, %68 : vector<1x128xf32>
    %cst_80 = arith.constant 0.000000e+00 : f32
    %70 = vector.broadcast %cst_80 : f32 to vector<1x128xf32>
    %71 = arith.maximumf %69, %70 : vector<1x128xf32>
    %72 = vector.broadcast %62 : vector<1x128xf32> to vector<8x128xf32>
    %73 = arith.subf %58, %72 : vector<8x128xf32>
    %c0_81 = arith.constant 0 : index
    %c0_82 = arith.constant 0 : index
    %74 = vector.load %arg3[%c0_81, %c0_82] : memref<1x128xf32, #tpu.memory_space<vmem>>, vector<1x128xf32>
    %cst_83 = arith.constant 9.99999974E-6 : f32
    %75 = vector.broadcast %cst_83 : f32 to vector<1x128xf32>
    %76 = arith.addf %71, %75 : vector<1x128xf32>
    %77 = math.rsqrt %76 : vector<1x128xf32>
    %78 = arith.mulf %74, %77 : vector<1x128xf32>
    %79 = vector.broadcast %78 : vector<1x128xf32> to vector<8x128xf32>
    %80 = arith.mulf %73, %79 : vector<8x128xf32>
    %c0_84 = arith.constant 0 : index
    %c0_85 = arith.constant 0 : index
    %81 = vector.load %arg4[%c0_84, %c0_85] : memref<1x128xf32, #tpu.memory_space<vmem>>, vector<1x128xf32>
    %82 = vector.broadcast %81 : vector<1x128xf32> to vector<8x128xf32>
    %83 = arith.addf %80, %82 : vector<8x128xf32>
    %cst_86 = arith.constant 0.000000e+00 : f32
    %84 = vector.broadcast %cst_86 : f32 to vector<8x128xf32>
    %85 = arith.cmpf oge, %83, %84 : vector<8x128xf32>
    %cst_87 = arith.constant 2.500000e-01 : f32
    %86 = vector.broadcast %cst_87 : f32 to vector<8x128xf32>
    %87 = arith.mulf %86, %83 : vector<8x128xf32>
    %88 = arith.select %85, %83, %87 : vector<8x128xi1>, vector<8x128xf32>
    %cst_88 = arith.constant 0.000000e+00 : bf16
    %89 = vector.broadcast %cst_88 : bf16 to vector<2x4x4x128xbf16>
    %c0_89 = arith.constant 0 : index
    %c0_90 = arith.constant 0 : index
    %c0_91 = arith.constant 0 : index
    %c0_92 = arith.constant 0 : index
    %90 = vector.load %arg8[%c0_89, %c0_90, %c0_91, %c0_92] : memref<2x4x4x128xbf16, #tpu.memory_space<vmem>>, vector<2x4x4x128xbf16>
    tpu.vector_store %arg8[%c0_89, %c0_90, %c0_91, %c0_92], %89 {strides = array<i32>} : memref<2x4x4x128xbf16, #tpu.memory_space<vmem>>, vector<2x4x4x128xbf16>,
    %91 = vector.shape_cast %88 : vector<8x128xf32> to vector<2x2x2x128xf32>
    %92 = arith.truncf %91 : vector<2x2x2x128xf32> to vector<2x2x2x128xbf16>
    %c0_93 = arith.constant 0 : index
    %c1_94 = arith.constant 1 : index
    %c1_95 = arith.constant 1 : index
    %c0_96 = arith.constant 0 : index
    %93 = vector.load %arg8[%c0_93, %c1_94, %c1_95, %c0_96] : memref<2x4x4x128xbf16, #tpu.memory_space<vmem>>, vector<2x2x2x128xbf16>
    tpu.vector_store %arg8[%c0_93, %c1_94, %c1_95, %c0_96], %92 {strides = array<i32>} : memref<2x4x4x128xbf16, #tpu.memory_space<vmem>>, vector<2x2x2x128xbf16>,
    %cst_97 = arith.constant 0.000000e+00 : f32
    %94 = vector.broadcast %cst_97 : f32 to vector<8x128xf32>
    %c0_98 = arith.constant 0 : index
    %c0_99 = arith.constant 0 : index
    %c0_100 = arith.constant 0 : index
    %c0_101 = arith.constant 0 : index
    %95 = vector.load %arg8[%c0_98, %c0_99, %c0_100, %c0_101] : memref<2x4x4x128xbf16, #tpu.memory_space<vmem>>, vector<2x2x2x128xbf16>
    %96 = vector.shape_cast %95 : vector<2x2x2x128xbf16> to vector<8x128xbf16>
    %c0_102 = arith.constant 0 : index
    %c0_103 = arith.constant 0 : index
    %c0_104 = arith.constant 0 : index
    %97 = vector.load %arg2[%c0_102, %c0_103, %c0_104] : memref<9x128x128xbf16, #tpu.memory_space<vmem>>, vector<1x128x128xbf16>
    %98 = vector.shape_cast %97 : vector<1x128x128xbf16> to vector<128x128xbf16>
    %cst_105 = arith.constant dense<0.000000e+00> : vector<8x128xf32>
    %99 = tpu.matmul %96, %98, %cst_105 {dimension_numbers = #tpu.dot_dimension_numbers<[1], [0], [0], [1], [0, 0, 1, 1], [], []>} : vector<8x128xbf16>, vector<128x128xbf16>, vector<8x128xf32> -> vector<8x128xf32>
    %100 = arith.addf %94, %99 : vector<8x128xf32>
    %c0_106 = arith.constant 0 : index
    %c0_107 = arith.constant 0 : index
    %c1_108 = arith.constant 1 : index
    %c0_109 = arith.constant 0 : index
    %101 = vector.load %arg8[%c0_106, %c0_107, %c1_108, %c0_109] : memref<2x4x4x128xbf16, #tpu.memory_space<vmem>>, vector<2x2x2x128xbf16>
    %102 = vector.shape_cast %101 : vector<2x2x2x128xbf16> to vector<8x128xbf16>
    %c1_110 = arith.constant 1 : index
    %c0_111 = arith.constant 0 : index
    %c0_112 = arith.constant 0 : index
    %103 = vector.load %arg2[%c1_110, %c0_111, %c0_112] : memref<9x128x128xbf16, #tpu.memory_space<vmem>>, vector<1x128x128xbf16>
    %104 = vector.shape_cast %103 : vector<1x128x128xbf16> to vector<128x128xbf16>
    %cst_113 = arith.constant dense<0.000000e+00> : vector<8x128xf32>
    %105 = tpu.matmul %102, %104, %cst_113 {dimension_numbers = #tpu.dot_dimension_numbers<[1], [0], [0], [1], [0, 0, 1, 1], [], []>} : vector<8x128xbf16>, vector<128x128xbf16>, vector<8x128xf32> -> vector<8x128xf32>
    %106 = arith.addf %100, %105 : vector<8x128xf32>
    %c0_114 = arith.constant 0 : index
    %c0_115 = arith.constant 0 : index
    %c2_116 = arith.constant 2 : index
    %c0_117 = arith.constant 0 : index
    %107 = vector.load %arg8[%c0_114, %c0_115, %c2_116, %c0_117] : memref<2x4x4x128xbf16, #tpu.memory_space<vmem>>, vector<2x2x2x128xbf16>
    %108 = vector.shape_cast %107 : vector<2x2x2x128xbf16> to vector<8x128xbf16>
    %c2_118 = arith.constant 2 : index
    %c0_119 = arith.constant 0 : index
    %c0_120 = arith.constant 0 : index
    %109 = vector.load %arg2[%c2_118, %c0_119, %c0_120] : memref<9x128x128xbf16, #tpu.memory_space<vmem>>, vector<1x128x128xbf16>
    %110 = vector.shape_cast %109 : vector<1x128x128xbf16> to vector<128x128xbf16>
    %cst_121 = arith.constant dense<0.000000e+00> : vector<8x128xf32>
    %111 = tpu.matmul %108, %110, %cst_121 {dimension_numbers = #tpu.dot_dimension_numbers<[1], [0], [0], [1], [0, 0, 1, 1], [], []>} : vector<8x128xbf16>, vector<128x128xbf16>, vector<8x128xf32> -> vector<8x128xf32>
    %112 = arith.addf %106, %111 : vector<8x128xf32>
    %c0_122 = arith.constant 0 : index
    %c1_123 = arith.constant 1 : index
    %c0_124 = arith.constant 0 : index
    %c0_125 = arith.constant 0 : index
    %113 = vector.load %arg8[%c0_122, %c1_123, %c0_124, %c0_125] : memref<2x4x4x128xbf16, #tpu.memory_space<vmem>>, vector<2x2x2x128xbf16>
    %114 = vector.shape_cast %113 : vector<2x2x2x128xbf16> to vector<8x128xbf16>
    %c3_126 = arith.constant 3 : index
    %c0_127 = arith.constant 0 : index
    %c0_128 = arith.constant 0 : index
    %115 = vector.load %arg2[%c3_126, %c0_127, %c0_128] : memref<9x128x128xbf16, #tpu.memory_space<vmem>>, vector<1x128x128xbf16>
    %116 = vector.shape_cast %115 : vector<1x128x128xbf16> to vector<128x128xbf16>
    %cst_129 = arith.constant dense<0.000000e+00> : vector<8x128xf32>
    %117 = tpu.matmul %114, %116, %cst_129 {dimension_numbers = #tpu.dot_dimension_numbers<[1], [0], [0], [1], [0, 0, 1, 1], [], []>} : vector<8x128xbf16>, vector<128x128xbf16>, vector<8x128xf32> -> vector<8x128xf32>
    %118 = arith.addf %112, %117 : vector<8x128xf32>
    %c0_130 = arith.constant 0 : index
    %c1_131 = arith.constant 1 : index
    %c1_132 = arith.constant 1 : index
    %c0_133 = arith.constant 0 : index
    %119 = vector.load %arg8[%c0_130, %c1_131, %c1_132, %c0_133] : memref<2x4x4x128xbf16, #tpu.memory_space<vmem>>, vector<2x2x2x128xbf16>
    %120 = vector.shape_cast %119 : vector<2x2x2x128xbf16> to vector<8x128xbf16>
    %c4_134 = arith.constant 4 : index
    %c0_135 = arith.constant 0 : index
    %c0_136 = arith.constant 0 : index
    %121 = vector.load %arg2[%c4_134, %c0_135, %c0_136] : memref<9x128x128xbf16, #tpu.memory_space<vmem>>, vector<1x128x128xbf16>
    %122 = vector.shape_cast %121 : vector<1x128x128xbf16> to vector<128x128xbf16>
    %cst_137 = arith.constant dense<0.000000e+00> : vector<8x128xf32>
    %123 = tpu.matmul %120, %122, %cst_137 {dimension_numbers = #tpu.dot_dimension_numbers<[1], [0], [0], [1], [0, 0, 1, 1], [], []>} : vector<8x128xbf16>, vector<128x128xbf16>, vector<8x128xf32> -> vector<8x128xf32>
    %124 = arith.addf %118, %123 : vector<8x128xf32>
    %c0_138 = arith.constant 0 : index
    %c1_139 = arith.constant 1 : index
    %c2_140 = arith.constant 2 : index
    %c0_141 = arith.constant 0 : index
    %125 = vector.load %arg8[%c0_138, %c1_139, %c2_140, %c0_141] : memref<2x4x4x128xbf16, #tpu.memory_space<vmem>>, vector<2x2x2x128xbf16>
    %126 = vector.shape_cast %125 : vector<2x2x2x128xbf16> to vector<8x128xbf16>
    %c5_142 = arith.constant 5 : index
    %c0_143 = arith.constant 0 : index
    %c0_144 = arith.constant 0 : index
    %127 = vector.load %arg2[%c5_142, %c0_143, %c0_144] : memref<9x128x128xbf16, #tpu.memory_space<vmem>>, vector<1x128x128xbf16>
    %128 = vector.shape_cast %127 : vector<1x128x128xbf16> to vector<128x128xbf16>
    %cst_145 = arith.constant dense<0.000000e+00> : vector<8x128xf32>
    %129 = tpu.matmul %126, %128, %cst_145 {dimension_numbers = #tpu.dot_dimension_numbers<[1], [0], [0], [1], [0, 0, 1, 1], [], []>} : vector<8x128xbf16>, vector<128x128xbf16>, vector<8x128xf32> -> vector<8x128xf32>
    %130 = arith.addf %124, %129 : vector<8x128xf32>
    %c0_146 = arith.constant 0 : index
    %c2_147 = arith.constant 2 : index
    %c0_148 = arith.constant 0 : index
    %c0_149 = arith.constant 0 : index
    %131 = vector.load %arg8[%c0_146, %c2_147, %c0_148, %c0_149] : memref<2x4x4x128xbf16, #tpu.memory_space<vmem>>, vector<2x2x2x128xbf16>
    %132 = vector.shape_cast %131 : vector<2x2x2x128xbf16> to vector<8x128xbf16>
    %c6_150 = arith.constant 6 : index
    %c0_151 = arith.constant 0 : index
    %c0_152 = arith.constant 0 : index
    %133 = vector.load %arg2[%c6_150, %c0_151, %c0_152] : memref<9x128x128xbf16, #tpu.memory_space<vmem>>, vector<1x128x128xbf16>
    %134 = vector.shape_cast %133 : vector<1x128x128xbf16> to vector<128x128xbf16>
    %cst_153 = arith.constant dense<0.000000e+00> : vector<8x128xf32>
    %135 = tpu.matmul %132, %134, %cst_153 {dimension_numbers = #tpu.dot_dimension_numbers<[1], [0], [0], [1], [0, 0, 1, 1], [], []>} : vector<8x128xbf16>, vector<128x128xbf16>, vector<8x128xf32> -> vector<8x128xf32>
    %136 = arith.addf %130, %135 : vector<8x128xf32>
    %c0_154 = arith.constant 0 : index
    %c2_155 = arith.constant 2 : index
    %c1_156 = arith.constant 1 : index
    %c0_157 = arith.constant 0 : index
    %137 = vector.load %arg8[%c0_154, %c2_155, %c1_156, %c0_157] : memref<2x4x4x128xbf16, #tpu.memory_space<vmem>>, vector<2x2x2x128xbf16>
    %138 = vector.shape_cast %137 : vector<2x2x2x128xbf16> to vector<8x128xbf16>
    %c7_158 = arith.constant 7 : index
    %c0_159 = arith.constant 0 : index
    %c0_160 = arith.constant 0 : index
    %139 = vector.load %arg2[%c7_158, %c0_159, %c0_160] : memref<9x128x128xbf16, #tpu.memory_space<vmem>>, vector<1x128x128xbf16>
    %140 = vector.shape_cast %139 : vector<1x128x128xbf16> to vector<128x128xbf16>
    %cst_161 = arith.constant dense<0.000000e+00> : vector<8x128xf32>
    %141 = tpu.matmul %138, %140, %cst_161 {dimension_numbers = #tpu.dot_dimension_numbers<[1], [0], [0], [1], [0, 0, 1, 1], [], []>} : vector<8x128xbf16>, vector<128x128xbf16>, vector<8x128xf32> -> vector<8x128xf32>
    %142 = arith.addf %136, %141 : vector<8x128xf32>
    %c0_162 = arith.constant 0 : index
    %c2_163 = arith.constant 2 : index
    %c2_164 = arith.constant 2 : index
    %c0_165 = arith.constant 0 : index
    %143 = vector.load %arg8[%c0_162, %c2_163, %c2_164, %c0_165] : memref<2x4x4x128xbf16, #tpu.memory_space<vmem>>, vector<2x2x2x128xbf16>
    %144 = vector.shape_cast %143 : vector<2x2x2x128xbf16> to vector<8x128xbf16>
    %c8_166 = arith.constant 8 : index
    %c0_167 = arith.constant 0 : index
    %c0_168 = arith.constant 0 : index
    %145 = vector.load %arg2[%c8_166, %c0_167, %c0_168] : memref<9x128x128xbf16, #tpu.memory_space<vmem>>, vector<1x128x128xbf16>
    %146 = vector.shape_cast %145 : vector<1x128x128xbf16> to vector<128x128xbf16>
    %cst_169 = arith.constant dense<0.000000e+00> : vector<8x128xf32>
    %147 = tpu.matmul %144, %146, %cst_169 {dimension_numbers = #tpu.dot_dimension_numbers<[1], [0], [0], [1], [0, 0, 1, 1], [], []>} : vector<8x128xbf16>, vector<128x128xbf16>, vector<8x128xf32> -> vector<8x128xf32>
    %148 = arith.addf %142, %147 : vector<8x128xf32>
    %cst_170 = arith.constant dense<0.000000e+00> : vector<128xf32>
    %149 = vector.multi_reduction <add>, %148, %cst_170 [0] : vector<8x128xf32> to vector<128xf32>
    %150 = vector.shape_cast %149 : vector<128xf32> to vector<1x128xf32>
    %cst_171 = arith.constant 8.000000e+00 : f32
    %151 = vector.broadcast %cst_171 : f32 to vector<1x128xf32>
    %152 = arith.divf %150, %151 : vector<1x128xf32>
    %153 = arith.mulf %148, %148 : vector<8x128xf32>
    %cst_172 = arith.constant dense<0.000000e+00> : vector<128xf32>
    %154 = vector.multi_reduction <add>, %153, %cst_172 [0] : vector<8x128xf32> to vector<128xf32>
    %155 = vector.shape_cast %154 : vector<128xf32> to vector<1x128xf32>
    %cst_173 = arith.constant 8.000000e+00 : f32
    %156 = vector.broadcast %cst_173 : f32 to vector<1x128xf32>
    %157 = arith.divf %155, %156 : vector<1x128xf32>
    %158 = arith.mulf %152, %152 : vector<1x128xf32>
    %159 = arith.subf %157, %158 : vector<1x128xf32>
    %cst_174 = arith.constant 0.000000e+00 : f32
    %160 = vector.broadcast %cst_174 : f32 to vector<1x128xf32>
    %161 = arith.maximumf %159, %160 : vector<1x128xf32>
    %162 = vector.broadcast %152 : vector<1x128xf32> to vector<8x128xf32>
    %163 = arith.subf %148, %162 : vector<8x128xf32>
    %c0_175 = arith.constant 0 : index
    %c0_176 = arith.constant 0 : index
    %164 = vector.load %arg5[%c0_175, %c0_176] : memref<1x128xf32, #tpu.memory_space<vmem>>, vector<1x128xf32>
    %cst_177 = arith.constant 9.99999974E-6 : f32
    %165 = vector.broadcast %cst_177 : f32 to vector<1x128xf32>
    %166 = arith.addf %161, %165 : vector<1x128xf32>
    %167 = math.rsqrt %166 : vector<1x128xf32>
    %168 = arith.mulf %164, %167 : vector<1x128xf32>
    %169 = vector.broadcast %168 : vector<1x128xf32> to vector<8x128xf32>
    %170 = arith.mulf %163, %169 : vector<8x128xf32>
    %c0_178 = arith.constant 0 : index
    %c0_179 = arith.constant 0 : index
    %171 = vector.load %arg6[%c0_178, %c0_179] : memref<1x128xf32, #tpu.memory_space<vmem>>, vector<1x128xf32>
    %172 = vector.broadcast %171 : vector<1x128xf32> to vector<8x128xf32>
    %173 = arith.addf %170, %172 : vector<8x128xf32>
    %174 = vector.shape_cast %0 : vector<2x2x2x128xbf16> to vector<8x128xbf16>
    %175 = arith.extf %174 : vector<8x128xbf16> to vector<8x128xf32>
    %176 = arith.addf %175, %173 : vector<8x128xf32>
    %177 = vector.shape_cast %176 : vector<8x128xf32> to vector<2x2x2x128xf32>
    %178 = arith.truncf %177 : vector<2x2x2x128xf32> to vector<2x2x2x128xbf16>
    %c0_180 = arith.constant 0 : index
    %c0_181 = arith.constant 0 : index
    %c0_182 = arith.constant 0 : index
    %c0_183 = arith.constant 0 : index
    %179 = vector.load %arg7[%c0_180, %c0_181, %c0_182, %c0_183] : memref<2x2x2x128xbf16, #tpu.memory_space<vmem>>, vector<2x2x2x128xbf16>
    tpu.vector_store %arg7[%c0_180, %c0_181, %c0_182, %c0_183], %178 {strides = array<i32>} : memref<2x2x2x128xbf16, #tpu.memory_space<vmem>>, vector<2x2x2x128xbf16>,
    return
  }
}

module attributes {stable_mosaic.version = 11 : i64} {
  func.func @_mm_fused_kernel(%arg0: i32, %arg1: memref<8x128xbf16, #tpu.memory_space<vmem>>, %arg2: memref<128x256xbf16, #tpu.memory_space<vmem>>, %arg3: memref<1x256xf32, #tpu.memory_space<vmem>>, %arg4: memref<8x256xbf16, #tpu.memory_space<vmem>>, %arg5: memref<8x256xbf16, #tpu.memory_space<vmem>>) attributes {dimension_semantics = [#tpu.dimension_semantics<parallel>], iteration_bounds = array<i64: 1>, scalar_prefetch = 0 : i64, scratch_operands = 0 : i64, tpu.core_type = #tpu.core_type<tc>, window_params = [{transform_indices = @transform_0, window_bounds = array<i64: 8, 128>}, {pipeline_mode = #tpu.pipeline_mode<synchronous>, transform_indices = @transform_1, window_bounds = array<i64: 128, 256>}, {pipeline_mode = #tpu.pipeline_mode<synchronous>, transform_indices = @transform_2, window_bounds = array<i64: 1, 256>}, {transform_indices = @transform_3, window_bounds = array<i64: 8, 256>}, {transform_indices = @transform_4, window_bounds = array<i64: 8, 256>}]} {
    %c0 = arith.constant 0 : index
    %c0_0 = arith.constant 0 : index
    %0 = vector.load %arg1[%c0, %c0_0] : memref<8x128xbf16, #tpu.memory_space<vmem>>, vector<8x128xbf16>
    %c0_1 = arith.constant 0 : index
    %c0_2 = arith.constant 0 : index
    %1 = vector.load %arg2[%c0_1, %c0_2] : memref<128x256xbf16, #tpu.memory_space<vmem>>, vector<128x256xbf16>
    %cst = arith.constant dense<0.000000e+00> : vector<8x256xf32>
    %2 = tpu.matmul %0, %1, %cst {dimension_numbers = #tpu.dot_dimension_numbers<[1], [0], [0], [1], [0, 0, 1, 1], [], []>} : vector<8x128xbf16>, vector<128x256xbf16>, vector<8x256xf32> -> vector<8x256xf32>
    %c0_3 = arith.constant 0 : index
    %c0_4 = arith.constant 0 : index
    %3 = vector.load %arg3[%c0_3, %c0_4] : memref<1x256xf32, #tpu.memory_space<vmem>>, vector<1x256xf32>
    %4 = vector.broadcast %3 : vector<1x256xf32> to vector<8x256xf32>
    %5 = arith.addf %2, %4 : vector<8x256xf32>
    %c0_5 = arith.constant 0 : index
    %c0_6 = arith.constant 0 : index
    %6 = vector.load %arg4[%c0_5, %c0_6] : memref<8x256xbf16, #tpu.memory_space<vmem>>, vector<8x256xbf16>
    %7 = arith.extf %6 : vector<8x256xbf16> to vector<8x256xf32>
    %8 = arith.addf %5, %7 : vector<8x256xf32>
    %cst_7 = arith.constant 0.000000e+00 : f32
    %9 = vector.broadcast %cst_7 : f32 to vector<8x256xf32>
    %10 = arith.maximumf %8, %9 : vector<8x256xf32>
    %11 = arith.truncf %10 : vector<8x256xf32> to vector<8x256xbf16>
    %c0_8 = arith.constant 0 : index
    %c0_9 = arith.constant 0 : index
    %12 = vector.load %arg5[%c0_8, %c0_9] : memref<8x256xbf16, #tpu.memory_space<vmem>>, vector<8x256xbf16>
    tpu.vector_store %arg5[%c0_8, %c0_9], %11 {strides = array<i32>} : memref<8x256xbf16, #tpu.memory_space<vmem>>, vector<8x256xbf16>,
    return
  }
  func.func @transform_0(%arg0: i32) -> (i32, i32) {
    %c0_i32 = arith.constant 0 : i32
    %c0_i32_0 = arith.constant 0 : i32
    return %arg0, %c0_i32 : i32, i32
  }
  func.func @transform_1(%arg0: i32) -> (i32, i32) {
    %c0_i32 = arith.constant 0 : i32
    %c0_i32_0 = arith.constant 0 : i32
    %c0_i32_1 = arith.constant 0 : i32
    return %c0_i32, %c0_i32_0 : i32, i32
  }
  func.func @transform_2(%arg0: i32) -> (i32, i32) {
    %c0_i32 = arith.constant 0 : i32
    %c0_i32_0 = arith.constant 0 : i32
    %c0_i32_1 = arith.constant 0 : i32
    return %c0_i32, %c0_i32_0 : i32, i32
  }
  func.func @transform_3(%arg0: i32) -> (i32, i32) {
    %c0_i32 = arith.constant 0 : i32
    %c0_i32_0 = arith.constant 0 : i32
    return %arg0, %c0_i32 : i32, i32
  }
  func.func @transform_4(%arg0: i32) -> (i32, i32) {
    %c0_i32 = arith.constant 0 : i32
    %c0_i32_0 = arith.constant 0 : i32
    return %arg0, %c0_i32 : i32, i32
  }
}

module attributes {stable_mosaic.version = 11 : i64} {
  func.func @_mm_fused_kernel(%arg0: i32, %arg1: memref<32x64xbf16, #tpu.memory_space<vmem>>, %arg2: memref<64x128xbf16, #tpu.memory_space<vmem>>, %arg3: memref<1x128xf32, #tpu.memory_space<vmem>>, %arg4: memref<32x128xbf16, #tpu.memory_space<vmem>>, %arg5: memref<32x128xbf16, #tpu.memory_space<vmem>>) attributes {dimension_semantics = [#tpu.dimension_semantics<parallel>], iteration_bounds = array<i64: 1>, scalar_prefetch = 0 : i64, scratch_operands = 0 : i64, tpu.core_type = #tpu.core_type<tc>, window_params = [{transform_indices = @transform_0, window_bounds = array<i64: 32, 64>}, {pipeline_mode = #tpu.pipeline_mode<synchronous>, transform_indices = @transform_1, window_bounds = array<i64: 64, 128>}, {pipeline_mode = #tpu.pipeline_mode<synchronous>, transform_indices = @transform_2, window_bounds = array<i64: 1, 128>}, {transform_indices = @transform_3, window_bounds = array<i64: 32, 128>}, {transform_indices = @transform_4, window_bounds = array<i64: 32, 128>}]} {
    %c0 = arith.constant 0 : index
    %c0_0 = arith.constant 0 : index
    %0 = vector.load %arg1[%c0, %c0_0] : memref<32x64xbf16, #tpu.memory_space<vmem>>, vector<32x64xbf16>
    %c0_1 = arith.constant 0 : index
    %c0_2 = arith.constant 0 : index
    %1 = vector.load %arg2[%c0_1, %c0_2] : memref<64x128xbf16, #tpu.memory_space<vmem>>, vector<64x128xbf16>
    %cst = arith.constant dense<0.000000e+00> : vector<32x128xf32>
    %2 = tpu.matmul %0, %1, %cst {dimension_numbers = #tpu.dot_dimension_numbers<[1], [0], [0], [1], [0, 0, 1, 1], [], []>} : vector<32x64xbf16>, vector<64x128xbf16>, vector<32x128xf32> -> vector<32x128xf32>
    %c0_3 = arith.constant 0 : index
    %c0_4 = arith.constant 0 : index
    %3 = vector.load %arg3[%c0_3, %c0_4] : memref<1x128xf32, #tpu.memory_space<vmem>>, vector<1x128xf32>
    %4 = vector.broadcast %3 : vector<1x128xf32> to vector<32x128xf32>
    %5 = arith.addf %2, %4 : vector<32x128xf32>
    %c0_5 = arith.constant 0 : index
    %c0_6 = arith.constant 0 : index
    %6 = vector.load %arg4[%c0_5, %c0_6] : memref<32x128xbf16, #tpu.memory_space<vmem>>, vector<32x128xbf16>
    %7 = arith.extf %6 : vector<32x128xbf16> to vector<32x128xf32>
    %8 = arith.addf %5, %7 : vector<32x128xf32>
    %cst_7 = arith.constant 0.000000e+00 : f32
    %9 = vector.broadcast %cst_7 : f32 to vector<32x128xf32>
    %10 = arith.maximumf %8, %9 : vector<32x128xf32>
    %11 = arith.truncf %10 : vector<32x128xf32> to vector<32x128xbf16>
    %c0_8 = arith.constant 0 : index
    %c0_9 = arith.constant 0 : index
    %12 = vector.load %arg5[%c0_8, %c0_9] : memref<32x128xbf16, #tpu.memory_space<vmem>>, vector<32x128xbf16>
    tpu.vector_store %arg5[%c0_8, %c0_9], %11 {strides = array<i32>} : memref<32x128xbf16, #tpu.memory_space<vmem>>, vector<32x128xbf16>,
    return
  }
  func.func @transform_0(%arg0: i32) -> (i32, i32) {
    %c0_i32 = arith.constant 0 : i32
    %c0_i32_0 = arith.constant 0 : i32
    return %arg0, %c0_i32 : i32, i32
  }
  func.func @transform_1(%arg0: i32) -> (i32, i32) {
    %c0_i32 = arith.constant 0 : i32
    %c0_i32_0 = arith.constant 0 : i32
    %c0_i32_1 = arith.constant 0 : i32
    return %c0_i32, %c0_i32_0 : i32, i32
  }
  func.func @transform_2(%arg0: i32) -> (i32, i32) {
    %c0_i32 = arith.constant 0 : i32
    %c0_i32_0 = arith.constant 0 : i32
    %c0_i32_1 = arith.constant 0 : i32
    return %c0_i32, %c0_i32_0 : i32, i32
  }
  func.func @transform_3(%arg0: i32) -> (i32, i32) {
    %c0_i32 = arith.constant 0 : i32
    %c0_i32_0 = arith.constant 0 : i32
    return %arg0, %c0_i32 : i32, i32
  }
  func.func @transform_4(%arg0: i32) -> (i32, i32) {
    %c0_i32 = arith.constant 0 : i32
    %c0_i32_0 = arith.constant 0 : i32
    return %arg0, %c0_i32 : i32, i32
  }
}

module attributes {stable_mosaic.version = 11 : i64} {
  func.func @_mm_fused_kernel(%arg0: i32, %arg1: memref<128x32xbf16, #tpu.memory_space<vmem>>, %arg2: memref<32x12xbf16, #tpu.memory_space<vmem>>, %arg3: memref<1x12xf32, #tpu.memory_space<vmem>>, %arg4: memref<128x12xbf16, #tpu.memory_space<vmem>>, %arg5: memref<128x12xf32, #tpu.memory_space<vmem>>) attributes {dimension_semantics = [#tpu.dimension_semantics<parallel>], iteration_bounds = array<i64: 1>, scalar_prefetch = 0 : i64, scratch_operands = 0 : i64, tpu.core_type = #tpu.core_type<tc>, window_params = [{transform_indices = @transform_0, window_bounds = array<i64: 128, 32>}, {pipeline_mode = #tpu.pipeline_mode<synchronous>, transform_indices = @transform_1, window_bounds = array<i64: 32, 12>}, {pipeline_mode = #tpu.pipeline_mode<synchronous>, transform_indices = @transform_2, window_bounds = array<i64: 1, 12>}, {transform_indices = @transform_3, window_bounds = array<i64: 128, 12>}, {transform_indices = @transform_4, window_bounds = array<i64: 128, 12>}]} {
    %c0 = arith.constant 0 : index
    %c0_0 = arith.constant 0 : index
    %0 = vector.load %arg1[%c0, %c0_0] : memref<128x32xbf16, #tpu.memory_space<vmem>>, vector<128x32xbf16>
    %c0_1 = arith.constant 0 : index
    %c0_2 = arith.constant 0 : index
    %1 = vector.load %arg2[%c0_1, %c0_2] : memref<32x12xbf16, #tpu.memory_space<vmem>>, vector<32x12xbf16>
    %cst = arith.constant dense<0.000000e+00> : vector<128x12xf32>
    %2 = tpu.matmul %0, %1, %cst {dimension_numbers = #tpu.dot_dimension_numbers<[1], [0], [0], [1], [0, 0, 1, 1], [], []>} : vector<128x32xbf16>, vector<32x12xbf16>, vector<128x12xf32> -> vector<128x12xf32>
    %c0_3 = arith.constant 0 : index
    %c0_4 = arith.constant 0 : index
    %3 = vector.load %arg3[%c0_3, %c0_4] : memref<1x12xf32, #tpu.memory_space<vmem>>, vector<1x12xf32>
    %4 = vector.broadcast %3 : vector<1x12xf32> to vector<128x12xf32>
    %5 = arith.addf %2, %4 : vector<128x12xf32>
    %c0_5 = arith.constant 0 : index
    %c0_6 = arith.constant 0 : index
    %6 = vector.load %arg4[%c0_5, %c0_6] : memref<128x12xbf16, #tpu.memory_space<vmem>>, vector<128x12xbf16>
    %7 = arith.extf %6 : vector<128x12xbf16> to vector<128x12xf32>
    %8 = arith.addf %5, %7 : vector<128x12xf32>
    %cst_7 = arith.constant 0.000000e+00 : f32
    %9 = vector.broadcast %cst_7 : f32 to vector<128x12xf32>
    %10 = arith.maximumf %8, %9 : vector<128x12xf32>
    %cst_8 = arith.constant 1.000000e+00 : f32
    %11 = vector.broadcast %cst_8 : f32 to vector<128x12xf32>
    %12 = arith.minimumf %10, %11 : vector<128x12xf32>
    %c0_9 = arith.constant 0 : index
    %c0_10 = arith.constant 0 : index
    %13 = vector.load %arg5[%c0_9, %c0_10] : memref<128x12xf32, #tpu.memory_space<vmem>>, vector<128x12xf32>
    tpu.vector_store %arg5[%c0_9, %c0_10], %12 {strides = array<i32>} : memref<128x12xf32, #tpu.memory_space<vmem>>, vector<128x12xf32>,
    return
  }
  func.func @transform_0(%arg0: i32) -> (i32, i32) {
    %c0_i32 = arith.constant 0 : i32
    %c0_i32_0 = arith.constant 0 : i32
    return %arg0, %c0_i32 : i32, i32
  }
  func.func @transform_1(%arg0: i32) -> (i32, i32) {
    %c0_i32 = arith.constant 0 : i32
    %c0_i32_0 = arith.constant 0 : i32
    %c0_i32_1 = arith.constant 0 : i32
    return %c0_i32, %c0_i32_0 : i32, i32
  }
  func.func @transform_2(%arg0: i32) -> (i32, i32) {
    %c0_i32 = arith.constant 0 : i32
    %c0_i32_0 = arith.constant 0 : i32
    %c0_i32_1 = arith.constant 0 : i32
    return %c0_i32, %c0_i32_0 : i32, i32
  }
  func.func @transform_3(%arg0: i32) -> (i32, i32) {
    %c0_i32 = arith.constant 0 : i32
    %c0_i32_0 = arith.constant 0 : i32
    return %arg0, %c0_i32 : i32, i32
  }
  func.func @transform_4(%arg0: i32) -> (i32, i32) {
    %c0_i32 = arith.constant 0 : i32
    %c0_i32_0 = arith.constant 0 : i32
    return %arg0, %c0_i32 : i32, i32
  }
}

</mosaic_0001>

<llo_original>
// kernel: _lambda_.12
$region0: #{_lambda_.12}
  #allocation0 [shape = 'u32[]', space=smem, size = 0x4, offset = 0x4, fixed_abs, tag = 'smem constant byte address 0x4 - core index']
  #allocation1 [shape = 'u32[72,128]{1,0:T(1,128)}', space=vmem, size = 0x9000, scoped, tag = 'internal scratch']
  %s0 = inlined_call_operand.vmem [shape: bf16[128,27], index: 0, kind: input, shape index: {}]
  %s1 = inlined_call_operand.vmem [shape: bf16[27,32], index: 1, kind: input, shape index: {}]
  %s2 = inlined_call_operand.vmem [shape: bf16[128,32], index: 2, kind: output, shape index: {0}]
  %s3 = inlined_call_operand.vmem [shape: f32[1,8,32], index: 3, kind: output, shape index: {1}]
  %s4 = inlined_call_operand.vmem [shape: f32[1,8,32], index: 4, kind: output, shape index: {2}]
  %5 = xla_tuple %s2, %s3, %s4
  %s6 = sld [smem:[#allocation0]]
  $region34: #{_lambda_.12} parent=0
    _
  %s8 = ssub.s32 1, %s6
  %s9 = scalar_select 0, %s8, %s6
  // Predicated region
  $region2: #{_lambda_.12} parent=0 // pred_check
    _
  $region3: #{_lambda_.12} parent=0 // pred_check_branch
    %11 = sbr.rel (0) target = $region5
  $region4: #{_lambda_.12} parent=0 // pred_region
    _
  $region5: #{_lambda_.12} parent=0 // pred_fallthru
    _
  // Predicated region
  $region6: #{_lambda_.12} parent=0 // pred_check
    _
  $region7: #{_lambda_.12} parent=0 // pred_check_branch
    %13 = sbr.rel (0) target = $region9
  $region8: #{_lambda_.12} parent=0 // pred_region
    _
  $region9: #{_lambda_.12} parent=0 // pred_fallthru
    _
  %v15 = vld [vmem:[%s0] sm:$0xf]
  %v16 = vld [vmem:[%s0 + $0x4] sm:$0xf]
  %v17 = vld [vmem:[%s0 + $0x8] sm:$0xf]
  %v18 = vld [vmem:[%s0 + $0xc] sm:$0xf]
  %v19 = vld [vmem:[%s0 + $0x10] sm:$0xf]
  %v20 = vld [vmem:[%s0 + $0x14] sm:$0xf]
  %v21 = vld [vmem:[%s0 + $0x18] sm:$0xf]
  %v22 = vld [vmem:[%s0 + $0x1c] sm:$0xf]
  %v23 = vld [vmem:[%s0 + $0x20] sm:$0xf]
  %v24 = vld [vmem:[%s0 + $0x24] sm:$0xf]
  %v25 = vld [vmem:[%s0 + $0x28] sm:$0xf]
  %v26 = vld [vmem:[%s0 + $0x2c] sm:$0xf]
  %v27 = vld [vmem:[%s0 + $0x30] sm:$0xf]
  %v28 = vld [vmem:[%s0 + $0x34] sm:$0xf]
  %v29 = vld [vmem:[%s0 + $0x38] sm:$0xf]
  %v30 = vld [vmem:[%s0 + $0x3c] sm:$0xf]
  %v31 = vld [vmem:[%s1] sm:$0xf]
  %v32 = vld [vmem:[%s1 + $0x4] sm:$0xf]
  %v33 = vld [vmem:[%s1 + $0x8] sm:$0xf]
  %v34 = vld [vmem:[%s1 + $0xc] sm:$0x3]
  %v51 = vunpack.c.l.b16 %v15
  %v52 = vunpack.c.l.b16 %v16
  %v53 = vunpack.c.l.b16 %v17
  %v54 = vunpack.c.l.b16 %v18
  %v55 = vunpack.c.l.b16 %v19
  %v56 = vunpack.c.l.b16 %v20
  %v57 = vunpack.c.l.b16 %v21
  %v58 = vunpack.c.l.b16 %v22
  %v59 = vunpack.c.l.b16 %v23
  %v60 = vunpack.c.l.b16 %v24
  %v61 = vunpack.c.l.b16 %v25
  %v62 = vunpack.c.l.b16 %v26
  %v63 = vunpack.c.l.b16 %v27
  %v64 = vunpack.c.l.b16 %v28
  %v65 = vunpack.c.l.b16 %v29
  %v66 = vunpack.c.l.b16 %v30
  %v67 = vpack.c.b16 %v52, %v51
  %v68 = vpack.c.b16 %v54, %v53
  %v69 = vpack.c.b16 %v56, %v55
  %v70 = vpack.c.b16 %v58, %v57
  %v71 = vpack.c.b16 %v60, %v59
  %v72 = vpack.c.b16 %v62, %v61
  %v73 = vpack.c.b16 %v64, %v63
  %v74 = vpack.c.b16 %v66, %v65
  %v79 = vunpack.c.l.b16 %v31
  %v80 = vunpack.c.l.b16 %v32
  %v81 = vunpack.c.l.b16 %v33
  %v82 = vunpack.c.l.b16 %v34
  %v83 = vpack.c.b16 %v80, %v79
  %v84 = vpack.c.b16 %v82, %v81
  %vm86 = vcmask 220160
  %v88 = vsel %vm86, %v67, 0
  %v91 = vsel %vm86, %v68, 0
  %v94 = vsel %vm86, %v69, 0
  %v97 = vsel %vm86, %v70, 0
  %v100 = vsel %vm86, %v71, 0
  %v103 = vsel %vm86, %v72, 0
  %v106 = vsel %vm86, %v73, 0
  %v109 = vsel %vm86, %v74, 0
  %vm111 = vcmask 1044480
  %vm112 = vcmask 1045504
  %v113 = vsel %vm111, 4294967295, 65535
  %v114 = vsel %vm112, %v113, 0
  %v116 = vand.u32 %v84, %v114
  %118 = vmatpush.bf16.msra.mxu0 0
  %119 = vmatpush.bf16.msra.mxu0 0
  %120 = vmatpush.bf16.msra.mxu0 0
  %121 = vmatpush.bf16.msra.mxu0 0
  %122 = vmatpush.bf16.msra.mxu0 0
  %123 = vmatpush.bf16.msra.mxu0 0
  %124 = vmatpush.bf16.msra.mxu0 %v116
  %125 = vmatpush.bf16.msra.mxu0 %v83
  %126 = vmatmul.bf16.gmra.mxu0 %v88
  %v127 = vpop.f32.mrf.mxu0
  %v128 = vadd.f32 0.0, %v127
  %v129 = vpop.f32.mrf.mxu0
  %v130 = vadd.f32 0.0, %v129
  %131 = vmatmul.bf16.gmra.mxu0 %v91
  %v132 = vpop.f32.mrf.mxu0
  %v133 = vadd.f32 0.0, %v132
  %v134 = vpop.f32.mrf.mxu0
  %v135 = vadd.f32 0.0, %v134
  %136 = vmatmul.bf16.gmra.mxu0 %v94
  %v137 = vpop.f32.mrf.mxu0
  %v138 = vadd.f32 0.0, %v137
  %v139 = vpop.f32.mrf.mxu0
  %v140 = vadd.f32 0.0, %v139
  %141 = vmatmul.bf16.gmra.mxu0 %v97
  %v142 = vpop.f32.mrf.mxu0
  %v143 = vadd.f32 0.0, %v142
  %v144 = vpop.f32.mrf.mxu0
  %v145 = vadd.f32 0.0, %v144
  %146 = vmatmul.bf16.gmra.mxu0 %v100
  %v147 = vpop.f32.mrf.mxu0
  %v148 = vadd.f32 0.0, %v147
  %v149 = vpop.f32.mrf.mxu0
  %v150 = vadd.f32 0.0, %v149
  %151 = vmatmul.bf16.gmra.mxu0 %v103
  %v152 = vpop.f32.mrf.mxu0
  %v153 = vadd.f32 0.0, %v152
  %v154 = vpop.f32.mrf.mxu0
  %v155 = vadd.f32 0.0, %v154
  %156 = vmatmul.bf16.gmra.mxu0 %v106
  %v157 = vpop.f32.mrf.mxu0
  %v158 = vadd.f32 0.0, %v157
  %v159 = vpop.f32.mrf.mxu0
  %v160 = vadd.f32 0.0, %v159
  %161 = vmatmul.bf16.gmra.mxu0 %v109
  %v162 = vpop.f32.mrf.mxu0
  %v163 = vadd.f32 0.0, %v162
  %v164 = vpop.f32.mrf.mxu0
  %v165 = vadd.f32 0.0, %v164
  %166 = vdwg.mxu0
  %vm167 = vcmask 261120
  %v168 = vsel %vm167, %v128, 0.0
  %v169 = vsel %vm167, %v130, 0.0
  %v170 = vadd.f32 %v168, %v169
  %v171 = vsel %vm167, %v133, 0.0
  %v172 = vadd.f32 %v170, %v171
  %v173 = vsel %vm167, %v135, 0.0
  %v174 = vadd.f32 %v172, %v173
  %v175 = vsel %vm167, %v138, 0.0
  %v176 = vadd.f32 %v174, %v175
  %v177 = vsel %vm167, %v140, 0.0
  %v178 = vadd.f32 %v176, %v177
  %v179 = vsel %vm167, %v143, 0.0
  %v180 = vadd.f32 %v178, %v179
  %v181 = vsel %vm167, %v145, 0.0
  %v182 = vadd.f32 %v180, %v181
  %v183 = vsel %vm167, %v148, 0.0
  %v184 = vadd.f32 %v182, %v183
  %v185 = vsel %vm167, %v150, 0.0
  %v186 = vadd.f32 %v184, %v185
  %v187 = vsel %vm167, %v153, 0.0
  %v188 = vadd.f32 %v186, %v187
  %v189 = vsel %vm167, %v155, 0.0
  %v190 = vadd.f32 %v188, %v189
  %v191 = vsel %vm167, %v158, 0.0
  %v192 = vadd.f32 %v190, %v191
  %v193 = vsel %vm167, %v160, 0.0
  %v194 = vadd.f32 %v192, %v193
  %v195 = vsel %vm167, %v163, 0.0
  %v196 = vadd.f32 %v194, %v195
  %v197 = vsel %vm167, %v165, 0.0
  %v198 = vadd.f32 %v196, %v197
  %v199 = vrot.slane %v198, 4
  %v200 = vadd.f32 %v198, %v199
  %v201 = vrot.slane %v200, 2
  %v202 = vadd.f32 %v200, %v201
  %v203 = vrot.slane %v202, 1
  %v204 = vadd.f32 %v202, %v203
  %v205 = vmul.f32 %v128, %v128
  %v206 = vmul.f32 %v130, %v130
  %v207 = vmul.f32 %v133, %v133
  %v208 = vmul.f32 %v135, %v135
  %v209 = vmul.f32 %v138, %v138
  %v210 = vmul.f32 %v140, %v140
  %v211 = vmul.f32 %v143, %v143
  %v212 = vmul.f32 %v145, %v145
  %v213 = vmul.f32 %v148, %v148
  %v214 = vmul.f32 %v150, %v150
  %v215 = vmul.f32 %v153, %v153
  %v216 = vmul.f32 %v155, %v155
  %v217 = vmul.f32 %v158, %v158
  %v218 = vmul.f32 %v160, %v160
  %v219 = vmul.f32 %v163, %v163
  %v220 = vmul.f32 %v165, %v165
  %v221 = vsel %vm167, %v205, 0.0
  %v222 = vsel %vm167, %v206, 0.0
  %v223 = vadd.f32 %v221, %v222
  %v224 = vsel %vm167, %v207, 0.0
  %v225 = vadd.f32 %v223, %v224
  %v226 = vsel %vm167, %v208, 0.0
  %v227 = vadd.f32 %v225, %v226
  %v228 = vsel %vm167, %v209, 0.0
  %v229 = vadd.f32 %v227, %v228
  %v230 = vsel %vm167, %v210, 0.0
  %v231 = vadd.f32 %v229, %v230
  %v232 = vsel %vm167, %v211, 0.0
  %v233 = vadd.f32 %v231, %v232
  %v234 = vsel %vm167, %v212, 0.0
  %v235 = vadd.f32 %v233, %v234
  %v236 = vsel %vm167, %v213, 0.0
  %v237 = vadd.f32 %v235, %v236
  %v238 = vsel %vm167, %v214, 0.0
  %v239 = vadd.f32 %v237, %v238
  %v240 = vsel %vm167, %v215, 0.0
  %v241 = vadd.f32 %v239, %v240
  %v242 = vsel %vm167, %v216, 0.0
  %v243 = vadd.f32 %v241, %v242
  %v244 = vsel %vm167, %v217, 0.0
  %v245 = vadd.f32 %v243, %v244
  %v246 = vsel %vm167, %v218, 0.0
  %v247 = vadd.f32 %v245, %v246
  %v248 = vsel %vm167, %v219, 0.0
  %v249 = vadd.f32 %v247, %v248
  %v250 = vsel %vm167, %v220, 0.0
  %v251 = vadd.f32 %v249, %v250
  %v252 = vrot.slane %v251, 4
  %v253 = vadd.f32 %v251, %v252
  %v254 = vrot.slane %v253, 2
  %v255 = vadd.f32 %v253, %v254
  %v256 = vrot.slane %v255, 1
  %v257 = vadd.f32 %v255, %v256
  %258 = vst.msk [vmem:[%s3] sm:$0xff] %vm167, %v204
  %259 = vst.msk [vmem:[%s4] sm:$0xff] %vm167, %v257
  %v260 = vpack.c.bf16 %v128, %v128
  %v261 = vpack.c.bf16 %v130, %v130
  %v262 = vpack.c.bf16 %v133, %v133
  %v263 = vpack.c.bf16 %v135, %v135
  %v264 = vpack.c.bf16 %v138, %v138
  %v265 = vpack.c.bf16 %v140, %v140
  %v266 = vpack.c.bf16 %v143, %v143
  %v267 = vpack.c.bf16 %v145, %v145
  %v268 = vpack.c.bf16 %v148, %v148
  %v269 = vpack.c.bf16 %v150, %v150
  %v270 = vpack.c.bf16 %v153, %v153
  %v271 = vpack.c.bf16 %v155, %v155
  %v272 = vpack.c.bf16 %v158, %v158
  %v273 = vpack.c.bf16 %v160, %v160
  %v274 = vpack.c.bf16 %v163, %v163
  %v275 = vpack.c.bf16 %v165, %v165
  %vm276 = vcmask 257024
  %277 = vst.msk [vmem:[%s2] sm:$0xf] %vm276, %v260
  %278 = vst.msk [vmem:[%s2 + $0x4] sm:$0xf] %vm276, %v261
  %279 = vst.msk [vmem:[%s2 + $0x8] sm:$0xf] %vm276, %v262
  %280 = vst.msk [vmem:[%s2 + $0xc] sm:$0xf] %vm276, %v263
  %281 = vst.msk [vmem:[%s2 + $0x10] sm:$0xf] %vm276, %v264
  %282 = vst.msk [vmem:[%s2 + $0x14] sm:$0xf] %vm276, %v265
  %283 = vst.msk [vmem:[%s2 + $0x18] sm:$0xf] %vm276, %v266
  %284 = vst.msk [vmem:[%s2 + $0x1c] sm:$0xf] %vm276, %v267
  %285 = vst.msk [vmem:[%s2 + $0x20] sm:$0xf] %vm276, %v268
  %286 = vst.msk [vmem:[%s2 + $0x24] sm:$0xf] %vm276, %v269
  %287 = vst.msk [vmem:[%s2 + $0x28] sm:$0xf] %vm276, %v270
  %288 = vst.msk [vmem:[%s2 + $0x2c] sm:$0xf] %vm276, %v271
  %289 = vst.msk [vmem:[%s2 + $0x30] sm:$0xf] %vm276, %v272
  %290 = vst.msk [vmem:[%s2 + $0x34] sm:$0xf] %vm276, %v273
  %291 = vst.msk [vmem:[%s2 + $0x38] sm:$0xf] %vm276, %v274
  %292 = vst.msk [vmem:[%s2 + $0x3c] sm:$0xf] %vm276, %v275
  // Predicated region
  $region10: #{_lambda_.12} parent=0 // pred_check
    _
  $region11: #{_lambda_.12} parent=0 // pred_check_branch
    %294 = sbr.rel (0) target = $region13
  $region12: #{_lambda_.12} parent=0 // pred_region
    _
  $region13: #{_lambda_.12} parent=0 // pred_fallthru
    _
  // Predicated region
  $region14: #{_lambda_.12} parent=0 // pred_check
    _
  $region15: #{_lambda_.12} parent=0 // pred_check_branch
    %296 = sbr.rel (0) target = $region17
  $region16: #{_lambda_.12} parent=0 // pred_region
    _
  $region17: #{_lambda_.12} parent=0 // pred_fallthru
    _
  // Predicated region
  $region18: #{_lambda_.12} parent=0 // pred_check
    _
  $region19: #{_lambda_.12} parent=0 // pred_check_branch
    %298 = sbr.rel (0) target = $region21
  $region20: #{_lambda_.12} parent=0 // pred_region
    _
  $region21: #{_lambda_.12} parent=0 // pred_fallthru
    _
  // Predicated region
  $region22: #{_lambda_.12} parent=0 // pred_check
    _
  $region23: #{_lambda_.12} parent=0 // pred_check_branch
    %300 = sbr.rel (0) target = $region25
  $region24: #{_lambda_.12} parent=0 // pred_region
    _
  $region25: #{_lambda_.12} parent=0 // pred_fallthru
    _
  // Predicated region
  $region26: #{_lambda_.12} parent=0 // pred_check
    _
  $region27: #{_lambda_.12} parent=0 // pred_check_branch
    %302 = sbr.rel (0) target = $region29
  $region28: #{_lambda_.12} parent=0 // pred_region
    _
  $region29: #{_lambda_.12} parent=0 // pred_fallthru
    _
  // Predicated region
  $region30: #{_lambda_.12} parent=0 // pred_check
    _
  $region31: #{_lambda_.12} parent=0 // pred_check_branch
    %304 = sbr.rel (0) target = $region33
  $region32: #{_lambda_.12} parent=0 // pred_region
    _
  $region33: #{_lambda_.12} parent=0 // pred_fallthru
    _

// kernel: _lambda_.13
$region0: #{_lambda_.13}
  #allocation0 [shape = 'u32[]', space=smem, size = 0x4, offset = 0x4, fixed_abs, tag = 'smem constant byte address 0x4 - core index']
  #allocation1 [shape = 'u32[72,128]{1,0:T(1,128)}', space=vmem, size = 0x9000, scoped, tag = 'internal scratch']
  %s0 = inlined_call_operand.vmem [shape: bf16[128,32], index: 0, kind: input, shape index: {}]
  %s1 = inlined_call_operand.vmem [shape: f32[1,32], index: 1, kind: input, shape index: {}]
  %s2 = inlined_call_operand.vmem [shape: f32[1,32], index: 2, kind: input, shape index: {}]
  %s3 = inlined_call_operand.vmem [shape: bf16[128,32], index: 3, kind: output, shape index: {}]
  %s4 = sld [smem:[#allocation0]]
  $region22: #{_lambda_.13} parent=0
    _
  %s6 = ssub.s32 1, %s4
  %s7 = scalar_select 0, %s6, %s4
  // Predicated region
  $region2: #{_lambda_.13} parent=0 // pred_check
    _
  $region3: #{_lambda_.13} parent=0 // pred_check_branch
    %9 = sbr.rel (0) target = $region5
  $region4: #{_lambda_.13} parent=0 // pred_region
    _
  $region5: #{_lambda_.13} parent=0 // pred_fallthru
    _
  // Predicated region
  $region6: #{_lambda_.13} parent=0 // pred_check
    _
  $region7: #{_lambda_.13} parent=0 // pred_check_branch
    %11 = sbr.rel (0) target = $region9
  $region8: #{_lambda_.13} parent=0 // pred_region
    _
  $region9: #{_lambda_.13} parent=0 // pred_fallthru
    _
  // Predicated region
  $region10: #{_lambda_.13} parent=0 // pred_check
    _
  $region11: #{_lambda_.13} parent=0 // pred_check_branch
    %13 = sbr.rel (0) target = $region13
  $region12: #{_lambda_.13} parent=0 // pred_region
    _
  $region13: #{_lambda_.13} parent=0 // pred_fallthru
    _
  %v14 = vld [vmem:[%s0] sm:$0xf]
  %v15 = vld [vmem:[%s0 + $0x4] sm:$0xf]
  %v16 = vld [vmem:[%s0 + $0x8] sm:$0xf]
  %v17 = vld [vmem:[%s0 + $0xc] sm:$0xf]
  %v18 = vld [vmem:[%s0 + $0x10] sm:$0xf]
  %v19 = vld [vmem:[%s0 + $0x14] sm:$0xf]
  %v20 = vld [vmem:[%s0 + $0x18] sm:$0xf]
  %v21 = vld [vmem:[%s0 + $0x1c] sm:$0xf]
  %v22 = vld [vmem:[%s0 + $0x20] sm:$0xf]
  %v23 = vld [vmem:[%s0 + $0x24] sm:$0xf]
  %v24 = vld [vmem:[%s0 + $0x28] sm:$0xf]
  %v25 = vld [vmem:[%s0 + $0x2c] sm:$0xf]
  %v26 = vld [vmem:[%s0 + $0x30] sm:$0xf]
  %v27 = vld [vmem:[%s0 + $0x34] sm:$0xf]
  %v28 = vld [vmem:[%s0 + $0x38] sm:$0xf]
  %v29 = vld [vmem:[%s0 + $0x3c] sm:$0xf]
  %v30 = vunpack.c.l.bf16 %v14
  %v31 = vunpack.c.l.bf16 %v15
  %v32 = vunpack.c.l.bf16 %v16
  %v33 = vunpack.c.l.bf16 %v17
  %v34 = vunpack.c.l.bf16 %v18
  %v35 = vunpack.c.l.bf16 %v19
  %v36 = vunpack.c.l.bf16 %v20
  %v37 = vunpack.c.l.bf16 %v21
  %v38 = vunpack.c.l.bf16 %v22
  %v39 = vunpack.c.l.bf16 %v23
  %v40 = vunpack.c.l.bf16 %v24
  %v41 = vunpack.c.l.bf16 %v25
  %v42 = vunpack.c.l.bf16 %v26
  %v43 = vunpack.c.l.bf16 %v27
  %v44 = vunpack.c.l.bf16 %v28
  %v45 = vunpack.c.l.bf16 %v29
  %v46 = vld [vmem:[%s1] sm:$0x1]
  %v48 = vperm.slane %v46, 0
  %v50 = vmul.f32 %v30, %v48
  %v51 = vmul.f32 %v31, %v48
  %v52 = vmul.f32 %v32, %v48
  %v53 = vmul.f32 %v33, %v48
  %v54 = vmul.f32 %v34, %v48
  %v55 = vmul.f32 %v35, %v48
  %v56 = vmul.f32 %v36, %v48
  %v57 = vmul.f32 %v37, %v48
  %v58 = vmul.f32 %v38, %v48
  %v59 = vmul.f32 %v39, %v48
  %v60 = vmul.f32 %v40, %v48
  %v61 = vmul.f32 %v41, %v48
  %v62 = vmul.f32 %v42, %v48
  %v63 = vmul.f32 %v43, %v48
  %v64 = vmul.f32 %v44, %v48
  %v65 = vmul.f32 %v45, %v48
  %v66 = vld [vmem:[%s2] sm:$0x1]
  %v68 = vperm.slane %v66, 0
  %v70 = vadd.f32 %v50, %v68
  %v71 = vadd.f32 %v51, %v68
  %v72 = vadd.f32 %v52, %v68
  %v73 = vadd.f32 %v53, %v68
  %v74 = vadd.f32 %v54, %v68
  %v75 = vadd.f32 %v55, %v68
  %v76 = vadd.f32 %v56, %v68
  %v77 = vadd.f32 %v57, %v68
  %v78 = vadd.f32 %v58, %v68
  %v79 = vadd.f32 %v59, %v68
  %v80 = vadd.f32 %v60, %v68
  %v81 = vadd.f32 %v61, %v68
  %v82 = vadd.f32 %v62, %v68
  %v83 = vadd.f32 %v63, %v68
  %v84 = vadd.f32 %v64, %v68
  %v85 = vadd.f32 %v65, %v68
  %v86 = vmax.f32 %v70, 0.0
  %v87 = vmax.f32 %v71, 0.0
  %v88 = vmax.f32 %v72, 0.0
  %v89 = vmax.f32 %v73, 0.0
  %v90 = vmax.f32 %v74, 0.0
  %v91 = vmax.f32 %v75, 0.0
  %v92 = vmax.f32 %v76, 0.0
  %v93 = vmax.f32 %v77, 0.0
  %v94 = vmax.f32 %v78, 0.0
  %v95 = vmax.f32 %v79, 0.0
  %v96 = vmax.f32 %v80, 0.0
  %v97 = vmax.f32 %v81, 0.0
  %v98 = vmax.f32 %v82, 0.0
  %v99 = vmax.f32 %v83, 0.0
  %v100 = vmax.f32 %v84, 0.0
  %v101 = vmax.f32 %v85, 0.0
  %v102 = vpack.c.bf16 %v86, %v86
  %v103 = vpack.c.bf16 %v87, %v87
  %v104 = vpack.c.bf16 %v88, %v88
  %v105 = vpack.c.bf16 %v89, %v89
  %v106 = vpack.c.bf16 %v90, %v90
  %v107 = vpack.c.bf16 %v91, %v91
  %v108 = vpack.c.bf16 %v92, %v92
  %v109 = vpack.c.bf16 %v93, %v93
  %v110 = vpack.c.bf16 %v94, %v94
  %v111 = vpack.c.bf16 %v95, %v95
  %v112 = vpack.c.bf16 %v96, %v96
  %v113 = vpack.c.bf16 %v97, %v97
  %v114 = vpack.c.bf16 %v98, %v98
  %v115 = vpack.c.bf16 %v99, %v99
  %v116 = vpack.c.bf16 %v100, %v100
  %v117 = vpack.c.bf16 %v101, %v101
  %vm118 = vcmask 257024
  %119 = vst.msk [vmem:[%s3] sm:$0xf] %vm118, %v102
  %120 = vst.msk [vmem:[%s3 + $0x4] sm:$0xf] %vm118, %v103
  %121 = vst.msk [vmem:[%s3 + $0x8] sm:$0xf] %vm118, %v104
  %122 = vst.msk [vmem:[%s3 + $0xc] sm:$0xf] %vm118, %v105
  %123 = vst.msk [vmem:[%s3 + $0x10] sm:$0xf] %vm118, %v106
  %124 = vst.msk [vmem:[%s3 + $0x14] sm:$0xf] %vm118, %v107
  %125 = vst.msk [vmem:[%s3 + $0x18] sm:$0xf] %vm118, %v108
  %126 = vst.msk [vmem:[%s3 + $0x1c] sm:$0xf] %vm118, %v109
  %127 = vst.msk [vmem:[%s3 + $0x20] sm:$0xf] %vm118, %v110
  %128 = vst.msk [vmem:[%s3 + $0x24] sm:$0xf] %vm118, %v111
  %129 = vst.msk [vmem:[%s3 + $0x28] sm:$0xf] %vm118, %v112
  %130 = vst.msk [vmem:[%s3 + $0x2c] sm:$0xf] %vm118, %v113
  %131 = vst.msk [vmem:[%s3 + $0x30] sm:$0xf] %vm118, %v114
  %132 = vst.msk [vmem:[%s3 + $0x34] sm:$0xf] %vm118, %v115
  %133 = vst.msk [vmem:[%s3 + $0x38] sm:$0xf] %vm118, %v116
  %134 = vst.msk [vmem:[%s3 + $0x3c] sm:$0xf] %vm118, %v117
  // Predicated region
  $region14: #{_lambda_.13} parent=0 // pred_check
    _
  $region15: #{_lambda_.13} parent=0 // pred_check_branch
    %136 = sbr.rel (0) target = $region17
  $region16: #{_lambda_.13} parent=0 // pred_region
    _
  $region17: #{_lambda_.13} parent=0 // pred_fallthru
    _
  // Predicated region
  $region18: #{_lambda_.13} parent=0 // pred_check
    _
  $region19: #{_lambda_.13} parent=0 // pred_check_branch
    %138 = sbr.rel (0) target = $region21
  $region20: #{_lambda_.13} parent=0 // pred_region
    _
  $region21: #{_lambda_.13} parent=0 // pred_fallthru
    _

// kernel: _lambda_.15
$region0: #{_lambda_.15}
  #allocation0 [shape = 'u32[]', space=smem, size = 0x4, offset = 0x4, fixed_abs, tag = 'smem constant byte address 0x4 - core index']
  #allocation1 [shape = 'u32[72,128]{1,0:T(1,128)}', space=vmem, size = 0x9000, scoped, tag = 'internal scratch']
  %s0 = inlined_call_operand.vmem [shape: bf16[32,64], index: 0, kind: input, shape index: {}]
  %s1 = inlined_call_operand.vmem [shape: f32[1,64], index: 1, kind: input, shape index: {}]
  %s2 = inlined_call_operand.vmem [shape: f32[1,64], index: 2, kind: input, shape index: {}]
  %s3 = inlined_call_operand.vmem [shape: bf16[32,64], index: 3, kind: output, shape index: {}]
  %s4 = sld [smem:[#allocation0]]
  $region22: #{_lambda_.15} parent=0
    _
  %s6 = ssub.s32 1, %s4
  %s7 = scalar_select 0, %s6, %s4
  // Predicated region
  $region2: #{_lambda_.15} parent=0 // pred_check
    _
  $region3: #{_lambda_.15} parent=0 // pred_check_branch
    %9 = sbr.rel (0) target = $region5
  $region4: #{_lambda_.15} parent=0 // pred_region
    _
  $region5: #{_lambda_.15} parent=0 // pred_fallthru
    _
  // Predicated region
  $region6: #{_lambda_.15} parent=0 // pred_check
    _
  $region7: #{_lambda_.15} parent=0 // pred_check_branch
    %11 = sbr.rel (0) target = $region9
  $region8: #{_lambda_.15} parent=0 // pred_region
    _
  $region9: #{_lambda_.15} parent=0 // pred_fallthru
    _
  // Predicated region
  $region10: #{_lambda_.15} parent=0 // pred_check
    _
  $region11: #{_lambda_.15} parent=0 // pred_check_branch
    %13 = sbr.rel (0) target = $region13
  $region12: #{_lambda_.15} parent=0 // pred_region
    _
  $region13: #{_lambda_.15} parent=0 // pred_fallthru
    _
  %v14 = vld [vmem:[%s0] sm:$0xf]
  %v15 = vld [vmem:[%s0 + $0x4] sm:$0xf]
  %v16 = vld [vmem:[%s0 + $0x8] sm:$0xf]
  %v17 = vld [vmem:[%s0 + $0xc] sm:$0xf]
  %v18 = vunpack.c.l.bf16 %v14
  %v19 = vunpack.c.l.bf16 %v15
  %v20 = vunpack.c.l.bf16 %v16
  %v21 = vunpack.c.l.bf16 %v17
  %v22 = vld [vmem:[%s1] sm:$0x1]
  %v24 = vperm.slane %v22, 0
  %v26 = vmul.f32 %v18, %v24
  %v27 = vmul.f32 %v19, %v24
  %v28 = vmul.f32 %v20, %v24
  %v29 = vmul.f32 %v21, %v24
  %v30 = vld [vmem:[%s2] sm:$0x1]
  %v32 = vperm.slane %v30, 0
  %v34 = vadd.f32 %v26, %v32
  %v35 = vadd.f32 %v27, %v32
  %v36 = vadd.f32 %v28, %v32
  %v37 = vadd.f32 %v29, %v32
  %v38 = vmax.f32 %v34, 0.0
  %v39 = vmax.f32 %v35, 0.0
  %v40 = vmax.f32 %v36, 0.0
  %v41 = vmax.f32 %v37, 0.0
  %v42 = vpack.c.bf16 %v38, %v38
  %v43 = vpack.c.bf16 %v39, %v39
  %v44 = vpack.c.bf16 %v40, %v40
  %v45 = vpack.c.bf16 %v41, %v41
  %vm46 = vcmask 519168
  %47 = vst.msk [vmem:[%s3] sm:$0xf] %vm46, %v42
  %48 = vst.msk [vmem:[%s3 + $0x4] sm:$0xf] %vm46, %v43
  %49 = vst.msk [vmem:[%s3 + $0x8] sm:$0xf] %vm46, %v44
  %50 = vst.msk [vmem:[%s3 + $0xc] sm:$0xf] %vm46, %v45
  // Predicated region
  $region14: #{_lambda_.15} parent=0 // pred_check
    _
  $region15: #{_lambda_.15} parent=0 // pred_check_branch
    %52 = sbr.rel (0) target = $region17
  $region16: #{_lambda_.15} parent=0 // pred_region
    _
  $region17: #{_lambda_.15} parent=0 // pred_fallthru
    _
  // Predicated region
  $region18: #{_lambda_.15} parent=0 // pred_check
    _
  $region19: #{_lambda_.15} parent=0 // pred_check_branch
    %54 = sbr.rel (0) target = $region21
  $region20: #{_lambda_.15} parent=0 // pred_region
    _
  $region21: #{_lambda_.15} parent=0 // pred_fallthru
    _

// kernel: _lambda_.14
$region0: #{_lambda_.14}
  #allocation0 [shape = 'u32[]', space=smem, size = 0x4, offset = 0x4, fixed_abs, tag = 'smem constant byte address 0x4 - core index']
  #allocation1 [shape = 'u32[72,128]{1,0:T(1,128)}', space=vmem, size = 0x9000, scoped, tag = 'internal scratch']
  %s0 = inlined_call_operand.vmem [shape: bf16[32,288], index: 0, kind: input, shape index: {}]
  %s1 = inlined_call_operand.vmem [shape: bf16[288,64], index: 1, kind: input, shape index: {}]
  %s2 = inlined_call_operand.vmem [shape: bf16[32,64], index: 2, kind: output, shape index: {0}]
  %s3 = inlined_call_operand.vmem [shape: f32[1,8,64], index: 3, kind: output, shape index: {1}]
  %s4 = inlined_call_operand.vmem [shape: f32[1,8,64], index: 4, kind: output, shape index: {2}]
  %5 = xla_tuple %s2, %s3, %s4
  %s6 = sld [smem:[#allocation0]]
  $region34: #{_lambda_.14} parent=0
    _
  %s8 = ssub.s32 1, %s6
  %s9 = scalar_select 0, %s8, %s6
  // Predicated region
  $region2: #{_lambda_.14} parent=0 // pred_check
    _
  $region3: #{_lambda_.14} parent=0 // pred_check_branch
    %11 = sbr.rel (0) target = $region5
  $region4: #{_lambda_.14} parent=0 // pred_region
    _
  $region5: #{_lambda_.14} parent=0 // pred_fallthru
    _
  // Predicated region
  $region6: #{_lambda_.14} parent=0 // pred_check
    _
  $region7: #{_lambda_.14} parent=0 // pred_check_branch
    %13 = sbr.rel (0) target = $region9
  $region8: #{_lambda_.14} parent=0 // pred_region
    _
  $region9: #{_lambda_.14} parent=0 // pred_fallthru
    _
  %v15 = vld [vmem:[%s0] sm:$0xff]
  %v16 = vld [vmem:[%s0 + $0x8] sm:$0xf]
  %v17 = vld [vmem:[%s0 + $0xc] sm:$0xff]
  %v18 = vld [vmem:[%s0 + $0x14] sm:$0xf]
  %v19 = vld [vmem:[%s0 + $0x18] sm:$0xff]
  %v20 = vld [vmem:[%s0 + $0x20] sm:$0xf]
  %v21 = vld [vmem:[%s0 + $0x24] sm:$0xff]
  %v22 = vld [vmem:[%s0 + $0x2c] sm:$0xf]
  %v23 = vld [vmem:[%s1] sm:$0xf]
  %v24 = vld [vmem:[%s1 + $0x4] sm:$0xf]
  %v25 = vld [vmem:[%s1 + $0x8] sm:$0xf]
  %v26 = vld [vmem:[%s1 + $0xc] sm:$0xf]
  %v27 = vld [vmem:[%s1 + $0x10] sm:$0xf]
  %v28 = vld [vmem:[%s1 + $0x14] sm:$0xf]
  %v29 = vld [vmem:[%s1 + $0x18] sm:$0xf]
  %v30 = vld [vmem:[%s1 + $0x1c] sm:$0xf]
  %v31 = vld [vmem:[%s1 + $0x20] sm:$0xf]
  %v32 = vld [vmem:[%s1 + $0x24] sm:$0xf]
  %v33 = vld [vmem:[%s1 + $0x28] sm:$0xf]
  %v34 = vld [vmem:[%s1 + $0x2c] sm:$0xf]
  %v35 = vld [vmem:[%s1 + $0x30] sm:$0xf]
  %v36 = vld [vmem:[%s1 + $0x34] sm:$0xf]
  %v37 = vld [vmem:[%s1 + $0x38] sm:$0xf]
  %v38 = vld [vmem:[%s1 + $0x3c] sm:$0xf]
  %v39 = vld [vmem:[%s1 + $0x40] sm:$0xf]
  %v40 = vld [vmem:[%s1 + $0x44] sm:$0xf]
  %v41 = vld [vmem:[%s1 + $0x48] sm:$0xf]
  %v42 = vld [vmem:[%s1 + $0x4c] sm:$0xf]
  %v43 = vld [vmem:[%s1 + $0x50] sm:$0xf]
  %v44 = vld [vmem:[%s1 + $0x54] sm:$0xf]
  %v45 = vld [vmem:[%s1 + $0x58] sm:$0xf]
  %v46 = vld [vmem:[%s1 + $0x5c] sm:$0xf]
  %v47 = vld [vmem:[%s1 + $0x60] sm:$0xf]
  %v48 = vld [vmem:[%s1 + $0x64] sm:$0xf]
  %v49 = vld [vmem:[%s1 + $0x68] sm:$0xf]
  %v50 = vld [vmem:[%s1 + $0x6c] sm:$0xf]
  %v51 = vld [vmem:[%s1 + $0x70] sm:$0xf]
  %v52 = vld [vmem:[%s1 + $0x74] sm:$0xf]
  %v53 = vld [vmem:[%s1 + $0x78] sm:$0xf]
  %v54 = vld [vmem:[%s1 + $0x7c] sm:$0xf]
  %v55 = vld [vmem:[%s1 + $0x80] sm:$0xf]
  %v56 = vld [vmem:[%s1 + $0x84] sm:$0xf]
  %v57 = vld [vmem:[%s1 + $0x88] sm:$0xf]
  %v58 = vld [vmem:[%s1 + $0x8c] sm:$0xf]
  %v67 = vunpack.c.l.b16 %v15
  %v68 = vunpack.c.h.b16 %v15
  %v69 = vunpack.c.l.b16 %v16
  %v70 = vunpack.c.l.b16 %v17
  %v71 = vunpack.c.h.b16 %v17
  %v72 = vunpack.c.l.b16 %v18
  %v73 = vunpack.c.l.b16 %v19
  %v74 = vunpack.c.h.b16 %v19
  %v75 = vunpack.c.l.b16 %v20
  %v76 = vunpack.c.l.b16 %v21
  %v77 = vunpack.c.h.b16 %v21
  %v78 = vunpack.c.l.b16 %v22
  %v79 = vpack.c.b16 %v70, %v67
  %v80 = vpack.c.b16 %v71, %v68
  %v81 = vpack.c.b16 %v72, %v69
  %v82 = vpack.c.b16 %v76, %v73
  %v83 = vpack.c.b16 %v77, %v74
  %v84 = vpack.c.b16 %v78, %v75
  %v125 = vunpack.c.l.b16 %v23
  %v126 = vunpack.c.l.b16 %v24
  %v127 = vunpack.c.l.b16 %v25
  %v128 = vunpack.c.l.b16 %v26
  %v129 = vunpack.c.l.b16 %v27
  %v130 = vunpack.c.l.b16 %v28
  %v131 = vunpack.c.l.b16 %v29
  %v132 = vunpack.c.l.b16 %v30
  %v133 = vunpack.c.l.b16 %v31
  %v134 = vunpack.c.l.b16 %v32
  %v135 = vunpack.c.l.b16 %v33
  %v136 = vunpack.c.l.b16 %v34
  %v137 = vunpack.c.l.b16 %v35
  %v138 = vunpack.c.l.b16 %v36
  %v139 = vunpack.c.l.b16 %v37
  %v140 = vunpack.c.l.b16 %v38
  %v141 = vunpack.c.l.b16 %v39
  %v142 = vunpack.c.l.b16 %v40
  %v143 = vunpack.c.l.b16 %v41
  %v144 = vunpack.c.l.b16 %v42
  %v145 = vunpack.c.l.b16 %v43
  %v146 = vunpack.c.l.b16 %v44
  %v147 = vunpack.c.l.b16 %v45
  %v148 = vunpack.c.l.b16 %v46
  %v149 = vunpack.c.l.b16 %v47
  %v150 = vunpack.c.l.b16 %v48
  %v151 = vunpack.c.l.b16 %v49
  %v152 = vunpack.c.l.b16 %v50
  %v153 = vunpack.c.l.b16 %v51
  %v154 = vunpack.c.l.b16 %v52
  %v155 = vunpack.c.l.b16 %v53
  %v156 = vunpack.c.l.b16 %v54
  %v157 = vunpack.c.l.b16 %v55
  %v158 = vunpack.c.l.b16 %v56
  %v159 = vunpack.c.l.b16 %v57
  %v160 = vunpack.c.l.b16 %v58
  %v161 = vpack.c.b16 %v126, %v125
  %v162 = vpack.c.b16 %v128, %v127
  %v163 = vpack.c.b16 %v130, %v129
  %v164 = vpack.c.b16 %v132, %v131
  %v165 = vpack.c.b16 %v134, %v133
  %v166 = vpack.c.b16 %v136, %v135
  %v167 = vpack.c.b16 %v138, %v137
  %v168 = vpack.c.b16 %v140, %v139
  %v169 = vpack.c.b16 %v142, %v141
  %v170 = vpack.c.b16 %v144, %v143
  %v171 = vpack.c.b16 %v146, %v145
  %v172 = vpack.c.b16 %v148, %v147
  %v173 = vpack.c.b16 %v150, %v149
  %v174 = vpack.c.b16 %v152, %v151
  %v175 = vpack.c.b16 %v154, %v153
  %v176 = vpack.c.b16 %v156, %v155
  %v177 = vpack.c.b16 %v158, %v157
  %v178 = vpack.c.b16 %v160, %v159
  %vm197 = vcmask 261120
  %v199 = vsel %vm197, %v81, 0
  %v202 = vsel %vm197, %v84, 0
  %204 = vmatpush.bf16.msra.mxu0 %v168
  %205 = vmatpush.bf16.msra.mxu0 %v167
  %206 = vmatpush.bf16.msra.mxu0 %v166
  %207 = vmatpush.bf16.msra.mxu0 %v165
  %208 = vmatpush.bf16.msra.mxu0 %v164
  %209 = vmatpush.bf16.msra.mxu0 %v163
  %210 = vmatpush.bf16.msra.mxu0 %v162
  %211 = vmatpush.bf16.msra.mxu0 %v161
  %212 = vmatmul.bf16.gmra.mxu0 %v79
  %v213 = vpop.f32.mrf.mxu0
  %v214 = vadd.f32 0.0, %v213
  %v215 = vpop.f32.mrf.mxu0
  %v216 = vadd.f32 0.0, %v215
  %217 = vmatmul.bf16.gmra.mxu0 %v82
  %v218 = vpop.f32.mrf.mxu0
  %v219 = vadd.f32 0.0, %v218
  %v220 = vpop.f32.mrf.mxu0
  %v221 = vadd.f32 0.0, %v220
  %222 = vdwg.mxu0
  %223 = vmatpush.bf16.msra.mxu0 %v176
  %224 = vmatpush.bf16.msra.mxu0 %v175
  %225 = vmatpush.bf16.msra.mxu0 %v174
  %226 = vmatpush.bf16.msra.mxu0 %v173
  %227 = vmatpush.bf16.msra.mxu0 %v172
  %228 = vmatpush.bf16.msra.mxu0 %v171
  %229 = vmatpush.bf16.msra.mxu0 %v170
  %230 = vmatpush.bf16.msra.mxu0 %v169
  %231 = vmatmul.bf16.gmra.mxu0 %v80
  %v232 = vpop.f32.mrf.mxu0
  %v233 = vadd.f32 %v214, %v232
  %v234 = vpop.f32.mrf.mxu0
  %v235 = vadd.f32 %v216, %v234
  %236 = vmatmul.bf16.gmra.mxu0 %v83
  %v237 = vpop.f32.mrf.mxu0
  %v238 = vadd.f32 %v219, %v237
  %v239 = vpop.f32.mrf.mxu0
  %v240 = vadd.f32 %v221, %v239
  %241 = vdwg.mxu0
  %242 = vmatpush.bf16.msra.mxu0 0
  %243 = vmatpush.bf16.msra.mxu0 0
  %244 = vmatpush.bf16.msra.mxu0 0
  %245 = vmatpush.bf16.msra.mxu0 0
  %246 = vmatpush.bf16.msra.mxu0 0
  %247 = vmatpush.bf16.msra.mxu0 0
  %248 = vmatpush.bf16.msra.mxu0 %v178
  %249 = vmatpush.bf16.msra.mxu0 %v177
  %250 = vmatmul.bf16.gmra.mxu0 %v199
  %v251 = vpop.f32.mrf.mxu0
  %v252 = vadd.f32 %v233, %v251
  %v253 = vpop.f32.mrf.mxu0
  %v254 = vadd.f32 %v235, %v253
  %255 = vmatmul.bf16.gmra.mxu0 %v202
  %v256 = vpop.f32.mrf.mxu0
  %v257 = vadd.f32 %v238, %v256
  %v258 = vpop.f32.mrf.mxu0
  %v259 = vadd.f32 %v240, %v258
  %260 = vdwg.mxu0
  %vm261 = vcmask 523264
  %v262 = vsel %vm261, %v252, 0.0
  %v263 = vsel %vm261, %v254, 0.0
  %v264 = vadd.f32 %v262, %v263
  %v265 = vsel %vm261, %v257, 0.0
  %v266 = vadd.f32 %v264, %v265
  %v267 = vsel %vm261, %v259, 0.0
  %v268 = vadd.f32 %v266, %v267
  %v269 = vrot.slane %v268, 4
  %v270 = vadd.f32 %v268, %v269
  %v271 = vrot.slane %v270, 2
  %v272 = vadd.f32 %v270, %v271
  %v273 = vrot.slane %v272, 1
  %v274 = vadd.f32 %v272, %v273
  %v275 = vmul.f32 %v252, %v252
  %v276 = vmul.f32 %v254, %v254
  %v277 = vmul.f32 %v257, %v257
  %v278 = vmul.f32 %v259, %v259
  %v279 = vsel %vm261, %v275, 0.0
  %v280 = vsel %vm261, %v276, 0.0
  %v281 = vadd.f32 %v279, %v280
  %v282 = vsel %vm261, %v277, 0.0
  %v283 = vadd.f32 %v281, %v282
  %v284 = vsel %vm261, %v278, 0.0
  %v285 = vadd.f32 %v283, %v284
  %v286 = vrot.slane %v285, 4
  %v287 = vadd.f32 %v285, %v286
  %v288 = vrot.slane %v287, 2
  %v289 = vadd.f32 %v287, %v288
  %v290 = vrot.slane %v289, 1
  %v291 = vadd.f32 %v289, %v290
  %292 = vst.msk [vmem:[%s3] sm:$0xff] %vm261, %v274
  %293 = vst.msk [vmem:[%s4] sm:$0xff] %vm261, %v291
  %v294 = vpack.c.bf16 %v252, %v252
  %v295 = vpack.c.bf16 %v254, %v254
  %v296 = vpack.c.bf16 %v257, %v257
  %v297 = vpack.c.bf16 %v259, %v259
  %vm298 = vcmask 519168
  %299 = vst.msk [vmem:[%s2] sm:$0xf] %vm298, %v294
  %300 = vst.msk [vmem:[%s2 + $0x4] sm:$0xf] %vm298, %v295
  %301 = vst.msk [vmem:[%s2 + $0x8] sm:$0xf] %vm298, %v296
  %302 = vst.msk [vmem:[%s2 + $0xc] sm:$0xf] %vm298, %v297
  // Predicated region
  $region10: #{_lambda_.14} parent=0 // pred_check
    _
  $region11: #{_lambda_.14} parent=0 // pred_check_branch
    %304 = sbr.rel (0) target = $region13
  $region12: #{_lambda_.14} parent=0 // pred_region
    _
  $region13: #{_lambda_.14} parent=0 // pred_fallthru
    _
  // Predicated region
  $region14: #{_lambda_.14} parent=0 // pred_check
    _
  $region15: #{_lambda_.14} parent=0 // pred_check_branch
    %306 = sbr.rel (0) target = $region17
  $region16: #{_lambda_.14} parent=0 // pred_region
    _
  $region17: #{_lambda_.14} parent=0 // pred_fallthru
    _
  // Predicated region
  $region18: #{_lambda_.14} parent=0 // pred_check
    _
  $region19: #{_lambda_.14} parent=0 // pred_check_branch
    %308 = sbr.rel (0) target = $region21
  $region20: #{_lambda_.14} parent=0 // pred_region
    _
  $region21: #{_lambda_.14} parent=0 // pred_fallthru
    _
  // Predicated region
  $region22: #{_lambda_.14} parent=0 // pred_check
    _
  $region23: #{_lambda_.14} parent=0 // pred_check_branch
    %310 = sbr.rel (0) target = $region25
  $region24: #{_lambda_.14} parent=0 // pred_region
    _
  $region25: #{_lambda_.14} parent=0 // pred_fallthru
    _
  // Predicated region
  $region26: #{_lambda_.14} parent=0 // pred_check
    _
  $region27: #{_lambda_.14} parent=0 // pred_check_branch
    %312 = sbr.rel (0) target = $region29
  $region28: #{_lambda_.14} parent=0 // pred_region
    _
  $region29: #{_lambda_.14} parent=0 // pred_fallthru
    _
  // Predicated region
  $region30: #{_lambda_.14} parent=0 // pred_check
    _
  $region31: #{_lambda_.14} parent=0 // pred_check_branch
    %314 = sbr.rel (0) target = $region33
  $region32: #{_lambda_.14} parent=0 // pred_region
    _
  $region33: #{_lambda_.14} parent=0 // pred_fallthru
    _

// kernel: _lambda_.17
$region0: #{_lambda_.17}
  #allocation0 [shape = 'u32[]', space=smem, size = 0x4, offset = 0x4, fixed_abs, tag = 'smem constant byte address 0x4 - core index']
  #allocation1 [shape = 'u32[72,128]{1,0:T(1,128)}', space=vmem, size = 0x9000, scoped, tag = 'internal scratch']
  %s0 = inlined_call_operand.vmem [shape: bf16[8,128], index: 0, kind: input, shape index: {}]
  %s1 = inlined_call_operand.vmem [shape: f32[1,128], index: 1, kind: input, shape index: {}]
  %s2 = inlined_call_operand.vmem [shape: f32[1,128], index: 2, kind: input, shape index: {}]
  %s3 = inlined_call_operand.vmem [shape: bf16[8,128], index: 3, kind: output, shape index: {}]
  %s4 = sld [smem:[#allocation0]]
  $region22: #{_lambda_.17} parent=0
    _
  %s6 = ssub.s32 1, %s4
  %s7 = scalar_select 0, %s6, %s4
  // Predicated region
  $region2: #{_lambda_.17} parent=0 // pred_check
    _
  $region3: #{_lambda_.17} parent=0 // pred_check_branch
    %9 = sbr.rel (0) target = $region5
  $region4: #{_lambda_.17} parent=0 // pred_region
    _
  $region5: #{_lambda_.17} parent=0 // pred_fallthru
    _
  // Predicated region
  $region6: #{_lambda_.17} parent=0 // pred_check
    _
  $region7: #{_lambda_.17} parent=0 // pred_check_branch
    %11 = sbr.rel (0) target = $region9
  $region8: #{_lambda_.17} parent=0 // pred_region
    _
  $region9: #{_lambda_.17} parent=0 // pred_fallthru
    _
  // Predicated region
  $region10: #{_lambda_.17} parent=0 // pred_check
    _
  $region11: #{_lambda_.17} parent=0 // pred_check_branch
    %13 = sbr.rel (0) target = $region13
  $region12: #{_lambda_.17} parent=0 // pred_region
    _
  $region13: #{_lambda_.17} parent=0 // pred_fallthru
    _
  %v14 = vld [vmem:[%s0] sm:$0xf]
  %v15 = vunpack.c.l.bf16 %v14
  %v16 = vld [vmem:[%s1] sm:$0x1]
  %v18 = vperm.slane %v16, 0
  %v20 = vmul.f32 %v15, %v18
  %v21 = vld [vmem:[%s2] sm:$0x1]
  %v23 = vperm.slane %v21, 0
  %v25 = vadd.f32 %v20, %v23
  %v26 = vmax.f32 %v25, 0.0
  %v27 = vpack.c.bf16 %v26, %v26
  %28 = vst [vmem:[%s3] sm:$0xf] %v27
  // Predicated region
  $region14: #{_lambda_.17} parent=0 // pred_check
    _
  $region15: #{_lambda_.17} parent=0 // pred_check_branch
    %30 = sbr.rel (0) target = $region17
  $region16: #{_lambda_.17} parent=0 // pred_region
    _
  $region17: #{_lambda_.17} parent=0 // pred_fallthru
    _
  // Predicated region
  $region18: #{_lambda_.17} parent=0 // pred_check
    _
  $region19: #{_lambda_.17} parent=0 // pred_check_branch
    %32 = sbr.rel (0) target = $region21
  $region20: #{_lambda_.17} parent=0 // pred_region
    _
  $region21: #{_lambda_.17} parent=0 // pred_fallthru
    _

// kernel: _lambda_.16
$region0: #{_lambda_.16}
  #allocation0 [shape = 'u32[]', space=smem, size = 0x4, offset = 0x4, fixed_abs, tag = 'smem constant byte address 0x4 - core index']
  #allocation1 [shape = 'u32[72,128]{1,0:T(1,128)}', space=vmem, size = 0x9000, scoped, tag = 'internal scratch']
  %s0 = inlined_call_operand.vmem [shape: bf16[8,576], index: 0, kind: input, shape index: {}]
  %s1 = inlined_call_operand.vmem [shape: bf16[576,128], index: 1, kind: input, shape index: {}]
  %s2 = inlined_call_operand.vmem [shape: bf16[8,128], index: 2, kind: output, shape index: {0}]
  %s3 = inlined_call_operand.vmem [shape: f32[1,8,128], index: 3, kind: output, shape index: {1}]
  %s4 = inlined_call_operand.vmem [shape: f32[1,8,128], index: 4, kind: output, shape index: {2}]
  %5 = xla_tuple %s2, %s3, %s4
  %s6 = sld [smem:[#allocation0]]
  $region34: #{_lambda_.16} parent=0
    _
  %s8 = ssub.s32 1, %s6
  %s9 = scalar_select 0, %s8, %s6
  // Predicated region
  $region2: #{_lambda_.16} parent=0 // pred_check
    _
  $region3: #{_lambda_.16} parent=0 // pred_check_branch
    %11 = sbr.rel (0) target = $region5
  $region4: #{_lambda_.16} parent=0 // pred_region
    _
  $region5: #{_lambda_.16} parent=0 // pred_fallthru
    _
  // Predicated region
  $region6: #{_lambda_.16} parent=0 // pred_check
    _
  $region7: #{_lambda_.16} parent=0 // pred_check_branch
    %13 = sbr.rel (0) target = $region9
  $region8: #{_lambda_.16} parent=0 // pred_region
    _
  $region9: #{_lambda_.16} parent=0 // pred_fallthru
    _
  %v15 = vld [vmem:[%s0] sm:$0xff]
  %v16 = vld [vmem:[%s0 + $0x8] sm:$0xff]
  %v17 = vld [vmem:[%s0 + $0x10] sm:$0xf]
  %v18 = vld [vmem:[%s1] sm:$0xf]
  %v19 = vld [vmem:[%s1 + $0x4] sm:$0xf]
  %v20 = vld [vmem:[%s1 + $0x8] sm:$0xf]
  %v21 = vld [vmem:[%s1 + $0xc] sm:$0xf]
  %v22 = vld [vmem:[%s1 + $0x10] sm:$0xf]
  %v23 = vld [vmem:[%s1 + $0x14] sm:$0xf]
  %v24 = vld [vmem:[%s1 + $0x18] sm:$0xf]
  %v25 = vld [vmem:[%s1 + $0x1c] sm:$0xf]
  %v26 = vld [vmem:[%s1 + $0x20] sm:$0xf]
  %v27 = vld [vmem:[%s1 + $0x24] sm:$0xf]
  %v28 = vld [vmem:[%s1 + $0x28] sm:$0xf]
  %v29 = vld [vmem:[%s1 + $0x2c] sm:$0xf]
  %v30 = vld [vmem:[%s1 + $0x30] sm:$0xf]
  %v31 = vld [vmem:[%s1 + $0x34] sm:$0xf]
  %v32 = vld [vmem:[%s1 + $0x38] sm:$0xf]
  %v33 = vld [vmem:[%s1 + $0x3c] sm:$0xf]
  %v34 = vld [vmem:[%s1 + $0x40] sm:$0xf]
  %v35 = vld [vmem:[%s1 + $0x44] sm:$0xf]
  %v36 = vld [vmem:[%s1 + $0x48] sm:$0xf]
  %v37 = vld [vmem:[%s1 + $0x4c] sm:$0xf]
  %v38 = vld [vmem:[%s1 + $0x50] sm:$0xf]
  %v39 = vld [vmem:[%s1 + $0x54] sm:$0xf]
  %v40 = vld [vmem:[%s1 + $0x58] sm:$0xf]
  %v41 = vld [vmem:[%s1 + $0x5c] sm:$0xf]
  %v42 = vld [vmem:[%s1 + $0x60] sm:$0xf]
  %v43 = vld [vmem:[%s1 + $0x64] sm:$0xf]
  %v44 = vld [vmem:[%s1 + $0x68] sm:$0xf]
  %v45 = vld [vmem:[%s1 + $0x6c] sm:$0xf]
  %v46 = vld [vmem:[%s1 + $0x70] sm:$0xf]
  %v47 = vld [vmem:[%s1 + $0x74] sm:$0xf]
  %v48 = vld [vmem:[%s1 + $0x78] sm:$0xf]
  %v49 = vld [vmem:[%s1 + $0x7c] sm:$0xf]
  %v50 = vld [vmem:[%s1 + $0x80] sm:$0xf]
  %v51 = vld [vmem:[%s1 + $0x84] sm:$0xf]
  %v52 = vld [vmem:[%s1 + $0x88] sm:$0xf]
  %v53 = vld [vmem:[%s1 + $0x8c] sm:$0xf]
  %v54 = vld [vmem:[%s1 + $0x90] sm:$0xf]
  %v55 = vld [vmem:[%s1 + $0x94] sm:$0xf]
  %v56 = vld [vmem:[%s1 + $0x98] sm:$0xf]
  %v57 = vld [vmem:[%s1 + $0x9c] sm:$0xf]
  %v58 = vld [vmem:[%s1 + $0xa0] sm:$0xf]
  %v59 = vld [vmem:[%s1 + $0xa4] sm:$0xf]
  %v60 = vld [vmem:[%s1 + $0xa8] sm:$0xf]
  %v61 = vld [vmem:[%s1 + $0xac] sm:$0xf]
  %v62 = vld [vmem:[%s1 + $0xb0] sm:$0xf]
  %v63 = vld [vmem:[%s1 + $0xb4] sm:$0xf]
  %v64 = vld [vmem:[%s1 + $0xb8] sm:$0xf]
  %v65 = vld [vmem:[%s1 + $0xbc] sm:$0xf]
  %v66 = vld [vmem:[%s1 + $0xc0] sm:$0xf]
  %v67 = vld [vmem:[%s1 + $0xc4] sm:$0xf]
  %v68 = vld [vmem:[%s1 + $0xc8] sm:$0xf]
  %v69 = vld [vmem:[%s1 + $0xcc] sm:$0xf]
  %v70 = vld [vmem:[%s1 + $0xd0] sm:$0xf]
  %v71 = vld [vmem:[%s1 + $0xd4] sm:$0xf]
  %v72 = vld [vmem:[%s1 + $0xd8] sm:$0xf]
  %v73 = vld [vmem:[%s1 + $0xdc] sm:$0xf]
  %v74 = vld [vmem:[%s1 + $0xe0] sm:$0xf]
  %v75 = vld [vmem:[%s1 + $0xe4] sm:$0xf]
  %v76 = vld [vmem:[%s1 + $0xe8] sm:$0xf]
  %v77 = vld [vmem:[%s1 + $0xec] sm:$0xf]
  %v78 = vld [vmem:[%s1 + $0xf0] sm:$0xf]
  %v79 = vld [vmem:[%s1 + $0xf4] sm:$0xf]
  %v80 = vld [vmem:[%s1 + $0xf8] sm:$0xf]
  %v81 = vld [vmem:[%s1 + $0xfc] sm:$0xf]
  %v82 = vld [vmem:[%s1 + $0x100] sm:$0xf]
  %v83 = vld [vmem:[%s1 + $0x104] sm:$0xf]
  %v84 = vld [vmem:[%s1 + $0x108] sm:$0xf]
  %v85 = vld [vmem:[%s1 + $0x10c] sm:$0xf]
  %v86 = vld [vmem:[%s1 + $0x110] sm:$0xf]
  %v87 = vld [vmem:[%s1 + $0x114] sm:$0xf]
  %v88 = vld [vmem:[%s1 + $0x118] sm:$0xf]
  %v89 = vld [vmem:[%s1 + $0x11c] sm:$0xf]
  %v93 = vunpack.c.l.b16 %v15
  %v94 = vunpack.c.h.b16 %v15
  %v95 = vunpack.c.l.b16 %v16
  %v96 = vunpack.c.h.b16 %v16
  %v97 = vunpack.c.l.b16 %v17
  %v98 = vpack.c.b16 %v93, %v93
  %v99 = vpack.c.b16 %v94, %v94
  %v100 = vpack.c.b16 %v95, %v95
  %v101 = vpack.c.b16 %v96, %v96
  %v102 = vpack.c.b16 %v97, %v97
  %v179 = vunpack.c.l.b16 %v18
  %v180 = vunpack.c.l.b16 %v19
  %v181 = vunpack.c.l.b16 %v20
  %v182 = vunpack.c.l.b16 %v21
  %v183 = vunpack.c.l.b16 %v22
  %v184 = vunpack.c.l.b16 %v23
  %v185 = vunpack.c.l.b16 %v24
  %v186 = vunpack.c.l.b16 %v25
  %v187 = vunpack.c.l.b16 %v26
  %v188 = vunpack.c.l.b16 %v27
  %v189 = vunpack.c.l.b16 %v28
  %v190 = vunpack.c.l.b16 %v29
  %v191 = vunpack.c.l.b16 %v30
  %v192 = vunpack.c.l.b16 %v31
  %v193 = vunpack.c.l.b16 %v32
  %v194 = vunpack.c.l.b16 %v33
  %v195 = vunpack.c.l.b16 %v34
  %v196 = vunpack.c.l.b16 %v35
  %v197 = vunpack.c.l.b16 %v36
  %v198 = vunpack.c.l.b16 %v37
  %v199 = vunpack.c.l.b16 %v38
  %v200 = vunpack.c.l.b16 %v39
  %v201 = vunpack.c.l.b16 %v40
  %v202 = vunpack.c.l.b16 %v41
  %v203 = vunpack.c.l.b16 %v42
  %v204 = vunpack.c.l.b16 %v43
  %v205 = vunpack.c.l.b16 %v44
  %v206 = vunpack.c.l.b16 %v45
  %v207 = vunpack.c.l.b16 %v46
  %v208 = vunpack.c.l.b16 %v47
  %v209 = vunpack.c.l.b16 %v48
  %v210 = vunpack.c.l.b16 %v49
  %v211 = vunpack.c.l.b16 %v50
  %v212 = vunpack.c.l.b16 %v51
  %v213 = vunpack.c.l.b16 %v52
  %v214 = vunpack.c.l.b16 %v53
  %v215 = vunpack.c.l.b16 %v54
  %v216 = vunpack.c.l.b16 %v55
  %v217 = vunpack.c.l.b16 %v56
  %v218 = vunpack.c.l.b16 %v57
  %v219 = vunpack.c.l.b16 %v58
  %v220 = vunpack.c.l.b16 %v59
  %v221 = vunpack.c.l.b16 %v60
  %v222 = vunpack.c.l.b16 %v61
  %v223 = vunpack.c.l.b16 %v62
  %v224 = vunpack.c.l.b16 %v63
  %v225 = vunpack.c.l.b16 %v64
  %v226 = vunpack.c.l.b16 %v65
  %v227 = vunpack.c.l.b16 %v66
  %v228 = vunpack.c.l.b16 %v67
  %v229 = vunpack.c.l.b16 %v68
  %v230 = vunpack.c.l.b16 %v69
  %v231 = vunpack.c.l.b16 %v70
  %v232 = vunpack.c.l.b16 %v71
  %v233 = vunpack.c.l.b16 %v72
  %v234 = vunpack.c.l.b16 %v73
  %v235 = vunpack.c.l.b16 %v74
  %v236 = vunpack.c.l.b16 %v75
  %v237 = vunpack.c.l.b16 %v76
  %v238 = vunpack.c.l.b16 %v77
  %v239 = vunpack.c.l.b16 %v78
  %v240 = vunpack.c.l.b16 %v79
  %v241 = vunpack.c.l.b16 %v80
  %v242 = vunpack.c.l.b16 %v81
  %v243 = vunpack.c.l.b16 %v82
  %v244 = vunpack.c.l.b16 %v83
  %v245 = vunpack.c.l.b16 %v84
  %v246 = vunpack.c.l.b16 %v85
  %v247 = vunpack.c.l.b16 %v86
  %v248 = vunpack.c.l.b16 %v87
  %v249 = vunpack.c.l.b16 %v88
  %v250 = vunpack.c.l.b16 %v89
  %v251 = vpack.c.b16 %v180, %v179
  %v252 = vpack.c.b16 %v182, %v181
  %v253 = vpack.c.b16 %v184, %v183
  %v254 = vpack.c.b16 %v186, %v185
  %v255 = vpack.c.b16 %v188, %v187
  %v256 = vpack.c.b16 %v190, %v189
  %v257 = vpack.c.b16 %v192, %v191
  %v258 = vpack.c.b16 %v194, %v193
  %v259 = vpack.c.b16 %v196, %v195
  %v260 = vpack.c.b16 %v198, %v197
  %v261 = vpack.c.b16 %v200, %v199
  %v262 = vpack.c.b16 %v202, %v201
  %v263 = vpack.c.b16 %v204, %v203
  %v264 = vpack.c.b16 %v206, %v205
  %v265 = vpack.c.b16 %v208, %v207
  %v266 = vpack.c.b16 %v210, %v209
  %v267 = vpack.c.b16 %v212, %v211
  %v268 = vpack.c.b16 %v214, %v213
  %v269 = vpack.c.b16 %v216, %v215
  %v270 = vpack.c.b16 %v218, %v217
  %v271 = vpack.c.b16 %v220, %v219
  %v272 = vpack.c.b16 %v222, %v221
  %v273 = vpack.c.b16 %v224, %v223
  %v274 = vpack.c.b16 %v226, %v225
  %v275 = vpack.c.b16 %v228, %v227
  %v276 = vpack.c.b16 %v230, %v229
  %v277 = vpack.c.b16 %v232, %v231
  %v278 = vpack.c.b16 %v234, %v233
  %v279 = vpack.c.b16 %v236, %v235
  %v280 = vpack.c.b16 %v238, %v237
  %v281 = vpack.c.b16 %v240, %v239
  %v282 = vpack.c.b16 %v242, %v241
  %v283 = vpack.c.b16 %v244, %v243
  %v284 = vpack.c.b16 %v246, %v245
  %v285 = vpack.c.b16 %v248, %v247
  %v286 = vpack.c.b16 %v250, %v249
  %vm323 = vcmask 523264
  %v325 = vsel %vm323, %v102, 0
  %327 = vmatpush.bf16.msra.mxu0 %v258
  %328 = vmatpush.bf16.msra.mxu0 %v257
  %329 = vmatpush.bf16.msra.mxu0 %v256
  %330 = vmatpush.bf16.msra.mxu0 %v255
  %331 = vmatpush.bf16.msra.mxu0 %v254
  %332 = vmatpush.bf16.msra.mxu0 %v253
  %333 = vmatpush.bf16.msra.mxu0 %v252
  %334 = vmatpush.bf16.msra.mxu0 %v251
  %335 = vmatmul.bf16.gmra.mxu0 %v98
  %v336 = vpop.f32.mrf.mxu0
  %v337 = vadd.f32 0.0, %v336
  %v338 = vpop.f32.mrf.mxu0
  %339 = vdwg.mxu0
  %340 = vmatpush.bf16.msra.mxu0 %v266
  %341 = vmatpush.bf16.msra.mxu0 %v265
  %342 = vmatpush.bf16.msra.mxu0 %v264
  %343 = vmatpush.bf16.msra.mxu0 %v263
  %344 = vmatpush.bf16.msra.mxu0 %v262
  %345 = vmatpush.bf16.msra.mxu0 %v261
  %346 = vmatpush.bf16.msra.mxu0 %v260
  %347 = vmatpush.bf16.msra.mxu0 %v259
  %348 = vmatmul.bf16.gmra.mxu0 %v99
  %v349 = vpop.f32.mrf.mxu0
  %v350 = vadd.f32 %v337, %v349
  %v351 = vpop.f32.mrf.mxu0
  %352 = vdwg.mxu0
  %353 = vmatpush.bf16.msra.mxu0 %v274
  %354 = vmatpush.bf16.msra.mxu0 %v273
  %355 = vmatpush.bf16.msra.mxu0 %v272
  %356 = vmatpush.bf16.msra.mxu0 %v271
  %357 = vmatpush.bf16.msra.mxu0 %v270
  %358 = vmatpush.bf16.msra.mxu0 %v269
  %359 = vmatpush.bf16.msra.mxu0 %v268
  %360 = vmatpush.bf16.msra.mxu0 %v267
  %361 = vmatmul.bf16.gmra.mxu0 %v100
  %v362 = vpop.f32.mrf.mxu0
  %v363 = vadd.f32 %v350, %v362
  %v364 = vpop.f32.mrf.mxu0
  %365 = vdwg.mxu0
  %366 = vmatpush.bf16.msra.mxu0 %v282
  %367 = vmatpush.bf16.msra.mxu0 %v281
  %368 = vmatpush.bf16.msra.mxu0 %v280
  %369 = vmatpush.bf16.msra.mxu0 %v279
  %370 = vmatpush.bf16.msra.mxu0 %v278
  %371 = vmatpush.bf16.msra.mxu0 %v277
  %372 = vmatpush.bf16.msra.mxu0 %v276
  %373 = vmatpush.bf16.msra.mxu0 %v275
  %374 = vmatmul.bf16.gmra.mxu0 %v101
  %v375 = vpop.f32.mrf.mxu0
  %v376 = vadd.f32 %v363, %v375
  %v377 = vpop.f32.mrf.mxu0
  %378 = vdwg.mxu0
  %379 = vmatpush.bf16.msra.mxu0 0
  %380 = vmatpush.bf16.msra.mxu0 0
  %381 = vmatpush.bf16.msra.mxu0 0
  %382 = vmatpush.bf16.msra.mxu0 0
  %383 = vmatpush.bf16.msra.mxu0 %v286
  %384 = vmatpush.bf16.msra.mxu0 %v285
  %385 = vmatpush.bf16.msra.mxu0 %v284
  %386 = vmatpush.bf16.msra.mxu0 %v283
  %387 = vmatmul.bf16.gmra.mxu0 %v325
  %v388 = vpop.f32.mrf.mxu0
  %v389 = vadd.f32 %v376, %v388
  %v390 = vpop.f32.mrf.mxu0
  %391 = vdwg.mxu0
  %v392 = vrot.slane %v389, 4
  %v393 = vadd.f32 %v389, %v392
  %v394 = vrot.slane %v393, 2
  %v395 = vadd.f32 %v393, %v394
  %v396 = vrot.slane %v395, 1
  %v397 = vadd.f32 %v395, %v396
  %v398 = vmul.f32 %v389, %v389
  %v399 = vrot.slane %v398, 4
  %v400 = vadd.f32 %v398, %v399
  %v401 = vrot.slane %v400, 2
  %v402 = vadd.f32 %v400, %v401
  %v403 = vrot.slane %v402, 1
  %v404 = vadd.f32 %v402, %v403
  %405 = vst [vmem:[%s3] sm:$0xff] %v397
  %406 = vst [vmem:[%s4] sm:$0xff] %v404
  %v407 = vpack.c.bf16 %v389, %v389
  %408 = vst [vmem:[%s2] sm:$0xf] %v407
  // Predicated region
  $region10: #{_lambda_.16} parent=0 // pred_check
    _
  $region11: #{_lambda_.16} parent=0 // pred_check_branch
    %410 = sbr.rel (0) target = $region13
  $region12: #{_lambda_.16} parent=0 // pred_region
    _
  $region13: #{_lambda_.16} parent=0 // pred_fallthru
    _
  // Predicated region
  $region14: #{_lambda_.16} parent=0 // pred_check
    _
  $region15: #{_lambda_.16} parent=0 // pred_check_branch
    %412 = sbr.rel (0) target = $region17
  $region16: #{_lambda_.16} parent=0 // pred_region
    _
  $region17: #{_lambda_.16} parent=0 // pred_fallthru
    _
  // Predicated region
  $region18: #{_lambda_.16} parent=0 // pred_check
    _
  $region19: #{_lambda_.16} parent=0 // pred_check_branch
    %414 = sbr.rel (0) target = $region21
  $region20: #{_lambda_.16} parent=0 // pred_region
    _
  $region21: #{_lambda_.16} parent=0 // pred_fallthru
    _
  // Predicated region
  $region22: #{_lambda_.16} parent=0 // pred_check
    _
  $region23: #{_lambda_.16} parent=0 // pred_check_branch
    %416 = sbr.rel (0) target = $region25
  $region24: #{_lambda_.16} parent=0 // pred_region
    _
  $region25: #{_lambda_.16} parent=0 // pred_fallthru
    _
  // Predicated region
  $region26: #{_lambda_.16} parent=0 // pred_check
    _
  $region27: #{_lambda_.16} parent=0 // pred_check_branch
    %418 = sbr.rel (0) target = $region29
  $region28: #{_lambda_.16} parent=0 // pred_region
    _
  $region29: #{_lambda_.16} parent=0 // pred_fallthru
    _
  // Predicated region
  $region30: #{_lambda_.16} parent=0 // pred_check
    _
  $region31: #{_lambda_.16} parent=0 // pred_check_branch
    %420 = sbr.rel (0) target = $region33
  $region32: #{_lambda_.16} parent=0 // pred_region
    _
  $region33: #{_lambda_.16} parent=0 // pred_fallthru
    _

// kernel: _lambda_.11
$region0: #{_lambda_.11}
  #allocation0 [shape = 'u32[]', space=smem, size = 0x4, offset = 0x4, fixed_abs, tag = 'smem constant byte address 0x4 - core index']
  #allocation1 [shape = 'u32[72,128]{1,0:T(1,128)}', space=vmem, size = 0x9000, scoped, tag = 'internal scratch']
  #allocation2 [shape = 'f32[6,18,18]{2,1,0:T(8,128)}', space=vmem, size = 0x12000, scoped, tag = 'scratch operand']
  %s0 = inlined_call_operand.vmem [shape: f32[243], index: 0, kind: input, shape index: {}]
  %s1 = inlined_call_operand.vmem [shape: f32[9], index: 1, kind: input, shape index: {}]
  %s2 = inlined_call_operand.vmem [shape: f32[3,2,16,16], index: 2, kind: input, shape index: {}]
  %s3 = inlined_call_operand.vmem [shape: bf16[3,2,16,16], index: 3, kind: output, shape index: {}]
  %s4 = sld [smem:[#allocation0]]
  $region30: #{_lambda_.11} parent=0
    _
  %s6 = ssub.s32 1, %s4
  %s7 = scalar_select 0, %s6, %s4
  $region1: #{_lambda_.11} parent=0
    #allocation3 [shape = 'u8[1024]{0}', space=smem, size = 0x400, scoped, tag = 'input window, operand 0, single buffered']
    #allocation4 [shape = 's32[1]{0}', space=sflag, size = 0x4, scoped, tag = 'scoped memory for _lambda_.11']
    #allocation5 [shape = 'u8[512]{0}', space=smem, size = 0x200, scoped, tag = 'input window, operand 1, single buffered']
    #allocation6 [shape = 's32[1]{0}', space=sflag, size = 0x4, scoped, tag = 'scoped memory for _lambda_.11']
    %8 = vsyncpa [#allocation4], 0
    %9 = vsyncpa [#allocation6], 0
    // Predicated region
    $region2: #{_lambda_.11} parent=1 // pred_check
      _
    $region3: #{_lambda_.11} parent=1 // pred_check_branch
      %11 = sbr.rel (0) target = $region5
    $region4: #{_lambda_.11} parent=1 // pred_region
      %13 = vsyncadd [#allocation4], 0
      %s15 = sshll.u32 %s0, 4
      %s16 = int_to_ptr.vmem [resolvable:$true] %s15
      %18 = dma.vmem_to_smem %s16, 32, [#allocation3], [#allocation4]
    $region5: #{_lambda_.11} parent=1 // pred_fallthru
      _
    // Predicated region
    $region6: #{_lambda_.11} parent=1 // pred_check
      _
    $region7: #{_lambda_.11} parent=1 // pred_check_branch
      %20 = sbr.rel (0) target = $region9
    $region8: #{_lambda_.11} parent=1 // pred_region
      %22 = vsyncadd [#allocation6], 0
      %s24 = sshll.u32 %s1, 4
      %s25 = int_to_ptr.vmem [resolvable:$true] %s24
      %27 = dma.vmem_to_smem %s25, 16, [#allocation5], [#allocation6]
    $region9: #{_lambda_.11} parent=1 // pred_fallthru
      _
    // Predicated region
    $region10: #{_lambda_.11} parent=1 // pred_check
      _
    $region11: #{_lambda_.11} parent=1 // pred_check_branch
      %29 = sbr.rel (0) target = $region13
    $region12: #{_lambda_.11} parent=1 // pred_region
      _
    $region13: #{_lambda_.11} parent=1 // pred_fallthru
      _
    // Predicated region
    $region14: #{_lambda_.11} parent=1 // pred_check
      _
    $region15: #{_lambda_.11} parent=1 // pred_check_branch
      %31 = sbr.rel (0) target = $region17
    $region16: #{_lambda_.11} parent=1 // pred_region
      %33 = dma.done [#allocation4], 32
    $region17: #{_lambda_.11} parent=1 // pred_fallthru
      _
    // Predicated region
    $region18: #{_lambda_.11} parent=1 // pred_check
      _
    $region19: #{_lambda_.11} parent=1 // pred_check_branch
      %35 = sbr.rel (0) target = $region21
    $region20: #{_lambda_.11} parent=1 // pred_region
      %37 = dma.done [#allocation6], 16
    $region21: #{_lambda_.11} parent=1 // pred_fallthru
      _
    %38 = sfence
    %v39 = vld [vmem:[%s2] sm:$0xff]
    %v40 = vld [vmem:[%s2 + $0x8] sm:$0xff]
    %v41 = vld [vmem:[%s2 + $0x10] sm:$0xff]
    %v42 = vld [vmem:[%s2 + $0x18] sm:$0xff]
    %s43 = scalar_lea.vmem %s2, 32
    %v44 = vld [vmem:[%s43] sm:$0xff]
    %v45 = vld [vmem:[%s43 + $0x8] sm:$0xff]
    %v46 = vld [vmem:[%s43 + $0x10] sm:$0xff]
    %v47 = vld [vmem:[%s43 + $0x18] sm:$0xff]
    %s48 = scalar_lea.vmem %s2, 64
    %v49 = vld [vmem:[%s48] sm:$0xff]
    %v50 = vld [vmem:[%s48 + $0x8] sm:$0xff]
    %v51 = vld [vmem:[%s48 + $0x10] sm:$0xff]
    %v52 = vld [vmem:[%s48 + $0x18] sm:$0xff]
    %vm53 = vcmask 146432
    %54 = vst.msk [vmem:[#allocation2] sm:$0xff] %vm53, 0.0
    %55 = vst.msk [vmem:[#allocation2 + $0x8] sm:$0xff] %vm53, 0.0
    %vm56 = vcmask 140288
    %57 = vst.msk [vmem:[#allocation2 + $0x10] sm:$0x3] %vm56, 0.0
    %58 = vst.msk [vmem:[#allocation2 + $0x18] sm:$0xff] %vm53, 0.0
    %59 = vst.msk [vmem:[#allocation2 + $0x20] sm:$0xff] %vm53, 0.0
    %60 = vst.msk [vmem:[#allocation2 + $0x28] sm:$0x3] %vm56, 0.0
    %61 = vst.msk [vmem:[#allocation2 + $0x30] sm:$0xff] %vm53, 0.0
    %62 = vst.msk [vmem:[#allocation2 + $0x38] sm:$0xff] %vm53, 0.0
    %63 = vst.msk [vmem:[#allocation2 + $0x40] sm:$0x3] %vm56, 0.0
    %64 = vst.msk [vmem:[#allocation2 + $0x48] sm:$0xff] %vm53, 0.0
    %65 = vst.msk [vmem:[#allocation2 + $0x50] sm:$0xff] %vm53, 0.0
    %66 = vst.msk [vmem:[#allocation2 + $0x58] sm:$0x3] %vm56, 0.0
    %67 = vst.msk [vmem:[#allocation2 + $0x60] sm:$0xff] %vm53, 0.0
    %68 = vst.msk [vmem:[#allocation2 + $0x68] sm:$0xff] %vm53, 0.0
    %69 = vst.msk [vmem:[#allocation2 + $0x70] sm:$0x3] %vm56, 0.0
    %70 = vst.msk [vmem:[#allocation2 + $0x78] sm:$0xff] %vm53, 0.0
    %71 = vst.msk [vmem:[#allocation2 + $0x80] sm:$0xff] %vm53, 0.0
    %72 = vst.msk [vmem:[#allocation2 + $0x88] sm:$0x3] %vm56, 0.0
    %77 = vrot.lane.b32.xlu0 %v39, 1
    %v78 = vpop.permute.xlu0 %77
    %79 = vrot.lane.b32.xlu0 %v40, 1
    %v80 = vpop.permute.xlu0 %79
    %81 = vrot.lane.b32.xlu0 %v41, 1
    %v82 = vpop.permute.xlu0 %81
    %83 = vrot.lane.b32.xlu0 %v42, 1
    %v84 = vpop.permute.xlu0 %83
    %vm89 = vcmask 138248
    %90 = vst.msk [vmem:[#allocation2 + $0x1] sm:$0xff] %vm89, %v78
    %91 = vst.msk [vmem:[#allocation2 + $0x9] sm:$0xff] %vm89, %v80
    %92 = vst.msk [vmem:[#allocation2 + $0x19] sm:$0xff] %vm89, %v82
    %93 = vst.msk [vmem:[#allocation2 + $0x21] sm:$0xff] %vm89, %v84
    %98 = vrot.lane.b32.xlu0 %v44, 1
    %v99 = vpop.permute.xlu0 %98
    %100 = vrot.lane.b32.xlu0 %v45, 1
    %v101 = vpop.permute.xlu0 %100
    %102 = vrot.lane.b32.xlu0 %v46, 1
    %v103 = vpop.permute.xlu0 %102
    %104 = vrot.lane.b32.xlu0 %v47, 1
    %v105 = vpop.permute.xlu0 %104
    %s110 = scalar_lea.vmem [#allocation2], 48
    %111 = vst.msk [vmem:[%s110 + $0x1] sm:$0xff] %vm89, %v99
    %112 = vst.msk [vmem:[%s110 + $0x9] sm:$0xff] %vm89, %v101
    %113 = vst.msk [vmem:[%s110 + $0x19] sm:$0xff] %vm89, %v103
    %114 = vst.msk [vmem:[%s110 + $0x21] sm:$0xff] %vm89, %v105
    %119 = vrot.lane.b32.xlu0 %v49, 1
    %v120 = vpop.permute.xlu0 %119
    %121 = vrot.lane.b32.xlu0 %v50, 1
    %v122 = vpop.permute.xlu0 %121
    %123 = vrot.lane.b32.xlu0 %v51, 1
    %v124 = vpop.permute.xlu0 %123
    %125 = vrot.lane.b32.xlu0 %v52, 1
    %v126 = vpop.permute.xlu0 %125
    %s131 = scalar_lea.vmem [#allocation2], 96
    %132 = vst.msk [vmem:[%s131 + $0x1] sm:$0xff] %vm89, %v120
    %133 = vst.msk [vmem:[%s131 + $0x9] sm:$0xff] %vm89, %v122
    %134 = vst.msk [vmem:[%s131 + $0x19] sm:$0xff] %vm89, %v124
    %135 = vst.msk [vmem:[%s131 + $0x21] sm:$0xff] %vm89, %v126
    %s136 = sld [smem:[#allocation5]]
    %v137 = vstv %s136
    %v138 = vadd.f32 %v137, 0.0
    %s139 = sld [smem:[#allocation5 + $0x1]]
    %v140 = vstv %s139
    %v141 = vadd.f32 %v140, 0.0
    %s142 = sld [smem:[#allocation5 + $0x2]]
    %v143 = vstv %s142
    %v144 = vadd.f32 %v143, 0.0
    %v145 = vld [vmem:[#allocation2] sm:$0xff]
    %v146 = vld [vmem:[#allocation2 + $0x8] sm:$0xff]
    %v147 = vld [vmem:[#allocation2 + $0x18] sm:$0xff]
    %v148 = vld [vmem:[#allocation2 + $0x20] sm:$0xff]
    %s149 = sld [smem:[#allocation3]]
    %v150 = vstv %s149
    %v151 = vmul.f32 %v150, %v145
    %v152 = vmul.f32 %v150, %v146
    %v153 = vmul.f32 %v150, %v147
    %v154 = vmul.f32 %v150, %v148
    %v155 = vadd.f32 %v138, %v151
    %v156 = vadd.f32 %v138, %v152
    %v157 = vadd.f32 %v138, %v153
    %v158 = vadd.f32 %v138, %v154
    %s159 = sld [smem:[#allocation3 + $0x1]]
    %v160 = vstv %s159
    %v161 = vmul.f32 %v160, %v145
    %v162 = vmul.f32 %v160, %v146
    %v163 = vmul.f32 %v160, %v147
    %v164 = vmul.f32 %v160, %v148
    %v165 = vadd.f32 %v141, %v161
    %v166 = vadd.f32 %v141, %v162
    %v167 = vadd.f32 %v141, %v163
    %v168 = vadd.f32 %v141, %v164
    %s169 = sld [smem:[#allocation3 + $0x2]]
    %v170 = vstv %s169
    %v171 = vmul.f32 %v170, %v145
    %v172 = vmul.f32 %v170, %v146
    %v173 = vmul.f32 %v170, %v147
    %v174 = vmul.f32 %v170, %v148
    %v175 = vadd.f32 %v144, %v171
    %v176 = vadd.f32 %v144, %v172
    %v177 = vadd.f32 %v144, %v173
    %v178 = vadd.f32 %v144, %v174
    %s179 = sld [smem:[#allocation3 + $0x9]]
    %v180 = vstv %s179
    %v181 = vmul.f32 %v180, %v145
    %v182 = vmul.f32 %v180, %v146
    %v183 = vmul.f32 %v180, %v147
    %v184 = vmul.f32 %v180, %v148
    %189 = vrot.lane.b32.xlu0 %v181, 127
    %v190 = vpop.permute.xlu0 %189
    %191 = vrot.lane.b32.xlu0 %v182, 127
    %v192 = vpop.permute.xlu0 %191
    %193 = vrot.lane.b32.xlu0 %v183, 127
    %v194 = vpop.permute.xlu0 %193
    %195 = vrot.lane.b32.xlu0 %v184, 127
    %v196 = vpop.permute.xlu0 %195
    %v201 = vadd.f32 %v155, %v190
    %v202 = vadd.f32 %v156, %v192
    %v203 = vadd.f32 %v157, %v194
    %v204 = vadd.f32 %v158, %v196
    %s205 = sld [smem:[#allocation3 + $0xa]]
    %v206 = vstv %s205
    %v207 = vmul.f32 %v206, %v145
    %v208 = vmul.f32 %v206, %v146
    %v209 = vmul.f32 %v206, %v147
    %v210 = vmul.f32 %v206, %v148
    %215 = vrot.lane.b32.xlu0 %v207, 127
    %v216 = vpop.permute.xlu0 %215
    %217 = vrot.lane.b32.xlu0 %v208, 127
    %v218 = vpop.permute.xlu0 %217
    %219 = vrot.lane.b32.xlu0 %v209, 127
    %v220 = vpop.permute.xlu0 %219
    %221 = vrot.lane.b32.xlu0 %v210, 127
    %v222 = vpop.permute.xlu0 %221
    %v227 = vadd.f32 %v165, %v216
    %v228 = vadd.f32 %v166, %v218
    %v229 = vadd.f32 %v167, %v220
    %v230 = vadd.f32 %v168, %v222
    %s231 = sld [smem:[#allocation3 + $0xb]]
    %v232 = vstv %s231
    %v233 = vmul.f32 %v232, %v145
    %v234 = vmul.f32 %v232, %v146
    %v235 = vmul.f32 %v232, %v147
    %v236 = vmul.f32 %v232, %v148
    %241 = vrot.lane.b32.xlu0 %v233, 127
    %v242 = vpop.permute.xlu0 %241
    %243 = vrot.lane.b32.xlu0 %v234, 127
    %v244 = vpop.permute.xlu0 %243
    %245 = vrot.lane.b32.xlu0 %v235, 127
    %v246 = vpop.permute.xlu0 %245
    %247 = vrot.lane.b32.xlu0 %v236, 127
    %v248 = vpop.permute.xlu0 %247
    %v253 = vadd.f32 %v175, %v242
    %v254 = vadd.f32 %v176, %v244
    %v255 = vadd.f32 %v177, %v246
    %v256 = vadd.f32 %v178, %v248
    %s257 = sld [smem:[#allocation3 + $0x12]]
    %v258 = vstv %s257
    %v259 = vmul.f32 %v258, %v145
    %v260 = vmul.f32 %v258, %v146
    %v261 = vmul.f32 %v258, %v147
    %v262 = vmul.f32 %v258, %v148
    %267 = vrot.lane.b32.xlu0 %v259, 126
    %v268 = vpop.permute.xlu0 %267
    %269 = vrot.lane.b32.xlu0 %v260, 126
    %v270 = vpop.permute.xlu0 %269
    %271 = vrot.lane.b32.xlu0 %v261, 126
    %v272 = vpop.permute.xlu0 %271
    %273 = vrot.lane.b32.xlu0 %v262, 126
    %v274 = vpop.permute.xlu0 %273
    %v279 = vadd.f32 %v201, %v268
    %v280 = vadd.f32 %v202, %v270
    %v281 = vadd.f32 %v203, %v272
    %v282 = vadd.f32 %v204, %v274
    %s283 = sld [smem:[#allocation3 + $0x13]]
    %v284 = vstv %s283
    %v285 = vmul.f32 %v284, %v145
    %v286 = vmul.f32 %v284, %v146
    %v287 = vmul.f32 %v284, %v147
    %v288 = vmul.f32 %v284, %v148
    %293 = vrot.lane.b32.xlu0 %v285, 126
    %v294 = vpop.permute.xlu0 %293
    %295 = vrot.lane.b32.xlu0 %v286, 126
    %v296 = vpop.permute.xlu0 %295
    %297 = vrot.lane.b32.xlu0 %v287, 126
    %v298 = vpop.permute.xlu0 %297
    %299 = vrot.lane.b32.xlu0 %v288, 126
    %v300 = vpop.permute.xlu0 %299
    %v305 = vadd.f32 %v227, %v294
    %v306 = vadd.f32 %v228, %v296
    %v307 = vadd.f32 %v229, %v298
    %v308 = vadd.f32 %v230, %v300
    %s309 = sld [smem:[#allocation3 + $0x14]]
    %v310 = vstv %s309
    %v311 = vmul.f32 %v310, %v145
    %v312 = vmul.f32 %v310, %v146
    %v313 = vmul.f32 %v310, %v147
    %v314 = vmul.f32 %v310, %v148
    %319 = vrot.lane.b32.xlu0 %v311, 126
    %v320 = vpop.permute.xlu0 %319
    %321 = vrot.lane.b32.xlu0 %v312, 126
    %v322 = vpop.permute.xlu0 %321
    %323 = vrot.lane.b32.xlu0 %v313, 126
    %v324 = vpop.permute.xlu0 %323
    %325 = vrot.lane.b32.xlu0 %v314, 126
    %v326 = vpop.permute.xlu0 %325
    %v331 = vadd.f32 %v253, %v320
    %v332 = vadd.f32 %v254, %v322
    %v333 = vadd.f32 %v255, %v324
    %v334 = vadd.f32 %v256, %v326
    %v335 = vld [vmem:[#allocation2 + $0x1] sm:$0xff]
    %v336 = vld [vmem:[#allocation2 + $0x9] sm:$0xff]
    %v337 = vld [vmem:[#allocation2 + $0x19] sm:$0xff]
    %v338 = vld [vmem:[#allocation2 + $0x21] sm:$0xff]
    %s339 = sld [smem:[#allocation3 + $0x1b]]
    %v340 = vstv %s339
    %v341 = vmul.f32 %v340, %v335
    %v342 = vmul.f32 %v340, %v336
    %v343 = vmul.f32 %v340, %v337
    %v344 = vmul.f32 %v340, %v338
    %v345 = vadd.f32 %v279, %v341
    %v346 = vadd.f32 %v280, %v342
    %v347 = vadd.f32 %v281, %v343
    %v348 = vadd.f32 %v282, %v344
    %s349 = sld [smem:[#allocation3 + $0x1c]]
    %v350 = vstv %s349
    %v351 = vmul.f32 %v350, %v335
    %v352 = vmul.f32 %v350, %v336
    %v353 = vmul.f32 %v350, %v337
    %v354 = vmul.f32 %v350, %v338
    %v355 = vadd.f32 %v305, %v351
    %v356 = vadd.f32 %v306, %v352
    %v357 = vadd.f32 %v307, %v353
    %v358 = vadd.f32 %v308, %v354
    %s359 = sld [smem:[#allocation3 + $0x1d]]
    %v360 = vstv %s359
    %v361 = vmul.f32 %v360, %v335
    %v362 = vmul.f32 %v360, %v336
    %v363 = vmul.f32 %v360, %v337
    %v364 = vmul.f32 %v360, %v338
    %v365 = vadd.f32 %v331, %v361
    %v366 = vadd.f32 %v332, %v362
    %v367 = vadd.f32 %v333, %v363
    %v368 = vadd.f32 %v334, %v364
    %s369 = sld [smem:[#allocation3 + $0x24]]
    %v370 = vstv %s369
    %v371 = vmul.f32 %v370, %v335
    %v372 = vmul.f32 %v370, %v336
    %v373 = vmul.f32 %v370, %v337
    %v374 = vmul.f32 %v370, %v338
    %379 = vrot.lane.b32.xlu0 %v371, 127
    %v380 = vpop.permute.xlu0 %379
    %381 = vrot.lane.b32.xlu0 %v372, 127
    %v382 = vpop.permute.xlu0 %381
    %383 = vrot.lane.b32.xlu0 %v373, 127
    %v384 = vpop.permute.xlu0 %383
    %385 = vrot.lane.b32.xlu0 %v374, 127
    %v386 = vpop.permute.xlu0 %385
    %v391 = vadd.f32 %v345, %v380
    %v392 = vadd.f32 %v346, %v382
    %v393 = vadd.f32 %v347, %v384
    %v394 = vadd.f32 %v348, %v386
    %s395 = sld [smem:[#allocation3 + $0x25]]
    %v396 = vstv %s395
    %v397 = vmul.f32 %v396, %v335
    %v398 = vmul.f32 %v396, %v336
    %v399 = vmul.f32 %v396, %v337
    %v400 = vmul.f32 %v396, %v338
    %405 = vrot.lane.b32.xlu0 %v397, 127
    %v406 = vpop.permute.xlu0 %405
    %407 = vrot.lane.b32.xlu0 %v398, 127
    %v408 = vpop.permute.xlu0 %407
    %409 = vrot.lane.b32.xlu0 %v399, 127
    %v410 = vpop.permute.xlu0 %409
    %411 = vrot.lane.b32.xlu0 %v400, 127
    %v412 = vpop.permute.xlu0 %411
    %v417 = vadd.f32 %v355, %v406
    %v418 = vadd.f32 %v356, %v408
    %v419 = vadd.f32 %v357, %v410
    %v420 = vadd.f32 %v358, %v412
    %s421 = sld [smem:[#allocation3 + $0x26]]
    %v422 = vstv %s421
    %v423 = vmul.f32 %v422, %v335
    %v424 = vmul.f32 %v422, %v336
    %v425 = vmul.f32 %v422, %v337
    %v426 = vmul.f32 %v422, %v338
    %431 = vrot.lane.b32.xlu0 %v423, 127
    %v432 = vpop.permute.xlu0 %431
    %433 = vrot.lane.b32.xlu0 %v424, 127
    %v434 = vpop.permute.xlu0 %433
    %435 = vrot.lane.b32.xlu0 %v425, 127
    %v436 = vpop.permute.xlu0 %435
    %437 = vrot.lane.b32.xlu0 %v426, 127
    %v438 = vpop.permute.xlu0 %437
    %v443 = vadd.f32 %v365, %v432
    %v444 = vadd.f32 %v366, %v434
    %v445 = vadd.f32 %v367, %v436
    %v446 = vadd.f32 %v368, %v438
    %s447 = sld [smem:[#allocation3 + $0x2d]]
    %v448 = vstv %s447
    %v449 = vmul.f32 %v448, %v335
    %v450 = vmul.f32 %v448, %v336
    %v451 = vmul.f32 %v448, %v337
    %v452 = vmul.f32 %v448, %v338
    %457 = vrot.lane.b32.xlu0 %v449, 126
    %v458 = vpop.permute.xlu0 %457
    %459 = vrot.lane.b32.xlu0 %v450, 126
    %v460 = vpop.permute.xlu0 %459
    %461 = vrot.lane.b32.xlu0 %v451, 126
    %v462 = vpop.permute.xlu0 %461
    %463 = vrot.lane.b32.xlu0 %v452, 126
    %v464 = vpop.permute.xlu0 %463
    %v469 = vadd.f32 %v391, %v458
    %v470 = vadd.f32 %v392, %v460
    %v471 = vadd.f32 %v393, %v462
    %v472 = vadd.f32 %v394, %v464
    %s473 = sld [smem:[#allocation3 + $0x2e]]
    %v474 = vstv %s473
    %v475 = vmul.f32 %v474, %v335
    %v476 = vmul.f32 %v474, %v336
    %v477 = vmul.f32 %v474, %v337
    %v478 = vmul.f32 %v474, %v338
    %483 = vrot.lane.b32.xlu0 %v475, 126
    %v484 = vpop.permute.xlu0 %483
    %485 = vrot.lane.b32.xlu0 %v476, 126
    %v486 = vpop.permute.xlu0 %485
    %487 = vrot.lane.b32.xlu0 %v477, 126
    %v488 = vpop.permute.xlu0 %487
    %489 = vrot.lane.b32.xlu0 %v478, 126
    %v490 = vpop.permute.xlu0 %489
    %v495 = vadd.f32 %v417, %v484
    %v496 = vadd.f32 %v418, %v486
    %v497 = vadd.f32 %v419, %v488
    %v498 = vadd.f32 %v420, %v490
    %s499 = sld [smem:[#allocation3 + $0x2f]]
    %v500 = vstv %s499
    %v501 = vmul.f32 %v500, %v335
    %v502 = vmul.f32 %v500, %v336
    %v503 = vmul.f32 %v500, %v337
    %v504 = vmul.f32 %v500, %v338
    %509 = vrot.lane.b32.xlu0 %v501, 126
    %v510 = vpop.permute.xlu0 %509
    %511 = vrot.lane.b32.xlu0 %v502, 126
    %v512 = vpop.permute.xlu0 %511
    %513 = vrot.lane.b32.xlu0 %v503, 126
    %v514 = vpop.permute.xlu0 %513
    %515 = vrot.lane.b32.xlu0 %v504, 126
    %v516 = vpop.permute.xlu0 %515
    %v521 = vadd.f32 %v443, %v510
    %v522 = vadd.f32 %v444, %v512
    %v523 = vadd.f32 %v445, %v514
    %v524 = vadd.f32 %v446, %v516
    %v525 = vld [vmem:[#allocation2 + $0x2] sm:$0xff]
    %v526 = vld [vmem:[#allocation2 + $0xa] sm:$0xff]
    %v527 = vld [vmem:[#allocation2 + $0x1a] sm:$0xff]
    %v528 = vld [vmem:[#allocation2 + $0x22] sm:$0xff]
    %s529 = sld [smem:[#allocation3 + $0x36]]
    %v530 = vstv %s529
    %v531 = vmul.f32 %v530, %v525
    %v532 = vmul.f32 %v530, %v526
    %v533 = vmul.f32 %v530, %v527
    %v534 = vmul.f32 %v530, %v528
    %v535 = vadd.f32 %v469, %v531
    %v536 = vadd.f32 %v470, %v532
    %v537 = vadd.f32 %v471, %v533
    %v538 = vadd.f32 %v472, %v534
    %s539 = sld [smem:[#allocation3 + $0x37]]
    %v540 = vstv %s539
    %v541 = vmul.f32 %v540, %v525
    %v542 = vmul.f32 %v540, %v526
    %v543 = vmul.f32 %v540, %v527
    %v544 = vmul.f32 %v540, %v528
    %v545 = vadd.f32 %v495, %v541
    %v546 = vadd.f32 %v496, %v542
    %v547 = vadd.f32 %v497, %v543
    %v548 = vadd.f32 %v498, %v544
    %s549 = sld [smem:[#allocation3 + $0x38]]
    %v550 = vstv %s549
    %v551 = vmul.f32 %v550, %v525
    %v552 = vmul.f32 %v550, %v526
    %v553 = vmul.f32 %v550, %v527
    %v554 = vmul.f32 %v550, %v528
    %v555 = vadd.f32 %v521, %v551
    %v556 = vadd.f32 %v522, %v552
    %v557 = vadd.f32 %v523, %v553
    %v558 = vadd.f32 %v524, %v554
    %s559 = sld [smem:[#allocation3 + $0x3f]]
    %v560 = vstv %s559
    %v561 = vmul.f32 %v560, %v525
    %v562 = vmul.f32 %v560, %v526
    %v563 = vmul.f32 %v560, %v527
    %v564 = vmul.f32 %v560, %v528
    %569 = vrot.lane.b32.xlu0 %v561, 127
    %v570 = vpop.permute.xlu0 %569
    %571 = vrot.lane.b32.xlu0 %v562, 127
    %v572 = vpop.permute.xlu0 %571
    %573 = vrot.lane.b32.xlu0 %v563, 127
    %v574 = vpop.permute.xlu0 %573
    %575 = vrot.lane.b32.xlu0 %v564, 127
    %v576 = vpop.permute.xlu0 %575
    %v581 = vadd.f32 %v535, %v570
    %v582 = vadd.f32 %v536, %v572
    %v583 = vadd.f32 %v537, %v574
    %v584 = vadd.f32 %v538, %v576
    %s585 = sld [smem:[#allocation3 + $0x40]]
    %v586 = vstv %s585
    %v587 = vmul.f32 %v586, %v525
    %v588 = vmul.f32 %v586, %v526
    %v589 = vmul.f32 %v586, %v527
    %v590 = vmul.f32 %v586, %v528
    %595 = vrot.lane.b32.xlu0 %v587, 127
    %v596 = vpop.permute.xlu0 %595
    %597 = vrot.lane.b32.xlu0 %v588, 127
    %v598 = vpop.permute.xlu0 %597
    %599 = vrot.lane.b32.xlu0 %v589, 127
    %v600 = vpop.permute.xlu0 %599
    %601 = vrot.lane.b32.xlu0 %v590, 127
    %v602 = vpop.permute.xlu0 %601
    %v607 = vadd.f32 %v545, %v596
    %v608 = vadd.f32 %v546, %v598
    %v609 = vadd.f32 %v547, %v600
    %v610 = vadd.f32 %v548, %v602
    %s611 = sld [smem:[#allocation3 + $0x41]]
    %v612 = vstv %s611
    %v613 = vmul.f32 %v612, %v525
    %v614 = vmul.f32 %v612, %v526
    %v615 = vmul.f32 %v612, %v527
    %v616 = vmul.f32 %v612, %v528
    %621 = vrot.lane.b32.xlu0 %v613, 127
    %v622 = vpop.permute.xlu0 %621
    %623 = vrot.lane.b32.xlu0 %v614, 127
    %v624 = vpop.permute.xlu0 %623
    %625 = vrot.lane.b32.xlu0 %v615, 127
    %v626 = vpop.permute.xlu0 %625
    %627 = vrot.lane.b32.xlu0 %v616, 127
    %v628 = vpop.permute.xlu0 %627
    %v633 = vadd.f32 %v555, %v622
    %v634 = vadd.f32 %v556, %v624
    %v635 = vadd.f32 %v557, %v626
    %v636 = vadd.f32 %v558, %v628
    %s637 = sld [smem:[#allocation3 + $0x48]]
    %v638 = vstv %s637
    %v639 = vmul.f32 %v638, %v525
    %v640 = vmul.f32 %v638, %v526
    %v641 = vmul.f32 %v638, %v527
    %v642 = vmul.f32 %v638, %v528
    %647 = vrot.lane.b32.xlu0 %v639, 126
    %v648 = vpop.permute.xlu0 %647
    %649 = vrot.lane.b32.xlu0 %v640, 126
    %v650 = vpop.permute.xlu0 %649
    %651 = vrot.lane.b32.xlu0 %v641, 126
    %v652 = vpop.permute.xlu0 %651
    %653 = vrot.lane.b32.xlu0 %v642, 126
    %v654 = vpop.permute.xlu0 %653
    %v659 = vadd.f32 %v581, %v648
    %v660 = vadd.f32 %v582, %v650
    %v661 = vadd.f32 %v583, %v652
    %v662 = vadd.f32 %v584, %v654
    %s663 = sld [smem:[#allocation3 + $0x49]]
    %v664 = vstv %s663
    %v665 = vmul.f32 %v664, %v525
    %v666 = vmul.f32 %v664, %v526
    %v667 = vmul.f32 %v664, %v527
    %v668 = vmul.f32 %v664, %v528
    %673 = vrot.lane.b32.xlu0 %v665, 126
    %v674 = vpop.permute.xlu0 %673
    %675 = vrot.lane.b32.xlu0 %v666, 126
    %v676 = vpop.permute.xlu0 %675
    %677 = vrot.lane.b32.xlu0 %v667, 126
    %v678 = vpop.permute.xlu0 %677
    %679 = vrot.lane.b32.xlu0 %v668, 126
    %v680 = vpop.permute.xlu0 %679
    %v685 = vadd.f32 %v607, %v674
    %v686 = vadd.f32 %v608, %v676
    %v687 = vadd.f32 %v609, %v678
    %v688 = vadd.f32 %v610, %v680
    %s689 = sld [smem:[#allocation3 + $0x4a]]
    %v690 = vstv %s689
    %v691 = vmul.f32 %v690, %v525
    %v692 = vmul.f32 %v690, %v526
    %v693 = vmul.f32 %v690, %v527
    %v694 = vmul.f32 %v690, %v528
    %699 = vrot.lane.b32.xlu0 %v691, 126
    %v700 = vpop.permute.xlu0 %699
    %701 = vrot.lane.b32.xlu0 %v692, 126
    %v702 = vpop.permute.xlu0 %701
    %703 = vrot.lane.b32.xlu0 %v693, 126
    %v704 = vpop.permute.xlu0 %703
    %705 = vrot.lane.b32.xlu0 %v694, 126
    %v706 = vpop.permute.xlu0 %705
    %v711 = vadd.f32 %v633, %v700
    %v712 = vadd.f32 %v634, %v702
    %v713 = vadd.f32 %v635, %v704
    %v714 = vadd.f32 %v636, %v706
    %v715 = vld [vmem:[%s110] sm:$0xff]
    %v716 = vld [vmem:[%s110 + $0x8] sm:$0xff]
    %v717 = vld [vmem:[%s110 + $0x18] sm:$0xff]
    %v718 = vld [vmem:[%s110 + $0x20] sm:$0xff]
    %s719 = sld [smem:[#allocation3 + $0x3]]
    %v720 = vstv %s719
    %v721 = vmul.f32 %v720, %v715
    %v722 = vmul.f32 %v720, %v716
    %v723 = vmul.f32 %v720, %v717
    %v724 = vmul.f32 %v720, %v718
    %v725 = vadd.f32 %v659, %v721
    %v726 = vadd.f32 %v660, %v722
    %v727 = vadd.f32 %v661, %v723
    %v728 = vadd.f32 %v662, %v724
    %s729 = sld [smem:[#allocation3 + $0x4]]
    %v730 = vstv %s729
    %v731 = vmul.f32 %v730, %v715
    %v732 = vmul.f32 %v730, %v716
    %v733 = vmul.f32 %v730, %v717
    %v734 = vmul.f32 %v730, %v718
    %v735 = vadd.f32 %v685, %v731
    %v736 = vadd.f32 %v686, %v732
    %v737 = vadd.f32 %v687, %v733
    %v738 = vadd.f32 %v688, %v734
    %s739 = sld [smem:[#allocation3 + $0x5]]
    %v740 = vstv %s739
    %v741 = vmul.f32 %v740, %v715
    %v742 = vmul.f32 %v740, %v716
    %v743 = vmul.f32 %v740, %v717
    %v744 = vmul.f32 %v740, %v718
    %v745 = vadd.f32 %v711, %v741
    %v746 = vadd.f32 %v712, %v742
    %v747 = vadd.f32 %v713, %v743
    %v748 = vadd.f32 %v714, %v744
    %s749 = sld [smem:[#allocation3 + $0xc]]
    %v750 = vstv %s749
    %v751 = vmul.f32 %v750, %v715
    %v752 = vmul.f32 %v750, %v716
    %v753 = vmul.f32 %v750, %v717
    %v754 = vmul.f32 %v750, %v718
    %759 = vrot.lane.b32.xlu0 %v751, 127
    %v760 = vpop.permute.xlu0 %759
    %761 = vrot.lane.b32.xlu0 %v752, 127
    %v762 = vpop.permute.xlu0 %761
    %763 = vrot.lane.b32.xlu0 %v753, 127
    %v764 = vpop.permute.xlu0 %763
    %765 = vrot.lane.b32.xlu0 %v754, 127
    %v766 = vpop.permute.xlu0 %765
    %v771 = vadd.f32 %v725, %v760
    %v772 = vadd.f32 %v726, %v762
    %v773 = vadd.f32 %v727, %v764
    %v774 = vadd.f32 %v728, %v766
    %s775 = sld [smem:[#allocation3 + $0xd]]
    %v776 = vstv %s775
    %v777 = vmul.f32 %v776, %v715
    %v778 = vmul.f32 %v776, %v716
    %v779 = vmul.f32 %v776, %v717
    %v780 = vmul.f32 %v776, %v718
    %785 = vrot.lane.b32.xlu0 %v777, 127
    %v786 = vpop.permute.xlu0 %785
    %787 = vrot.lane.b32.xlu0 %v778, 127
    %v788 = vpop.permute.xlu0 %787
    %789 = vrot.lane.b32.xlu0 %v779, 127
    %v790 = vpop.permute.xlu0 %789
    %791 = vrot.lane.b32.xlu0 %v780, 127
    %v792 = vpop.permute.xlu0 %791
    %v797 = vadd.f32 %v735, %v786
    %v798 = vadd.f32 %v736, %v788
    %v799 = vadd.f32 %v737, %v790
    %v800 = vadd.f32 %v738, %v792
    %s801 = sld [smem:[#allocation3 + $0xe]]
    %v802 = vstv %s801
    %v803 = vmul.f32 %v802, %v715
    %v804 = vmul.f32 %v802, %v716
    %v805 = vmul.f32 %v802, %v717
    %v806 = vmul.f32 %v802, %v718
    %811 = vrot.lane.b32.xlu0 %v803, 127
    %v812 = vpop.permute.xlu0 %811
    %813 = vrot.lane.b32.xlu0 %v804, 127
    %v814 = vpop.permute.xlu0 %813
    %815 = vrot.lane.b32.xlu0 %v805, 127
    %v816 = vpop.permute.xlu0 %815
    %817 = vrot.lane.b32.xlu0 %v806, 127
    %v818 = vpop.permute.xlu0 %817
    %v823 = vadd.f32 %v745, %v812
    %v824 = vadd.f32 %v746, %v814
    %v825 = vadd.f32 %v747, %v816
    %v826 = vadd.f32 %v748, %v818
    %s827 = sld [smem:[#allocation3 + $0x15]]
    %v828 = vstv %s827
    %v829 = vmul.f32 %v828, %v715
    %v830 = vmul.f32 %v828, %v716
    %v831 = vmul.f32 %v828, %v717
    %v832 = vmul.f32 %v828, %v718
    %837 = vrot.lane.b32.xlu0 %v829, 126
    %v838 = vpop.permute.xlu0 %837
    %839 = vrot.lane.b32.xlu0 %v830, 126
    %v840 = vpop.permute.xlu0 %839
    %841 = vrot.lane.b32.xlu0 %v831, 126
    %v842 = vpop.permute.xlu0 %841
    %843 = vrot.lane.b32.xlu0 %v832, 126
    %v844 = vpop.permute.xlu0 %843
    %v849 = vadd.f32 %v771, %v838
    %v850 = vadd.f32 %v772, %v840
    %v851 = vadd.f32 %v773, %v842
    %v852 = vadd.f32 %v774, %v844
    %s853 = sld [smem:[#allocation3 + $0x16]]
    %v854 = vstv %s853
    %v855 = vmul.f32 %v854, %v715
    %v856 = vmul.f32 %v854, %v716
    %v857 = vmul.f32 %v854, %v717
    %v858 = vmul.f32 %v854, %v718
    %863 = vrot.lane.b32.xlu0 %v855, 126
    %v864 = vpop.permute.xlu0 %863
    %865 = vrot.lane.b32.xlu0 %v856, 126
    %v866 = vpop.permute.xlu0 %865
    %867 = vrot.lane.b32.xlu0 %v857, 126
    %v868 = vpop.permute.xlu0 %867
    %869 = vrot.lane.b32.xlu0 %v858, 126
    %v870 = vpop.permute.xlu0 %869
    %v875 = vadd.f32 %v797, %v864
    %v876 = vadd.f32 %v798, %v866
    %v877 = vadd.f32 %v799, %v868
    %v878 = vadd.f32 %v800, %v870
    %s879 = sld [smem:[#allocation3 + $0x17]]
    %v880 = vstv %s879
    %v881 = vmul.f32 %v880, %v715
    %v882 = vmul.f32 %v880, %v716
    %v883 = vmul.f32 %v880, %v717
    %v884 = vmul.f32 %v880, %v718
    %889 = vrot.lane.b32.xlu0 %v881, 126
    %v890 = vpop.permute.xlu0 %889
    %891 = vrot.lane.b32.xlu0 %v882, 126
    %v892 = vpop.permute.xlu0 %891
    %893 = vrot.lane.b32.xlu0 %v883, 126
    %v894 = vpop.permute.xlu0 %893
    %895 = vrot.lane.b32.xlu0 %v884, 126
    %v896 = vpop.permute.xlu0 %895
    %v901 = vadd.f32 %v823, %v890
    %v902 = vadd.f32 %v824, %v892
    %v903 = vadd.f32 %v825, %v894
    %v904 = vadd.f32 %v826, %v896
    %v905 = vld [vmem:[%s110 + $0x1] sm:$0xff]
    %v906 = vld [vmem:[%s110 + $0x9] sm:$0xff]
    %v907 = vld [vmem:[%s110 + $0x19] sm:$0xff]
    %v908 = vld [vmem:[%s110 + $0x21] sm:$0xff]
    %s909 = sld [smem:[#allocation3 + $0x1e]]
    %v910 = vstv %s909
    %v911 = vmul.f32 %v910, %v905
    %v912 = vmul.f32 %v910, %v906
    %v913 = vmul.f32 %v910, %v907
    %v914 = vmul.f32 %v910, %v908
    %v915 = vadd.f32 %v849, %v911
    %v916 = vadd.f32 %v850, %v912
    %v917 = vadd.f32 %v851, %v913
    %v918 = vadd.f32 %v852, %v914
    %s919 = sld [smem:[#allocation3 + $0x1f]]
    %v920 = vstv %s919
    %v921 = vmul.f32 %v920, %v905
    %v922 = vmul.f32 %v920, %v906
    %v923 = vmul.f32 %v920, %v907
    %v924 = vmul.f32 %v920, %v908
    %v925 = vadd.f32 %v875, %v921
    %v926 = vadd.f32 %v876, %v922
    %v927 = vadd.f32 %v877, %v923
    %v928 = vadd.f32 %v878, %v924
    %s929 = sld [smem:[#allocation3 + $0x20]]
    %v930 = vstv %s929
    %v931 = vmul.f32 %v930, %v905
    %v932 = vmul.f32 %v930, %v906
    %v933 = vmul.f32 %v930, %v907
    %v934 = vmul.f32 %v930, %v908
    %v935 = vadd.f32 %v901, %v931
    %v936 = vadd.f32 %v902, %v932
    %v937 = vadd.f32 %v903, %v933
    %v938 = vadd.f32 %v904, %v934
    %s939 = sld [smem:[#allocation3 + $0x27]]
    %v940 = vstv %s939
    %v941 = vmul.f32 %v940, %v905
    %v942 = vmul.f32 %v940, %v906
    %v943 = vmul.f32 %v940, %v907
    %v944 = vmul.f32 %v940, %v908
    %949 = vrot.lane.b32.xlu0 %v941, 127
    %v950 = vpop.permute.xlu0 %949
    %951 = vrot.lane.b32.xlu0 %v942, 127
    %v952 = vpop.permute.xlu0 %951
    %953 = vrot.lane.b32.xlu0 %v943, 127
    %v954 = vpop.permute.xlu0 %953
    %955 = vrot.lane.b32.xlu0 %v944, 127
    %v956 = vpop.permute.xlu0 %955
    %v961 = vadd.f32 %v915, %v950
    %v962 = vadd.f32 %v916, %v952
    %v963 = vadd.f32 %v917, %v954
    %v964 = vadd.f32 %v918, %v956
    %s965 = sld [smem:[#allocation3 + $0x28]]
    %v966 = vstv %s965
    %v967 = vmul.f32 %v966, %v905
    %v968 = vmul.f32 %v966, %v906
    %v969 = vmul.f32 %v966, %v907
    %v970 = vmul.f32 %v966, %v908
    %975 = vrot.lane.b32.xlu0 %v967, 127
    %v976 = vpop.permute.xlu0 %975
    %977 = vrot.lane.b32.xlu0 %v968, 127
    %v978 = vpop.permute.xlu0 %977
    %979 = vrot.lane.b32.xlu0 %v969, 127
    %v980 = vpop.permute.xlu0 %979
    %981 = vrot.lane.b32.xlu0 %v970, 127
    %v982 = vpop.permute.xlu0 %981
    %v987 = vadd.f32 %v925, %v976
    %v988 = vadd.f32 %v926, %v978
    %v989 = vadd.f32 %v927, %v980
    %v990 = vadd.f32 %v928, %v982
    %s991 = sld [smem:[#allocation3 + $0x29]]
    %v992 = vstv %s991
    %v993 = vmul.f32 %v992, %v905
    %v994 = vmul.f32 %v992, %v906
    %v995 = vmul.f32 %v992, %v907
    %v996 = vmul.f32 %v992, %v908
    %1001 = vrot.lane.b32.xlu0 %v993, 127
    %v1002 = vpop.permute.xlu0 %1001
    %1003 = vrot.lane.b32.xlu0 %v994, 127
    %v1004 = vpop.permute.xlu0 %1003
    %1005 = vrot.lane.b32.xlu0 %v995, 127
    %v1006 = vpop.permute.xlu0 %1005
    %1007 = vrot.lane.b32.xlu0 %v996, 127
    %v1008 = vpop.permute.xlu0 %1007
    %v1013 = vadd.f32 %v935, %v1002
    %v1014 = vadd.f32 %v936, %v1004
    %v1015 = vadd.f32 %v937, %v1006
    %v1016 = vadd.f32 %v938, %v1008
    %s1017 = sld [smem:[#allocation3 + $0x30]]
    %v1018 = vstv %s1017
    %v1019 = vmul.f32 %v1018, %v905
    %v1020 = vmul.f32 %v1018, %v906
    %v1021 = vmul.f32 %v1018, %v907
    %v1022 = vmul.f32 %v1018, %v908
    %1027 = vrot.lane.b32.xlu0 %v1019, 126
    %v1028 = vpop.permute.xlu0 %1027
    %1029 = vrot.lane.b32.xlu0 %v1020, 126
    %v1030 = vpop.permute.xlu0 %1029
    %1031 = vrot.lane.b32.xlu0 %v1021, 126
    %v1032 = vpop.permute.xlu0 %1031
    %1033 = vrot.lane.b32.xlu0 %v1022, 126
    %v1034 = vpop.permute.xlu0 %1033
    %v1039 = vadd.f32 %v961, %v1028
    %v1040 = vadd.f32 %v962, %v1030
    %v1041 = vadd.f32 %v963, %v1032
    %v1042 = vadd.f32 %v964, %v1034
    %s1043 = sld [smem:[#allocation3 + $0x31]]
    %v1044 = vstv %s1043
    %v1045 = vmul.f32 %v1044, %v905
    %v1046 = vmul.f32 %v1044, %v906
    %v1047 = vmul.f32 %v1044, %v907
    %v1048 = vmul.f32 %v1044, %v908
    %1053 = vrot.lane.b32.xlu0 %v1045, 126
    %v1054 = vpop.permute.xlu0 %1053
    %1055 = vrot.lane.b32.xlu0 %v1046, 126
    %v1056 = vpop.permute.xlu0 %1055
    %1057 = vrot.lane.b32.xlu0 %v1047, 126
    %v1058 = vpop.permute.xlu0 %1057
    %1059 = vrot.lane.b32.xlu0 %v1048, 126
    %v1060 = vpop.permute.xlu0 %1059
    %v1065 = vadd.f32 %v987, %v1054
    %v1066 = vadd.f32 %v988, %v1056
    %v1067 = vadd.f32 %v989, %v1058
    %v1068 = vadd.f32 %v990, %v1060
    %s1069 = sld [smem:[#allocation3 + $0x32]]
    %v1070 = vstv %s1069
    %v1071 = vmul.f32 %v1070, %v905
    %v1072 = vmul.f32 %v1070, %v906
    %v1073 = vmul.f32 %v1070, %v907
    %v1074 = vmul.f32 %v1070, %v908
    %1079 = vrot.lane.b32.xlu0 %v1071, 126
    %v1080 = vpop.permute.xlu0 %1079
    %1081 = vrot.lane.b32.xlu0 %v1072, 126
    %v1082 = vpop.permute.xlu0 %1081
    %1083 = vrot.lane.b32.xlu0 %v1073, 126
    %v1084 = vpop.permute.xlu0 %1083
    %1085 = vrot.lane.b32.xlu0 %v1074, 126
    %v1086 = vpop.permute.xlu0 %1085
    %v1091 = vadd.f32 %v1013, %v1080
    %v1092 = vadd.f32 %v1014, %v1082
    %v1093 = vadd.f32 %v1015, %v1084
    %v1094 = vadd.f32 %v1016, %v1086
    %v1095 = vld [vmem:[%s110 + $0x2] sm:$0xff]
    %v1096 = vld [vmem:[%s110 + $0xa] sm:$0xff]
    %v1097 = vld [vmem:[%s110 + $0x1a] sm:$0xff]
    %v1098 = vld [vmem:[%s110 + $0x22] sm:$0xff]
    %s1099 = sld [smem:[#allocation3 + $0x39]]
    %v1100 = vstv %s1099
    %v1101 = vmul.f32 %v1100, %v1095
    %v1102 = vmul.f32 %v1100, %v1096
    %v1103 = vmul.f32 %v1100, %v1097
    %v1104 = vmul.f32 %v1100, %v1098
    %v1105 = vadd.f32 %v1039, %v1101
    %v1106 = vadd.f32 %v1040, %v1102
    %v1107 = vadd.f32 %v1041, %v1103
    %v1108 = vadd.f32 %v1042, %v1104
    %s1109 = sld [smem:[#allocation3 + $0x3a]]
    %v1110 = vstv %s1109
    %v1111 = vmul.f32 %v1110, %v1095
    %v1112 = vmul.f32 %v1110, %v1096
    %v1113 = vmul.f32 %v1110, %v1097
    %v1114 = vmul.f32 %v1110, %v1098
    %v1115 = vadd.f32 %v1065, %v1111
    %v1116 = vadd.f32 %v1066, %v1112
    %v1117 = vadd.f32 %v1067, %v1113
    %v1118 = vadd.f32 %v1068, %v1114
    %s1119 = sld [smem:[#allocation3 + $0x3b]]
    %v1120 = vstv %s1119
    %v1121 = vmul.f32 %v1120, %v1095
    %v1122 = vmul.f32 %v1120, %v1096
    %v1123 = vmul.f32 %v1120, %v1097
    %v1124 = vmul.f32 %v1120, %v1098
    %v1125 = vadd.f32 %v1091, %v1121
    %v1126 = vadd.f32 %v1092, %v1122
    %v1127 = vadd.f32 %v1093, %v1123
    %v1128 = vadd.f32 %v1094, %v1124
    %s1129 = sld [smem:[#allocation3 + $0x42]]
    %v1130 = vstv %s1129
    %v1131 = vmul.f32 %v1130, %v1095
    %v1132 = vmul.f32 %v1130, %v1096
    %v1133 = vmul.f32 %v1130, %v1097
    %v1134 = vmul.f32 %v1130, %v1098
    %1139 = vrot.lane.b32.xlu0 %v1131, 127
    %v1140 = vpop.permute.xlu0 %1139
    %1141 = vrot.lane.b32.xlu0 %v1132, 127
    %v1142 = vpop.permute.xlu0 %1141
    %1143 = vrot.lane.b32.xlu0 %v1133, 127
    %v1144 = vpop.permute.xlu0 %1143
    %1145 = vrot.lane.b32.xlu0 %v1134, 127
    %v1146 = vpop.permute.xlu0 %1145
    %v1151 = vadd.f32 %v1105, %v1140
    %v1152 = vadd.f32 %v1106, %v1142
    %v1153 = vadd.f32 %v1107, %v1144
    %v1154 = vadd.f32 %v1108, %v1146
    %s1155 = sld [smem:[#allocation3 + $0x43]]
    %v1156 = vstv %s1155
    %v1157 = vmul.f32 %v1156, %v1095
    %v1158 = vmul.f32 %v1156, %v1096
    %v1159 = vmul.f32 %v1156, %v1097
    %v1160 = vmul.f32 %v1156, %v1098
    %1165 = vrot.lane.b32.xlu0 %v1157, 127
    %v1166 = vpop.permute.xlu0 %1165
    %1167 = vrot.lane.b32.xlu0 %v1158, 127
    %v1168 = vpop.permute.xlu0 %1167
    %1169 = vrot.lane.b32.xlu0 %v1159, 127
    %v1170 = vpop.permute.xlu0 %1169
    %1171 = vrot.lane.b32.xlu0 %v1160, 127
    %v1172 = vpop.permute.xlu0 %1171
    %v1177 = vadd.f32 %v1115, %v1166
    %v1178 = vadd.f32 %v1116, %v1168
    %v1179 = vadd.f32 %v1117, %v1170
    %v1180 = vadd.f32 %v1118, %v1172
    %s1181 = sld [smem:[#allocation3 + $0x44]]
    %v1182 = vstv %s1181
    %v1183 = vmul.f32 %v1182, %v1095
    %v1184 = vmul.f32 %v1182, %v1096
    %v1185 = vmul.f32 %v1182, %v1097
    %v1186 = vmul.f32 %v1182, %v1098
    %1191 = vrot.lane.b32.xlu0 %v1183, 127
    %v1192 = vpop.permute.xlu0 %1191
    %1193 = vrot.lane.b32.xlu0 %v1184, 127
    %v1194 = vpop.permute.xlu0 %1193
    %1195 = vrot.lane.b32.xlu0 %v1185, 127
    %v1196 = vpop.permute.xlu0 %1195
    %1197 = vrot.lane.b32.xlu0 %v1186, 127
    %v1198 = vpop.permute.xlu0 %1197
    %v1203 = vadd.f32 %v1125, %v1192
    %v1204 = vadd.f32 %v1126, %v1194
    %v1205 = vadd.f32 %v1127, %v1196
    %v1206 = vadd.f32 %v1128, %v1198
    %s1207 = sld [smem:[#allocation3 + $0x4b]]
    %v1208 = vstv %s1207
    %v1209 = vmul.f32 %v1208, %v1095
    %v1210 = vmul.f32 %v1208, %v1096
    %v1211 = vmul.f32 %v1208, %v1097
    %v1212 = vmul.f32 %v1208, %v1098
    %1217 = vrot.lane.b32.xlu0 %v1209, 126
    %v1218 = vpop.permute.xlu0 %1217
    %1219 = vrot.lane.b32.xlu0 %v1210, 126
    %v1220 = vpop.permute.xlu0 %1219
    %1221 = vrot.lane.b32.xlu0 %v1211, 126
    %v1222 = vpop.permute.xlu0 %1221
    %1223 = vrot.lane.b32.xlu0 %v1212, 126
    %v1224 = vpop.permute.xlu0 %1223
    %v1229 = vadd.f32 %v1151, %v1218
    %v1230 = vadd.f32 %v1152, %v1220
    %v1231 = vadd.f32 %v1153, %v1222
    %v1232 = vadd.f32 %v1154, %v1224
    %s1233 = sld [smem:[#allocation3 + $0x4c]]
    %v1234 = vstv %s1233
    %v1235 = vmul.f32 %v1234, %v1095
    %v1236 = vmul.f32 %v1234, %v1096
    %v1237 = vmul.f32 %v1234, %v1097
    %v1238 = vmul.f32 %v1234, %v1098
    %1243 = vrot.lane.b32.xlu0 %v1235, 126
    %v1244 = vpop.permute.xlu0 %1243
    %1245 = vrot.lane.b32.xlu0 %v1236, 126
    %v1246 = vpop.permute.xlu0 %1245
    %1247 = vrot.lane.b32.xlu0 %v1237, 126
    %v1248 = vpop.permute.xlu0 %1247
    %1249 = vrot.lane.b32.xlu0 %v1238, 126
    %v1250 = vpop.permute.xlu0 %1249
    %v1255 = vadd.f32 %v1177, %v1244
    %v1256 = vadd.f32 %v1178, %v1246
    %v1257 = vadd.f32 %v1179, %v1248
    %v1258 = vadd.f32 %v1180, %v1250
    %s1259 = sld [smem:[#allocation3 + $0x4d]]
    %v1260 = vstv %s1259
    %v1261 = vmul.f32 %v1260, %v1095
    %v1262 = vmul.f32 %v1260, %v1096
    %v1263 = vmul.f32 %v1260, %v1097
    %v1264 = vmul.f32 %v1260, %v1098
    %1269 = vrot.lane.b32.xlu0 %v1261, 126
    %v1270 = vpop.permute.xlu0 %1269
    %1271 = vrot.lane.b32.xlu0 %v1262, 126
    %v1272 = vpop.permute.xlu0 %1271
    %1273 = vrot.lane.b32.xlu0 %v1263, 126
    %v1274 = vpop.permute.xlu0 %1273
    %1275 = vrot.lane.b32.xlu0 %v1264, 126
    %v1276 = vpop.permute.xlu0 %1275
    %v1281 = vadd.f32 %v1203, %v1270
    %v1282 = vadd.f32 %v1204, %v1272
    %v1283 = vadd.f32 %v1205, %v1274
    %v1284 = vadd.f32 %v1206, %v1276
    %v1285 = vld [vmem:[%s131] sm:$0xff]
    %v1286 = vld [vmem:[%s131 + $0x8] sm:$0xff]
    %v1287 = vld [vmem:[%s131 + $0x18] sm:$0xff]
    %v1288 = vld [vmem:[%s131 + $0x20] sm:$0xff]
    %s1289 = sld [smem:[#allocation3 + $0x6]]
    %v1290 = vstv %s1289
    %v1291 = vmul.f32 %v1290, %v1285
    %v1292 = vmul.f32 %v1290, %v1286
    %v1293 = vmul.f32 %v1290, %v1287
    %v1294 = vmul.f32 %v1290, %v1288
    %v1295 = vadd.f32 %v1229, %v1291
    %v1296 = vadd.f32 %v1230, %v1292
    %v1297 = vadd.f32 %v1231, %v1293
    %v1298 = vadd.f32 %v1232, %v1294
    %s1299 = sld [smem:[#allocation3 + $0x7]]
    %v1300 = vstv %s1299
    %v1301 = vmul.f32 %v1300, %v1285
    %v1302 = vmul.f32 %v1300, %v1286
    %v1303 = vmul.f32 %v1300, %v1287
    %v1304 = vmul.f32 %v1300, %v1288
    %v1305 = vadd.f32 %v1255, %v1301
    %v1306 = vadd.f32 %v1256, %v1302
    %v1307 = vadd.f32 %v1257, %v1303
    %v1308 = vadd.f32 %v1258, %v1304
    %s1309 = sld [smem:[#allocation3 + $0x8]]
    %v1310 = vstv %s1309
    %v1311 = vmul.f32 %v1310, %v1285
    %v1312 = vmul.f32 %v1310, %v1286
    %v1313 = vmul.f32 %v1310, %v1287
    %v1314 = vmul.f32 %v1310, %v1288
    %v1315 = vadd.f32 %v1281, %v1311
    %v1316 = vadd.f32 %v1282, %v1312
    %v1317 = vadd.f32 %v1283, %v1313
    %v1318 = vadd.f32 %v1284, %v1314
    %s1319 = sld [smem:[#allocation3 + $0xf]]
    %v1320 = vstv %s1319
    %v1321 = vmul.f32 %v1320, %v1285
    %v1322 = vmul.f32 %v1320, %v1286
    %v1323 = vmul.f32 %v1320, %v1287
    %v1324 = vmul.f32 %v1320, %v1288
    %1329 = vrot.lane.b32.xlu0 %v1321, 127
    %v1330 = vpop.permute.xlu0 %1329
    %1331 = vrot.lane.b32.xlu0 %v1322, 127
    %v1332 = vpop.permute.xlu0 %1331
    %1333 = vrot.lane.b32.xlu0 %v1323, 127
    %v1334 = vpop.permute.xlu0 %1333
    %1335 = vrot.lane.b32.xlu0 %v1324, 127
    %v1336 = vpop.permute.xlu0 %1335
    %v1341 = vadd.f32 %v1295, %v1330
    %v1342 = vadd.f32 %v1296, %v1332
    %v1343 = vadd.f32 %v1297, %v1334
    %v1344 = vadd.f32 %v1298, %v1336
    %s1345 = sld [smem:[#allocation3 + $0x10]]
    %v1346 = vstv %s1345
    %v1347 = vmul.f32 %v1346, %v1285
    %v1348 = vmul.f32 %v1346, %v1286
    %v1349 = vmul.f32 %v1346, %v1287
    %v1350 = vmul.f32 %v1346, %v1288
    %1355 = vrot.lane.b32.xlu0 %v1347, 127
    %v1356 = vpop.permute.xlu0 %1355
    %1357 = vrot.lane.b32.xlu0 %v1348, 127
    %v1358 = vpop.permute.xlu0 %1357
    %1359 = vrot.lane.b32.xlu0 %v1349, 127
    %v1360 = vpop.permute.xlu0 %1359
    %1361 = vrot.lane.b32.xlu0 %v1350, 127
    %v1362 = vpop.permute.xlu0 %1361
    %v1367 = vadd.f32 %v1305, %v1356
    %v1368 = vadd.f32 %v1306, %v1358
    %v1369 = vadd.f32 %v1307, %v1360
    %v1370 = vadd.f32 %v1308, %v1362
    %s1371 = sld [smem:[#allocation3 + $0x11]]
    %v1372 = vstv %s1371
    %v1373 = vmul.f32 %v1372, %v1285
    %v1374 = vmul.f32 %v1372, %v1286
    %v1375 = vmul.f32 %v1372, %v1287
    %v1376 = vmul.f32 %v1372, %v1288
    %1381 = vrot.lane.b32.xlu0 %v1373, 127
    %v1382 = vpop.permute.xlu0 %1381
    %1383 = vrot.lane.b32.xlu0 %v1374, 127
    %v1384 = vpop.permute.xlu0 %1383
    %1385 = vrot.lane.b32.xlu0 %v1375, 127
    %v1386 = vpop.permute.xlu0 %1385
    %1387 = vrot.lane.b32.xlu0 %v1376, 127
    %v1388 = vpop.permute.xlu0 %1387
    %v1393 = vadd.f32 %v1315, %v1382
    %v1394 = vadd.f32 %v1316, %v1384
    %v1395 = vadd.f32 %v1317, %v1386
    %v1396 = vadd.f32 %v1318, %v1388
    %s1397 = sld [smem:[#allocation3 + $0x18]]
    %v1398 = vstv %s1397
    %v1399 = vmul.f32 %v1398, %v1285
    %v1400 = vmul.f32 %v1398, %v1286
    %v1401 = vmul.f32 %v1398, %v1287
    %v1402 = vmul.f32 %v1398, %v1288
    %1407 = vrot.lane.b32.xlu0 %v1399, 126
    %v1408 = vpop.permute.xlu0 %1407
    %1409 = vrot.lane.b32.xlu0 %v1400, 126
    %v1410 = vpop.permute.xlu0 %1409
    %1411 = vrot.lane.b32.xlu0 %v1401, 126
    %v1412 = vpop.permute.xlu0 %1411
    %1413 = vrot.lane.b32.xlu0 %v1402, 126
    %v1414 = vpop.permute.xlu0 %1413
    %v1419 = vadd.f32 %v1341, %v1408
    %v1420 = vadd.f32 %v1342, %v1410
    %v1421 = vadd.f32 %v1343, %v1412
    %v1422 = vadd.f32 %v1344, %v1414
    %s1423 = sld [smem:[#allocation3 + $0x19]]
    %v1424 = vstv %s1423
    %v1425 = vmul.f32 %v1424, %v1285
    %v1426 = vmul.f32 %v1424, %v1286
    %v1427 = vmul.f32 %v1424, %v1287
    %v1428 = vmul.f32 %v1424, %v1288
    %1433 = vrot.lane.b32.xlu0 %v1425, 126
    %v1434 = vpop.permute.xlu0 %1433
    %1435 = vrot.lane.b32.xlu0 %v1426, 126
    %v1436 = vpop.permute.xlu0 %1435
    %1437 = vrot.lane.b32.xlu0 %v1427, 126
    %v1438 = vpop.permute.xlu0 %1437
    %1439 = vrot.lane.b32.xlu0 %v1428, 126
    %v1440 = vpop.permute.xlu0 %1439
    %v1445 = vadd.f32 %v1367, %v1434
    %v1446 = vadd.f32 %v1368, %v1436
    %v1447 = vadd.f32 %v1369, %v1438
    %v1448 = vadd.f32 %v1370, %v1440
    %s1449 = sld [smem:[#allocation3 + $0x1a]]
    %v1450 = vstv %s1449
    %v1451 = vmul.f32 %v1450, %v1285
    %v1452 = vmul.f32 %v1450, %v1286
    %v1453 = vmul.f32 %v1450, %v1287
    %v1454 = vmul.f32 %v1450, %v1288
    %1459 = vrot.lane.b32.xlu0 %v1451, 126
    %v1460 = vpop.permute.xlu0 %1459
    %1461 = vrot.lane.b32.xlu0 %v1452, 126
    %v1462 = vpop.permute.xlu0 %1461
    %1463 = vrot.lane.b32.xlu0 %v1453, 126
    %v1464 = vpop.permute.xlu0 %1463
    %1465 = vrot.lane.b32.xlu0 %v1454, 126
    %v1466 = vpop.permute.xlu0 %1465
    %v1471 = vadd.f32 %v1393, %v1460
    %v1472 = vadd.f32 %v1394, %v1462
    %v1473 = vadd.f32 %v1395, %v1464
    %v1474 = vadd.f32 %v1396, %v1466
    %v1475 = vld [vmem:[%s131 + $0x1] sm:$0xff]
    %v1476 = vld [vmem:[%s131 + $0x9] sm:$0xff]
    %v1477 = vld [vmem:[%s131 + $0x19] sm:$0xff]
    %v1478 = vld [vmem:[%s131 + $0x21] sm:$0xff]
    %s1479 = sld [smem:[#allocation3 + $0x21]]
    %v1480 = vstv %s1479
    %v1481 = vmul.f32 %v1480, %v1475
    %v1482 = vmul.f32 %v1480, %v1476
    %v1483 = vmul.f32 %v1480, %v1477
    %v1484 = vmul.f32 %v1480, %v1478
    %v1485 = vadd.f32 %v1419, %v1481
    %v1486 = vadd.f32 %v1420, %v1482
    %v1487 = vadd.f32 %v1421, %v1483
    %v1488 = vadd.f32 %v1422, %v1484
    %s1489 = sld [smem:[#allocation3 + $0x22]]
    %v1490 = vstv %s1489
    %v1491 = vmul.f32 %v1490, %v1475
    %v1492 = vmul.f32 %v1490, %v1476
    %v1493 = vmul.f32 %v1490, %v1477
    %v1494 = vmul.f32 %v1490, %v1478
    %v1495 = vadd.f32 %v1445, %v1491
    %v1496 = vadd.f32 %v1446, %v1492
    %v1497 = vadd.f32 %v1447, %v1493
    %v1498 = vadd.f32 %v1448, %v1494
    %s1499 = sld [smem:[#allocation3 + $0x23]]
    %v1500 = vstv %s1499
    %v1501 = vmul.f32 %v1500, %v1475
    %v1502 = vmul.f32 %v1500, %v1476
    %v1503 = vmul.f32 %v1500, %v1477
    %v1504 = vmul.f32 %v1500, %v1478
    %v1505 = vadd.f32 %v1471, %v1501
    %v1506 = vadd.f32 %v1472, %v1502
    %v1507 = vadd.f32 %v1473, %v1503
    %v1508 = vadd.f32 %v1474, %v1504
    %s1509 = sld [smem:[#allocation3 + $0x2a]]
    %v1510 = vstv %s1509
    %v1511 = vmul.f32 %v1510, %v1475
    %v1512 = vmul.f32 %v1510, %v1476
    %v1513 = vmul.f32 %v1510, %v1477
    %v1514 = vmul.f32 %v1510, %v1478
    %1519 = vrot.lane.b32.xlu0 %v1511, 127
    %v1520 = vpop.permute.xlu0 %1519
    %1521 = vrot.lane.b32.xlu0 %v1512, 127
    %v1522 = vpop.permute.xlu0 %1521
    %1523 = vrot.lane.b32.xlu0 %v1513, 127
    %v1524 = vpop.permute.xlu0 %1523
    %1525 = vrot.lane.b32.xlu0 %v1514, 127
    %v1526 = vpop.permute.xlu0 %1525
    %v1531 = vadd.f32 %v1485, %v1520
    %v1532 = vadd.f32 %v1486, %v1522
    %v1533 = vadd.f32 %v1487, %v1524
    %v1534 = vadd.f32 %v1488, %v1526
    %s1535 = sld [smem:[#allocation3 + $0x2b]]
    %v1536 = vstv %s1535
    %v1537 = vmul.f32 %v1536, %v1475
    %v1538 = vmul.f32 %v1536, %v1476
    %v1539 = vmul.f32 %v1536, %v1477
    %v1540 = vmul.f32 %v1536, %v1478
    %1545 = vrot.lane.b32.xlu0 %v1537, 127
    %v1546 = vpop.permute.xlu0 %1545
    %1547 = vrot.lane.b32.xlu0 %v1538, 127
    %v1548 = vpop.permute.xlu0 %1547
    %1549 = vrot.lane.b32.xlu0 %v1539, 127
    %v1550 = vpop.permute.xlu0 %1549
    %1551 = vrot.lane.b32.xlu0 %v1540, 127
    %v1552 = vpop.permute.xlu0 %1551
    %v1557 = vadd.f32 %v1495, %v1546
    %v1558 = vadd.f32 %v1496, %v1548
    %v1559 = vadd.f32 %v1497, %v1550
    %v1560 = vadd.f32 %v1498, %v1552
    %s1561 = sld [smem:[#allocation3 + $0x2c]]
    %v1562 = vstv %s1561
    %v1563 = vmul.f32 %v1562, %v1475
    %v1564 = vmul.f32 %v1562, %v1476
    %v1565 = vmul.f32 %v1562, %v1477
    %v1566 = vmul.f32 %v1562, %v1478
    %1571 = vrot.lane.b32.xlu0 %v1563, 127
    %v1572 = vpop.permute.xlu0 %1571
    %1573 = vrot.lane.b32.xlu0 %v1564, 127
    %v1574 = vpop.permute.xlu0 %1573
    %1575 = vrot.lane.b32.xlu0 %v1565, 127
    %v1576 = vpop.permute.xlu0 %1575
    %1577 = vrot.lane.b32.xlu0 %v1566, 127
    %v1578 = vpop.permute.xlu0 %1577
    %v1583 = vadd.f32 %v1505, %v1572
    %v1584 = vadd.f32 %v1506, %v1574
    %v1585 = vadd.f32 %v1507, %v1576
    %v1586 = vadd.f32 %v1508, %v1578
    %s1587 = sld [smem:[#allocation3 + $0x33]]
    %v1588 = vstv %s1587
    %v1589 = vmul.f32 %v1588, %v1475
    %v1590 = vmul.f32 %v1588, %v1476
    %v1591 = vmul.f32 %v1588, %v1477
    %v1592 = vmul.f32 %v1588, %v1478
    %1597 = vrot.lane.b32.xlu0 %v1589, 126
    %v1598 = vpop.permute.xlu0 %1597
    %1599 = vrot.lane.b32.xlu0 %v1590, 126
    %v1600 = vpop.permute.xlu0 %1599
    %1601 = vrot.lane.b32.xlu0 %v1591, 126
    %v1602 = vpop.permute.xlu0 %1601
    %1603 = vrot.lane.b32.xlu0 %v1592, 126
    %v1604 = vpop.permute.xlu0 %1603
    %v1609 = vadd.f32 %v1531, %v1598
    %v1610 = vadd.f32 %v1532, %v1600
    %v1611 = vadd.f32 %v1533, %v1602
    %v1612 = vadd.f32 %v1534, %v1604
    %s1613 = sld [smem:[#allocation3 + $0x34]]
    %v1614 = vstv %s1613
    %v1615 = vmul.f32 %v1614, %v1475
    %v1616 = vmul.f32 %v1614, %v1476
    %v1617 = vmul.f32 %v1614, %v1477
    %v1618 = vmul.f32 %v1614, %v1478
    %1623 = vrot.lane.b32.xlu0 %v1615, 126
    %v1624 = vpop.permute.xlu0 %1623
    %1625 = vrot.lane.b32.xlu0 %v1616, 126
    %v1626 = vpop.permute.xlu0 %1625
    %1627 = vrot.lane.b32.xlu0 %v1617, 126
    %v1628 = vpop.permute.xlu0 %1627
    %1629 = vrot.lane.b32.xlu0 %v1618, 126
    %v1630 = vpop.permute.xlu0 %1629
    %v1635 = vadd.f32 %v1557, %v1624
    %v1636 = vadd.f32 %v1558, %v1626
    %v1637 = vadd.f32 %v1559, %v1628
    %v1638 = vadd.f32 %v1560, %v1630
    %s1639 = sld [smem:[#allocation3 + $0x35]]
    %v1640 = vstv %s1639
    %v1641 = vmul.f32 %v1640, %v1475
    %v1642 = vmul.f32 %v1640, %v1476
    %v1643 = vmul.f32 %v1640, %v1477
    %v1644 = vmul.f32 %v1640, %v1478
    %1649 = vrot.lane.b32.xlu0 %v1641, 126
    %v1650 = vpop.permute.xlu0 %1649
    %1651 = vrot.lane.b32.xlu0 %v1642, 126
    %v1652 = vpop.permute.xlu0 %1651
    %1653 = vrot.lane.b32.xlu0 %v1643, 126
    %v1654 = vpop.permute.xlu0 %1653
    %1655 = vrot.lane.b32.xlu0 %v1644, 126
    %v1656 = vpop.permute.xlu0 %1655
    %v1661 = vadd.f32 %v1583, %v1650
    %v1662 = vadd.f32 %v1584, %v1652
    %v1663 = vadd.f32 %v1585, %v1654
    %v1664 = vadd.f32 %v1586, %v1656
    %v1665 = vld [vmem:[%s131 + $0x2] sm:$0xff]
    %v1666 = vld [vmem:[%s131 + $0xa] sm:$0xff]
    %v1667 = vld [vmem:[%s131 + $0x1a] sm:$0xff]
    %v1668 = vld [vmem:[%s131 + $0x22] sm:$0xff]
    %s1669 = sld [smem:[#allocation3 + $0x3c]]
    %v1670 = vstv %s1669
    %v1671 = vmul.f32 %v1670, %v1665
    %v1672 = vmul.f32 %v1670, %v1666
    %v1673 = vmul.f32 %v1670, %v1667
    %v1674 = vmul.f32 %v1670, %v1668
    %v1675 = vadd.f32 %v1609, %v1671
    %v1676 = vadd.f32 %v1610, %v1672
    %v1677 = vadd.f32 %v1611, %v1673
    %v1678 = vadd.f32 %v1612, %v1674
    %s1679 = sld [smem:[#allocation3 + $0x3d]]
    %v1680 = vstv %s1679
    %v1681 = vmul.f32 %v1680, %v1665
    %v1682 = vmul.f32 %v1680, %v1666
    %v1683 = vmul.f32 %v1680, %v1667
    %v1684 = vmul.f32 %v1680, %v1668
    %v1685 = vadd.f32 %v1635, %v1681
    %v1686 = vadd.f32 %v1636, %v1682
    %v1687 = vadd.f32 %v1637, %v1683
    %v1688 = vadd.f32 %v1638, %v1684
    %s1689 = sld [smem:[#allocation3 + $0x3e]]
    %v1690 = vstv %s1689
    %v1691 = vmul.f32 %v1690, %v1665
    %v1692 = vmul.f32 %v1690, %v1666
    %v1693 = vmul.f32 %v1690, %v1667
    %v1694 = vmul.f32 %v1690, %v1668
    %v1695 = vadd.f32 %v1661, %v1691
    %v1696 = vadd.f32 %v1662, %v1692
    %v1697 = vadd.f32 %v1663, %v1693
    %v1698 = vadd.f32 %v1664, %v1694
    %s1699 = sld [smem:[#allocation3 + $0x45]]
    %v1700 = vstv %s1699
    %v1701 = vmul.f32 %v1700, %v1665
    %v1702 = vmul.f32 %v1700, %v1666
    %v1703 = vmul.f32 %v1700, %v1667
    %v1704 = vmul.f32 %v1700, %v1668
    %1709 = vrot.lane.b32.xlu0 %v1701, 127
    %v1710 = vpop.permute.xlu0 %1709
    %1711 = vrot.lane.b32.xlu0 %v1702, 127
    %v1712 = vpop.permute.xlu0 %1711
    %1713 = vrot.lane.b32.xlu0 %v1703, 127
    %v1714 = vpop.permute.xlu0 %1713
    %1715 = vrot.lane.b32.xlu0 %v1704, 127
    %v1716 = vpop.permute.xlu0 %1715
    %v1721 = vadd.f32 %v1675, %v1710
    %v1722 = vadd.f32 %v1676, %v1712
    %v1723 = vadd.f32 %v1677, %v1714
    %v1724 = vadd.f32 %v1678, %v1716
    %s1725 = sld [smem:[#allocation3 + $0x46]]
    %v1726 = vstv %s1725
    %v1727 = vmul.f32 %v1726, %v1665
    %v1728 = vmul.f32 %v1726, %v1666
    %v1729 = vmul.f32 %v1726, %v1667
    %v1730 = vmul.f32 %v1726, %v1668
    %1735 = vrot.lane.b32.xlu0 %v1727, 127
    %v1736 = vpop.permute.xlu0 %1735
    %1737 = vrot.lane.b32.xlu0 %v1728, 127
    %v1738 = vpop.permute.xlu0 %1737
    %1739 = vrot.lane.b32.xlu0 %v1729, 127
    %v1740 = vpop.permute.xlu0 %1739
    %1741 = vrot.lane.b32.xlu0 %v1730, 127
    %v1742 = vpop.permute.xlu0 %1741
    %v1747 = vadd.f32 %v1685, %v1736
    %v1748 = vadd.f32 %v1686, %v1738
    %v1749 = vadd.f32 %v1687, %v1740
    %v1750 = vadd.f32 %v1688, %v1742
    %s1751 = sld [smem:[#allocation3 + $0x47]]
    %v1752 = vstv %s1751
    %v1753 = vmul.f32 %v1752, %v1665
    %v1754 = vmul.f32 %v1752, %v1666
    %v1755 = vmul.f32 %v1752, %v1667
    %v1756 = vmul.f32 %v1752, %v1668
    %1761 = vrot.lane.b32.xlu0 %v1753, 127
    %v1762 = vpop.permute.xlu0 %1761
    %1763 = vrot.lane.b32.xlu0 %v1754, 127
    %v1764 = vpop.permute.xlu0 %1763
    %1765 = vrot.lane.b32.xlu0 %v1755, 127
    %v1766 = vpop.permute.xlu0 %1765
    %1767 = vrot.lane.b32.xlu0 %v1756, 127
    %v1768 = vpop.permute.xlu0 %1767
    %v1773 = vadd.f32 %v1695, %v1762
    %v1774 = vadd.f32 %v1696, %v1764
    %v1775 = vadd.f32 %v1697, %v1766
    %v1776 = vadd.f32 %v1698, %v1768
    %s1777 = sld [smem:[#allocation3 + $0x4e]]
    %v1778 = vstv %s1777
    %v1779 = vmul.f32 %v1778, %v1665
    %v1780 = vmul.f32 %v1778, %v1666
    %v1781 = vmul.f32 %v1778, %v1667
    %v1782 = vmul.f32 %v1778, %v1668
    %1787 = vrot.lane.b32.xlu0 %v1779, 126
    %v1788 = vpop.permute.xlu0 %1787
    %1789 = vrot.lane.b32.xlu0 %v1780, 126
    %v1790 = vpop.permute.xlu0 %1789
    %1791 = vrot.lane.b32.xlu0 %v1781, 126
    %v1792 = vpop.permute.xlu0 %1791
    %1793 = vrot.lane.b32.xlu0 %v1782, 126
    %v1794 = vpop.permute.xlu0 %1793
    %v1799 = vadd.f32 %v1721, %v1788
    %v1800 = vadd.f32 %v1722, %v1790
    %v1801 = vadd.f32 %v1723, %v1792
    %v1802 = vadd.f32 %v1724, %v1794
    %s1803 = sld [smem:[#allocation3 + $0x4f]]
    %v1804 = vstv %s1803
    %v1805 = vmul.f32 %v1804, %v1665
    %v1806 = vmul.f32 %v1804, %v1666
    %v1807 = vmul.f32 %v1804, %v1667
    %v1808 = vmul.f32 %v1804, %v1668
    %1813 = vrot.lane.b32.xlu0 %v1805, 126
    %v1814 = vpop.permute.xlu0 %1813
    %1815 = vrot.lane.b32.xlu0 %v1806, 126
    %v1816 = vpop.permute.xlu0 %1815
    %1817 = vrot.lane.b32.xlu0 %v1807, 126
    %v1818 = vpop.permute.xlu0 %1817
    %1819 = vrot.lane.b32.xlu0 %v1808, 126
    %v1820 = vpop.permute.xlu0 %1819
    %v1825 = vadd.f32 %v1747, %v1814
    %v1826 = vadd.f32 %v1748, %v1816
    %v1827 = vadd.f32 %v1749, %v1818
    %v1828 = vadd.f32 %v1750, %v1820
    %s1829 = sld [smem:[#allocation3 + $0x50]]
    %v1830 = vstv %s1829
    %v1831 = vmul.f32 %v1830, %v1665
    %v1832 = vmul.f32 %v1830, %v1666
    %v1833 = vmul.f32 %v1830, %v1667
    %v1834 = vmul.f32 %v1830, %v1668
    %1839 = vrot.lane.b32.xlu0 %v1831, 126
    %v1840 = vpop.permute.xlu0 %1839
    %1841 = vrot.lane.b32.xlu0 %v1832, 126
    %v1842 = vpop.permute.xlu0 %1841
    %1843 = vrot.lane.b32.xlu0 %v1833, 126
    %v1844 = vpop.permute.xlu0 %1843
    %1845 = vrot.lane.b32.xlu0 %v1834, 126
    %v1846 = vpop.permute.xlu0 %1845
    %v1851 = vadd.f32 %v1773, %v1840
    %v1852 = vadd.f32 %v1774, %v1842
    %v1853 = vadd.f32 %v1775, %v1844
    %v1854 = vadd.f32 %v1776, %v1846
    %v1855 = vmax.f32 %v1799, 0.0
    %v1856 = vmax.f32 %v1800, 0.0
    %v1857 = vmax.f32 %v1801, 0.0
    %v1858 = vmax.f32 %v1802, 0.0
    %v1859 = vmax.f32 %v1825, 0.0
    %v1860 = vmax.f32 %v1826, 0.0
    %v1861 = vmax.f32 %v1827, 0.0
    %v1862 = vmax.f32 %v1828, 0.0
    %v1863 = vmax.f32 %v1851, 0.0
    %v1864 = vmax.f32 %v1852, 0.0
    %v1865 = vmax.f32 %v1853, 0.0
    %v1866 = vmax.f32 %v1854, 0.0
    %1867 = vst.msk [vmem:[#allocation2] sm:$0xff] %vm53, 0.0
    %1868 = vst.msk [vmem:[#allocation2 + $0x8] sm:$0xff] %vm53, 0.0
    %1869 = vst.msk [vmem:[#allocation2 + $0x10] sm:$0x3] %vm56, 0.0
    %1870 = vst.msk [vmem:[#allocation2 + $0x18] sm:$0xff] %vm53, 0.0
    %1871 = vst.msk [vmem:[#allocation2 + $0x20] sm:$0xff] %vm53, 0.0
    %1872 = vst.msk [vmem:[#allocation2 + $0x28] sm:$0x3] %vm56, 0.0
    %1873 = vst.msk [vmem:[#allocation2 + $0x30] sm:$0xff] %vm53, 0.0
    %1874 = vst.msk [vmem:[#allocation2 + $0x38] sm:$0xff] %vm53, 0.0
    %1875 = vst.msk [vmem:[#allocation2 + $0x40] sm:$0x3] %vm56, 0.0
    %1876 = vst.msk [vmem:[#allocation2 + $0x48] sm:$0xff] %vm53, 0.0
    %1877 = vst.msk [vmem:[#allocation2 + $0x50] sm:$0xff] %vm53, 0.0
    %1878 = vst.msk [vmem:[#allocation2 + $0x58] sm:$0x3] %vm56, 0.0
    %1879 = vst.msk [vmem:[#allocation2 + $0x60] sm:$0xff] %vm53, 0.0
    %1880 = vst.msk [vmem:[#allocation2 + $0x68] sm:$0xff] %vm53, 0.0
    %1881 = vst.msk [vmem:[#allocation2 + $0x70] sm:$0x3] %vm56, 0.0
    %1882 = vst.msk [vmem:[#allocation2 + $0x78] sm:$0xff] %vm53, 0.0
    %1883 = vst.msk [vmem:[#allocation2 + $0x80] sm:$0xff] %vm53, 0.0
    %1884 = vst.msk [vmem:[#allocation2 + $0x88] sm:$0x3] %vm56, 0.0
    %1889 = vrot.lane.b32.xlu0 %v1855, 1
    %v1890 = vpop.permute.xlu0 %1889
    %1891 = vrot.lane.b32.xlu0 %v1856, 1
    %v1892 = vpop.permute.xlu0 %1891
    %1893 = vrot.lane.b32.xlu0 %v1857, 1
    %v1894 = vpop.permute.xlu0 %1893
    %1895 = vrot.lane.b32.xlu0 %v1858, 1
    %v1896 = vpop.permute.xlu0 %1895
    %1901 = vst.msk [vmem:[#allocation2 + $0x1] sm:$0xff] %vm89, %v1890
    %1902 = vst.msk [vmem:[#allocation2 + $0x9] sm:$0xff] %vm89, %v1892
    %1903 = vst.msk [vmem:[#allocation2 + $0x19] sm:$0xff] %vm89, %v1894
    %1904 = vst.msk [vmem:[#allocation2 + $0x21] sm:$0xff] %vm89, %v1896
    %1909 = vrot.lane.b32.xlu0 %v1859, 1
    %v1910 = vpop.permute.xlu0 %1909
    %1911 = vrot.lane.b32.xlu0 %v1860, 1
    %v1912 = vpop.permute.xlu0 %1911
    %1913 = vrot.lane.b32.xlu0 %v1861, 1
    %v1914 = vpop.permute.xlu0 %1913
    %1915 = vrot.lane.b32.xlu0 %v1862, 1
    %v1916 = vpop.permute.xlu0 %1915
    %1921 = vst.msk [vmem:[%s110 + $0x1] sm:$0xff] %vm89, %v1910
    %1922 = vst.msk [vmem:[%s110 + $0x9] sm:$0xff] %vm89, %v1912
    %1923 = vst.msk [vmem:[%s110 + $0x19] sm:$0xff] %vm89, %v1914
    %1924 = vst.msk [vmem:[%s110 + $0x21] sm:$0xff] %vm89, %v1916
    %1929 = vrot.lane.b32.xlu0 %v1863, 1
    %v1930 = vpop.permute.xlu0 %1929
    %1931 = vrot.lane.b32.xlu0 %v1864, 1
    %v1932 = vpop.permute.xlu0 %1931
    %1933 = vrot.lane.b32.xlu0 %v1865, 1
    %v1934 = vpop.permute.xlu0 %1933
    %1935 = vrot.lane.b32.xlu0 %v1866, 1
    %v1936 = vpop.permute.xlu0 %1935
    %1941 = vst.msk [vmem:[%s131 + $0x1] sm:$0xff] %vm89, %v1930
    %1942 = vst.msk [vmem:[%s131 + $0x9] sm:$0xff] %vm89, %v1932
    %1943 = vst.msk [vmem:[%s131 + $0x19] sm:$0xff] %vm89, %v1934
    %1944 = vst.msk [vmem:[%s131 + $0x21] sm:$0xff] %vm89, %v1936
    %s1945 = sld [smem:[#allocation5 + $0x3]]
    %v1946 = vstv %s1945
    %v1947 = vadd.f32 %v1946, 0.0
    %s1948 = sld [smem:[#allocation5 + $0x4]]
    %v1949 = vstv %s1948
    %v1950 = vadd.f32 %v1949, 0.0
    %s1951 = sld [smem:[#allocation5 + $0x5]]
    %v1952 = vstv %s1951
    %v1953 = vadd.f32 %v1952, 0.0
    %v1954 = vld [vmem:[#allocation2] sm:$0xff]
    %v1955 = vld [vmem:[#allocation2 + $0x8] sm:$0xff]
    %v1956 = vld [vmem:[#allocation2 + $0x18] sm:$0xff]
    %v1957 = vld [vmem:[#allocation2 + $0x20] sm:$0xff]
    %s1958 = sld [smem:[#allocation3 + $0x51]]
    %v1959 = vstv %s1958
    %v1960 = vmul.f32 %v1959, %v1954
    %v1961 = vmul.f32 %v1959, %v1955
    %v1962 = vmul.f32 %v1959, %v1956
    %v1963 = vmul.f32 %v1959, %v1957
    %v1964 = vadd.f32 %v1947, %v1960
    %v1965 = vadd.f32 %v1947, %v1961
    %v1966 = vadd.f32 %v1947, %v1962
    %v1967 = vadd.f32 %v1947, %v1963
    %s1968 = sld [smem:[#allocation3 + $0x52]]
    %v1969 = vstv %s1968
    %v1970 = vmul.f32 %v1969, %v1954
    %v1971 = vmul.f32 %v1969, %v1955
    %v1972 = vmul.f32 %v1969, %v1956
    %v1973 = vmul.f32 %v1969, %v1957
    %v1974 = vadd.f32 %v1950, %v1970
    %v1975 = vadd.f32 %v1950, %v1971
    %v1976 = vadd.f32 %v1950, %v1972
    %v1977 = vadd.f32 %v1950, %v1973
    %s1978 = sld [smem:[#allocation3 + $0x53]]
    %v1979 = vstv %s1978
    %v1980 = vmul.f32 %v1979, %v1954
    %v1981 = vmul.f32 %v1979, %v1955
    %v1982 = vmul.f32 %v1979, %v1956
    %v1983 = vmul.f32 %v1979, %v1957
    %v1984 = vadd.f32 %v1953, %v1980
    %v1985 = vadd.f32 %v1953, %v1981
    %v1986 = vadd.f32 %v1953, %v1982
    %v1987 = vadd.f32 %v1953, %v1983
    %s1988 = sld [smem:[#allocation3 + $0x5a]]
    %v1989 = vstv %s1988
    %v1990 = vmul.f32 %v1989, %v1954
    %v1991 = vmul.f32 %v1989, %v1955
    %v1992 = vmul.f32 %v1989, %v1956
    %v1993 = vmul.f32 %v1989, %v1957
    %1998 = vrot.lane.b32.xlu0 %v1990, 127
    %v1999 = vpop.permute.xlu0 %1998
    %2000 = vrot.lane.b32.xlu0 %v1991, 127
    %v2001 = vpop.permute.xlu0 %2000
    %2002 = vrot.lane.b32.xlu0 %v1992, 127
    %v2003 = vpop.permute.xlu0 %2002
    %2004 = vrot.lane.b32.xlu0 %v1993, 127
    %v2005 = vpop.permute.xlu0 %2004
    %v2010 = vadd.f32 %v1964, %v1999
    %v2011 = vadd.f32 %v1965, %v2001
    %v2012 = vadd.f32 %v1966, %v2003
    %v2013 = vadd.f32 %v1967, %v2005
    %s2014 = sld [smem:[#allocation3 + $0x5b]]
    %v2015 = vstv %s2014
    %v2016 = vmul.f32 %v2015, %v1954
    %v2017 = vmul.f32 %v2015, %v1955
    %v2018 = vmul.f32 %v2015, %v1956
    %v2019 = vmul.f32 %v2015, %v1957
    %2024 = vrot.lane.b32.xlu0 %v2016, 127
    %v2025 = vpop.permute.xlu0 %2024
    %2026 = vrot.lane.b32.xlu0 %v2017, 127
    %v2027 = vpop.permute.xlu0 %2026
    %2028 = vrot.lane.b32.xlu0 %v2018, 127
    %v2029 = vpop.permute.xlu0 %2028
    %2030 = vrot.lane.b32.xlu0 %v2019, 127
    %v2031 = vpop.permute.xlu0 %2030
    %v2036 = vadd.f32 %v1974, %v2025
    %v2037 = vadd.f32 %v1975, %v2027
    %v2038 = vadd.f32 %v1976, %v2029
    %v2039 = vadd.f32 %v1977, %v2031
    %s2040 = sld [smem:[#allocation3 + $0x5c]]
    %v2041 = vstv %s2040
    %v2042 = vmul.f32 %v2041, %v1954
    %v2043 = vmul.f32 %v2041, %v1955
    %v2044 = vmul.f32 %v2041, %v1956
    %v2045 = vmul.f32 %v2041, %v1957
    %2050 = vrot.lane.b32.xlu0 %v2042, 127
    %v2051 = vpop.permute.xlu0 %2050
    %2052 = vrot.lane.b32.xlu0 %v2043, 127
    %v2053 = vpop.permute.xlu0 %2052
    %2054 = vrot.lane.b32.xlu0 %v2044, 127
    %v2055 = vpop.permute.xlu0 %2054
    %2056 = vrot.lane.b32.xlu0 %v2045, 127
    %v2057 = vpop.permute.xlu0 %2056
    %v2062 = vadd.f32 %v1984, %v2051
    %v2063 = vadd.f32 %v1985, %v2053
    %v2064 = vadd.f32 %v1986, %v2055
    %v2065 = vadd.f32 %v1987, %v2057
    %s2066 = sld [smem:[#allocation3 + $0x63]]
    %v2067 = vstv %s2066
    %v2068 = vmul.f32 %v2067, %v1954
    %v2069 = vmul.f32 %v2067, %v1955
    %v2070 = vmul.f32 %v2067, %v1956
    %v2071 = vmul.f32 %v2067, %v1957
    %2076 = vrot.lane.b32.xlu0 %v2068, 126
    %v2077 = vpop.permute.xlu0 %2076
    %2078 = vrot.lane.b32.xlu0 %v2069, 126
    %v2079 = vpop.permute.xlu0 %2078
    %2080 = vrot.lane.b32.xlu0 %v2070, 126
    %v2081 = vpop.permute.xlu0 %2080
    %2082 = vrot.lane.b32.xlu0 %v2071, 126
    %v2083 = vpop.permute.xlu0 %2082
    %v2088 = vadd.f32 %v2010, %v2077
    %v2089 = vadd.f32 %v2011, %v2079
    %v2090 = vadd.f32 %v2012, %v2081
    %v2091 = vadd.f32 %v2013, %v2083
    %s2092 = sld [smem:[#allocation3 + $0x64]]
    %v2093 = vstv %s2092
    %v2094 = vmul.f32 %v2093, %v1954
    %v2095 = vmul.f32 %v2093, %v1955
    %v2096 = vmul.f32 %v2093, %v1956
    %v2097 = vmul.f32 %v2093, %v1957
    %2102 = vrot.lane.b32.xlu0 %v2094, 126
    %v2103 = vpop.permute.xlu0 %2102
    %2104 = vrot.lane.b32.xlu0 %v2095, 126
    %v2105 = vpop.permute.xlu0 %2104
    %2106 = vrot.lane.b32.xlu0 %v2096, 126
    %v2107 = vpop.permute.xlu0 %2106
    %2108 = vrot.lane.b32.xlu0 %v2097, 126
    %v2109 = vpop.permute.xlu0 %2108
    %v2114 = vadd.f32 %v2036, %v2103
    %v2115 = vadd.f32 %v2037, %v2105
    %v2116 = vadd.f32 %v2038, %v2107
    %v2117 = vadd.f32 %v2039, %v2109
    %s2118 = sld [smem:[#allocation3 + $0x65]]
    %v2119 = vstv %s2118
    %v2120 = vmul.f32 %v2119, %v1954
    %v2121 = vmul.f32 %v2119, %v1955
    %v2122 = vmul.f32 %v2119, %v1956
    %v2123 = vmul.f32 %v2119, %v1957
    %2128 = vrot.lane.b32.xlu0 %v2120, 126
    %v2129 = vpop.permute.xlu0 %2128
    %2130 = vrot.lane.b32.xlu0 %v2121, 126
    %v2131 = vpop.permute.xlu0 %2130
    %2132 = vrot.lane.b32.xlu0 %v2122, 126
    %v2133 = vpop.permute.xlu0 %2132
    %2134 = vrot.lane.b32.xlu0 %v2123, 126
    %v2135 = vpop.permute.xlu0 %2134
    %v2140 = vadd.f32 %v2062, %v2129
    %v2141 = vadd.f32 %v2063, %v2131
    %v2142 = vadd.f32 %v2064, %v2133
    %v2143 = vadd.f32 %v2065, %v2135
    %v2144 = vld [vmem:[#allocation2 + $0x1] sm:$0xff]
    %v2145 = vld [vmem:[#allocation2 + $0x9] sm:$0xff]
    %v2146 = vld [vmem:[#allocation2 + $0x19] sm:$0xff]
    %v2147 = vld [vmem:[#allocation2 + $0x21] sm:$0xff]
    %s2148 = sld [smem:[#allocation3 + $0x6c]]
    %v2149 = vstv %s2148
    %v2150 = vmul.f32 %v2149, %v2144
    %v2151 = vmul.f32 %v2149, %v2145
    %v2152 = vmul.f32 %v2149, %v2146
    %v2153 = vmul.f32 %v2149, %v2147
    %v2154 = vadd.f32 %v2088, %v2150
    %v2155 = vadd.f32 %v2089, %v2151
    %v2156 = vadd.f32 %v2090, %v2152
    %v2157 = vadd.f32 %v2091, %v2153
    %s2158 = sld [smem:[#allocation3 + $0x6d]]
    %v2159 = vstv %s2158
    %v2160 = vmul.f32 %v2159, %v2144
    %v2161 = vmul.f32 %v2159, %v2145
    %v2162 = vmul.f32 %v2159, %v2146
    %v2163 = vmul.f32 %v2159, %v2147
    %v2164 = vadd.f32 %v2114, %v2160
    %v2165 = vadd.f32 %v2115, %v2161
    %v2166 = vadd.f32 %v2116, %v2162
    %v2167 = vadd.f32 %v2117, %v2163
    %s2168 = sld [smem:[#allocation3 + $0x6e]]
    %v2169 = vstv %s2168
    %v2170 = vmul.f32 %v2169, %v2144
    %v2171 = vmul.f32 %v2169, %v2145
    %v2172 = vmul.f32 %v2169, %v2146
    %v2173 = vmul.f32 %v2169, %v2147
    %v2174 = vadd.f32 %v2140, %v2170
    %v2175 = vadd.f32 %v2141, %v2171
    %v2176 = vadd.f32 %v2142, %v2172
    %v2177 = vadd.f32 %v2143, %v2173
    %s2178 = sld [smem:[#allocation3 + $0x75]]
    %v2179 = vstv %s2178
    %v2180 = vmul.f32 %v2179, %v2144
    %v2181 = vmul.f32 %v2179, %v2145
    %v2182 = vmul.f32 %v2179, %v2146
    %v2183 = vmul.f32 %v2179, %v2147
    %2188 = vrot.lane.b32.xlu0 %v2180, 127
    %v2189 = vpop.permute.xlu0 %2188
    %2190 = vrot.lane.b32.xlu0 %v2181, 127
    %v2191 = vpop.permute.xlu0 %2190
    %2192 = vrot.lane.b32.xlu0 %v2182, 127
    %v2193 = vpop.permute.xlu0 %2192
    %2194 = vrot.lane.b32.xlu0 %v2183, 127
    %v2195 = vpop.permute.xlu0 %2194
    %v2200 = vadd.f32 %v2154, %v2189
    %v2201 = vadd.f32 %v2155, %v2191
    %v2202 = vadd.f32 %v2156, %v2193
    %v2203 = vadd.f32 %v2157, %v2195
    %s2204 = sld [smem:[#allocation3 + $0x76]]
    %v2205 = vstv %s2204
    %v2206 = vmul.f32 %v2205, %v2144
    %v2207 = vmul.f32 %v2205, %v2145
    %v2208 = vmul.f32 %v2205, %v2146
    %v2209 = vmul.f32 %v2205, %v2147
    %2214 = vrot.lane.b32.xlu0 %v2206, 127
    %v2215 = vpop.permute.xlu0 %2214
    %2216 = vrot.lane.b32.xlu0 %v2207, 127
    %v2217 = vpop.permute.xlu0 %2216
    %2218 = vrot.lane.b32.xlu0 %v2208, 127
    %v2219 = vpop.permute.xlu0 %2218
    %2220 = vrot.lane.b32.xlu0 %v2209, 127
    %v2221 = vpop.permute.xlu0 %2220
    %v2226 = vadd.f32 %v2164, %v2215
    %v2227 = vadd.f32 %v2165, %v2217
    %v2228 = vadd.f32 %v2166, %v2219
    %v2229 = vadd.f32 %v2167, %v2221
    %s2230 = sld [smem:[#allocation3 + $0x77]]
    %v2231 = vstv %s2230
    %v2232 = vmul.f32 %v2231, %v2144
    %v2233 = vmul.f32 %v2231, %v2145
    %v2234 = vmul.f32 %v2231, %v2146
    %v2235 = vmul.f32 %v2231, %v2147
    %2240 = vrot.lane.b32.xlu0 %v2232, 127
    %v2241 = vpop.permute.xlu0 %2240
    %2242 = vrot.lane.b32.xlu0 %v2233, 127
    %v2243 = vpop.permute.xlu0 %2242
    %2244 = vrot.lane.b32.xlu0 %v2234, 127
    %v2245 = vpop.permute.xlu0 %2244
    %2246 = vrot.lane.b32.xlu0 %v2235, 127
    %v2247 = vpop.permute.xlu0 %2246
    %v2252 = vadd.f32 %v2174, %v2241
    %v2253 = vadd.f32 %v2175, %v2243
    %v2254 = vadd.f32 %v2176, %v2245
    %v2255 = vadd.f32 %v2177, %v2247
    %s2256 = sld [smem:[#allocation3 + $0x7e]]
    %v2257 = vstv %s2256
    %v2258 = vmul.f32 %v2257, %v2144
    %v2259 = vmul.f32 %v2257, %v2145
    %v2260 = vmul.f32 %v2257, %v2146
    %v2261 = vmul.f32 %v2257, %v2147
    %2266 = vrot.lane.b32.xlu0 %v2258, 126
    %v2267 = vpop.permute.xlu0 %2266
    %2268 = vrot.lane.b32.xlu0 %v2259, 126
    %v2269 = vpop.permute.xlu0 %2268
    %2270 = vrot.lane.b32.xlu0 %v2260, 126
    %v2271 = vpop.permute.xlu0 %2270
    %2272 = vrot.lane.b32.xlu0 %v2261, 126
    %v2273 = vpop.permute.xlu0 %2272
    %v2278 = vadd.f32 %v2200, %v2267
    %v2279 = vadd.f32 %v2201, %v2269
    %v2280 = vadd.f32 %v2202, %v2271
    %v2281 = vadd.f32 %v2203, %v2273
    %s2282 = sld [smem:[#allocation3 + $0x7f]]
    %v2283 = vstv %s2282
    %v2284 = vmul.f32 %v2283, %v2144
    %v2285 = vmul.f32 %v2283, %v2145
    %v2286 = vmul.f32 %v2283, %v2146
    %v2287 = vmul.f32 %v2283, %v2147
    %2292 = vrot.lane.b32.xlu0 %v2284, 126
    %v2293 = vpop.permute.xlu0 %2292
    %2294 = vrot.lane.b32.xlu0 %v2285, 126
    %v2295 = vpop.permute.xlu0 %2294
    %2296 = vrot.lane.b32.xlu0 %v2286, 126
    %v2297 = vpop.permute.xlu0 %2296
    %2298 = vrot.lane.b32.xlu0 %v2287, 126
    %v2299 = vpop.permute.xlu0 %2298
    %v2304 = vadd.f32 %v2226, %v2293
    %v2305 = vadd.f32 %v2227, %v2295
    %v2306 = vadd.f32 %v2228, %v2297
    %v2307 = vadd.f32 %v2229, %v2299
    %s2308 = sld [smem:[#allocation3 + $0x80]]
    %v2309 = vstv %s2308
    %v2310 = vmul.f32 %v2309, %v2144
    %v2311 = vmul.f32 %v2309, %v2145
    %v2312 = vmul.f32 %v2309, %v2146
    %v2313 = vmul.f32 %v2309, %v2147
    %2318 = vrot.lane.b32.xlu0 %v2310, 126
    %v2319 = vpop.permute.xlu0 %2318
    %2320 = vrot.lane.b32.xlu0 %v2311, 126
    %v2321 = vpop.permute.xlu0 %2320
    %2322 = vrot.lane.b32.xlu0 %v2312, 126
    %v2323 = vpop.permute.xlu0 %2322
    %2324 = vrot.lane.b32.xlu0 %v2313, 126
    %v2325 = vpop.permute.xlu0 %2324
    %v2330 = vadd.f32 %v2252, %v2319
    %v2331 = vadd.f32 %v2253, %v2321
    %v2332 = vadd.f32 %v2254, %v2323
    %v2333 = vadd.f32 %v2255, %v2325
    %v2334 = vld [vmem:[#allocation2 + $0x2] sm:$0xff]
    %v2335 = vld [vmem:[#allocation2 + $0xa] sm:$0xff]
    %v2336 = vld [vmem:[#allocation2 + $0x1a] sm:$0xff]
    %v2337 = vld [vmem:[#allocation2 + $0x22] sm:$0xff]
    %s2338 = sld [smem:[#allocation3 + $0x87]]
    %v2339 = vstv %s2338
    %v2340 = vmul.f32 %v2339, %v2334
    %v2341 = vmul.f32 %v2339, %v2335
    %v2342 = vmul.f32 %v2339, %v2336
    %v2343 = vmul.f32 %v2339, %v2337
    %v2344 = vadd.f32 %v2278, %v2340
    %v2345 = vadd.f32 %v2279, %v2341
    %v2346 = vadd.f32 %v2280, %v2342
    %v2347 = vadd.f32 %v2281, %v2343
    %s2348 = sld [smem:[#allocation3 + $0x88]]
    %v2349 = vstv %s2348
    %v2350 = vmul.f32 %v2349, %v2334
    %v2351 = vmul.f32 %v2349, %v2335
    %v2352 = vmul.f32 %v2349, %v2336
    %v2353 = vmul.f32 %v2349, %v2337
    %v2354 = vadd.f32 %v2304, %v2350
    %v2355 = vadd.f32 %v2305, %v2351
    %v2356 = vadd.f32 %v2306, %v2352
    %v2357 = vadd.f32 %v2307, %v2353
    %s2358 = sld [smem:[#allocation3 + $0x89]]
    %v2359 = vstv %s2358
    %v2360 = vmul.f32 %v2359, %v2334
    %v2361 = vmul.f32 %v2359, %v2335
    %v2362 = vmul.f32 %v2359, %v2336
    %v2363 = vmul.f32 %v2359, %v2337
    %v2364 = vadd.f32 %v2330, %v2360
    %v2365 = vadd.f32 %v2331, %v2361
    %v2366 = vadd.f32 %v2332, %v2362
    %v2367 = vadd.f32 %v2333, %v2363
    %s2368 = sld [smem:[#allocation3 + $0x90]]
    %v2369 = vstv %s2368
    %v2370 = vmul.f32 %v2369, %v2334
    %v2371 = vmul.f32 %v2369, %v2335
    %v2372 = vmul.f32 %v2369, %v2336
    %v2373 = vmul.f32 %v2369, %v2337
    %2378 = vrot.lane.b32.xlu0 %v2370, 127
    %v2379 = vpop.permute.xlu0 %2378
    %2380 = vrot.lane.b32.xlu0 %v2371, 127
    %v2381 = vpop.permute.xlu0 %2380
    %2382 = vrot.lane.b32.xlu0 %v2372, 127
    %v2383 = vpop.permute.xlu0 %2382
    %2384 = vrot.lane.b32.xlu0 %v2373, 127
    %v2385 = vpop.permute.xlu0 %2384
    %v2390 = vadd.f32 %v2344, %v2379
    %v2391 = vadd.f32 %v2345, %v2381
    %v2392 = vadd.f32 %v2346, %v2383
    %v2393 = vadd.f32 %v2347, %v2385
    %s2394 = sld [smem:[#allocation3 + $0x91]]
    %v2395 = vstv %s2394
    %v2396 = vmul.f32 %v2395, %v2334
    %v2397 = vmul.f32 %v2395, %v2335
    %v2398 = vmul.f32 %v2395, %v2336
    %v2399 = vmul.f32 %v2395, %v2337
    %2404 = vrot.lane.b32.xlu0 %v2396, 127
    %v2405 = vpop.permute.xlu0 %2404
    %2406 = vrot.lane.b32.xlu0 %v2397, 127
    %v2407 = vpop.permute.xlu0 %2406
    %2408 = vrot.lane.b32.xlu0 %v2398, 127
    %v2409 = vpop.permute.xlu0 %2408
    %2410 = vrot.lane.b32.xlu0 %v2399, 127
    %v2411 = vpop.permute.xlu0 %2410
    %v2416 = vadd.f32 %v2354, %v2405
    %v2417 = vadd.f32 %v2355, %v2407
    %v2418 = vadd.f32 %v2356, %v2409
    %v2419 = vadd.f32 %v2357, %v2411
    %s2420 = sld [smem:[#allocation3 + $0x92]]
    %v2421 = vstv %s2420
    %v2422 = vmul.f32 %v2421, %v2334
    %v2423 = vmul.f32 %v2421, %v2335
    %v2424 = vmul.f32 %v2421, %v2336
    %v2425 = vmul.f32 %v2421, %v2337
    %2430 = vrot.lane.b32.xlu0 %v2422, 127
    %v2431 = vpop.permute.xlu0 %2430
    %2432 = vrot.lane.b32.xlu0 %v2423, 127
    %v2433 = vpop.permute.xlu0 %2432
    %2434 = vrot.lane.b32.xlu0 %v2424, 127
    %v2435 = vpop.permute.xlu0 %2434
    %2436 = vrot.lane.b32.xlu0 %v2425, 127
    %v2437 = vpop.permute.xlu0 %2436
    %v2442 = vadd.f32 %v2364, %v2431
    %v2443 = vadd.f32 %v2365, %v2433
    %v2444 = vadd.f32 %v2366, %v2435
    %v2445 = vadd.f32 %v2367, %v2437
    %s2446 = sld [smem:[#allocation3 + $0x99]]
    %v2447 = vstv %s2446
    %v2448 = vmul.f32 %v2447, %v2334
    %v2449 = vmul.f32 %v2447, %v2335
    %v2450 = vmul.f32 %v2447, %v2336
    %v2451 = vmul.f32 %v2447, %v2337
    %2456 = vrot.lane.b32.xlu0 %v2448, 126
    %v2457 = vpop.permute.xlu0 %2456
    %2458 = vrot.lane.b32.xlu0 %v2449, 126
    %v2459 = vpop.permute.xlu0 %2458
    %2460 = vrot.lane.b32.xlu0 %v2450, 126
    %v2461 = vpop.permute.xlu0 %2460
    %2462 = vrot.lane.b32.xlu0 %v2451, 126
    %v2463 = vpop.permute.xlu0 %2462
    %v2468 = vadd.f32 %v2390, %v2457
    %v2469 = vadd.f32 %v2391, %v2459
    %v2470 = vadd.f32 %v2392, %v2461
    %v2471 = vadd.f32 %v2393, %v2463
    %s2472 = sld [smem:[#allocation3 + $0x9a]]
    %v2473 = vstv %s2472
    %v2474 = vmul.f32 %v2473, %v2334
    %v2475 = vmul.f32 %v2473, %v2335
    %v2476 = vmul.f32 %v2473, %v2336
    %v2477 = vmul.f32 %v2473, %v2337
    %2482 = vrot.lane.b32.xlu0 %v2474, 126
    %v2483 = vpop.permute.xlu0 %2482
    %2484 = vrot.lane.b32.xlu0 %v2475, 126
    %v2485 = vpop.permute.xlu0 %2484
    %2486 = vrot.lane.b32.xlu0 %v2476, 126
    %v2487 = vpop.permute.xlu0 %2486
    %2488 = vrot.lane.b32.xlu0 %v2477, 126
    %v2489 = vpop.permute.xlu0 %2488
    %v2494 = vadd.f32 %v2416, %v2483
    %v2495 = vadd.f32 %v2417, %v2485
    %v2496 = vadd.f32 %v2418, %v2487
    %v2497 = vadd.f32 %v2419, %v2489
    %s2498 = sld [smem:[#allocation3 + $0x9b]]
    %v2499 = vstv %s2498
    %v2500 = vmul.f32 %v2499, %v2334
    %v2501 = vmul.f32 %v2499, %v2335
    %v2502 = vmul.f32 %v2499, %v2336
    %v2503 = vmul.f32 %v2499, %v2337
    %2508 = vrot.lane.b32.xlu0 %v2500, 126
    %v2509 = vpop.permute.xlu0 %2508
    %2510 = vrot.lane.b32.xlu0 %v2501, 126
    %v2511 = vpop.permute.xlu0 %2510
    %2512 = vrot.lane.b32.xlu0 %v2502, 126
    %v2513 = vpop.permute.xlu0 %2512
    %2514 = vrot.lane.b32.xlu0 %v2503, 126
    %v2515 = vpop.permute.xlu0 %2514
    %v2520 = vadd.f32 %v2442, %v2509
    %v2521 = vadd.f32 %v2443, %v2511
    %v2522 = vadd.f32 %v2444, %v2513
    %v2523 = vadd.f32 %v2445, %v2515
    %v2524 = vld [vmem:[%s110] sm:$0xff]
    %v2525 = vld [vmem:[%s110 + $0x8] sm:$0xff]
    %v2526 = vld [vmem:[%s110 + $0x18] sm:$0xff]
    %v2527 = vld [vmem:[%s110 + $0x20] sm:$0xff]
    %s2528 = sld [smem:[#allocation3 + $0x54]]
    %v2529 = vstv %s2528
    %v2530 = vmul.f32 %v2529, %v2524
    %v2531 = vmul.f32 %v2529, %v2525
    %v2532 = vmul.f32 %v2529, %v2526
    %v2533 = vmul.f32 %v2529, %v2527
    %v2534 = vadd.f32 %v2468, %v2530
    %v2535 = vadd.f32 %v2469, %v2531
    %v2536 = vadd.f32 %v2470, %v2532
    %v2537 = vadd.f32 %v2471, %v2533
    %s2538 = sld [smem:[#allocation3 + $0x55]]
    %v2539 = vstv %s2538
    %v2540 = vmul.f32 %v2539, %v2524
    %v2541 = vmul.f32 %v2539, %v2525
    %v2542 = vmul.f32 %v2539, %v2526
    %v2543 = vmul.f32 %v2539, %v2527
    %v2544 = vadd.f32 %v2494, %v2540
    %v2545 = vadd.f32 %v2495, %v2541
    %v2546 = vadd.f32 %v2496, %v2542
    %v2547 = vadd.f32 %v2497, %v2543
    %s2548 = sld [smem:[#allocation3 + $0x56]]
    %v2549 = vstv %s2548
    %v2550 = vmul.f32 %v2549, %v2524
    %v2551 = vmul.f32 %v2549, %v2525
    %v2552 = vmul.f32 %v2549, %v2526
    %v2553 = vmul.f32 %v2549, %v2527
    %v2554 = vadd.f32 %v2520, %v2550
    %v2555 = vadd.f32 %v2521, %v2551
    %v2556 = vadd.f32 %v2522, %v2552
    %v2557 = vadd.f32 %v2523, %v2553
    %s2558 = sld [smem:[#allocation3 + $0x5d]]
    %v2559 = vstv %s2558
    %v2560 = vmul.f32 %v2559, %v2524
    %v2561 = vmul.f32 %v2559, %v2525
    %v2562 = vmul.f32 %v2559, %v2526
    %v2563 = vmul.f32 %v2559, %v2527
    %2568 = vrot.lane.b32.xlu0 %v2560, 127
    %v2569 = vpop.permute.xlu0 %2568
    %2570 = vrot.lane.b32.xlu0 %v2561, 127
    %v2571 = vpop.permute.xlu0 %2570
    %2572 = vrot.lane.b32.xlu0 %v2562, 127
    %v2573 = vpop.permute.xlu0 %2572
    %2574 = vrot.lane.b32.xlu0 %v2563, 127
    %v2575 = vpop.permute.xlu0 %2574
    %v2580 = vadd.f32 %v2534, %v2569
    %v2581 = vadd.f32 %v2535, %v2571
    %v2582 = vadd.f32 %v2536, %v2573
    %v2583 = vadd.f32 %v2537, %v2575
    %s2584 = sld [smem:[#allocation3 + $0x5e]]
    %v2585 = vstv %s2584
    %v2586 = vmul.f32 %v2585, %v2524
    %v2587 = vmul.f32 %v2585, %v2525
    %v2588 = vmul.f32 %v2585, %v2526
    %v2589 = vmul.f32 %v2585, %v2527
    %2594 = vrot.lane.b32.xlu0 %v2586, 127
    %v2595 = vpop.permute.xlu0 %2594
    %2596 = vrot.lane.b32.xlu0 %v2587, 127
    %v2597 = vpop.permute.xlu0 %2596
    %2598 = vrot.lane.b32.xlu0 %v2588, 127
    %v2599 = vpop.permute.xlu0 %2598
    %2600 = vrot.lane.b32.xlu0 %v2589, 127
    %v2601 = vpop.permute.xlu0 %2600
    %v2606 = vadd.f32 %v2544, %v2595
    %v2607 = vadd.f32 %v2545, %v2597
    %v2608 = vadd.f32 %v2546, %v2599
    %v2609 = vadd.f32 %v2547, %v2601
    %s2610 = sld [smem:[#allocation3 + $0x5f]]
    %v2611 = vstv %s2610
    %v2612 = vmul.f32 %v2611, %v2524
    %v2613 = vmul.f32 %v2611, %v2525
    %v2614 = vmul.f32 %v2611, %v2526
    %v2615 = vmul.f32 %v2611, %v2527
    %2620 = vrot.lane.b32.xlu0 %v2612, 127
    %v2621 = vpop.permute.xlu0 %2620
    %2622 = vrot.lane.b32.xlu0 %v2613, 127
    %v2623 = vpop.permute.xlu0 %2622
    %2624 = vrot.lane.b32.xlu0 %v2614, 127
    %v2625 = vpop.permute.xlu0 %2624
    %2626 = vrot.lane.b32.xlu0 %v2615, 127
    %v2627 = vpop.permute.xlu0 %2626
    %v2632 = vadd.f32 %v2554, %v2621
    %v2633 = vadd.f32 %v2555, %v2623
    %v2634 = vadd.f32 %v2556, %v2625
    %v2635 = vadd.f32 %v2557, %v2627
    %s2636 = sld [smem:[#allocation3 + $0x66]]
    %v2637 = vstv %s2636
    %v2638 = vmul.f32 %v2637, %v2524
    %v2639 = vmul.f32 %v2637, %v2525
    %v2640 = vmul.f32 %v2637, %v2526
    %v2641 = vmul.f32 %v2637, %v2527
    %2646 = vrot.lane.b32.xlu0 %v2638, 126
    %v2647 = vpop.permute.xlu0 %2646
    %2648 = vrot.lane.b32.xlu0 %v2639, 126
    %v2649 = vpop.permute.xlu0 %2648
    %2650 = vrot.lane.b32.xlu0 %v2640, 126
    %v2651 = vpop.permute.xlu0 %2650
    %2652 = vrot.lane.b32.xlu0 %v2641, 126
    %v2653 = vpop.permute.xlu0 %2652
    %v2658 = vadd.f32 %v2580, %v2647
    %v2659 = vadd.f32 %v2581, %v2649
    %v2660 = vadd.f32 %v2582, %v2651
    %v2661 = vadd.f32 %v2583, %v2653
    %s2662 = sld [smem:[#allocation3 + $0x67]]
    %v2663 = vstv %s2662
    %v2664 = vmul.f32 %v2663, %v2524
    %v2665 = vmul.f32 %v2663, %v2525
    %v2666 = vmul.f32 %v2663, %v2526
    %v2667 = vmul.f32 %v2663, %v2527
    %2672 = vrot.lane.b32.xlu0 %v2664, 126
    %v2673 = vpop.permute.xlu0 %2672
    %2674 = vrot.lane.b32.xlu0 %v2665, 126
    %v2675 = vpop.permute.xlu0 %2674
    %2676 = vrot.lane.b32.xlu0 %v2666, 126
    %v2677 = vpop.permute.xlu0 %2676
    %2678 = vrot.lane.b32.xlu0 %v2667, 126
    %v2679 = vpop.permute.xlu0 %2678
    %v2684 = vadd.f32 %v2606, %v2673
    %v2685 = vadd.f32 %v2607, %v2675
    %v2686 = vadd.f32 %v2608, %v2677
    %v2687 = vadd.f32 %v2609, %v2679
    %s2688 = sld [smem:[#allocation3 + $0x68]]
    %v2689 = vstv %s2688
    %v2690 = vmul.f32 %v2689, %v2524
    %v2691 = vmul.f32 %v2689, %v2525
    %v2692 = vmul.f32 %v2689, %v2526
    %v2693 = vmul.f32 %v2689, %v2527
    %2698 = vrot.lane.b32.xlu0 %v2690, 126
    %v2699 = vpop.permute.xlu0 %2698
    %2700 = vrot.lane.b32.xlu0 %v2691, 126
    %v2701 = vpop.permute.xlu0 %2700
    %2702 = vrot.lane.b32.xlu0 %v2692, 126
    %v2703 = vpop.permute.xlu0 %2702
    %2704 = vrot.lane.b32.xlu0 %v2693, 126
    %v2705 = vpop.permute.xlu0 %2704
    %v2710 = vadd.f32 %v2632, %v2699
    %v2711 = vadd.f32 %v2633, %v2701
    %v2712 = vadd.f32 %v2634, %v2703
    %v2713 = vadd.f32 %v2635, %v2705
    %v2714 = vld [vmem:[%s110 + $0x1] sm:$0xff]
    %v2715 = vld [vmem:[%s110 + $0x9] sm:$0xff]
    %v2716 = vld [vmem:[%s110 + $0x19] sm:$0xff]
    %v2717 = vld [vmem:[%s110 + $0x21] sm:$0xff]
    %s2718 = sld [smem:[#allocation3 + $0x6f]]
    %v2719 = vstv %s2718
    %v2720 = vmul.f32 %v2719, %v2714
    %v2721 = vmul.f32 %v2719, %v2715
    %v2722 = vmul.f32 %v2719, %v2716
    %v2723 = vmul.f32 %v2719, %v2717
    %v2724 = vadd.f32 %v2658, %v2720
    %v2725 = vadd.f32 %v2659, %v2721
    %v2726 = vadd.f32 %v2660, %v2722
    %v2727 = vadd.f32 %v2661, %v2723
    %s2728 = sld [smem:[#allocation3 + $0x70]]
    %v2729 = vstv %s2728
    %v2730 = vmul.f32 %v2729, %v2714
    %v2731 = vmul.f32 %v2729, %v2715
    %v2732 = vmul.f32 %v2729, %v2716
    %v2733 = vmul.f32 %v2729, %v2717
    %v2734 = vadd.f32 %v2684, %v2730
    %v2735 = vadd.f32 %v2685, %v2731
    %v2736 = vadd.f32 %v2686, %v2732
    %v2737 = vadd.f32 %v2687, %v2733
    %s2738 = sld [smem:[#allocation3 + $0x71]]
    %v2739 = vstv %s2738
    %v2740 = vmul.f32 %v2739, %v2714
    %v2741 = vmul.f32 %v2739, %v2715
    %v2742 = vmul.f32 %v2739, %v2716
    %v2743 = vmul.f32 %v2739, %v2717
    %v2744 = vadd.f32 %v2710, %v2740
    %v2745 = vadd.f32 %v2711, %v2741
    %v2746 = vadd.f32 %v2712, %v2742
    %v2747 = vadd.f32 %v2713, %v2743
    %s2748 = sld [smem:[#allocation3 + $0x78]]
    %v2749 = vstv %s2748
    %v2750 = vmul.f32 %v2749, %v2714
    %v2751 = vmul.f32 %v2749, %v2715
    %v2752 = vmul.f32 %v2749, %v2716
    %v2753 = vmul.f32 %v2749, %v2717
    %2758 = vrot.lane.b32.xlu0 %v2750, 127
    %v2759 = vpop.permute.xlu0 %2758
    %2760 = vrot.lane.b32.xlu0 %v2751, 127
    %v2761 = vpop.permute.xlu0 %2760
    %2762 = vrot.lane.b32.xlu0 %v2752, 127
    %v2763 = vpop.permute.xlu0 %2762
    %2764 = vrot.lane.b32.xlu0 %v2753, 127
    %v2765 = vpop.permute.xlu0 %2764
    %v2770 = vadd.f32 %v2724, %v2759
    %v2771 = vadd.f32 %v2725, %v2761
    %v2772 = vadd.f32 %v2726, %v2763
    %v2773 = vadd.f32 %v2727, %v2765
    %s2774 = sld [smem:[#allocation3 + $0x79]]
    %v2775 = vstv %s2774
    %v2776 = vmul.f32 %v2775, %v2714
    %v2777 = vmul.f32 %v2775, %v2715
    %v2778 = vmul.f32 %v2775, %v2716
    %v2779 = vmul.f32 %v2775, %v2717
    %2784 = vrot.lane.b32.xlu0 %v2776, 127
    %v2785 = vpop.permute.xlu0 %2784
    %2786 = vrot.lane.b32.xlu0 %v2777, 127
    %v2787 = vpop.permute.xlu0 %2786
    %2788 = vrot.lane.b32.xlu0 %v2778, 127
    %v2789 = vpop.permute.xlu0 %2788
    %2790 = vrot.lane.b32.xlu0 %v2779, 127
    %v2791 = vpop.permute.xlu0 %2790
    %v2796 = vadd.f32 %v2734, %v2785
    %v2797 = vadd.f32 %v2735, %v2787
    %v2798 = vadd.f32 %v2736, %v2789
    %v2799 = vadd.f32 %v2737, %v2791
    %s2800 = sld [smem:[#allocation3 + $0x7a]]
    %v2801 = vstv %s2800
    %v2802 = vmul.f32 %v2801, %v2714
    %v2803 = vmul.f32 %v2801, %v2715
    %v2804 = vmul.f32 %v2801, %v2716
    %v2805 = vmul.f32 %v2801, %v2717
    %2810 = vrot.lane.b32.xlu0 %v2802, 127
    %v2811 = vpop.permute.xlu0 %2810
    %2812 = vrot.lane.b32.xlu0 %v2803, 127
    %v2813 = vpop.permute.xlu0 %2812
    %2814 = vrot.lane.b32.xlu0 %v2804, 127
    %v2815 = vpop.permute.xlu0 %2814
    %2816 = vrot.lane.b32.xlu0 %v2805, 127
    %v2817 = vpop.permute.xlu0 %2816
    %v2822 = vadd.f32 %v2744, %v2811
    %v2823 = vadd.f32 %v2745, %v2813
    %v2824 = vadd.f32 %v2746, %v2815
    %v2825 = vadd.f32 %v2747, %v2817
    %s2826 = sld [smem:[#allocation3 + $0x81]]
    %v2827 = vstv %s2826
    %v2828 = vmul.f32 %v2827, %v2714
    %v2829 = vmul.f32 %v2827, %v2715
    %v2830 = vmul.f32 %v2827, %v2716
    %v2831 = vmul.f32 %v2827, %v2717
    %2836 = vrot.lane.b32.xlu0 %v2828, 126
    %v2837 = vpop.permute.xlu0 %2836
    %2838 = vrot.lane.b32.xlu0 %v2829, 126
    %v2839 = vpop.permute.xlu0 %2838
    %2840 = vrot.lane.b32.xlu0 %v2830, 126
    %v2841 = vpop.permute.xlu0 %2840
    %2842 = vrot.lane.b32.xlu0 %v2831, 126
    %v2843 = vpop.permute.xlu0 %2842
    %v2848 = vadd.f32 %v2770, %v2837
    %v2849 = vadd.f32 %v2771, %v2839
    %v2850 = vadd.f32 %v2772, %v2841
    %v2851 = vadd.f32 %v2773, %v2843
    %s2852 = sld [smem:[#allocation3 + $0x82]]
    %v2853 = vstv %s2852
    %v2854 = vmul.f32 %v2853, %v2714
    %v2855 = vmul.f32 %v2853, %v2715
    %v2856 = vmul.f32 %v2853, %v2716
    %v2857 = vmul.f32 %v2853, %v2717
    %2862 = vrot.lane.b32.xlu0 %v2854, 126
    %v2863 = vpop.permute.xlu0 %2862
    %2864 = vrot.lane.b32.xlu0 %v2855, 126
    %v2865 = vpop.permute.xlu0 %2864
    %2866 = vrot.lane.b32.xlu0 %v2856, 126
    %v2867 = vpop.permute.xlu0 %2866
    %2868 = vrot.lane.b32.xlu0 %v2857, 126
    %v2869 = vpop.permute.xlu0 %2868
    %v2874 = vadd.f32 %v2796, %v2863
    %v2875 = vadd.f32 %v2797, %v2865
    %v2876 = vadd.f32 %v2798, %v2867
    %v2877 = vadd.f32 %v2799, %v2869
    %s2878 = sld [smem:[#allocation3 + $0x83]]
    %v2879 = vstv %s2878
    %v2880 = vmul.f32 %v2879, %v2714
    %v2881 = vmul.f32 %v2879, %v2715
    %v2882 = vmul.f32 %v2879, %v2716
    %v2883 = vmul.f32 %v2879, %v2717
    %2888 = vrot.lane.b32.xlu0 %v2880, 126
    %v2889 = vpop.permute.xlu0 %2888
    %2890 = vrot.lane.b32.xlu0 %v2881, 126
    %v2891 = vpop.permute.xlu0 %2890
    %2892 = vrot.lane.b32.xlu0 %v2882, 126
    %v2893 = vpop.permute.xlu0 %2892
    %2894 = vrot.lane.b32.xlu0 %v2883, 126
    %v2895 = vpop.permute.xlu0 %2894
    %v2900 = vadd.f32 %v2822, %v2889
    %v2901 = vadd.f32 %v2823, %v2891
    %v2902 = vadd.f32 %v2824, %v2893
    %v2903 = vadd.f32 %v2825, %v2895
    %v2904 = vld [vmem:[%s110 + $0x2] sm:$0xff]
    %v2905 = vld [vmem:[%s110 + $0xa] sm:$0xff]
    %v2906 = vld [vmem:[%s110 + $0x1a] sm:$0xff]
    %v2907 = vld [vmem:[%s110 + $0x22] sm:$0xff]
    %s2908 = sld [smem:[#allocation3 + $0x8a]]
    %v2909 = vstv %s2908
    %v2910 = vmul.f32 %v2909, %v2904
    %v2911 = vmul.f32 %v2909, %v2905
    %v2912 = vmul.f32 %v2909, %v2906
    %v2913 = vmul.f32 %v2909, %v2907
    %v2914 = vadd.f32 %v2848, %v2910
    %v2915 = vadd.f32 %v2849, %v2911
    %v2916 = vadd.f32 %v2850, %v2912
    %v2917 = vadd.f32 %v2851, %v2913
    %s2918 = sld [smem:[#allocation3 + $0x8b]]
    %v2919 = vstv %s2918
    %v2920 = vmul.f32 %v2919, %v2904
    %v2921 = vmul.f32 %v2919, %v2905
    %v2922 = vmul.f32 %v2919, %v2906
    %v2923 = vmul.f32 %v2919, %v2907
    %v2924 = vadd.f32 %v2874, %v2920
    %v2925 = vadd.f32 %v2875, %v2921
    %v2926 = vadd.f32 %v2876, %v2922
    %v2927 = vadd.f32 %v2877, %v2923
    %s2928 = sld [smem:[#allocation3 + $0x8c]]
    %v2929 = vstv %s2928
    %v2930 = vmul.f32 %v2929, %v2904
    %v2931 = vmul.f32 %v2929, %v2905
    %v2932 = vmul.f32 %v2929, %v2906
    %v2933 = vmul.f32 %v2929, %v2907
    %v2934 = vadd.f32 %v2900, %v2930
    %v2935 = vadd.f32 %v2901, %v2931
    %v2936 = vadd.f32 %v2902, %v2932
    %v2937 = vadd.f32 %v2903, %v2933
    %s2938 = sld [smem:[#allocation3 + $0x93]]
    %v2939 = vstv %s2938
    %v2940 = vmul.f32 %v2939, %v2904
    %v2941 = vmul.f32 %v2939, %v2905
    %v2942 = vmul.f32 %v2939, %v2906
    %v2943 = vmul.f32 %v2939, %v2907
    %2948 = vrot.lane.b32.xlu0 %v2940, 127
    %v2949 = vpop.permute.xlu0 %2948
    %2950 = vrot.lane.b32.xlu0 %v2941, 127
    %v2951 = vpop.permute.xlu0 %2950
    %2952 = vrot.lane.b32.xlu0 %v2942, 127
    %v2953 = vpop.permute.xlu0 %2952
    %2954 = vrot.lane.b32.xlu0 %v2943, 127
    %v2955 = vpop.permute.xlu0 %2954
    %v2960 = vadd.f32 %v2914, %v2949
    %v2961 = vadd.f32 %v2915, %v2951
    %v2962 = vadd.f32 %v2916, %v2953
    %v2963 = vadd.f32 %v2917, %v2955
    %s2964 = sld [smem:[#allocation3 + $0x94]]
    %v2965 = vstv %s2964
    %v2966 = vmul.f32 %v2965, %v2904
    %v2967 = vmul.f32 %v2965, %v2905
    %v2968 = vmul.f32 %v2965, %v2906
    %v2969 = vmul.f32 %v2965, %v2907
    %2974 = vrot.lane.b32.xlu0 %v2966, 127
    %v2975 = vpop.permute.xlu0 %2974
    %2976 = vrot.lane.b32.xlu0 %v2967, 127
    %v2977 = vpop.permute.xlu0 %2976
    %2978 = vrot.lane.b32.xlu0 %v2968, 127
    %v2979 = vpop.permute.xlu0 %2978
    %2980 = vrot.lane.b32.xlu0 %v2969, 127
    %v2981 = vpop.permute.xlu0 %2980
    %v2986 = vadd.f32 %v2924, %v2975
    %v2987 = vadd.f32 %v2925, %v2977
    %v2988 = vadd.f32 %v2926, %v2979
    %v2989 = vadd.f32 %v2927, %v2981
    %s2990 = sld [smem:[#allocation3 + $0x95]]
    %v2991 = vstv %s2990
    %v2992 = vmul.f32 %v2991, %v2904
    %v2993 = vmul.f32 %v2991, %v2905
    %v2994 = vmul.f32 %v2991, %v2906
    %v2995 = vmul.f32 %v2991, %v2907
    %3000 = vrot.lane.b32.xlu0 %v2992, 127
    %v3001 = vpop.permute.xlu0 %3000
    %3002 = vrot.lane.b32.xlu0 %v2993, 127
    %v3003 = vpop.permute.xlu0 %3002
    %3004 = vrot.lane.b32.xlu0 %v2994, 127
    %v3005 = vpop.permute.xlu0 %3004
    %3006 = vrot.lane.b32.xlu0 %v2995, 127
    %v3007 = vpop.permute.xlu0 %3006
    %v3012 = vadd.f32 %v2934, %v3001
    %v3013 = vadd.f32 %v2935, %v3003
    %v3014 = vadd.f32 %v2936, %v3005
    %v3015 = vadd.f32 %v2937, %v3007
    %s3016 = sld [smem:[#allocation3 + $0x9c]]
    %v3017 = vstv %s3016
    %v3018 = vmul.f32 %v3017, %v2904
    %v3019 = vmul.f32 %v3017, %v2905
    %v3020 = vmul.f32 %v3017, %v2906
    %v3021 = vmul.f32 %v3017, %v2907
    %3026 = vrot.lane.b32.xlu0 %v3018, 126
    %v3027 = vpop.permute.xlu0 %3026
    %3028 = vrot.lane.b32.xlu0 %v3019, 126
    %v3029 = vpop.permute.xlu0 %3028
    %3030 = vrot.lane.b32.xlu0 %v3020, 126
    %v3031 = vpop.permute.xlu0 %3030
    %3032 = vrot.lane.b32.xlu0 %v3021, 126
    %v3033 = vpop.permute.xlu0 %3032
    %v3038 = vadd.f32 %v2960, %v3027
    %v3039 = vadd.f32 %v2961, %v3029
    %v3040 = vadd.f32 %v2962, %v3031
    %v3041 = vadd.f32 %v2963, %v3033
    %s3042 = sld [smem:[#allocation3 + $0x9d]]
    %v3043 = vstv %s3042
    %v3044 = vmul.f32 %v3043, %v2904
    %v3045 = vmul.f32 %v3043, %v2905
    %v3046 = vmul.f32 %v3043, %v2906
    %v3047 = vmul.f32 %v3043, %v2907
    %3052 = vrot.lane.b32.xlu0 %v3044, 126
    %v3053 = vpop.permute.xlu0 %3052
    %3054 = vrot.lane.b32.xlu0 %v3045, 126
    %v3055 = vpop.permute.xlu0 %3054
    %3056 = vrot.lane.b32.xlu0 %v3046, 126
    %v3057 = vpop.permute.xlu0 %3056
    %3058 = vrot.lane.b32.xlu0 %v3047, 126
    %v3059 = vpop.permute.xlu0 %3058
    %v3064 = vadd.f32 %v2986, %v3053
    %v3065 = vadd.f32 %v2987, %v3055
    %v3066 = vadd.f32 %v2988, %v3057
    %v3067 = vadd.f32 %v2989, %v3059
    %s3068 = sld [smem:[#allocation3 + $0x9e]]
    %v3069 = vstv %s3068
    %v3070 = vmul.f32 %v3069, %v2904
    %v3071 = vmul.f32 %v3069, %v2905
    %v3072 = vmul.f32 %v3069, %v2906
    %v3073 = vmul.f32 %v3069, %v2907
    %3078 = vrot.lane.b32.xlu0 %v3070, 126
    %v3079 = vpop.permute.xlu0 %3078
    %3080 = vrot.lane.b32.xlu0 %v3071, 126
    %v3081 = vpop.permute.xlu0 %3080
    %3082 = vrot.lane.b32.xlu0 %v3072, 126
    %v3083 = vpop.permute.xlu0 %3082
    %3084 = vrot.lane.b32.xlu0 %v3073, 126
    %v3085 = vpop.permute.xlu0 %3084
    %v3090 = vadd.f32 %v3012, %v3079
    %v3091 = vadd.f32 %v3013, %v3081
    %v3092 = vadd.f32 %v3014, %v3083
    %v3093 = vadd.f32 %v3015, %v3085
    %v3094 = vld [vmem:[%s131] sm:$0xff]
    %v3095 = vld [vmem:[%s131 + $0x8] sm:$0xff]
    %v3096 = vld [vmem:[%s131 + $0x18] sm:$0xff]
    %v3097 = vld [vmem:[%s131 + $0x20] sm:$0xff]
    %s3098 = sld [smem:[#allocation3 + $0x57]]
    %v3099 = vstv %s3098
    %v3100 = vmul.f32 %v3099, %v3094
    %v3101 = vmul.f32 %v3099, %v3095
    %v3102 = vmul.f32 %v3099, %v3096
    %v3103 = vmul.f32 %v3099, %v3097
    %v3104 = vadd.f32 %v3038, %v3100
    %v3105 = vadd.f32 %v3039, %v3101
    %v3106 = vadd.f32 %v3040, %v3102
    %v3107 = vadd.f32 %v3041, %v3103
    %s3108 = sld [smem:[#allocation3 + $0x58]]
    %v3109 = vstv %s3108
    %v3110 = vmul.f32 %v3109, %v3094
    %v3111 = vmul.f32 %v3109, %v3095
    %v3112 = vmul.f32 %v3109, %v3096
    %v3113 = vmul.f32 %v3109, %v3097
    %v3114 = vadd.f32 %v3064, %v3110
    %v3115 = vadd.f32 %v3065, %v3111
    %v3116 = vadd.f32 %v3066, %v3112
    %v3117 = vadd.f32 %v3067, %v3113
    %s3118 = sld [smem:[#allocation3 + $0x59]]
    %v3119 = vstv %s3118
    %v3120 = vmul.f32 %v3119, %v3094
    %v3121 = vmul.f32 %v3119, %v3095
    %v3122 = vmul.f32 %v3119, %v3096
    %v3123 = vmul.f32 %v3119, %v3097
    %v3124 = vadd.f32 %v3090, %v3120
    %v3125 = vadd.f32 %v3091, %v3121
    %v3126 = vadd.f32 %v3092, %v3122
    %v3127 = vadd.f32 %v3093, %v3123
    %s3128 = sld [smem:[#allocation3 + $0x60]]
    %v3129 = vstv %s3128
    %v3130 = vmul.f32 %v3129, %v3094
    %v3131 = vmul.f32 %v3129, %v3095
    %v3132 = vmul.f32 %v3129, %v3096
    %v3133 = vmul.f32 %v3129, %v3097
    %3138 = vrot.lane.b32.xlu0 %v3130, 127
    %v3139 = vpop.permute.xlu0 %3138
    %3140 = vrot.lane.b32.xlu0 %v3131, 127
    %v3141 = vpop.permute.xlu0 %3140
    %3142 = vrot.lane.b32.xlu0 %v3132, 127
    %v3143 = vpop.permute.xlu0 %3142
    %3144 = vrot.lane.b32.xlu0 %v3133, 127
    %v3145 = vpop.permute.xlu0 %3144
    %v3150 = vadd.f32 %v3104, %v3139
    %v3151 = vadd.f32 %v3105, %v3141
    %v3152 = vadd.f32 %v3106, %v3143
    %v3153 = vadd.f32 %v3107, %v3145
    %s3154 = sld [smem:[#allocation3 + $0x61]]
    %v3155 = vstv %s3154
    %v3156 = vmul.f32 %v3155, %v3094
    %v3157 = vmul.f32 %v3155, %v3095
    %v3158 = vmul.f32 %v3155, %v3096
    %v3159 = vmul.f32 %v3155, %v3097
    %3164 = vrot.lane.b32.xlu0 %v3156, 127
    %v3165 = vpop.permute.xlu0 %3164
    %3166 = vrot.lane.b32.xlu0 %v3157, 127
    %v3167 = vpop.permute.xlu0 %3166
    %3168 = vrot.lane.b32.xlu0 %v3158, 127
    %v3169 = vpop.permute.xlu0 %3168
    %3170 = vrot.lane.b32.xlu0 %v3159, 127
    %v3171 = vpop.permute.xlu0 %3170
    %v3176 = vadd.f32 %v3114, %v3165
    %v3177 = vadd.f32 %v3115, %v3167
    %v3178 = vadd.f32 %v3116, %v3169
    %v3179 = vadd.f32 %v3117, %v3171
    %s3180 = sld [smem:[#allocation3 + $0x62]]
    %v3181 = vstv %s3180
    %v3182 = vmul.f32 %v3181, %v3094
    %v3183 = vmul.f32 %v3181, %v3095
    %v3184 = vmul.f32 %v3181, %v3096
    %v3185 = vmul.f32 %v3181, %v3097
    %3190 = vrot.lane.b32.xlu0 %v3182, 127
    %v3191 = vpop.permute.xlu0 %3190
    %3192 = vrot.lane.b32.xlu0 %v3183, 127
    %v3193 = vpop.permute.xlu0 %3192
    %3194 = vrot.lane.b32.xlu0 %v3184, 127
    %v3195 = vpop.permute.xlu0 %3194
    %3196 = vrot.lane.b32.xlu0 %v3185, 127
    %v3197 = vpop.permute.xlu0 %3196
    %v3202 = vadd.f32 %v3124, %v3191
    %v3203 = vadd.f32 %v3125, %v3193
    %v3204 = vadd.f32 %v3126, %v3195
    %v3205 = vadd.f32 %v3127, %v3197
    %s3206 = sld [smem:[#allocation3 + $0x69]]
    %v3207 = vstv %s3206
    %v3208 = vmul.f32 %v3207, %v3094
    %v3209 = vmul.f32 %v3207, %v3095
    %v3210 = vmul.f32 %v3207, %v3096
    %v3211 = vmul.f32 %v3207, %v3097
    %3216 = vrot.lane.b32.xlu0 %v3208, 126
    %v3217 = vpop.permute.xlu0 %3216
    %3218 = vrot.lane.b32.xlu0 %v3209, 126
    %v3219 = vpop.permute.xlu0 %3218
    %3220 = vrot.lane.b32.xlu0 %v3210, 126
    %v3221 = vpop.permute.xlu0 %3220
    %3222 = vrot.lane.b32.xlu0 %v3211, 126
    %v3223 = vpop.permute.xlu0 %3222
    %v3228 = vadd.f32 %v3150, %v3217
    %v3229 = vadd.f32 %v3151, %v3219
    %v3230 = vadd.f32 %v3152, %v3221
    %v3231 = vadd.f32 %v3153, %v3223
    %s3232 = sld [smem:[#allocation3 + $0x6a]]
    %v3233 = vstv %s3232
    %v3234 = vmul.f32 %v3233, %v3094
    %v3235 = vmul.f32 %v3233, %v3095
    %v3236 = vmul.f32 %v3233, %v3096
    %v3237 = vmul.f32 %v3233, %v3097
    %3242 = vrot.lane.b32.xlu0 %v3234, 126
    %v3243 = vpop.permute.xlu0 %3242
    %3244 = vrot.lane.b32.xlu0 %v3235, 126
    %v3245 = vpop.permute.xlu0 %3244
    %3246 = vrot.lane.b32.xlu0 %v3236, 126
    %v3247 = vpop.permute.xlu0 %3246
    %3248 = vrot.lane.b32.xlu0 %v3237, 126
    %v3249 = vpop.permute.xlu0 %3248
    %v3254 = vadd.f32 %v3176, %v3243
    %v3255 = vadd.f32 %v3177, %v3245
    %v3256 = vadd.f32 %v3178, %v3247
    %v3257 = vadd.f32 %v3179, %v3249
    %s3258 = sld [smem:[#allocation3 + $0x6b]]
    %v3259 = vstv %s3258
    %v3260 = vmul.f32 %v3259, %v3094
    %v3261 = vmul.f32 %v3259, %v3095
    %v3262 = vmul.f32 %v3259, %v3096
    %v3263 = vmul.f32 %v3259, %v3097
    %3268 = vrot.lane.b32.xlu0 %v3260, 126
    %v3269 = vpop.permute.xlu0 %3268
    %3270 = vrot.lane.b32.xlu0 %v3261, 126
    %v3271 = vpop.permute.xlu0 %3270
    %3272 = vrot.lane.b32.xlu0 %v3262, 126
    %v3273 = vpop.permute.xlu0 %3272
    %3274 = vrot.lane.b32.xlu0 %v3263, 126
    %v3275 = vpop.permute.xlu0 %3274
    %v3280 = vadd.f32 %v3202, %v3269
    %v3281 = vadd.f32 %v3203, %v3271
    %v3282 = vadd.f32 %v3204, %v3273
    %v3283 = vadd.f32 %v3205, %v3275
    %v3284 = vld [vmem:[%s131 + $0x1] sm:$0xff]
    %v3285 = vld [vmem:[%s131 + $0x9] sm:$0xff]
    %v3286 = vld [vmem:[%s131 + $0x19] sm:$0xff]
    %v3287 = vld [vmem:[%s131 + $0x21] sm:$0xff]
    %s3288 = sld [smem:[#allocation3 + $0x72]]
    %v3289 = vstv %s3288
    %v3290 = vmul.f32 %v3289, %v3284
    %v3291 = vmul.f32 %v3289, %v3285
    %v3292 = vmul.f32 %v3289, %v3286
    %v3293 = vmul.f32 %v3289, %v3287
    %v3294 = vadd.f32 %v3228, %v3290
    %v3295 = vadd.f32 %v3229, %v3291
    %v3296 = vadd.f32 %v3230, %v3292
    %v3297 = vadd.f32 %v3231, %v3293
    %s3298 = sld [smem:[#allocation3 + $0x73]]
    %v3299 = vstv %s3298
    %v3300 = vmul.f32 %v3299, %v3284
    %v3301 = vmul.f32 %v3299, %v3285
    %v3302 = vmul.f32 %v3299, %v3286
    %v3303 = vmul.f32 %v3299, %v3287
    %v3304 = vadd.f32 %v3254, %v3300
    %v3305 = vadd.f32 %v3255, %v3301
    %v3306 = vadd.f32 %v3256, %v3302
    %v3307 = vadd.f32 %v3257, %v3303
    %s3308 = sld [smem:[#allocation3 + $0x74]]
    %v3309 = vstv %s3308
    %v3310 = vmul.f32 %v3309, %v3284
    %v3311 = vmul.f32 %v3309, %v3285
    %v3312 = vmul.f32 %v3309, %v3286
    %v3313 = vmul.f32 %v3309, %v3287
    %v3314 = vadd.f32 %v3280, %v3310
    %v3315 = vadd.f32 %v3281, %v3311
    %v3316 = vadd.f32 %v3282, %v3312
    %v3317 = vadd.f32 %v3283, %v3313
    %s3318 = sld [smem:[#allocation3 + $0x7b]]
    %v3319 = vstv %s3318
    %v3320 = vmul.f32 %v3319, %v3284
    %v3321 = vmul.f32 %v3319, %v3285
    %v3322 = vmul.f32 %v3319, %v3286
    %v3323 = vmul.f32 %v3319, %v3287
    %3328 = vrot.lane.b32.xlu0 %v3320, 127
    %v3329 = vpop.permute.xlu0 %3328
    %3330 = vrot.lane.b32.xlu0 %v3321, 127
    %v3331 = vpop.permute.xlu0 %3330
    %3332 = vrot.lane.b32.xlu0 %v3322, 127
    %v3333 = vpop.permute.xlu0 %3332
    %3334 = vrot.lane.b32.xlu0 %v3323, 127
    %v3335 = vpop.permute.xlu0 %3334
    %v3340 = vadd.f32 %v3294, %v3329
    %v3341 = vadd.f32 %v3295, %v3331
    %v3342 = vadd.f32 %v3296, %v3333
    %v3343 = vadd.f32 %v3297, %v3335
    %s3344 = sld [smem:[#allocation3 + $0x7c]]
    %v3345 = vstv %s3344
    %v3346 = vmul.f32 %v3345, %v3284
    %v3347 = vmul.f32 %v3345, %v3285
    %v3348 = vmul.f32 %v3345, %v3286
    %v3349 = vmul.f32 %v3345, %v3287
    %3354 = vrot.lane.b32.xlu0 %v3346, 127
    %v3355 = vpop.permute.xlu0 %3354
    %3356 = vrot.lane.b32.xlu0 %v3347, 127
    %v3357 = vpop.permute.xlu0 %3356
    %3358 = vrot.lane.b32.xlu0 %v3348, 127
    %v3359 = vpop.permute.xlu0 %3358
    %3360 = vrot.lane.b32.xlu0 %v3349, 127
    %v3361 = vpop.permute.xlu0 %3360
    %v3366 = vadd.f32 %v3304, %v3355
    %v3367 = vadd.f32 %v3305, %v3357
    %v3368 = vadd.f32 %v3306, %v3359
    %v3369 = vadd.f32 %v3307, %v3361
    %s3370 = sld [smem:[#allocation3 + $0x7d]]
    %v3371 = vstv %s3370
    %v3372 = vmul.f32 %v3371, %v3284
    %v3373 = vmul.f32 %v3371, %v3285
    %v3374 = vmul.f32 %v3371, %v3286
    %v3375 = vmul.f32 %v3371, %v3287
    %3380 = vrot.lane.b32.xlu0 %v3372, 127
    %v3381 = vpop.permute.xlu0 %3380
    %3382 = vrot.lane.b32.xlu0 %v3373, 127
    %v3383 = vpop.permute.xlu0 %3382
    %3384 = vrot.lane.b32.xlu0 %v3374, 127
    %v3385 = vpop.permute.xlu0 %3384
    %3386 = vrot.lane.b32.xlu0 %v3375, 127
    %v3387 = vpop.permute.xlu0 %3386
    %v3392 = vadd.f32 %v3314, %v3381
    %v3393 = vadd.f32 %v3315, %v3383
    %v3394 = vadd.f32 %v3316, %v3385
    %v3395 = vadd.f32 %v3317, %v3387
    %s3396 = sld [smem:[#allocation3 + $0x84]]
    %v3397 = vstv %s3396
    %v3398 = vmul.f32 %v3397, %v3284
    %v3399 = vmul.f32 %v3397, %v3285
    %v3400 = vmul.f32 %v3397, %v3286
    %v3401 = vmul.f32 %v3397, %v3287
    %3406 = vrot.lane.b32.xlu0 %v3398, 126
    %v3407 = vpop.permute.xlu0 %3406
    %3408 = vrot.lane.b32.xlu0 %v3399, 126
    %v3409 = vpop.permute.xlu0 %3408
    %3410 = vrot.lane.b32.xlu0 %v3400, 126
    %v3411 = vpop.permute.xlu0 %3410
    %3412 = vrot.lane.b32.xlu0 %v3401, 126
    %v3413 = vpop.permute.xlu0 %3412
    %v3418 = vadd.f32 %v3340, %v3407
    %v3419 = vadd.f32 %v3341, %v3409
    %v3420 = vadd.f32 %v3342, %v3411
    %v3421 = vadd.f32 %v3343, %v3413
    %s3422 = sld [smem:[#allocation3 + $0x85]]
    %v3423 = vstv %s3422
    %v3424 = vmul.f32 %v3423, %v3284
    %v3425 = vmul.f32 %v3423, %v3285
    %v3426 = vmul.f32 %v3423, %v3286
    %v3427 = vmul.f32 %v3423, %v3287
    %3432 = vrot.lane.b32.xlu0 %v3424, 126
    %v3433 = vpop.permute.xlu0 %3432
    %3434 = vrot.lane.b32.xlu0 %v3425, 126
    %v3435 = vpop.permute.xlu0 %3434
    %3436 = vrot.lane.b32.xlu0 %v3426, 126
    %v3437 = vpop.permute.xlu0 %3436
    %3438 = vrot.lane.b32.xlu0 %v3427, 126
    %v3439 = vpop.permute.xlu0 %3438
    %v3444 = vadd.f32 %v3366, %v3433
    %v3445 = vadd.f32 %v3367, %v3435
    %v3446 = vadd.f32 %v3368, %v3437
    %v3447 = vadd.f32 %v3369, %v3439
    %s3448 = sld [smem:[#allocation3 + $0x86]]
    %v3449 = vstv %s3448
    %v3450 = vmul.f32 %v3449, %v3284
    %v3451 = vmul.f32 %v3449, %v3285
    %v3452 = vmul.f32 %v3449, %v3286
    %v3453 = vmul.f32 %v3449, %v3287
    %3458 = vrot.lane.b32.xlu0 %v3450, 126
    %v3459 = vpop.permute.xlu0 %3458
    %3460 = vrot.lane.b32.xlu0 %v3451, 126
    %v3461 = vpop.permute.xlu0 %3460
    %3462 = vrot.lane.b32.xlu0 %v3452, 126
    %v3463 = vpop.permute.xlu0 %3462
    %3464 = vrot.lane.b32.xlu0 %v3453, 126
    %v3465 = vpop.permute.xlu0 %3464
    %v3470 = vadd.f32 %v3392, %v3459
    %v3471 = vadd.f32 %v3393, %v3461
    %v3472 = vadd.f32 %v3394, %v3463
    %v3473 = vadd.f32 %v3395, %v3465
    %v3474 = vld [vmem:[%s131 + $0x2] sm:$0xff]
    %v3475 = vld [vmem:[%s131 + $0xa] sm:$0xff]
    %v3476 = vld [vmem:[%s131 + $0x1a] sm:$0xff]
    %v3477 = vld [vmem:[%s131 + $0x22] sm:$0xff]
    %s3478 = sld [smem:[#allocation3 + $0x8d]]
    %v3479 = vstv %s3478
    %v3480 = vmul.f32 %v3479, %v3474
    %v3481 = vmul.f32 %v3479, %v3475
    %v3482 = vmul.f32 %v3479, %v3476
    %v3483 = vmul.f32 %v3479, %v3477
    %v3484 = vadd.f32 %v3418, %v3480
    %v3485 = vadd.f32 %v3419, %v3481
    %v3486 = vadd.f32 %v3420, %v3482
    %v3487 = vadd.f32 %v3421, %v3483
    %s3488 = sld [smem:[#allocation3 + $0x8e]]
    %v3489 = vstv %s3488
    %v3490 = vmul.f32 %v3489, %v3474
    %v3491 = vmul.f32 %v3489, %v3475
    %v3492 = vmul.f32 %v3489, %v3476
    %v3493 = vmul.f32 %v3489, %v3477
    %v3494 = vadd.f32 %v3444, %v3490
    %v3495 = vadd.f32 %v3445, %v3491
    %v3496 = vadd.f32 %v3446, %v3492
    %v3497 = vadd.f32 %v3447, %v3493
    %s3498 = sld [smem:[#allocation3 + $0x8f]]
    %v3499 = vstv %s3498
    %v3500 = vmul.f32 %v3499, %v3474
    %v3501 = vmul.f32 %v3499, %v3475
    %v3502 = vmul.f32 %v3499, %v3476
    %v3503 = vmul.f32 %v3499, %v3477
    %v3504 = vadd.f32 %v3470, %v3500
    %v3505 = vadd.f32 %v3471, %v3501
    %v3506 = vadd.f32 %v3472, %v3502
    %v3507 = vadd.f32 %v3473, %v3503
    %s3508 = sld [smem:[#allocation3 + $0x96]]
    %v3509 = vstv %s3508
    %v3510 = vmul.f32 %v3509, %v3474
    %v3511 = vmul.f32 %v3509, %v3475
    %v3512 = vmul.f32 %v3509, %v3476
    %v3513 = vmul.f32 %v3509, %v3477
    %3518 = vrot.lane.b32.xlu0 %v3510, 127
    %v3519 = vpop.permute.xlu0 %3518
    %3520 = vrot.lane.b32.xlu0 %v3511, 127
    %v3521 = vpop.permute.xlu0 %3520
    %3522 = vrot.lane.b32.xlu0 %v3512, 127
    %v3523 = vpop.permute.xlu0 %3522
    %3524 = vrot.lane.b32.xlu0 %v3513, 127
    %v3525 = vpop.permute.xlu0 %3524
    %v3530 = vadd.f32 %v3484, %v3519
    %v3531 = vadd.f32 %v3485, %v3521
    %v3532 = vadd.f32 %v3486, %v3523
    %v3533 = vadd.f32 %v3487, %v3525
    %s3534 = sld [smem:[#allocation3 + $0x97]]
    %v3535 = vstv %s3534
    %v3536 = vmul.f32 %v3535, %v3474
    %v3537 = vmul.f32 %v3535, %v3475
    %v3538 = vmul.f32 %v3535, %v3476
    %v3539 = vmul.f32 %v3535, %v3477
    %3544 = vrot.lane.b32.xlu0 %v3536, 127
    %v3545 = vpop.permute.xlu0 %3544
    %3546 = vrot.lane.b32.xlu0 %v3537, 127
    %v3547 = vpop.permute.xlu0 %3546
    %3548 = vrot.lane.b32.xlu0 %v3538, 127
    %v3549 = vpop.permute.xlu0 %3548
    %3550 = vrot.lane.b32.xlu0 %v3539, 127
    %v3551 = vpop.permute.xlu0 %3550
    %v3556 = vadd.f32 %v3494, %v3545
    %v3557 = vadd.f32 %v3495, %v3547
    %v3558 = vadd.f32 %v3496, %v3549
    %v3559 = vadd.f32 %v3497, %v3551
    %s3560 = sld [smem:[#allocation3 + $0x98]]
    %v3561 = vstv %s3560
    %v3562 = vmul.f32 %v3561, %v3474
    %v3563 = vmul.f32 %v3561, %v3475
    %v3564 = vmul.f32 %v3561, %v3476
    %v3565 = vmul.f32 %v3561, %v3477
    %3570 = vrot.lane.b32.xlu0 %v3562, 127
    %v3571 = vpop.permute.xlu0 %3570
    %3572 = vrot.lane.b32.xlu0 %v3563, 127
    %v3573 = vpop.permute.xlu0 %3572
    %3574 = vrot.lane.b32.xlu0 %v3564, 127
    %v3575 = vpop.permute.xlu0 %3574
    %3576 = vrot.lane.b32.xlu0 %v3565, 127
    %v3577 = vpop.permute.xlu0 %3576
    %v3582 = vadd.f32 %v3504, %v3571
    %v3583 = vadd.f32 %v3505, %v3573
    %v3584 = vadd.f32 %v3506, %v3575
    %v3585 = vadd.f32 %v3507, %v3577
    %s3586 = sld [smem:[#allocation3 + $0x9f]]
    %v3587 = vstv %s3586
    %v3588 = vmul.f32 %v3587, %v3474
    %v3589 = vmul.f32 %v3587, %v3475
    %v3590 = vmul.f32 %v3587, %v3476
    %v3591 = vmul.f32 %v3587, %v3477
    %3596 = vrot.lane.b32.xlu0 %v3588, 126
    %v3597 = vpop.permute.xlu0 %3596
    %3598 = vrot.lane.b32.xlu0 %v3589, 126
    %v3599 = vpop.permute.xlu0 %3598
    %3600 = vrot.lane.b32.xlu0 %v3590, 126
    %v3601 = vpop.permute.xlu0 %3600
    %3602 = vrot.lane.b32.xlu0 %v3591, 126
    %v3603 = vpop.permute.xlu0 %3602
    %v3608 = vadd.f32 %v3530, %v3597
    %v3609 = vadd.f32 %v3531, %v3599
    %v3610 = vadd.f32 %v3532, %v3601
    %v3611 = vadd.f32 %v3533, %v3603
    %s3612 = sld [smem:[#allocation3 + $0xa0]]
    %v3613 = vstv %s3612
    %v3614 = vmul.f32 %v3613, %v3474
    %v3615 = vmul.f32 %v3613, %v3475
    %v3616 = vmul.f32 %v3613, %v3476
    %v3617 = vmul.f32 %v3613, %v3477
    %3622 = vrot.lane.b32.xlu0 %v3614, 126
    %v3623 = vpop.permute.xlu0 %3622
    %3624 = vrot.lane.b32.xlu0 %v3615, 126
    %v3625 = vpop.permute.xlu0 %3624
    %3626 = vrot.lane.b32.xlu0 %v3616, 126
    %v3627 = vpop.permute.xlu0 %3626
    %3628 = vrot.lane.b32.xlu0 %v3617, 126
    %v3629 = vpop.permute.xlu0 %3628
    %v3634 = vadd.f32 %v3556, %v3623
    %v3635 = vadd.f32 %v3557, %v3625
    %v3636 = vadd.f32 %v3558, %v3627
    %v3637 = vadd.f32 %v3559, %v3629
    %s3638 = sld [smem:[#allocation3 + $0xa1]]
    %v3639 = vstv %s3638
    %v3640 = vmul.f32 %v3639, %v3474
    %v3641 = vmul.f32 %v3639, %v3475
    %v3642 = vmul.f32 %v3639, %v3476
    %v3643 = vmul.f32 %v3639, %v3477
    %3648 = vrot.lane.b32.xlu0 %v3640, 126
    %v3649 = vpop.permute.xlu0 %3648
    %3650 = vrot.lane.b32.xlu0 %v3641, 126
    %v3651 = vpop.permute.xlu0 %3650
    %3652 = vrot.lane.b32.xlu0 %v3642, 126
    %v3653 = vpop.permute.xlu0 %3652
    %3654 = vrot.lane.b32.xlu0 %v3643, 126
    %v3655 = vpop.permute.xlu0 %3654
    %v3660 = vadd.f32 %v3582, %v3649
    %v3661 = vadd.f32 %v3583, %v3651
    %v3662 = vadd.f32 %v3584, %v3653
    %v3663 = vadd.f32 %v3585, %v3655
    %v3664 = vmax.f32 %v3608, 0.0
    %v3665 = vmax.f32 %v3609, 0.0
    %v3666 = vmax.f32 %v3610, 0.0
    %v3667 = vmax.f32 %v3611, 0.0
    %v3668 = vmax.f32 %v3634, 0.0
    %v3669 = vmax.f32 %v3635, 0.0
    %v3670 = vmax.f32 %v3636, 0.0
    %v3671 = vmax.f32 %v3637, 0.0
    %v3672 = vmax.f32 %v3660, 0.0
    %v3673 = vmax.f32 %v3661, 0.0
    %v3674 = vmax.f32 %v3662, 0.0
    %v3675 = vmax.f32 %v3663, 0.0
    %3676 = vst.msk [vmem:[#allocation2] sm:$0xff] %vm53, 0.0
    %3677 = vst.msk [vmem:[#allocation2 + $0x8] sm:$0xff] %vm53, 0.0
    %3678 = vst.msk [vmem:[#allocation2 + $0x10] sm:$0x3] %vm56, 0.0
    %3679 = vst.msk [vmem:[#allocation2 + $0x18] sm:$0xff] %vm53, 0.0
    %3680 = vst.msk [vmem:[#allocation2 + $0x20] sm:$0xff] %vm53, 0.0
    %3681 = vst.msk [vmem:[#allocation2 + $0x28] sm:$0x3] %vm56, 0.0
    %3682 = vst.msk [vmem:[#allocation2 + $0x30] sm:$0xff] %vm53, 0.0
    %3683 = vst.msk [vmem:[#allocation2 + $0x38] sm:$0xff] %vm53, 0.0
    %3684 = vst.msk [vmem:[#allocation2 + $0x40] sm:$0x3] %vm56, 0.0
    %3685 = vst.msk [vmem:[#allocation2 + $0x48] sm:$0xff] %vm53, 0.0
    %3686 = vst.msk [vmem:[#allocation2 + $0x50] sm:$0xff] %vm53, 0.0
    %3687 = vst.msk [vmem:[#allocation2 + $0x58] sm:$0x3] %vm56, 0.0
    %3688 = vst.msk [vmem:[#allocation2 + $0x60] sm:$0xff] %vm53, 0.0
    %3689 = vst.msk [vmem:[#allocation2 + $0x68] sm:$0xff] %vm53, 0.0
    %3690 = vst.msk [vmem:[#allocation2 + $0x70] sm:$0x3] %vm56, 0.0
    %3691 = vst.msk [vmem:[#allocation2 + $0x78] sm:$0xff] %vm53, 0.0
    %3692 = vst.msk [vmem:[#allocation2 + $0x80] sm:$0xff] %vm53, 0.0
    %3693 = vst.msk [vmem:[#allocation2 + $0x88] sm:$0x3] %vm56, 0.0
    %3698 = vrot.lane.b32.xlu0 %v3664, 1
    %v3699 = vpop.permute.xlu0 %3698
    %3700 = vrot.lane.b32.xlu0 %v3665, 1
    %v3701 = vpop.permute.xlu0 %3700
    %3702 = vrot.lane.b32.xlu0 %v3666, 1
    %v3703 = vpop.permute.xlu0 %3702
    %3704 = vrot.lane.b32.xlu0 %v3667, 1
    %v3705 = vpop.permute.xlu0 %3704
    %3710 = vst.msk [vmem:[#allocation2 + $0x1] sm:$0xff] %vm89, %v3699
    %3711 = vst.msk [vmem:[#allocation2 + $0x9] sm:$0xff] %vm89, %v3701
    %3712 = vst.msk [vmem:[#allocation2 + $0x19] sm:$0xff] %vm89, %v3703
    %3713 = vst.msk [vmem:[#allocation2 + $0x21] sm:$0xff] %vm89, %v3705
    %3718 = vrot.lane.b32.xlu0 %v3668, 1
    %v3719 = vpop.permute.xlu0 %3718
    %3720 = vrot.lane.b32.xlu0 %v3669, 1
    %v3721 = vpop.permute.xlu0 %3720
    %3722 = vrot.lane.b32.xlu0 %v3670, 1
    %v3723 = vpop.permute.xlu0 %3722
    %3724 = vrot.lane.b32.xlu0 %v3671, 1
    %v3725 = vpop.permute.xlu0 %3724
    %3730 = vst.msk [vmem:[%s110 + $0x1] sm:$0xff] %vm89, %v3719
    %3731 = vst.msk [vmem:[%s110 + $0x9] sm:$0xff] %vm89, %v3721
    %3732 = vst.msk [vmem:[%s110 + $0x19] sm:$0xff] %vm89, %v3723
    %3733 = vst.msk [vmem:[%s110 + $0x21] sm:$0xff] %vm89, %v3725
    %3738 = vrot.lane.b32.xlu0 %v3672, 1
    %v3739 = vpop.permute.xlu0 %3738
    %3740 = vrot.lane.b32.xlu0 %v3673, 1
    %v3741 = vpop.permute.xlu0 %3740
    %3742 = vrot.lane.b32.xlu0 %v3674, 1
    %v3743 = vpop.permute.xlu0 %3742
    %3744 = vrot.lane.b32.xlu0 %v3675, 1
    %v3745 = vpop.permute.xlu0 %3744
    %3750 = vst.msk [vmem:[%s131 + $0x1] sm:$0xff] %vm89, %v3739
    %3751 = vst.msk [vmem:[%s131 + $0x9] sm:$0xff] %vm89, %v3741
    %3752 = vst.msk [vmem:[%s131 + $0x19] sm:$0xff] %vm89, %v3743
    %3753 = vst.msk [vmem:[%s131 + $0x21] sm:$0xff] %vm89, %v3745
    %s3754 = sld [smem:[#allocation5 + $0x6]]
    %v3755 = vstv %s3754
    %v3756 = vadd.f32 %v3755, 0.0
    %s3757 = sld [smem:[#allocation5 + $0x7]]
    %v3758 = vstv %s3757
    %v3759 = vadd.f32 %v3758, 0.0
    %s3760 = sld [smem:[#allocation5 + $0x8]]
    %v3761 = vstv %s3760
    %v3762 = vadd.f32 %v3761, 0.0
    %v3763 = vld [vmem:[#allocation2] sm:$0xff]
    %v3764 = vld [vmem:[#allocation2 + $0x8] sm:$0xff]
    %v3765 = vld [vmem:[#allocation2 + $0x18] sm:$0xff]
    %v3766 = vld [vmem:[#allocation2 + $0x20] sm:$0xff]
    %s3767 = sld [smem:[#allocation3 + $0xa2]]
    %v3768 = vstv %s3767
    %v3769 = vmul.f32 %v3768, %v3763
    %v3770 = vmul.f32 %v3768, %v3764
    %v3771 = vmul.f32 %v3768, %v3765
    %v3772 = vmul.f32 %v3768, %v3766
    %v3773 = vadd.f32 %v3756, %v3769
    %v3774 = vadd.f32 %v3756, %v3770
    %v3775 = vadd.f32 %v3756, %v3771
    %v3776 = vadd.f32 %v3756, %v3772
    %s3777 = sld [smem:[#allocation3 + $0xa3]]
    %v3778 = vstv %s3777
    %v3779 = vmul.f32 %v3778, %v3763
    %v3780 = vmul.f32 %v3778, %v3764
    %v3781 = vmul.f32 %v3778, %v3765
    %v3782 = vmul.f32 %v3778, %v3766
    %v3783 = vadd.f32 %v3759, %v3779
    %v3784 = vadd.f32 %v3759, %v3780
    %v3785 = vadd.f32 %v3759, %v3781
    %v3786 = vadd.f32 %v3759, %v3782
    %s3787 = sld [smem:[#allocation3 + $0xa4]]
    %v3788 = vstv %s3787
    %v3789 = vmul.f32 %v3788, %v3763
    %v3790 = vmul.f32 %v3788, %v3764
    %v3791 = vmul.f32 %v3788, %v3765
    %v3792 = vmul.f32 %v3788, %v3766
    %v3793 = vadd.f32 %v3762, %v3789
    %v3794 = vadd.f32 %v3762, %v3790
    %v3795 = vadd.f32 %v3762, %v3791
    %v3796 = vadd.f32 %v3762, %v3792
    %s3797 = sld [smem:[#allocation3 + $0xab]]
    %v3798 = vstv %s3797
    %v3799 = vmul.f32 %v3798, %v3763
    %v3800 = vmul.f32 %v3798, %v3764
    %v3801 = vmul.f32 %v3798, %v3765
    %v3802 = vmul.f32 %v3798, %v3766
    %3807 = vrot.lane.b32.xlu0 %v3799, 127
    %v3808 = vpop.permute.xlu0 %3807
    %3809 = vrot.lane.b32.xlu0 %v3800, 127
    %v3810 = vpop.permute.xlu0 %3809
    %3811 = vrot.lane.b32.xlu0 %v3801, 127
    %v3812 = vpop.permute.xlu0 %3811
    %3813 = vrot.lane.b32.xlu0 %v3802, 127
    %v3814 = vpop.permute.xlu0 %3813
    %v3819 = vadd.f32 %v3773, %v3808
    %v3820 = vadd.f32 %v3774, %v3810
    %v3821 = vadd.f32 %v3775, %v3812
    %v3822 = vadd.f32 %v3776, %v3814
    %s3823 = sld [smem:[#allocation3 + $0xac]]
    %v3824 = vstv %s3823
    %v3825 = vmul.f32 %v3824, %v3763
    %v3826 = vmul.f32 %v3824, %v3764
    %v3827 = vmul.f32 %v3824, %v3765
    %v3828 = vmul.f32 %v3824, %v3766
    %3833 = vrot.lane.b32.xlu0 %v3825, 127
    %v3834 = vpop.permute.xlu0 %3833
    %3835 = vrot.lane.b32.xlu0 %v3826, 127
    %v3836 = vpop.permute.xlu0 %3835
    %3837 = vrot.lane.b32.xlu0 %v3827, 127
    %v3838 = vpop.permute.xlu0 %3837
    %3839 = vrot.lane.b32.xlu0 %v3828, 127
    %v3840 = vpop.permute.xlu0 %3839
    %v3845 = vadd.f32 %v3783, %v3834
    %v3846 = vadd.f32 %v3784, %v3836
    %v3847 = vadd.f32 %v3785, %v3838
    %v3848 = vadd.f32 %v3786, %v3840
    %s3849 = sld [smem:[#allocation3 + $0xad]]
    %v3850 = vstv %s3849
    %v3851 = vmul.f32 %v3850, %v3763
    %v3852 = vmul.f32 %v3850, %v3764
    %v3853 = vmul.f32 %v3850, %v3765
    %v3854 = vmul.f32 %v3850, %v3766
    %3859 = vrot.lane.b32.xlu0 %v3851, 127
    %v3860 = vpop.permute.xlu0 %3859
    %3861 = vrot.lane.b32.xlu0 %v3852, 127
    %v3862 = vpop.permute.xlu0 %3861
    %3863 = vrot.lane.b32.xlu0 %v3853, 127
    %v3864 = vpop.permute.xlu0 %3863
    %3865 = vrot.lane.b32.xlu0 %v3854, 127
    %v3866 = vpop.permute.xlu0 %3865
    %v3871 = vadd.f32 %v3793, %v3860
    %v3872 = vadd.f32 %v3794, %v3862
    %v3873 = vadd.f32 %v3795, %v3864
    %v3874 = vadd.f32 %v3796, %v3866
    %s3875 = sld [smem:[#allocation3 + $0xb4]]
    %v3876 = vstv %s3875
    %v3877 = vmul.f32 %v3876, %v3763
    %v3878 = vmul.f32 %v3876, %v3764
    %v3879 = vmul.f32 %v3876, %v3765
    %v3880 = vmul.f32 %v3876, %v3766
    %3885 = vrot.lane.b32.xlu0 %v3877, 126
    %v3886 = vpop.permute.xlu0 %3885
    %3887 = vrot.lane.b32.xlu0 %v3878, 126
    %v3888 = vpop.permute.xlu0 %3887
    %3889 = vrot.lane.b32.xlu0 %v3879, 126
    %v3890 = vpop.permute.xlu0 %3889
    %3891 = vrot.lane.b32.xlu0 %v3880, 126
    %v3892 = vpop.permute.xlu0 %3891
    %v3897 = vadd.f32 %v3819, %v3886
    %v3898 = vadd.f32 %v3820, %v3888
    %v3899 = vadd.f32 %v3821, %v3890
    %v3900 = vadd.f32 %v3822, %v3892
    %s3901 = sld [smem:[#allocation3 + $0xb5]]
    %v3902 = vstv %s3901
    %v3903 = vmul.f32 %v3902, %v3763
    %v3904 = vmul.f32 %v3902, %v3764
    %v3905 = vmul.f32 %v3902, %v3765
    %v3906 = vmul.f32 %v3902, %v3766
    %3911 = vrot.lane.b32.xlu0 %v3903, 126
    %v3912 = vpop.permute.xlu0 %3911
    %3913 = vrot.lane.b32.xlu0 %v3904, 126
    %v3914 = vpop.permute.xlu0 %3913
    %3915 = vrot.lane.b32.xlu0 %v3905, 126
    %v3916 = vpop.permute.xlu0 %3915
    %3917 = vrot.lane.b32.xlu0 %v3906, 126
    %v3918 = vpop.permute.xlu0 %3917
    %v3923 = vadd.f32 %v3845, %v3912
    %v3924 = vadd.f32 %v3846, %v3914
    %v3925 = vadd.f32 %v3847, %v3916
    %v3926 = vadd.f32 %v3848, %v3918
    %s3927 = sld [smem:[#allocation3 + $0xb6]]
    %v3928 = vstv %s3927
    %v3929 = vmul.f32 %v3928, %v3763
    %v3930 = vmul.f32 %v3928, %v3764
    %v3931 = vmul.f32 %v3928, %v3765
    %v3932 = vmul.f32 %v3928, %v3766
    %3937 = vrot.lane.b32.xlu0 %v3929, 126
    %v3938 = vpop.permute.xlu0 %3937
    %3939 = vrot.lane.b32.xlu0 %v3930, 126
    %v3940 = vpop.permute.xlu0 %3939
    %3941 = vrot.lane.b32.xlu0 %v3931, 126
    %v3942 = vpop.permute.xlu0 %3941
    %3943 = vrot.lane.b32.xlu0 %v3932, 126
    %v3944 = vpop.permute.xlu0 %3943
    %v3949 = vadd.f32 %v3871, %v3938
    %v3950 = vadd.f32 %v3872, %v3940
    %v3951 = vadd.f32 %v3873, %v3942
    %v3952 = vadd.f32 %v3874, %v3944
    %v3953 = vld [vmem:[#allocation2 + $0x1] sm:$0xff]
    %v3954 = vld [vmem:[#allocation2 + $0x9] sm:$0xff]
    %v3955 = vld [vmem:[#allocation2 + $0x19] sm:$0xff]
    %v3956 = vld [vmem:[#allocation2 + $0x21] sm:$0xff]
    %s3957 = sld [smem:[#allocation3 + $0xbd]]
    %v3958 = vstv %s3957
    %v3959 = vmul.f32 %v3958, %v3953
    %v3960 = vmul.f32 %v3958, %v3954
    %v3961 = vmul.f32 %v3958, %v3955
    %v3962 = vmul.f32 %v3958, %v3956
    %v3963 = vadd.f32 %v3897, %v3959
    %v3964 = vadd.f32 %v3898, %v3960
    %v3965 = vadd.f32 %v3899, %v3961
    %v3966 = vadd.f32 %v3900, %v3962
    %s3967 = sld [smem:[#allocation3 + $0xbe]]
    %v3968 = vstv %s3967
    %v3969 = vmul.f32 %v3968, %v3953
    %v3970 = vmul.f32 %v3968, %v3954
    %v3971 = vmul.f32 %v3968, %v3955
    %v3972 = vmul.f32 %v3968, %v3956
    %v3973 = vadd.f32 %v3923, %v3969
    %v3974 = vadd.f32 %v3924, %v3970
    %v3975 = vadd.f32 %v3925, %v3971
    %v3976 = vadd.f32 %v3926, %v3972
    %s3977 = sld [smem:[#allocation3 + $0xbf]]
    %v3978 = vstv %s3977
    %v3979 = vmul.f32 %v3978, %v3953
    %v3980 = vmul.f32 %v3978, %v3954
    %v3981 = vmul.f32 %v3978, %v3955
    %v3982 = vmul.f32 %v3978, %v3956
    %v3983 = vadd.f32 %v3949, %v3979
    %v3984 = vadd.f32 %v3950, %v3980
    %v3985 = vadd.f32 %v3951, %v3981
    %v3986 = vadd.f32 %v3952, %v3982
    %s3987 = sld [smem:[#allocation3 + $0xc6]]
    %v3988 = vstv %s3987
    %v3989 = vmul.f32 %v3988, %v3953
    %v3990 = vmul.f32 %v3988, %v3954
    %v3991 = vmul.f32 %v3988, %v3955
    %v3992 = vmul.f32 %v3988, %v3956
    %3997 = vrot.lane.b32.xlu0 %v3989, 127
    %v3998 = vpop.permute.xlu0 %3997
    %3999 = vrot.lane.b32.xlu0 %v3990, 127
    %v4000 = vpop.permute.xlu0 %3999
    %4001 = vrot.lane.b32.xlu0 %v3991, 127
    %v4002 = vpop.permute.xlu0 %4001
    %4003 = vrot.lane.b32.xlu0 %v3992, 127
    %v4004 = vpop.permute.xlu0 %4003
    %v4009 = vadd.f32 %v3963, %v3998
    %v4010 = vadd.f32 %v3964, %v4000
    %v4011 = vadd.f32 %v3965, %v4002
    %v4012 = vadd.f32 %v3966, %v4004
    %s4013 = sld [smem:[#allocation3 + $0xc7]]
    %v4014 = vstv %s4013
    %v4015 = vmul.f32 %v4014, %v3953
    %v4016 = vmul.f32 %v4014, %v3954
    %v4017 = vmul.f32 %v4014, %v3955
    %v4018 = vmul.f32 %v4014, %v3956
    %4023 = vrot.lane.b32.xlu0 %v4015, 127
    %v4024 = vpop.permute.xlu0 %4023
    %4025 = vrot.lane.b32.xlu0 %v4016, 127
    %v4026 = vpop.permute.xlu0 %4025
    %4027 = vrot.lane.b32.xlu0 %v4017, 127
    %v4028 = vpop.permute.xlu0 %4027
    %4029 = vrot.lane.b32.xlu0 %v4018, 127
    %v4030 = vpop.permute.xlu0 %4029
    %v4035 = vadd.f32 %v3973, %v4024
    %v4036 = vadd.f32 %v3974, %v4026
    %v4037 = vadd.f32 %v3975, %v4028
    %v4038 = vadd.f32 %v3976, %v4030
    %s4039 = sld [smem:[#allocation3 + $0xc8]]
    %v4040 = vstv %s4039
    %v4041 = vmul.f32 %v4040, %v3953
    %v4042 = vmul.f32 %v4040, %v3954
    %v4043 = vmul.f32 %v4040, %v3955
    %v4044 = vmul.f32 %v4040, %v3956
    %4049 = vrot.lane.b32.xlu0 %v4041, 127
    %v4050 = vpop.permute.xlu0 %4049
    %4051 = vrot.lane.b32.xlu0 %v4042, 127
    %v4052 = vpop.permute.xlu0 %4051
    %4053 = vrot.lane.b32.xlu0 %v4043, 127
    %v4054 = vpop.permute.xlu0 %4053
    %4055 = vrot.lane.b32.xlu0 %v4044, 127
    %v4056 = vpop.permute.xlu0 %4055
    %v4061 = vadd.f32 %v3983, %v4050
    %v4062 = vadd.f32 %v3984, %v4052
    %v4063 = vadd.f32 %v3985, %v4054
    %v4064 = vadd.f32 %v3986, %v4056
    %s4065 = sld [smem:[#allocation3 + $0xcf]]
    %v4066 = vstv %s4065
    %v4067 = vmul.f32 %v4066, %v3953
    %v4068 = vmul.f32 %v4066, %v3954
    %v4069 = vmul.f32 %v4066, %v3955
    %v4070 = vmul.f32 %v4066, %v3956
    %4075 = vrot.lane.b32.xlu0 %v4067, 126
    %v4076 = vpop.permute.xlu0 %4075
    %4077 = vrot.lane.b32.xlu0 %v4068, 126
    %v4078 = vpop.permute.xlu0 %4077
    %4079 = vrot.lane.b32.xlu0 %v4069, 126
    %v4080 = vpop.permute.xlu0 %4079
    %4081 = vrot.lane.b32.xlu0 %v4070, 126
    %v4082 = vpop.permute.xlu0 %4081
    %v4087 = vadd.f32 %v4009, %v4076
    %v4088 = vadd.f32 %v4010, %v4078
    %v4089 = vadd.f32 %v4011, %v4080
    %v4090 = vadd.f32 %v4012, %v4082
    %s4091 = sld [smem:[#allocation3 + $0xd0]]
    %v4092 = vstv %s4091
    %v4093 = vmul.f32 %v4092, %v3953
    %v4094 = vmul.f32 %v4092, %v3954
    %v4095 = vmul.f32 %v4092, %v3955
    %v4096 = vmul.f32 %v4092, %v3956
    %4101 = vrot.lane.b32.xlu0 %v4093, 126
    %v4102 = vpop.permute.xlu0 %4101
    %4103 = vrot.lane.b32.xlu0 %v4094, 126
    %v4104 = vpop.permute.xlu0 %4103
    %4105 = vrot.lane.b32.xlu0 %v4095, 126
    %v4106 = vpop.permute.xlu0 %4105
    %4107 = vrot.lane.b32.xlu0 %v4096, 126
    %v4108 = vpop.permute.xlu0 %4107
    %v4113 = vadd.f32 %v4035, %v4102
    %v4114 = vadd.f32 %v4036, %v4104
    %v4115 = vadd.f32 %v4037, %v4106
    %v4116 = vadd.f32 %v4038, %v4108
    %s4117 = sld [smem:[#allocation3 + $0xd1]]
    %v4118 = vstv %s4117
    %v4119 = vmul.f32 %v4118, %v3953
    %v4120 = vmul.f32 %v4118, %v3954
    %v4121 = vmul.f32 %v4118, %v3955
    %v4122 = vmul.f32 %v4118, %v3956
    %4127 = vrot.lane.b32.xlu0 %v4119, 126
    %v4128 = vpop.permute.xlu0 %4127
    %4129 = vrot.lane.b32.xlu0 %v4120, 126
    %v4130 = vpop.permute.xlu0 %4129
    %4131 = vrot.lane.b32.xlu0 %v4121, 126
    %v4132 = vpop.permute.xlu0 %4131
    %4133 = vrot.lane.b32.xlu0 %v4122, 126
    %v4134 = vpop.permute.xlu0 %4133
    %v4139 = vadd.f32 %v4061, %v4128
    %v4140 = vadd.f32 %v4062, %v4130
    %v4141 = vadd.f32 %v4063, %v4132
    %v4142 = vadd.f32 %v4064, %v4134
    %v4143 = vld [vmem:[#allocation2 + $0x2] sm:$0xff]
    %v4144 = vld [vmem:[#allocation2 + $0xa] sm:$0xff]
    %v4145 = vld [vmem:[#allocation2 + $0x1a] sm:$0xff]
    %v4146 = vld [vmem:[#allocation2 + $0x22] sm:$0xff]
    %s4147 = sld [smem:[#allocation3 + $0xd8]]
    %v4148 = vstv %s4147
    %v4149 = vmul.f32 %v4148, %v4143
    %v4150 = vmul.f32 %v4148, %v4144
    %v4151 = vmul.f32 %v4148, %v4145
    %v4152 = vmul.f32 %v4148, %v4146
    %v4153 = vadd.f32 %v4087, %v4149
    %v4154 = vadd.f32 %v4088, %v4150
    %v4155 = vadd.f32 %v4089, %v4151
    %v4156 = vadd.f32 %v4090, %v4152
    %s4157 = sld [smem:[#allocation3 + $0xd9]]
    %v4158 = vstv %s4157
    %v4159 = vmul.f32 %v4158, %v4143
    %v4160 = vmul.f32 %v4158, %v4144
    %v4161 = vmul.f32 %v4158, %v4145
    %v4162 = vmul.f32 %v4158, %v4146
    %v4163 = vadd.f32 %v4113, %v4159
    %v4164 = vadd.f32 %v4114, %v4160
    %v4165 = vadd.f32 %v4115, %v4161
    %v4166 = vadd.f32 %v4116, %v4162
    %s4167 = sld [smem:[#allocation3 + $0xda]]
    %v4168 = vstv %s4167
    %v4169 = vmul.f32 %v4168, %v4143
    %v4170 = vmul.f32 %v4168, %v4144
    %v4171 = vmul.f32 %v4168, %v4145
    %v4172 = vmul.f32 %v4168, %v4146
    %v4173 = vadd.f32 %v4139, %v4169
    %v4174 = vadd.f32 %v4140, %v4170
    %v4175 = vadd.f32 %v4141, %v4171
    %v4176 = vadd.f32 %v4142, %v4172
    %s4177 = sld [smem:[#allocation3 + $0xe1]]
    %v4178 = vstv %s4177
    %v4179 = vmul.f32 %v4178, %v4143
    %v4180 = vmul.f32 %v4178, %v4144
    %v4181 = vmul.f32 %v4178, %v4145
    %v4182 = vmul.f32 %v4178, %v4146
    %4187 = vrot.lane.b32.xlu0 %v4179, 127
    %v4188 = vpop.permute.xlu0 %4187
    %4189 = vrot.lane.b32.xlu0 %v4180, 127
    %v4190 = vpop.permute.xlu0 %4189
    %4191 = vrot.lane.b32.xlu0 %v4181, 127
    %v4192 = vpop.permute.xlu0 %4191
    %4193 = vrot.lane.b32.xlu0 %v4182, 127
    %v4194 = vpop.permute.xlu0 %4193
    %v4199 = vadd.f32 %v4153, %v4188
    %v4200 = vadd.f32 %v4154, %v4190
    %v4201 = vadd.f32 %v4155, %v4192
    %v4202 = vadd.f32 %v4156, %v4194
    %s4203 = sld [smem:[#allocation3 + $0xe2]]
    %v4204 = vstv %s4203
    %v4205 = vmul.f32 %v4204, %v4143
    %v4206 = vmul.f32 %v4204, %v4144
    %v4207 = vmul.f32 %v4204, %v4145
    %v4208 = vmul.f32 %v4204, %v4146
    %4213 = vrot.lane.b32.xlu0 %v4205, 127
    %v4214 = vpop.permute.xlu0 %4213
    %4215 = vrot.lane.b32.xlu0 %v4206, 127
    %v4216 = vpop.permute.xlu0 %4215
    %4217 = vrot.lane.b32.xlu0 %v4207, 127
    %v4218 = vpop.permute.xlu0 %4217
    %4219 = vrot.lane.b32.xlu0 %v4208, 127
    %v4220 = vpop.permute.xlu0 %4219
    %v4225 = vadd.f32 %v4163, %v4214
    %v4226 = vadd.f32 %v4164, %v4216
    %v4227 = vadd.f32 %v4165, %v4218
    %v4228 = vadd.f32 %v4166, %v4220
    %s4229 = sld [smem:[#allocation3 + $0xe3]]
    %v4230 = vstv %s4229
    %v4231 = vmul.f32 %v4230, %v4143
    %v4232 = vmul.f32 %v4230, %v4144
    %v4233 = vmul.f32 %v4230, %v4145
    %v4234 = vmul.f32 %v4230, %v4146
    %4239 = vrot.lane.b32.xlu0 %v4231, 127
    %v4240 = vpop.permute.xlu0 %4239
    %4241 = vrot.lane.b32.xlu0 %v4232, 127
    %v4242 = vpop.permute.xlu0 %4241
    %4243 = vrot.lane.b32.xlu0 %v4233, 127
    %v4244 = vpop.permute.xlu0 %4243
    %4245 = vrot.lane.b32.xlu0 %v4234, 127
    %v4246 = vpop.permute.xlu0 %4245
    %v4251 = vadd.f32 %v4173, %v4240
    %v4252 = vadd.f32 %v4174, %v4242
    %v4253 = vadd.f32 %v4175, %v4244
    %v4254 = vadd.f32 %v4176, %v4246
    %s4255 = sld [smem:[#allocation3 + $0xea]]
    %v4256 = vstv %s4255
    %v4257 = vmul.f32 %v4256, %v4143
    %v4258 = vmul.f32 %v4256, %v4144
    %v4259 = vmul.f32 %v4256, %v4145
    %v4260 = vmul.f32 %v4256, %v4146
    %4265 = vrot.lane.b32.xlu0 %v4257, 126
    %v4266 = vpop.permute.xlu0 %4265
    %4267 = vrot.lane.b32.xlu0 %v4258, 126
    %v4268 = vpop.permute.xlu0 %4267
    %4269 = vrot.lane.b32.xlu0 %v4259, 126
    %v4270 = vpop.permute.xlu0 %4269
    %4271 = vrot.lane.b32.xlu0 %v4260, 126
    %v4272 = vpop.permute.xlu0 %4271
    %v4277 = vadd.f32 %v4199, %v4266
    %v4278 = vadd.f32 %v4200, %v4268
    %v4279 = vadd.f32 %v4201, %v4270
    %v4280 = vadd.f32 %v4202, %v4272
    %s4281 = sld [smem:[#allocation3 + $0xeb]]
    %v4282 = vstv %s4281
    %v4283 = vmul.f32 %v4282, %v4143
    %v4284 = vmul.f32 %v4282, %v4144
    %v4285 = vmul.f32 %v4282, %v4145
    %v4286 = vmul.f32 %v4282, %v4146
    %4291 = vrot.lane.b32.xlu0 %v4283, 126
    %v4292 = vpop.permute.xlu0 %4291
    %4293 = vrot.lane.b32.xlu0 %v4284, 126
    %v4294 = vpop.permute.xlu0 %4293
    %4295 = vrot.lane.b32.xlu0 %v4285, 126
    %v4296 = vpop.permute.xlu0 %4295
    %4297 = vrot.lane.b32.xlu0 %v4286, 126
    %v4298 = vpop.permute.xlu0 %4297
    %v4303 = vadd.f32 %v4225, %v4292
    %v4304 = vadd.f32 %v4226, %v4294
    %v4305 = vadd.f32 %v4227, %v4296
    %v4306 = vadd.f32 %v4228, %v4298
    %s4307 = sld [smem:[#allocation3 + $0xec]]
    %v4308 = vstv %s4307
    %v4309 = vmul.f32 %v4308, %v4143
    %v4310 = vmul.f32 %v4308, %v4144
    %v4311 = vmul.f32 %v4308, %v4145
    %v4312 = vmul.f32 %v4308, %v4146
    %4317 = vrot.lane.b32.xlu0 %v4309, 126
    %v4318 = vpop.permute.xlu0 %4317
    %4319 = vrot.lane.b32.xlu0 %v4310, 126
    %v4320 = vpop.permute.xlu0 %4319
    %4321 = vrot.lane.b32.xlu0 %v4311, 126
    %v4322 = vpop.permute.xlu0 %4321
    %4323 = vrot.lane.b32.xlu0 %v4312, 126
    %v4324 = vpop.permute.xlu0 %4323
    %v4329 = vadd.f32 %v4251, %v4318
    %v4330 = vadd.f32 %v4252, %v4320
    %v4331 = vadd.f32 %v4253, %v4322
    %v4332 = vadd.f32 %v4254, %v4324
    %v4333 = vld [vmem:[%s110] sm:$0xff]
    %v4334 = vld [vmem:[%s110 + $0x8] sm:$0xff]
    %v4335 = vld [vmem:[%s110 + $0x18] sm:$0xff]
    %v4336 = vld [vmem:[%s110 + $0x20] sm:$0xff]
    %s4337 = sld [smem:[#allocation3 + $0xa5]]
    %v4338 = vstv %s4337
    %v4339 = vmul.f32 %v4338, %v4333
    %v4340 = vmul.f32 %v4338, %v4334
    %v4341 = vmul.f32 %v4338, %v4335
    %v4342 = vmul.f32 %v4338, %v4336
    %v4343 = vadd.f32 %v4277, %v4339
    %v4344 = vadd.f32 %v4278, %v4340
    %v4345 = vadd.f32 %v4279, %v4341
    %v4346 = vadd.f32 %v4280, %v4342
    %s4347 = sld [smem:[#allocation3 + $0xa6]]
    %v4348 = vstv %s4347
    %v4349 = vmul.f32 %v4348, %v4333
    %v4350 = vmul.f32 %v4348, %v4334
    %v4351 = vmul.f32 %v4348, %v4335
    %v4352 = vmul.f32 %v4348, %v4336
    %v4353 = vadd.f32 %v4303, %v4349
    %v4354 = vadd.f32 %v4304, %v4350
    %v4355 = vadd.f32 %v4305, %v4351
    %v4356 = vadd.f32 %v4306, %v4352
    %s4357 = sld [smem:[#allocation3 + $0xa7]]
    %v4358 = vstv %s4357
    %v4359 = vmul.f32 %v4358, %v4333
    %v4360 = vmul.f32 %v4358, %v4334
    %v4361 = vmul.f32 %v4358, %v4335
    %v4362 = vmul.f32 %v4358, %v4336
    %v4363 = vadd.f32 %v4329, %v4359
    %v4364 = vadd.f32 %v4330, %v4360
    %v4365 = vadd.f32 %v4331, %v4361
    %v4366 = vadd.f32 %v4332, %v4362
    %s4367 = sld [smem:[#allocation3 + $0xae]]
    %v4368 = vstv %s4367
    %v4369 = vmul.f32 %v4368, %v4333
    %v4370 = vmul.f32 %v4368, %v4334
    %v4371 = vmul.f32 %v4368, %v4335
    %v4372 = vmul.f32 %v4368, %v4336
    %4377 = vrot.lane.b32.xlu0 %v4369, 127
    %v4378 = vpop.permute.xlu0 %4377
    %4379 = vrot.lane.b32.xlu0 %v4370, 127
    %v4380 = vpop.permute.xlu0 %4379
    %4381 = vrot.lane.b32.xlu0 %v4371, 127
    %v4382 = vpop.permute.xlu0 %4381
    %4383 = vrot.lane.b32.xlu0 %v4372, 127
    %v4384 = vpop.permute.xlu0 %4383
    %v4389 = vadd.f32 %v4343, %v4378
    %v4390 = vadd.f32 %v4344, %v4380
    %v4391 = vadd.f32 %v4345, %v4382
    %v4392 = vadd.f32 %v4346, %v4384
    %s4393 = sld [smem:[#allocation3 + $0xaf]]
    %v4394 = vstv %s4393
    %v4395 = vmul.f32 %v4394, %v4333
    %v4396 = vmul.f32 %v4394, %v4334
    %v4397 = vmul.f32 %v4394, %v4335
    %v4398 = vmul.f32 %v4394, %v4336
    %4403 = vrot.lane.b32.xlu0 %v4395, 127
    %v4404 = vpop.permute.xlu0 %4403
    %4405 = vrot.lane.b32.xlu0 %v4396, 127
    %v4406 = vpop.permute.xlu0 %4405
    %4407 = vrot.lane.b32.xlu0 %v4397, 127
    %v4408 = vpop.permute.xlu0 %4407
    %4409 = vrot.lane.b32.xlu0 %v4398, 127
    %v4410 = vpop.permute.xlu0 %4409
    %v4415 = vadd.f32 %v4353, %v4404
    %v4416 = vadd.f32 %v4354, %v4406
    %v4417 = vadd.f32 %v4355, %v4408
    %v4418 = vadd.f32 %v4356, %v4410
    %s4419 = sld [smem:[#allocation3 + $0xb0]]
    %v4420 = vstv %s4419
    %v4421 = vmul.f32 %v4420, %v4333
    %v4422 = vmul.f32 %v4420, %v4334
    %v4423 = vmul.f32 %v4420, %v4335
    %v4424 = vmul.f32 %v4420, %v4336
    %4429 = vrot.lane.b32.xlu0 %v4421, 127
    %v4430 = vpop.permute.xlu0 %4429
    %4431 = vrot.lane.b32.xlu0 %v4422, 127
    %v4432 = vpop.permute.xlu0 %4431
    %4433 = vrot.lane.b32.xlu0 %v4423, 127
    %v4434 = vpop.permute.xlu0 %4433
    %4435 = vrot.lane.b32.xlu0 %v4424, 127
    %v4436 = vpop.permute.xlu0 %4435
    %v4441 = vadd.f32 %v4363, %v4430
    %v4442 = vadd.f32 %v4364, %v4432
    %v4443 = vadd.f32 %v4365, %v4434
    %v4444 = vadd.f32 %v4366, %v4436
    %s4445 = sld [smem:[#allocation3 + $0xb7]]
    %v4446 = vstv %s4445
    %v4447 = vmul.f32 %v4446, %v4333
    %v4448 = vmul.f32 %v4446, %v4334
    %v4449 = vmul.f32 %v4446, %v4335
    %v4450 = vmul.f32 %v4446, %v4336
    %4455 = vrot.lane.b32.xlu0 %v4447, 126
    %v4456 = vpop.permute.xlu0 %4455
    %4457 = vrot.lane.b32.xlu0 %v4448, 126
    %v4458 = vpop.permute.xlu0 %4457
    %4459 = vrot.lane.b32.xlu0 %v4449, 126
    %v4460 = vpop.permute.xlu0 %4459
    %4461 = vrot.lane.b32.xlu0 %v4450, 126
    %v4462 = vpop.permute.xlu0 %4461
    %v4467 = vadd.f32 %v4389, %v4456
    %v4468 = vadd.f32 %v4390, %v4458
    %v4469 = vadd.f32 %v4391, %v4460
    %v4470 = vadd.f32 %v4392, %v4462
    %s4471 = sld [smem:[#allocation3 + $0xb8]]
    %v4472 = vstv %s4471
    %v4473 = vmul.f32 %v4472, %v4333
    %v4474 = vmul.f32 %v4472, %v4334
    %v4475 = vmul.f32 %v4472, %v4335
    %v4476 = vmul.f32 %v4472, %v4336
    %4481 = vrot.lane.b32.xlu0 %v4473, 126
    %v4482 = vpop.permute.xlu0 %4481
    %4483 = vrot.lane.b32.xlu0 %v4474, 126
    %v4484 = vpop.permute.xlu0 %4483
    %4485 = vrot.lane.b32.xlu0 %v4475, 126
    %v4486 = vpop.permute.xlu0 %4485
    %4487 = vrot.lane.b32.xlu0 %v4476, 126
    %v4488 = vpop.permute.xlu0 %4487
    %v4493 = vadd.f32 %v4415, %v4482
    %v4494 = vadd.f32 %v4416, %v4484
    %v4495 = vadd.f32 %v4417, %v4486
    %v4496 = vadd.f32 %v4418, %v4488
    %s4497 = sld [smem:[#allocation3 + $0xb9]]
    %v4498 = vstv %s4497
    %v4499 = vmul.f32 %v4498, %v4333
    %v4500 = vmul.f32 %v4498, %v4334
    %v4501 = vmul.f32 %v4498, %v4335
    %v4502 = vmul.f32 %v4498, %v4336
    %4507 = vrot.lane.b32.xlu0 %v4499, 126
    %v4508 = vpop.permute.xlu0 %4507
    %4509 = vrot.lane.b32.xlu0 %v4500, 126
    %v4510 = vpop.permute.xlu0 %4509
    %4511 = vrot.lane.b32.xlu0 %v4501, 126
    %v4512 = vpop.permute.xlu0 %4511
    %4513 = vrot.lane.b32.xlu0 %v4502, 126
    %v4514 = vpop.permute.xlu0 %4513
    %v4519 = vadd.f32 %v4441, %v4508
    %v4520 = vadd.f32 %v4442, %v4510
    %v4521 = vadd.f32 %v4443, %v4512
    %v4522 = vadd.f32 %v4444, %v4514
    %v4523 = vld [vmem:[%s110 + $0x1] sm:$0xff]
    %v4524 = vld [vmem:[%s110 + $0x9] sm:$0xff]
    %v4525 = vld [vmem:[%s110 + $0x19] sm:$0xff]
    %v4526 = vld [vmem:[%s110 + $0x21] sm:$0xff]
    %s4527 = sld [smem:[#allocation3 + $0xc0]]
    %v4528 = vstv %s4527
    %v4529 = vmul.f32 %v4528, %v4523
    %v4530 = vmul.f32 %v4528, %v4524
    %v4531 = vmul.f32 %v4528, %v4525
    %v4532 = vmul.f32 %v4528, %v4526
    %v4533 = vadd.f32 %v4467, %v4529
    %v4534 = vadd.f32 %v4468, %v4530
    %v4535 = vadd.f32 %v4469, %v4531
    %v4536 = vadd.f32 %v4470, %v4532
    %s4537 = sld [smem:[#allocation3 + $0xc1]]
    %v4538 = vstv %s4537
    %v4539 = vmul.f32 %v4538, %v4523
    %v4540 = vmul.f32 %v4538, %v4524
    %v4541 = vmul.f32 %v4538, %v4525
    %v4542 = vmul.f32 %v4538, %v4526
    %v4543 = vadd.f32 %v4493, %v4539
    %v4544 = vadd.f32 %v4494, %v4540
    %v4545 = vadd.f32 %v4495, %v4541
    %v4546 = vadd.f32 %v4496, %v4542
    %s4547 = sld [smem:[#allocation3 + $0xc2]]
    %v4548 = vstv %s4547
    %v4549 = vmul.f32 %v4548, %v4523
    %v4550 = vmul.f32 %v4548, %v4524
    %v4551 = vmul.f32 %v4548, %v4525
    %v4552 = vmul.f32 %v4548, %v4526
    %v4553 = vadd.f32 %v4519, %v4549
    %v4554 = vadd.f32 %v4520, %v4550
    %v4555 = vadd.f32 %v4521, %v4551
    %v4556 = vadd.f32 %v4522, %v4552
    %s4557 = sld [smem:[#allocation3 + $0xc9]]
    %v4558 = vstv %s4557
    %v4559 = vmul.f32 %v4558, %v4523
    %v4560 = vmul.f32 %v4558, %v4524
    %v4561 = vmul.f32 %v4558, %v4525
    %v4562 = vmul.f32 %v4558, %v4526
    %4567 = vrot.lane.b32.xlu0 %v4559, 127
    %v4568 = vpop.permute.xlu0 %4567
    %4569 = vrot.lane.b32.xlu0 %v4560, 127
    %v4570 = vpop.permute.xlu0 %4569
    %4571 = vrot.lane.b32.xlu0 %v4561, 127
    %v4572 = vpop.permute.xlu0 %4571
    %4573 = vrot.lane.b32.xlu0 %v4562, 127
    %v4574 = vpop.permute.xlu0 %4573
    %v4579 = vadd.f32 %v4533, %v4568
    %v4580 = vadd.f32 %v4534, %v4570
    %v4581 = vadd.f32 %v4535, %v4572
    %v4582 = vadd.f32 %v4536, %v4574
    %s4583 = sld [smem:[#allocation3 + $0xca]]
    %v4584 = vstv %s4583
    %v4585 = vmul.f32 %v4584, %v4523
    %v4586 = vmul.f32 %v4584, %v4524
    %v4587 = vmul.f32 %v4584, %v4525
    %v4588 = vmul.f32 %v4584, %v4526
    %4593 = vrot.lane.b32.xlu0 %v4585, 127
    %v4594 = vpop.permute.xlu0 %4593
    %4595 = vrot.lane.b32.xlu0 %v4586, 127
    %v4596 = vpop.permute.xlu0 %4595
    %4597 = vrot.lane.b32.xlu0 %v4587, 127
    %v4598 = vpop.permute.xlu0 %4597
    %4599 = vrot.lane.b32.xlu0 %v4588, 127
    %v4600 = vpop.permute.xlu0 %4599
    %v4605 = vadd.f32 %v4543, %v4594
    %v4606 = vadd.f32 %v4544, %v4596
    %v4607 = vadd.f32 %v4545, %v4598
    %v4608 = vadd.f32 %v4546, %v4600
    %s4609 = sld [smem:[#allocation3 + $0xcb]]
    %v4610 = vstv %s4609
    %v4611 = vmul.f32 %v4610, %v4523
    %v4612 = vmul.f32 %v4610, %v4524
    %v4613 = vmul.f32 %v4610, %v4525
    %v4614 = vmul.f32 %v4610, %v4526
    %4619 = vrot.lane.b32.xlu0 %v4611, 127
    %v4620 = vpop.permute.xlu0 %4619
    %4621 = vrot.lane.b32.xlu0 %v4612, 127
    %v4622 = vpop.permute.xlu0 %4621
    %4623 = vrot.lane.b32.xlu0 %v4613, 127
    %v4624 = vpop.permute.xlu0 %4623
    %4625 = vrot.lane.b32.xlu0 %v4614, 127
    %v4626 = vpop.permute.xlu0 %4625
    %v4631 = vadd.f32 %v4553, %v4620
    %v4632 = vadd.f32 %v4554, %v4622
    %v4633 = vadd.f32 %v4555, %v4624
    %v4634 = vadd.f32 %v4556, %v4626
    %s4635 = sld [smem:[#allocation3 + $0xd2]]
    %v4636 = vstv %s4635
    %v4637 = vmul.f32 %v4636, %v4523
    %v4638 = vmul.f32 %v4636, %v4524
    %v4639 = vmul.f32 %v4636, %v4525
    %v4640 = vmul.f32 %v4636, %v4526
    %4645 = vrot.lane.b32.xlu0 %v4637, 126
    %v4646 = vpop.permute.xlu0 %4645
    %4647 = vrot.lane.b32.xlu0 %v4638, 126
    %v4648 = vpop.permute.xlu0 %4647
    %4649 = vrot.lane.b32.xlu0 %v4639, 126
    %v4650 = vpop.permute.xlu0 %4649
    %4651 = vrot.lane.b32.xlu0 %v4640, 126
    %v4652 = vpop.permute.xlu0 %4651
    %v4657 = vadd.f32 %v4579, %v4646
    %v4658 = vadd.f32 %v4580, %v4648
    %v4659 = vadd.f32 %v4581, %v4650
    %v4660 = vadd.f32 %v4582, %v4652
    %s4661 = sld [smem:[#allocation3 + $0xd3]]
    %v4662 = vstv %s4661
    %v4663 = vmul.f32 %v4662, %v4523
    %v4664 = vmul.f32 %v4662, %v4524
    %v4665 = vmul.f32 %v4662, %v4525
    %v4666 = vmul.f32 %v4662, %v4526
    %4671 = vrot.lane.b32.xlu0 %v4663, 126
    %v4672 = vpop.permute.xlu0 %4671
    %4673 = vrot.lane.b32.xlu0 %v4664, 126
    %v4674 = vpop.permute.xlu0 %4673
    %4675 = vrot.lane.b32.xlu0 %v4665, 126
    %v4676 = vpop.permute.xlu0 %4675
    %4677 = vrot.lane.b32.xlu0 %v4666, 126
    %v4678 = vpop.permute.xlu0 %4677
    %v4683 = vadd.f32 %v4605, %v4672
    %v4684 = vadd.f32 %v4606, %v4674
    %v4685 = vadd.f32 %v4607, %v4676
    %v4686 = vadd.f32 %v4608, %v4678
    %s4687 = sld [smem:[#allocation3 + $0xd4]]
    %v4688 = vstv %s4687
    %v4689 = vmul.f32 %v4688, %v4523
    %v4690 = vmul.f32 %v4688, %v4524
    %v4691 = vmul.f32 %v4688, %v4525
    %v4692 = vmul.f32 %v4688, %v4526
    %4697 = vrot.lane.b32.xlu0 %v4689, 126
    %v4698 = vpop.permute.xlu0 %4697
    %4699 = vrot.lane.b32.xlu0 %v4690, 126
    %v4700 = vpop.permute.xlu0 %4699
    %4701 = vrot.lane.b32.xlu0 %v4691, 126
    %v4702 = vpop.permute.xlu0 %4701
    %4703 = vrot.lane.b32.xlu0 %v4692, 126
    %v4704 = vpop.permute.xlu0 %4703
    %v4709 = vadd.f32 %v4631, %v4698
    %v4710 = vadd.f32 %v4632, %v4700
    %v4711 = vadd.f32 %v4633, %v4702
    %v4712 = vadd.f32 %v4634, %v4704
    %v4713 = vld [vmem:[%s110 + $0x2] sm:$0xff]
    %v4714 = vld [vmem:[%s110 + $0xa] sm:$0xff]
    %v4715 = vld [vmem:[%s110 + $0x1a] sm:$0xff]
    %v4716 = vld [vmem:[%s110 + $0x22] sm:$0xff]
    %s4717 = sld [smem:[#allocation3 + $0xdb]]
    %v4718 = vstv %s4717
    %v4719 = vmul.f32 %v4718, %v4713
    %v4720 = vmul.f32 %v4718, %v4714
    %v4721 = vmul.f32 %v4718, %v4715
    %v4722 = vmul.f32 %v4718, %v4716
    %v4723 = vadd.f32 %v4657, %v4719
    %v4724 = vadd.f32 %v4658, %v4720
    %v4725 = vadd.f32 %v4659, %v4721
    %v4726 = vadd.f32 %v4660, %v4722
    %s4727 = sld [smem:[#allocation3 + $0xdc]]
    %v4728 = vstv %s4727
    %v4729 = vmul.f32 %v4728, %v4713
    %v4730 = vmul.f32 %v4728, %v4714
    %v4731 = vmul.f32 %v4728, %v4715
    %v4732 = vmul.f32 %v4728, %v4716
    %v4733 = vadd.f32 %v4683, %v4729
    %v4734 = vadd.f32 %v4684, %v4730
    %v4735 = vadd.f32 %v4685, %v4731
    %v4736 = vadd.f32 %v4686, %v4732
    %s4737 = sld [smem:[#allocation3 + $0xdd]]
    %v4738 = vstv %s4737
    %v4739 = vmul.f32 %v4738, %v4713
    %v4740 = vmul.f32 %v4738, %v4714
    %v4741 = vmul.f32 %v4738, %v4715
    %v4742 = vmul.f32 %v4738, %v4716
    %v4743 = vadd.f32 %v4709, %v4739
    %v4744 = vadd.f32 %v4710, %v4740
    %v4745 = vadd.f32 %v4711, %v4741
    %v4746 = vadd.f32 %v4712, %v4742
    %s4747 = sld [smem:[#allocation3 + $0xe4]]
    %v4748 = vstv %s4747
    %v4749 = vmul.f32 %v4748, %v4713
    %v4750 = vmul.f32 %v4748, %v4714
    %v4751 = vmul.f32 %v4748, %v4715
    %v4752 = vmul.f32 %v4748, %v4716
    %4757 = vrot.lane.b32.xlu0 %v4749, 127
    %v4758 = vpop.permute.xlu0 %4757
    %4759 = vrot.lane.b32.xlu0 %v4750, 127
    %v4760 = vpop.permute.xlu0 %4759
    %4761 = vrot.lane.b32.xlu0 %v4751, 127
    %v4762 = vpop.permute.xlu0 %4761
    %4763 = vrot.lane.b32.xlu0 %v4752, 127
    %v4764 = vpop.permute.xlu0 %4763
    %v4769 = vadd.f32 %v4723, %v4758
    %v4770 = vadd.f32 %v4724, %v4760
    %v4771 = vadd.f32 %v4725, %v4762
    %v4772 = vadd.f32 %v4726, %v4764
    %s4773 = sld [smem:[#allocation3 + $0xe5]]
    %v4774 = vstv %s4773
    %v4775 = vmul.f32 %v4774, %v4713
    %v4776 = vmul.f32 %v4774, %v4714
    %v4777 = vmul.f32 %v4774, %v4715
    %v4778 = vmul.f32 %v4774, %v4716
    %4783 = vrot.lane.b32.xlu0 %v4775, 127
    %v4784 = vpop.permute.xlu0 %4783
    %4785 = vrot.lane.b32.xlu0 %v4776, 127
    %v4786 = vpop.permute.xlu0 %4785
    %4787 = vrot.lane.b32.xlu0 %v4777, 127
    %v4788 = vpop.permute.xlu0 %4787
    %4789 = vrot.lane.b32.xlu0 %v4778, 127
    %v4790 = vpop.permute.xlu0 %4789
    %v4795 = vadd.f32 %v4733, %v4784
    %v4796 = vadd.f32 %v4734, %v4786
    %v4797 = vadd.f32 %v4735, %v4788
    %v4798 = vadd.f32 %v4736, %v4790
    %s4799 = sld [smem:[#allocation3 + $0xe6]]
    %v4800 = vstv %s4799
    %v4801 = vmul.f32 %v4800, %v4713
    %v4802 = vmul.f32 %v4800, %v4714
    %v4803 = vmul.f32 %v4800, %v4715
    %v4804 = vmul.f32 %v4800, %v4716
    %4809 = vrot.lane.b32.xlu0 %v4801, 127
    %v4810 = vpop.permute.xlu0 %4809
    %4811 = vrot.lane.b32.xlu0 %v4802, 127
    %v4812 = vpop.permute.xlu0 %4811
    %4813 = vrot.lane.b32.xlu0 %v4803, 127
    %v4814 = vpop.permute.xlu0 %4813
    %4815 = vrot.lane.b32.xlu0 %v4804, 127
    %v4816 = vpop.permute.xlu0 %4815
    %v4821 = vadd.f32 %v4743, %v4810
    %v4822 = vadd.f32 %v4744, %v4812
    %v4823 = vadd.f32 %v4745, %v4814
    %v4824 = vadd.f32 %v4746, %v4816
    %s4825 = sld [smem:[#allocation3 + $0xed]]
    %v4826 = vstv %s4825
    %v4827 = vmul.f32 %v4826, %v4713
    %v4828 = vmul.f32 %v4826, %v4714
    %v4829 = vmul.f32 %v4826, %v4715
    %v4830 = vmul.f32 %v4826, %v4716
    %4835 = vrot.lane.b32.xlu0 %v4827, 126
    %v4836 = vpop.permute.xlu0 %4835
    %4837 = vrot.lane.b32.xlu0 %v4828, 126
    %v4838 = vpop.permute.xlu0 %4837
    %4839 = vrot.lane.b32.xlu0 %v4829, 126
    %v4840 = vpop.permute.xlu0 %4839
    %4841 = vrot.lane.b32.xlu0 %v4830, 126
    %v4842 = vpop.permute.xlu0 %4841
    %v4847 = vadd.f32 %v4769, %v4836
    %v4848 = vadd.f32 %v4770, %v4838
    %v4849 = vadd.f32 %v4771, %v4840
    %v4850 = vadd.f32 %v4772, %v4842
    %s4851 = sld [smem:[#allocation3 + $0xee]]
    %v4852 = vstv %s4851
    %v4853 = vmul.f32 %v4852, %v4713
    %v4854 = vmul.f32 %v4852, %v4714
    %v4855 = vmul.f32 %v4852, %v4715
    %v4856 = vmul.f32 %v4852, %v4716
    %4861 = vrot.lane.b32.xlu0 %v4853, 126
    %v4862 = vpop.permute.xlu0 %4861
    %4863 = vrot.lane.b32.xlu0 %v4854, 126
    %v4864 = vpop.permute.xlu0 %4863
    %4865 = vrot.lane.b32.xlu0 %v4855, 126
    %v4866 = vpop.permute.xlu0 %4865
    %4867 = vrot.lane.b32.xlu0 %v4856, 126
    %v4868 = vpop.permute.xlu0 %4867
    %v4873 = vadd.f32 %v4795, %v4862
    %v4874 = vadd.f32 %v4796, %v4864
    %v4875 = vadd.f32 %v4797, %v4866
    %v4876 = vadd.f32 %v4798, %v4868
    %s4877 = sld [smem:[#allocation3 + $0xef]]
    %v4878 = vstv %s4877
    %v4879 = vmul.f32 %v4878, %v4713
    %v4880 = vmul.f32 %v4878, %v4714
    %v4881 = vmul.f32 %v4878, %v4715
    %v4882 = vmul.f32 %v4878, %v4716
    %4887 = vrot.lane.b32.xlu0 %v4879, 126
    %v4888 = vpop.permute.xlu0 %4887
    %4889 = vrot.lane.b32.xlu0 %v4880, 126
    %v4890 = vpop.permute.xlu0 %4889
    %4891 = vrot.lane.b32.xlu0 %v4881, 126
    %v4892 = vpop.permute.xlu0 %4891
    %4893 = vrot.lane.b32.xlu0 %v4882, 126
    %v4894 = vpop.permute.xlu0 %4893
    %v4899 = vadd.f32 %v4821, %v4888
    %v4900 = vadd.f32 %v4822, %v4890
    %v4901 = vadd.f32 %v4823, %v4892
    %v4902 = vadd.f32 %v4824, %v4894
    %v4903 = vld [vmem:[%s131] sm:$0xff]
    %v4904 = vld [vmem:[%s131 + $0x8] sm:$0xff]
    %v4905 = vld [vmem:[%s131 + $0x18] sm:$0xff]
    %v4906 = vld [vmem:[%s131 + $0x20] sm:$0xff]
    %s4907 = sld [smem:[#allocation3 + $0xa8]]
    %v4908 = vstv %s4907
    %v4909 = vmul.f32 %v4908, %v4903
    %v4910 = vmul.f32 %v4908, %v4904
    %v4911 = vmul.f32 %v4908, %v4905
    %v4912 = vmul.f32 %v4908, %v4906
    %v4913 = vadd.f32 %v4847, %v4909
    %v4914 = vadd.f32 %v4848, %v4910
    %v4915 = vadd.f32 %v4849, %v4911
    %v4916 = vadd.f32 %v4850, %v4912
    %s4917 = sld [smem:[#allocation3 + $0xa9]]
    %v4918 = vstv %s4917
    %v4919 = vmul.f32 %v4918, %v4903
    %v4920 = vmul.f32 %v4918, %v4904
    %v4921 = vmul.f32 %v4918, %v4905
    %v4922 = vmul.f32 %v4918, %v4906
    %v4923 = vadd.f32 %v4873, %v4919
    %v4924 = vadd.f32 %v4874, %v4920
    %v4925 = vadd.f32 %v4875, %v4921
    %v4926 = vadd.f32 %v4876, %v4922
    %s4927 = sld [smem:[#allocation3 + $0xaa]]
    %v4928 = vstv %s4927
    %v4929 = vmul.f32 %v4928, %v4903
    %v4930 = vmul.f32 %v4928, %v4904
    %v4931 = vmul.f32 %v4928, %v4905
    %v4932 = vmul.f32 %v4928, %v4906
    %v4933 = vadd.f32 %v4899, %v4929
    %v4934 = vadd.f32 %v4900, %v4930
    %v4935 = vadd.f32 %v4901, %v4931
    %v4936 = vadd.f32 %v4902, %v4932
    %s4937 = sld [smem:[#allocation3 + $0xb1]]
    %v4938 = vstv %s4937
    %v4939 = vmul.f32 %v4938, %v4903
    %v4940 = vmul.f32 %v4938, %v4904
    %v4941 = vmul.f32 %v4938, %v4905
    %v4942 = vmul.f32 %v4938, %v4906
    %4947 = vrot.lane.b32.xlu0 %v4939, 127
    %v4948 = vpop.permute.xlu0 %4947
    %4949 = vrot.lane.b32.xlu0 %v4940, 127
    %v4950 = vpop.permute.xlu0 %4949
    %4951 = vrot.lane.b32.xlu0 %v4941, 127
    %v4952 = vpop.permute.xlu0 %4951
    %4953 = vrot.lane.b32.xlu0 %v4942, 127
    %v4954 = vpop.permute.xlu0 %4953
    %v4959 = vadd.f32 %v4913, %v4948
    %v4960 = vadd.f32 %v4914, %v4950
    %v4961 = vadd.f32 %v4915, %v4952
    %v4962 = vadd.f32 %v4916, %v4954
    %s4963 = sld [smem:[#allocation3 + $0xb2]]
    %v4964 = vstv %s4963
    %v4965 = vmul.f32 %v4964, %v4903
    %v4966 = vmul.f32 %v4964, %v4904
    %v4967 = vmul.f32 %v4964, %v4905
    %v4968 = vmul.f32 %v4964, %v4906
    %4973 = vrot.lane.b32.xlu0 %v4965, 127
    %v4974 = vpop.permute.xlu0 %4973
    %4975 = vrot.lane.b32.xlu0 %v4966, 127
    %v4976 = vpop.permute.xlu0 %4975
    %4977 = vrot.lane.b32.xlu0 %v4967, 127
    %v4978 = vpop.permute.xlu0 %4977
    %4979 = vrot.lane.b32.xlu0 %v4968, 127
    %v4980 = vpop.permute.xlu0 %4979
    %v4985 = vadd.f32 %v4923, %v4974
    %v4986 = vadd.f32 %v4924, %v4976
    %v4987 = vadd.f32 %v4925, %v4978
    %v4988 = vadd.f32 %v4926, %v4980
    %s4989 = sld [smem:[#allocation3 + $0xb3]]
    %v4990 = vstv %s4989
    %v4991 = vmul.f32 %v4990, %v4903
    %v4992 = vmul.f32 %v4990, %v4904
    %v4993 = vmul.f32 %v4990, %v4905
    %v4994 = vmul.f32 %v4990, %v4906
    %4999 = vrot.lane.b32.xlu0 %v4991, 127
    %v5000 = vpop.permute.xlu0 %4999
    %5001 = vrot.lane.b32.xlu0 %v4992, 127
    %v5002 = vpop.permute.xlu0 %5001
    %5003 = vrot.lane.b32.xlu0 %v4993, 127
    %v5004 = vpop.permute.xlu0 %5003
    %5005 = vrot.lane.b32.xlu0 %v4994, 127
    %v5006 = vpop.permute.xlu0 %5005
    %v5011 = vadd.f32 %v4933, %v5000
    %v5012 = vadd.f32 %v4934, %v5002
    %v5013 = vadd.f32 %v4935, %v5004
    %v5014 = vadd.f32 %v4936, %v5006
    %s5015 = sld [smem:[#allocation3 + $0xba]]
    %v5016 = vstv %s5015
    %v5017 = vmul.f32 %v5016, %v4903
    %v5018 = vmul.f32 %v5016, %v4904
    %v5019 = vmul.f32 %v5016, %v4905
    %v5020 = vmul.f32 %v5016, %v4906
    %5025 = vrot.lane.b32.xlu0 %v5017, 126
    %v5026 = vpop.permute.xlu0 %5025
    %5027 = vrot.lane.b32.xlu0 %v5018, 126
    %v5028 = vpop.permute.xlu0 %5027
    %5029 = vrot.lane.b32.xlu0 %v5019, 126
    %v5030 = vpop.permute.xlu0 %5029
    %5031 = vrot.lane.b32.xlu0 %v5020, 126
    %v5032 = vpop.permute.xlu0 %5031
    %v5037 = vadd.f32 %v4959, %v5026
    %v5038 = vadd.f32 %v4960, %v5028
    %v5039 = vadd.f32 %v4961, %v5030
    %v5040 = vadd.f32 %v4962, %v5032
    %s5041 = sld [smem:[#allocation3 + $0xbb]]
    %v5042 = vstv %s5041
    %v5043 = vmul.f32 %v5042, %v4903
    %v5044 = vmul.f32 %v5042, %v4904
    %v5045 = vmul.f32 %v5042, %v4905
    %v5046 = vmul.f32 %v5042, %v4906
    %5051 = vrot.lane.b32.xlu0 %v5043, 126
    %v5052 = vpop.permute.xlu0 %5051
    %5053 = vrot.lane.b32.xlu0 %v5044, 126
    %v5054 = vpop.permute.xlu0 %5053
    %5055 = vrot.lane.b32.xlu0 %v5045, 126
    %v5056 = vpop.permute.xlu0 %5055
    %5057 = vrot.lane.b32.xlu0 %v5046, 126
    %v5058 = vpop.permute.xlu0 %5057
    %v5063 = vadd.f32 %v4985, %v5052
    %v5064 = vadd.f32 %v4986, %v5054
    %v5065 = vadd.f32 %v4987, %v5056
    %v5066 = vadd.f32 %v4988, %v5058
    %s5067 = sld [smem:[#allocation3 + $0xbc]]
    %v5068 = vstv %s5067
    %v5069 = vmul.f32 %v5068, %v4903
    %v5070 = vmul.f32 %v5068, %v4904
    %v5071 = vmul.f32 %v5068, %v4905
    %v5072 = vmul.f32 %v5068, %v4906
    %5077 = vrot.lane.b32.xlu0 %v5069, 126
    %v5078 = vpop.permute.xlu0 %5077
    %5079 = vrot.lane.b32.xlu0 %v5070, 126
    %v5080 = vpop.permute.xlu0 %5079
    %5081 = vrot.lane.b32.xlu0 %v5071, 126
    %v5082 = vpop.permute.xlu0 %5081
    %5083 = vrot.lane.b32.xlu0 %v5072, 126
    %v5084 = vpop.permute.xlu0 %5083
    %v5089 = vadd.f32 %v5011, %v5078
    %v5090 = vadd.f32 %v5012, %v5080
    %v5091 = vadd.f32 %v5013, %v5082
    %v5092 = vadd.f32 %v5014, %v5084
    %v5093 = vld [vmem:[%s131 + $0x1] sm:$0xff]
    %v5094 = vld [vmem:[%s131 + $0x9] sm:$0xff]
    %v5095 = vld [vmem:[%s131 + $0x19] sm:$0xff]
    %v5096 = vld [vmem:[%s131 + $0x21] sm:$0xff]
    %s5097 = sld [smem:[#allocation3 + $0xc3]]
    %v5098 = vstv %s5097
    %v5099 = vmul.f32 %v5098, %v5093
    %v5100 = vmul.f32 %v5098, %v5094
    %v5101 = vmul.f32 %v5098, %v5095
    %v5102 = vmul.f32 %v5098, %v5096
    %v5103 = vadd.f32 %v5037, %v5099
    %v5104 = vadd.f32 %v5038, %v5100
    %v5105 = vadd.f32 %v5039, %v5101
    %v5106 = vadd.f32 %v5040, %v5102
    %s5107 = sld [smem:[#allocation3 + $0xc4]]
    %v5108 = vstv %s5107
    %v5109 = vmul.f32 %v5108, %v5093
    %v5110 = vmul.f32 %v5108, %v5094
    %v5111 = vmul.f32 %v5108, %v5095
    %v5112 = vmul.f32 %v5108, %v5096
    %v5113 = vadd.f32 %v5063, %v5109
    %v5114 = vadd.f32 %v5064, %v5110
    %v5115 = vadd.f32 %v5065, %v5111
    %v5116 = vadd.f32 %v5066, %v5112
    %s5117 = sld [smem:[#allocation3 + $0xc5]]
    %v5118 = vstv %s5117
    %v5119 = vmul.f32 %v5118, %v5093
    %v5120 = vmul.f32 %v5118, %v5094
    %v5121 = vmul.f32 %v5118, %v5095
    %v5122 = vmul.f32 %v5118, %v5096
    %v5123 = vadd.f32 %v5089, %v5119
    %v5124 = vadd.f32 %v5090, %v5120
    %v5125 = vadd.f32 %v5091, %v5121
    %v5126 = vadd.f32 %v5092, %v5122
    %s5127 = sld [smem:[#allocation3 + $0xcc]]
    %v5128 = vstv %s5127
    %v5129 = vmul.f32 %v5128, %v5093
    %v5130 = vmul.f32 %v5128, %v5094
    %v5131 = vmul.f32 %v5128, %v5095
    %v5132 = vmul.f32 %v5128, %v5096
    %5137 = vrot.lane.b32.xlu0 %v5129, 127
    %v5138 = vpop.permute.xlu0 %5137
    %5139 = vrot.lane.b32.xlu0 %v5130, 127
    %v5140 = vpop.permute.xlu0 %5139
    %5141 = vrot.lane.b32.xlu0 %v5131, 127
    %v5142 = vpop.permute.xlu0 %5141
    %5143 = vrot.lane.b32.xlu0 %v5132, 127
    %v5144 = vpop.permute.xlu0 %5143
    %v5149 = vadd.f32 %v5103, %v5138
    %v5150 = vadd.f32 %v5104, %v5140
    %v5151 = vadd.f32 %v5105, %v5142
    %v5152 = vadd.f32 %v5106, %v5144
    %s5153 = sld [smem:[#allocation3 + $0xcd]]
    %v5154 = vstv %s5153
    %v5155 = vmul.f32 %v5154, %v5093
    %v5156 = vmul.f32 %v5154, %v5094
    %v5157 = vmul.f32 %v5154, %v5095
    %v5158 = vmul.f32 %v5154, %v5096
    %5163 = vrot.lane.b32.xlu0 %v5155, 127
    %v5164 = vpop.permute.xlu0 %5163
    %5165 = vrot.lane.b32.xlu0 %v5156, 127
    %v5166 = vpop.permute.xlu0 %5165
    %5167 = vrot.lane.b32.xlu0 %v5157, 127
    %v5168 = vpop.permute.xlu0 %5167
    %5169 = vrot.lane.b32.xlu0 %v5158, 127
    %v5170 = vpop.permute.xlu0 %5169
    %v5175 = vadd.f32 %v5113, %v5164
    %v5176 = vadd.f32 %v5114, %v5166
    %v5177 = vadd.f32 %v5115, %v5168
    %v5178 = vadd.f32 %v5116, %v5170
    %s5179 = sld [smem:[#allocation3 + $0xce]]
    %v5180 = vstv %s5179
    %v5181 = vmul.f32 %v5180, %v5093
    %v5182 = vmul.f32 %v5180, %v5094
    %v5183 = vmul.f32 %v5180, %v5095
    %v5184 = vmul.f32 %v5180, %v5096
    %5189 = vrot.lane.b32.xlu0 %v5181, 127
    %v5190 = vpop.permute.xlu0 %5189
    %5191 = vrot.lane.b32.xlu0 %v5182, 127
    %v5192 = vpop.permute.xlu0 %5191
    %5193 = vrot.lane.b32.xlu0 %v5183, 127
    %v5194 = vpop.permute.xlu0 %5193
    %5195 = vrot.lane.b32.xlu0 %v5184, 127
    %v5196 = vpop.permute.xlu0 %5195
    %v5201 = vadd.f32 %v5123, %v5190
    %v5202 = vadd.f32 %v5124, %v5192
    %v5203 = vadd.f32 %v5125, %v5194
    %v5204 = vadd.f32 %v5126, %v5196
    %s5205 = sld [smem:[#allocation3 + $0xd5]]
    %v5206 = vstv %s5205
    %v5207 = vmul.f32 %v5206, %v5093
    %v5208 = vmul.f32 %v5206, %v5094
    %v5209 = vmul.f32 %v5206, %v5095
    %v5210 = vmul.f32 %v5206, %v5096
    %5215 = vrot.lane.b32.xlu0 %v5207, 126
    %v5216 = vpop.permute.xlu0 %5215
    %5217 = vrot.lane.b32.xlu0 %v5208, 126
    %v5218 = vpop.permute.xlu0 %5217
    %5219 = vrot.lane.b32.xlu0 %v5209, 126
    %v5220 = vpop.permute.xlu0 %5219
    %5221 = vrot.lane.b32.xlu0 %v5210, 126
    %v5222 = vpop.permute.xlu0 %5221
    %v5227 = vadd.f32 %v5149, %v5216
    %v5228 = vadd.f32 %v5150, %v5218
    %v5229 = vadd.f32 %v5151, %v5220
    %v5230 = vadd.f32 %v5152, %v5222
    %s5231 = sld [smem:[#allocation3 + $0xd6]]
    %v5232 = vstv %s5231
    %v5233 = vmul.f32 %v5232, %v5093
    %v5234 = vmul.f32 %v5232, %v5094
    %v5235 = vmul.f32 %v5232, %v5095
    %v5236 = vmul.f32 %v5232, %v5096
    %5241 = vrot.lane.b32.xlu0 %v5233, 126
    %v5242 = vpop.permute.xlu0 %5241
    %5243 = vrot.lane.b32.xlu0 %v5234, 126
    %v5244 = vpop.permute.xlu0 %5243
    %5245 = vrot.lane.b32.xlu0 %v5235, 126
    %v5246 = vpop.permute.xlu0 %5245
    %5247 = vrot.lane.b32.xlu0 %v5236, 126
    %v5248 = vpop.permute.xlu0 %5247
    %v5253 = vadd.f32 %v5175, %v5242
    %v5254 = vadd.f32 %v5176, %v5244
    %v5255 = vadd.f32 %v5177, %v5246
    %v5256 = vadd.f32 %v5178, %v5248
    %s5257 = sld [smem:[#allocation3 + $0xd7]]
    %v5258 = vstv %s5257
    %v5259 = vmul.f32 %v5258, %v5093
    %v5260 = vmul.f32 %v5258, %v5094
    %v5261 = vmul.f32 %v5258, %v5095
    %v5262 = vmul.f32 %v5258, %v5096
    %5267 = vrot.lane.b32.xlu0 %v5259, 126
    %v5268 = vpop.permute.xlu0 %5267
    %5269 = vrot.lane.b32.xlu0 %v5260, 126
    %v5270 = vpop.permute.xlu0 %5269
    %5271 = vrot.lane.b32.xlu0 %v5261, 126
    %v5272 = vpop.permute.xlu0 %5271
    %5273 = vrot.lane.b32.xlu0 %v5262, 126
    %v5274 = vpop.permute.xlu0 %5273
    %v5279 = vadd.f32 %v5201, %v5268
    %v5280 = vadd.f32 %v5202, %v5270
    %v5281 = vadd.f32 %v5203, %v5272
    %v5282 = vadd.f32 %v5204, %v5274
    %v5283 = vld [vmem:[%s131 + $0x2] sm:$0xff]
    %v5284 = vld [vmem:[%s131 + $0xa] sm:$0xff]
    %v5285 = vld [vmem:[%s131 + $0x1a] sm:$0xff]
    %v5286 = vld [vmem:[%s131 + $0x22] sm:$0xff]
    %s5287 = sld [smem:[#allocation3 + $0xde]]
    %v5288 = vstv %s5287
    %v5289 = vmul.f32 %v5288, %v5283
    %v5290 = vmul.f32 %v5288, %v5284
    %v5291 = vmul.f32 %v5288, %v5285
    %v5292 = vmul.f32 %v5288, %v5286
    %v5293 = vadd.f32 %v5227, %v5289
    %v5294 = vadd.f32 %v5228, %v5290
    %v5295 = vadd.f32 %v5229, %v5291
    %v5296 = vadd.f32 %v5230, %v5292
    %s5297 = sld [smem:[#allocation3 + $0xdf]]
    %v5298 = vstv %s5297
    %v5299 = vmul.f32 %v5298, %v5283
    %v5300 = vmul.f32 %v5298, %v5284
    %v5301 = vmul.f32 %v5298, %v5285
    %v5302 = vmul.f32 %v5298, %v5286
    %v5303 = vadd.f32 %v5253, %v5299
    %v5304 = vadd.f32 %v5254, %v5300
    %v5305 = vadd.f32 %v5255, %v5301
    %v5306 = vadd.f32 %v5256, %v5302
    %s5307 = sld [smem:[#allocation3 + $0xe0]]
    %v5308 = vstv %s5307
    %v5309 = vmul.f32 %v5308, %v5283
    %v5310 = vmul.f32 %v5308, %v5284
    %v5311 = vmul.f32 %v5308, %v5285
    %v5312 = vmul.f32 %v5308, %v5286
    %v5313 = vadd.f32 %v5279, %v5309
    %v5314 = vadd.f32 %v5280, %v5310
    %v5315 = vadd.f32 %v5281, %v5311
    %v5316 = vadd.f32 %v5282, %v5312
    %s5317 = sld [smem:[#allocation3 + $0xe7]]
    %v5318 = vstv %s5317
    %v5319 = vmul.f32 %v5318, %v5283
    %v5320 = vmul.f32 %v5318, %v5284
    %v5321 = vmul.f32 %v5318, %v5285
    %v5322 = vmul.f32 %v5318, %v5286
    %5327 = vrot.lane.b32.xlu0 %v5319, 127
    %v5328 = vpop.permute.xlu0 %5327
    %5329 = vrot.lane.b32.xlu0 %v5320, 127
    %v5330 = vpop.permute.xlu0 %5329
    %5331 = vrot.lane.b32.xlu0 %v5321, 127
    %v5332 = vpop.permute.xlu0 %5331
    %5333 = vrot.lane.b32.xlu0 %v5322, 127
    %v5334 = vpop.permute.xlu0 %5333
    %v5339 = vadd.f32 %v5293, %v5328
    %v5340 = vadd.f32 %v5294, %v5330
    %v5341 = vadd.f32 %v5295, %v5332
    %v5342 = vadd.f32 %v5296, %v5334
    %s5343 = sld [smem:[#allocation3 + $0xe8]]
    %v5344 = vstv %s5343
    %v5345 = vmul.f32 %v5344, %v5283
    %v5346 = vmul.f32 %v5344, %v5284
    %v5347 = vmul.f32 %v5344, %v5285
    %v5348 = vmul.f32 %v5344, %v5286
    %5353 = vrot.lane.b32.xlu0 %v5345, 127
    %v5354 = vpop.permute.xlu0 %5353
    %5355 = vrot.lane.b32.xlu0 %v5346, 127
    %v5356 = vpop.permute.xlu0 %5355
    %5357 = vrot.lane.b32.xlu0 %v5347, 127
    %v5358 = vpop.permute.xlu0 %5357
    %5359 = vrot.lane.b32.xlu0 %v5348, 127
    %v5360 = vpop.permute.xlu0 %5359
    %v5365 = vadd.f32 %v5303, %v5354
    %v5366 = vadd.f32 %v5304, %v5356
    %v5367 = vadd.f32 %v5305, %v5358
    %v5368 = vadd.f32 %v5306, %v5360
    %s5369 = sld [smem:[#allocation3 + $0xe9]]
    %v5370 = vstv %s5369
    %v5371 = vmul.f32 %v5370, %v5283
    %v5372 = vmul.f32 %v5370, %v5284
    %v5373 = vmul.f32 %v5370, %v5285
    %v5374 = vmul.f32 %v5370, %v5286
    %5379 = vrot.lane.b32.xlu0 %v5371, 127
    %v5380 = vpop.permute.xlu0 %5379
    %5381 = vrot.lane.b32.xlu0 %v5372, 127
    %v5382 = vpop.permute.xlu0 %5381
    %5383 = vrot.lane.b32.xlu0 %v5373, 127
    %v5384 = vpop.permute.xlu0 %5383
    %5385 = vrot.lane.b32.xlu0 %v5374, 127
    %v5386 = vpop.permute.xlu0 %5385
    %v5391 = vadd.f32 %v5313, %v5380
    %v5392 = vadd.f32 %v5314, %v5382
    %v5393 = vadd.f32 %v5315, %v5384
    %v5394 = vadd.f32 %v5316, %v5386
    %s5395 = sld [smem:[#allocation3 + $0xf0]]
    %v5396 = vstv %s5395
    %v5397 = vmul.f32 %v5396, %v5283
    %v5398 = vmul.f32 %v5396, %v5284
    %v5399 = vmul.f32 %v5396, %v5285
    %v5400 = vmul.f32 %v5396, %v5286
    %5405 = vrot.lane.b32.xlu0 %v5397, 126
    %v5406 = vpop.permute.xlu0 %5405
    %5407 = vrot.lane.b32.xlu0 %v5398, 126
    %v5408 = vpop.permute.xlu0 %5407
    %5409 = vrot.lane.b32.xlu0 %v5399, 126
    %v5410 = vpop.permute.xlu0 %5409
    %5411 = vrot.lane.b32.xlu0 %v5400, 126
    %v5412 = vpop.permute.xlu0 %5411
    %v5417 = vadd.f32 %v5339, %v5406
    %v5418 = vadd.f32 %v5340, %v5408
    %v5419 = vadd.f32 %v5341, %v5410
    %v5420 = vadd.f32 %v5342, %v5412
    %s5421 = sld [smem:[#allocation3 + $0xf1]]
    %v5422 = vstv %s5421
    %v5423 = vmul.f32 %v5422, %v5283
    %v5424 = vmul.f32 %v5422, %v5284
    %v5425 = vmul.f32 %v5422, %v5285
    %v5426 = vmul.f32 %v5422, %v5286
    %5431 = vrot.lane.b32.xlu0 %v5423, 126
    %v5432 = vpop.permute.xlu0 %5431
    %5433 = vrot.lane.b32.xlu0 %v5424, 126
    %v5434 = vpop.permute.xlu0 %5433
    %5435 = vrot.lane.b32.xlu0 %v5425, 126
    %v5436 = vpop.permute.xlu0 %5435
    %5437 = vrot.lane.b32.xlu0 %v5426, 126
    %v5438 = vpop.permute.xlu0 %5437
    %v5443 = vadd.f32 %v5365, %v5432
    %v5444 = vadd.f32 %v5366, %v5434
    %v5445 = vadd.f32 %v5367, %v5436
    %v5446 = vadd.f32 %v5368, %v5438
    %s5447 = sld [smem:[#allocation3 + $0xf2]]
    %v5448 = vstv %s5447
    %v5449 = vmul.f32 %v5448, %v5283
    %v5450 = vmul.f32 %v5448, %v5284
    %v5451 = vmul.f32 %v5448, %v5285
    %v5452 = vmul.f32 %v5448, %v5286
    %5457 = vrot.lane.b32.xlu0 %v5449, 126
    %v5458 = vpop.permute.xlu0 %5457
    %5459 = vrot.lane.b32.xlu0 %v5450, 126
    %v5460 = vpop.permute.xlu0 %5459
    %5461 = vrot.lane.b32.xlu0 %v5451, 126
    %v5462 = vpop.permute.xlu0 %5461
    %5463 = vrot.lane.b32.xlu0 %v5452, 126
    %v5464 = vpop.permute.xlu0 %5463
    %v5469 = vadd.f32 %v5391, %v5458
    %v5470 = vadd.f32 %v5392, %v5460
    %v5471 = vadd.f32 %v5393, %v5462
    %v5472 = vadd.f32 %v5394, %v5464
    %v5473 = vmax.f32 %v5417, 0.0
    %v5474 = vmax.f32 %v5418, 0.0
    %v5475 = vmax.f32 %v5419, 0.0
    %v5476 = vmax.f32 %v5420, 0.0
    %v5477 = vmax.f32 %v5443, 0.0
    %v5478 = vmax.f32 %v5444, 0.0
    %v5479 = vmax.f32 %v5445, 0.0
    %v5480 = vmax.f32 %v5446, 0.0
    %v5481 = vmax.f32 %v5469, 0.0
    %v5482 = vmax.f32 %v5470, 0.0
    %v5483 = vmax.f32 %v5471, 0.0
    %v5484 = vmax.f32 %v5472, 0.0
    %v5485 = vpack.c.bf16 %v5473, %v5473
    %v5486 = vpack.c.bf16 %v5474, %v5474
    %v5487 = vpack.c.bf16 %v5475, %v5475
    %v5488 = vpack.c.bf16 %v5476, %v5476
    %vm5489 = vcmask 125952
    %5490 = vst.msk [vmem:[%s3] sm:$0xf] %vm5489, %v5485
    %5491 = vst.msk [vmem:[%s3 + $0x4] sm:$0xf] %vm5489, %v5486
    %5492 = vst.msk [vmem:[%s3 + $0x8] sm:$0xf] %vm5489, %v5487
    %5493 = vst.msk [vmem:[%s3 + $0xc] sm:$0xf] %vm5489, %v5488
    %v5494 = vpack.c.bf16 %v5477, %v5477
    %v5495 = vpack.c.bf16 %v5478, %v5478
    %v5496 = vpack.c.bf16 %v5479, %v5479
    %v5497 = vpack.c.bf16 %v5480, %v5480
    %s5498 = scalar_lea.vmem %s3, 16
    %5499 = vst.msk [vmem:[%s5498] sm:$0xf] %vm5489, %v5494
    %5500 = vst.msk [vmem:[%s5498 + $0x4] sm:$0xf] %vm5489, %v5495
    %5501 = vst.msk [vmem:[%s5498 + $0x8] sm:$0xf] %vm5489, %v5496
    %5502 = vst.msk [vmem:[%s5498 + $0xc] sm:$0xf] %vm5489, %v5497
    %v5503 = vpack.c.bf16 %v5481, %v5481
    %v5504 = vpack.c.bf16 %v5482, %v5482
    %v5505 = vpack.c.bf16 %v5483, %v5483
    %v5506 = vpack.c.bf16 %v5484, %v5484
    %s5507 = scalar_lea.vmem %s3, 32
    %5508 = vst.msk [vmem:[%s5507] sm:$0xf] %vm5489, %v5503
    %5509 = vst.msk [vmem:[%s5507 + $0x4] sm:$0xf] %vm5489, %v5504
    %5510 = vst.msk [vmem:[%s5507 + $0x8] sm:$0xf] %vm5489, %v5505
    %5511 = vst.msk [vmem:[%s5507 + $0xc] sm:$0xf] %vm5489, %v5506
    // Predicated region
    $region22: #{_lambda_.11} parent=1 // pred_check
      _
    $region23: #{_lambda_.11} parent=1 // pred_check_branch
      %5513 = sbr.rel (0) target = $region25
    $region24: #{_lambda_.11} parent=1 // pred_region
      _
    $region25: #{_lambda_.11} parent=1 // pred_fallthru
      _
    // Predicated region
    $region26: #{_lambda_.11} parent=1 // pred_check
      _
    $region27: #{_lambda_.11} parent=1 // pred_check_branch
      %5515 = sbr.rel (0) target = $region29
    $region28: #{_lambda_.11} parent=1 // pred_region
      _
    $region29: #{_lambda_.11} parent=1 // pred_fallthru
      _
    %5516 = vsyncpa [#allocation4], 1
    %5517 = vsyncpa [#allocation6], 1

// kernel: _lambda_.18
$region0: #{_lambda_.18}
  #allocation0 [shape = 'u32[]', space=smem, size = 0x4, offset = 0x4, fixed_abs, tag = 'smem constant byte address 0x4 - core index']
  #allocation1 [shape = 'u32[72,128]{1,0:T(1,128)}', space=vmem, size = 0x9000, scoped, tag = 'internal scratch']
  #allocation2 [shape = 'bf16[2,4,4,128]{3,2,1,0:T(4,128)(2,1)}', space=vmem, size = 0x2000, scoped, tag = 'scratch operand']
  %s0 = inlined_call_operand.vmem [shape: bf16[2,2,2,128], index: 0, kind: input, shape index: {}]
  %s1 = inlined_call_operand.vmem [shape: bf16[9,128,128], index: 1, kind: input, shape index: {}]
  %s2 = inlined_call_operand.vmem [shape: bf16[9,128,128], index: 2, kind: input, shape index: {}]
  %s3 = inlined_call_operand.vmem [shape: f32[1,128], index: 3, kind: input, shape index: {}, may-alias: {3,5}]
  %s4 = inlined_call_operand.vmem [shape: f32[1,128], index: 4, kind: input, shape index: {}, may-alias: {4,6}]
  %s5 = inlined_call_operand.vmem [shape: f32[1,128], index: 5, kind: input, shape index: {}, may-alias: {3,5}]
  %s6 = inlined_call_operand.vmem [shape: f32[1,128], index: 6, kind: input, shape index: {}, may-alias: {4,6}]
  %s7 = inlined_call_operand.vmem [shape: bf16[2,2,2,128], index: 7, kind: output, shape index: {}]
  %s8 = sld [smem:[#allocation0]]
  $region38: #{_lambda_.18} parent=0
    _
  %s10 = ssub.s32 1, %s8
  %s11 = scalar_select 0, %s10, %s8
  // Predicated region
  $region2: #{_lambda_.18} parent=0 // pred_check
    _
  $region3: #{_lambda_.18} parent=0 // pred_check_branch
    %13 = sbr.rel (0) target = $region5
  $region4: #{_lambda_.18} parent=0 // pred_region
    _
  $region5: #{_lambda_.18} parent=0 // pred_fallthru
    _
  // Predicated region
  $region6: #{_lambda_.18} parent=0 // pred_check
    _
  $region7: #{_lambda_.18} parent=0 // pred_check_branch
    %15 = sbr.rel (0) target = $region9
  $region8: #{_lambda_.18} parent=0 // pred_region
    _
  $region9: #{_lambda_.18} parent=0 // pred_fallthru
    _
  // Predicated region
  $region10: #{_lambda_.18} parent=0 // pred_check
    _
  $region11: #{_lambda_.18} parent=0 // pred_check_branch
    %17 = sbr.rel (0) target = $region13
  $region12: #{_lambda_.18} parent=0 // pred_region
    _
  $region13: #{_lambda_.18} parent=0 // pred_fallthru
    _
  // Predicated region
  $region14: #{_lambda_.18} parent=0 // pred_check
    _
  $region15: #{_lambda_.18} parent=0 // pred_check_branch
    %19 = sbr.rel (0) target = $region17
  $region16: #{_lambda_.18} parent=0 // pred_region
    _
  $region17: #{_lambda_.18} parent=0 // pred_fallthru
    _
  // Predicated region
  $region18: #{_lambda_.18} parent=0 // pred_check
    _
  $region19: #{_lambda_.18} parent=0 // pred_check_branch
    %21 = sbr.rel (0) target = $region21
  $region20: #{_lambda_.18} parent=0 // pred_region
    _
  $region21: #{_lambda_.18} parent=0 // pred_fallthru
    _
  // Predicated region
  $region22: #{_lambda_.18} parent=0 // pred_check
    _
  $region23: #{_lambda_.18} parent=0 // pred_check_branch
    %23 = sbr.rel (0) target = $region25
  $region24: #{_lambda_.18} parent=0 // pred_region
    _
  $region25: #{_lambda_.18} parent=0 // pred_fallthru
    _
  // Predicated region
  $region26: #{_lambda_.18} parent=0 // pred_check
    _
  $region27: #{_lambda_.18} parent=0 // pred_check_branch
    %25 = sbr.rel (0) target = $region29
  $region28: #{_lambda_.18} parent=0 // pred_region
    _
  $region29: #{_lambda_.18} parent=0 // pred_fallthru
    _
  %v27 = vld [vmem:[%s0] sm:$0x1]
  %v28 = vld [vmem:[%s0 + $0x1] sm:$0x1]
  %v29 = vld [vmem:[%s0 + $0x2] sm:$0x1]
  %v30 = vld [vmem:[%s0 + $0x3] sm:$0x1]
  %31 = vst [vmem:[#allocation2] sm:$0x3] 0
  %32 = vst [vmem:[#allocation2 + $0x2] sm:$0x3] 0
  %33 = vst [vmem:[#allocation2 + $0x4] sm:$0x3] 0
  %34 = vst [vmem:[#allocation2 + $0x6] sm:$0x3] 0
  %35 = vst [vmem:[#allocation2 + $0x8] sm:$0x3] 0
  %36 = vst [vmem:[#allocation2 + $0xa] sm:$0x3] 0
  %37 = vst [vmem:[#allocation2 + $0xc] sm:$0x3] 0
  %38 = vst [vmem:[#allocation2 + $0xe] sm:$0x3] 0
  %40 = vst [vmem:[#allocation1] ss:$2 sm:$0xff] %v27
  %v41 = vld [vmem:[#allocation1] sm:$0xff]
  %s43 = scalar_lea.vmem [#allocation1], 16
  %44 = vst [vmem:[%s43] ss:$2 sm:$0xff] %v28
  %v45 = vld [vmem:[#allocation1 + $0x10] sm:$0xff]
  %s47 = scalar_lea.vmem [#allocation1], 32
  %48 = vst [vmem:[%s47] ss:$2 sm:$0xff] %v29
  %v49 = vld [vmem:[#allocation1 + $0x20] sm:$0xff]
  %s51 = scalar_lea.vmem [#allocation1], 48
  %52 = vst [vmem:[%s51] ss:$2 sm:$0xff] %v30
  %v53 = vld [vmem:[#allocation1 + $0x30] sm:$0xff]
  %v54 = vshrl.u32 %v41, 16
  %v56 = vrot.slane %v54, 7
  %v57 = vshll.u32 %v41, 16
  %v59 = vor.u32 %v56, %v57
  %v60 = vshrl.u32 %v45, 16
  %v62 = vrot.slane %v60, 7
  %v63 = vshll.u32 %v45, 16
  %v65 = vor.u32 %v62, %v63
  %v66 = vshrl.u32 %v49, 16
  %v68 = vrot.slane %v66, 7
  %v69 = vshll.u32 %v49, 16
  %v71 = vor.u32 %v68, %v69
  %v72 = vshrl.u32 %v53, 16
  %v74 = vrot.slane %v72, 7
  %v75 = vshll.u32 %v53, 16
  %v77 = vor.u32 %v74, %v75
  %s82 = scalar_lea.vmem [#allocation2], 2
  %vm83 = vcmask 1041408
  %vm84 = vsmask.f32 1282
  %vm85 = vmand %vm83, %vm84
  %v86 = vld [vmem:[%s82] sm:$0x3]
  %v87 = vsel %vm85, %v59, %v86
  %88 = vst [vmem:[%s82] sm:$0x3] %v87
  %v89 = vld [vmem:[%s82 + $0x2] sm:$0x3]
  %v90 = vsel %vm85, %v65, %v89
  %91 = vst [vmem:[%s82 + $0x2] sm:$0x3] %v90
  %v92 = vld [vmem:[%s82 + $0x8] sm:$0x3]
  %v93 = vsel %vm85, %v71, %v92
  %94 = vst [vmem:[%s82 + $0x8] sm:$0x3] %v93
  %v95 = vld [vmem:[%s82 + $0xa] sm:$0x3]
  %v96 = vsel %vm85, %v77, %v95
  %97 = vst [vmem:[%s82 + $0xa] sm:$0x3] %v96
  %v98 = vld [vmem:[#allocation2] sm:$0x1]
  %v99 = vld [vmem:[#allocation2 + $0x2] sm:$0x1]
  %v100 = vld [vmem:[#allocation2 + $0x8] sm:$0x1]
  %v101 = vld [vmem:[#allocation2 + $0xa] sm:$0x1]
  %v102 = vld [vmem:[%s1] sm:$0xf]
  %v103 = vld [vmem:[%s1 + $0x4] sm:$0xf]
  %v104 = vld [vmem:[%s1 + $0x8] sm:$0xf]
  %v105 = vld [vmem:[%s1 + $0xc] sm:$0xf]
  %v106 = vld [vmem:[%s1 + $0x10] sm:$0xf]
  %v107 = vld [vmem:[%s1 + $0x14] sm:$0xf]
  %v108 = vld [vmem:[%s1 + $0x18] sm:$0xf]
  %v109 = vld [vmem:[%s1 + $0x1c] sm:$0xf]
  %v110 = vld [vmem:[%s1 + $0x20] sm:$0xf]
  %v111 = vld [vmem:[%s1 + $0x24] sm:$0xf]
  %v112 = vld [vmem:[%s1 + $0x28] sm:$0xf]
  %v113 = vld [vmem:[%s1 + $0x2c] sm:$0xf]
  %v114 = vld [vmem:[%s1 + $0x30] sm:$0xf]
  %v115 = vld [vmem:[%s1 + $0x34] sm:$0xf]
  %v116 = vld [vmem:[%s1 + $0x38] sm:$0xf]
  %v117 = vld [vmem:[%s1 + $0x3c] sm:$0xf]
  %v118 = vld [vmem:[#allocation2] sm:$0x3]
  %v119 = vld [vmem:[#allocation2 + $0x2] sm:$0x3]
  %v120 = vld [vmem:[#allocation2 + $0x8] sm:$0x3]
  %v121 = vld [vmem:[#allocation2 + $0xa] sm:$0x3]
  %v126 = vrot.slane %v118, 1
  %v127 = vrot.slane %v118, 2
  %v128 = vrot.slane %v118, 3
  %v129 = vrot.slane %v119, 1
  %v130 = vrot.slane %v119, 2
  %v131 = vrot.slane %v119, 3
  %v132 = vrot.slane %v120, 1
  %v133 = vrot.slane %v120, 2
  %v134 = vrot.slane %v120, 3
  %v135 = vrot.slane %v121, 1
  %v136 = vrot.slane %v121, 2
  %v137 = vrot.slane %v121, 3
  %vm138 = vcmask 1040384
  %v141 = vsel %vm138, %v118, %v126
  %vm142 = vcmask 1042434
  %v145 = vsel %vm142, %v127, %v128
  %vm146 = vcmask 1041408
  %v147 = vsel %vm146, %v141, %v145
  %vm148 = vcmask 1041409
  %v149 = vsel %vm148, %v118, %v126
  %vm150 = vcmask 1043459
  %v151 = vsel %vm150, %v127, %v128
  %vm152 = vcmask 1042433
  %v153 = vsel %vm152, %v149, %v151
  %v155 = vrot.slane %v153, 1
  %v158 = vsel %vm138, %v119, %v129
  %v161 = vsel %vm142, %v130, %v131
  %v162 = vsel %vm146, %v158, %v161
  %v163 = vsel %vm148, %v119, %v129
  %v164 = vsel %vm150, %v130, %v131
  %v165 = vsel %vm152, %v163, %v164
  %v167 = vrot.slane %v165, 1
  %v170 = vsel %vm138, %v120, %v132
  %v173 = vsel %vm142, %v133, %v134
  %v174 = vsel %vm146, %v170, %v173
  %v175 = vsel %vm148, %v120, %v132
  %v176 = vsel %vm150, %v133, %v134
  %v177 = vsel %vm152, %v175, %v176
  %v179 = vrot.slane %v177, 1
  %v182 = vsel %vm138, %v121, %v135
  %v185 = vsel %vm142, %v136, %v137
  %v186 = vsel %vm146, %v182, %v185
  %v187 = vsel %vm148, %v121, %v135
  %v188 = vsel %vm150, %v136, %v137
  %v189 = vsel %vm152, %v187, %v188
  %v191 = vrot.slane %v189, 1
  %vm192 = vsmask.f32 256
  %vm193 = vsmask.f32 1284
  %vm194 = vmor %vm192, %vm193
  %vm195 = vsmask.f32 2312
  %vm196 = vmor %vm194, %vm195
  %vm197 = vsmask.f32 3340
  %vm198 = vmor %vm196, %vm197
  %vm199 = vsmask.f32 4368
  %vm200 = vmor %vm198, %vm199
  %vm201 = vsmask.f32 5396
  %vm202 = vmor %vm200, %vm201
  %vm203 = vsmask.f32 6424
  %vm204 = vmor %vm202, %vm203
  %vm205 = vsmask.f32 7452
  %vm206 = vmor %vm204, %vm205
  %v207 = vshrl.u32 %v147, 16
  %v209 = vrot.slane %v207, 7
  %v210 = vrot.slane %v209, 1
  %v212 = vshll.u32 %v155, 16
  %v214 = vsel %vm206, %v210, %v212
  %v215 = vshrl.u32 %v162, 16
  %v217 = vrot.slane %v215, 7
  %v218 = vrot.slane %v217, 1
  %v220 = vshll.u32 %v167, 16
  %v222 = vsel %vm206, %v218, %v220
  %v223 = vshrl.u32 %v174, 16
  %v225 = vrot.slane %v223, 7
  %v226 = vrot.slane %v225, 1
  %v228 = vshll.u32 %v179, 16
  %v230 = vsel %vm206, %v226, %v228
  %v231 = vshrl.u32 %v186, 16
  %v233 = vrot.slane %v231, 7
  %v234 = vrot.slane %v233, 1
  %v236 = vshll.u32 %v191, 16
  %v238 = vsel %vm206, %v234, %v236
  %s239 = scalar_lea.vmem %s1, 64
  %v240 = vld [vmem:[%s239] sm:$0xf]
  %v241 = vld [vmem:[%s239 + $0x4] sm:$0xf]
  %v242 = vld [vmem:[%s239 + $0x8] sm:$0xf]
  %v243 = vld [vmem:[%s239 + $0xc] sm:$0xf]
  %v244 = vld [vmem:[%s239 + $0x10] sm:$0xf]
  %v245 = vld [vmem:[%s239 + $0x14] sm:$0xf]
  %v246 = vld [vmem:[%s239 + $0x18] sm:$0xf]
  %v247 = vld [vmem:[%s239 + $0x1c] sm:$0xf]
  %v248 = vld [vmem:[%s239 + $0x20] sm:$0xf]
  %v249 = vld [vmem:[%s239 + $0x24] sm:$0xf]
  %v250 = vld [vmem:[%s239 + $0x28] sm:$0xf]
  %v251 = vld [vmem:[%s239 + $0x2c] sm:$0xf]
  %v252 = vld [vmem:[%s239 + $0x30] sm:$0xf]
  %v253 = vld [vmem:[%s239 + $0x34] sm:$0xf]
  %v254 = vld [vmem:[%s239 + $0x38] sm:$0xf]
  %v255 = vld [vmem:[%s239 + $0x3c] sm:$0xf]
  %257 = vst [vmem:[#allocation1] ss:$9 sm:$0xff] %v214
  %s259 = scalar_lea.vmem [#allocation1], 1
  %260 = vst [vmem:[%s259] ss:$9 sm:$0xff] %v222
  %s262 = scalar_lea.vmem [#allocation1], 2
  %263 = vst [vmem:[%s262] ss:$9 sm:$0xff] %v230
  %s265 = scalar_lea.vmem [#allocation1], 3
  %266 = vst [vmem:[%s265] ss:$9 sm:$0xff] %v238
  %v267 = vld [vmem:[#allocation1] sm:$0xff]
  %v285 = vunpack.c.l.b16 %v240
  %v286 = vunpack.c.l.b16 %v241
  %v287 = vunpack.c.l.b16 %v242
  %v288 = vunpack.c.l.b16 %v243
  %v289 = vunpack.c.l.b16 %v244
  %v290 = vunpack.c.l.b16 %v245
  %v291 = vunpack.c.l.b16 %v246
  %v292 = vunpack.c.l.b16 %v247
  %v293 = vunpack.c.l.b16 %v248
  %v294 = vunpack.c.l.b16 %v249
  %v295 = vunpack.c.l.b16 %v250
  %v296 = vunpack.c.l.b16 %v251
  %v297 = vunpack.c.l.b16 %v252
  %v298 = vunpack.c.l.b16 %v253
  %v299 = vunpack.c.l.b16 %v254
  %v300 = vunpack.c.l.b16 %v255
  %v301 = vpack.c.b16 %v286, %v285
  %v302 = vpack.c.b16 %v288, %v287
  %v303 = vpack.c.b16 %v290, %v289
  %v304 = vpack.c.b16 %v292, %v291
  %v305 = vpack.c.b16 %v294, %v293
  %v306 = vpack.c.b16 %v296, %v295
  %v307 = vpack.c.b16 %v298, %v297
  %v308 = vpack.c.b16 %v300, %v299
  %317 = vmatpush.bf16.msra.mxu0 %v308
  %318 = vmatpush.bf16.msra.mxu0 %v307
  %319 = vmatpush.bf16.msra.mxu0 %v306
  %320 = vmatpush.bf16.msra.mxu0 %v305
  %321 = vmatpush.bf16.msra.mxu0 %v304
  %322 = vmatpush.bf16.msra.mxu0 %v303
  %323 = vmatpush.bf16.msra.mxu0 %v302
  %324 = vmatpush.bf16.msra.mxu0 %v301
  %325 = vmatmul.bf16.gmra.mxu0 %v267
  %v326 = vpop.f32.mrf.mxu0
  %v327 = vadd.f32 0.0, %v326
  %v328 = vpop.f32.mrf.mxu0
  %329 = vdwg.mxu0
  %331 = vst [vmem:[#allocation1] ss:$9 sm:$0xff] %v98
  %s333 = scalar_lea.vmem [#allocation1], 1
  %334 = vst [vmem:[%s333] ss:$9 sm:$0xff] %v99
  %s336 = scalar_lea.vmem [#allocation1], 2
  %337 = vst [vmem:[%s336] ss:$9 sm:$0xff] %v100
  %s339 = scalar_lea.vmem [#allocation1], 3
  %340 = vst [vmem:[%s339] ss:$9 sm:$0xff] %v101
  %v341 = vld [vmem:[#allocation1] sm:$0xff]
  %v359 = vunpack.c.l.b16 %v102
  %v360 = vunpack.c.l.b16 %v103
  %v361 = vunpack.c.l.b16 %v104
  %v362 = vunpack.c.l.b16 %v105
  %v363 = vunpack.c.l.b16 %v106
  %v364 = vunpack.c.l.b16 %v107
  %v365 = vunpack.c.l.b16 %v108
  %v366 = vunpack.c.l.b16 %v109
  %v367 = vunpack.c.l.b16 %v110
  %v368 = vunpack.c.l.b16 %v111
  %v369 = vunpack.c.l.b16 %v112
  %v370 = vunpack.c.l.b16 %v113
  %v371 = vunpack.c.l.b16 %v114
  %v372 = vunpack.c.l.b16 %v115
  %v373 = vunpack.c.l.b16 %v116
  %v374 = vunpack.c.l.b16 %v117
  %v375 = vpack.c.b16 %v360, %v359
  %v376 = vpack.c.b16 %v362, %v361
  %v377 = vpack.c.b16 %v364, %v363
  %v378 = vpack.c.b16 %v366, %v365
  %v379 = vpack.c.b16 %v368, %v367
  %v380 = vpack.c.b16 %v370, %v369
  %v381 = vpack.c.b16 %v372, %v371
  %v382 = vpack.c.b16 %v374, %v373
  %391 = vmatpush.bf16.msra.mxu0 %v382
  %392 = vmatpush.bf16.msra.mxu0 %v381
  %393 = vmatpush.bf16.msra.mxu0 %v380
  %394 = vmatpush.bf16.msra.mxu0 %v379
  %395 = vmatpush.bf16.msra.mxu0 %v378
  %396 = vmatpush.bf16.msra.mxu0 %v377
  %397 = vmatpush.bf16.msra.mxu0 %v376
  %398 = vmatpush.bf16.msra.mxu0 %v375
  %399 = vmatmul.bf16.gmra.mxu0 %v341
  %v400 = vpop.f32.mrf.mxu0
  %v401 = vadd.f32 %v327, %v400
  %v402 = vpop.f32.mrf.mxu0
  %403 = vdwg.mxu0
  %v404 = vld [vmem:[#allocation2] sm:$0x2]
  %v405 = vld [vmem:[#allocation2 + $0x2] sm:$0x2]
  %v406 = vld [vmem:[#allocation2 + $0x8] sm:$0x2]
  %v407 = vld [vmem:[#allocation2 + $0xa] sm:$0x2]
  %409 = vst [vmem:[#allocation1] sm:$0xff] %v404
  %s410 = scalar_lea.vmem [#allocation1], 1
  %v411 = vld [vmem:[%s410] ss:$2 sm:$0xff]
  %413 = vst [vmem:[#allocation1 + $0x10] sm:$0xff] %v405
  %s414 = scalar_lea.vmem [#allocation1], 17
  %v415 = vld [vmem:[%s414] ss:$2 sm:$0xff]
  %417 = vst [vmem:[#allocation1 + $0x20] sm:$0xff] %v406
  %s418 = scalar_lea.vmem [#allocation1], 33
  %v419 = vld [vmem:[%s418] ss:$2 sm:$0xff]
  %421 = vst [vmem:[#allocation1 + $0x30] sm:$0xff] %v407
  %s422 = scalar_lea.vmem [#allocation1], 49
  %v423 = vld [vmem:[%s422] ss:$2 sm:$0xff]
  %s424 = scalar_lea.vmem %s1, 128
  %v425 = vld [vmem:[%s424] sm:$0xf]
  %v426 = vld [vmem:[%s424 + $0x4] sm:$0xf]
  %v427 = vld [vmem:[%s424 + $0x8] sm:$0xf]
  %v428 = vld [vmem:[%s424 + $0xc] sm:$0xf]
  %v429 = vld [vmem:[%s424 + $0x10] sm:$0xf]
  %v430 = vld [vmem:[%s424 + $0x14] sm:$0xf]
  %v431 = vld [vmem:[%s424 + $0x18] sm:$0xf]
  %v432 = vld [vmem:[%s424 + $0x1c] sm:$0xf]
  %v433 = vld [vmem:[%s424 + $0x20] sm:$0xf]
  %v434 = vld [vmem:[%s424 + $0x24] sm:$0xf]
  %v435 = vld [vmem:[%s424 + $0x28] sm:$0xf]
  %v436 = vld [vmem:[%s424 + $0x2c] sm:$0xf]
  %v437 = vld [vmem:[%s424 + $0x30] sm:$0xf]
  %v438 = vld [vmem:[%s424 + $0x34] sm:$0xf]
  %v439 = vld [vmem:[%s424 + $0x38] sm:$0xf]
  %v440 = vld [vmem:[%s424 + $0x3c] sm:$0xf]
  %441 = vst [vmem:[#allocation1] ss:$9 sm:$0xff] %v411
  %s442 = scalar_lea.vmem [#allocation1], 1
  %443 = vst [vmem:[%s442] ss:$9 sm:$0xff] %v415
  %s444 = scalar_lea.vmem [#allocation1], 2
  %445 = vst [vmem:[%s444] ss:$9 sm:$0xff] %v419
  %s446 = scalar_lea.vmem [#allocation1], 3
  %447 = vst [vmem:[%s446] ss:$9 sm:$0xff] %v423
  %v448 = vld [vmem:[#allocation1] sm:$0xff]
  %v466 = vunpack.c.l.b16 %v425
  %v467 = vunpack.c.l.b16 %v426
  %v468 = vunpack.c.l.b16 %v427
  %v469 = vunpack.c.l.b16 %v428
  %v470 = vunpack.c.l.b16 %v429
  %v471 = vunpack.c.l.b16 %v430
  %v472 = vunpack.c.l.b16 %v431
  %v473 = vunpack.c.l.b16 %v432
  %v474 = vunpack.c.l.b16 %v433
  %v475 = vunpack.c.l.b16 %v434
  %v476 = vunpack.c.l.b16 %v435
  %v477 = vunpack.c.l.b16 %v436
  %v478 = vunpack.c.l.b16 %v437
  %v479 = vunpack.c.l.b16 %v438
  %v480 = vunpack.c.l.b16 %v439
  %v481 = vunpack.c.l.b16 %v440
  %v482 = vpack.c.b16 %v467, %v466
  %v483 = vpack.c.b16 %v469, %v468
  %v484 = vpack.c.b16 %v471, %v470
  %v485 = vpack.c.b16 %v473, %v472
  %v486 = vpack.c.b16 %v475, %v474
  %v487 = vpack.c.b16 %v477, %v476
  %v488 = vpack.c.b16 %v479, %v478
  %v489 = vpack.c.b16 %v481, %v480
  %498 = vmatpush.bf16.msra.mxu0 %v489
  %499 = vmatpush.bf16.msra.mxu0 %v488
  %500 = vmatpush.bf16.msra.mxu0 %v487
  %501 = vmatpush.bf16.msra.mxu0 %v486
  %502 = vmatpush.bf16.msra.mxu0 %v485
  %503 = vmatpush.bf16.msra.mxu0 %v484
  %504 = vmatpush.bf16.msra.mxu0 %v483
  %505 = vmatpush.bf16.msra.mxu0 %v482
  %506 = vmatmul.bf16.gmra.mxu0 %v448
  %v507 = vpop.f32.mrf.mxu0
  %v508 = vadd.f32 0.0, %v507
  %v509 = vpop.f32.mrf.mxu0
  %510 = vdwg.mxu0
  %v511 = vadd.f32 %v401, %v508
  %v512 = vld [vmem:[%s82] sm:$0x1]
  %v513 = vld [vmem:[%s82 + $0x2] sm:$0x1]
  %v514 = vld [vmem:[%s82 + $0x8] sm:$0x1]
  %v515 = vld [vmem:[%s82 + $0xa] sm:$0x1]
  %s516 = scalar_lea.vmem %s1, 192
  %v517 = vld [vmem:[%s516] sm:$0xf]
  %v518 = vld [vmem:[%s516 + $0x4] sm:$0xf]
  %v519 = vld [vmem:[%s516 + $0x8] sm:$0xf]
  %v520 = vld [vmem:[%s516 + $0xc] sm:$0xf]
  %v521 = vld [vmem:[%s516 + $0x10] sm:$0xf]
  %v522 = vld [vmem:[%s516 + $0x14] sm:$0xf]
  %v523 = vld [vmem:[%s516 + $0x18] sm:$0xf]
  %v524 = vld [vmem:[%s516 + $0x1c] sm:$0xf]
  %v525 = vld [vmem:[%s516 + $0x20] sm:$0xf]
  %v526 = vld [vmem:[%s516 + $0x24] sm:$0xf]
  %v527 = vld [vmem:[%s516 + $0x28] sm:$0xf]
  %v528 = vld [vmem:[%s516 + $0x2c] sm:$0xf]
  %v529 = vld [vmem:[%s516 + $0x30] sm:$0xf]
  %v530 = vld [vmem:[%s516 + $0x34] sm:$0xf]
  %v531 = vld [vmem:[%s516 + $0x38] sm:$0xf]
  %v532 = vld [vmem:[%s516 + $0x3c] sm:$0xf]
  %534 = vst [vmem:[#allocation1] ss:$9 sm:$0xff] %v512
  %s536 = scalar_lea.vmem [#allocation1], 1
  %537 = vst [vmem:[%s536] ss:$9 sm:$0xff] %v513
  %s539 = scalar_lea.vmem [#allocation1], 2
  %540 = vst [vmem:[%s539] ss:$9 sm:$0xff] %v514
  %s542 = scalar_lea.vmem [#allocation1], 3
  %543 = vst [vmem:[%s542] ss:$9 sm:$0xff] %v515
  %v544 = vld [vmem:[#allocation1] sm:$0xff]
  %v562 = vunpack.c.l.b16 %v517
  %v563 = vunpack.c.l.b16 %v518
  %v564 = vunpack.c.l.b16 %v519
  %v565 = vunpack.c.l.b16 %v520
  %v566 = vunpack.c.l.b16 %v521
  %v567 = vunpack.c.l.b16 %v522
  %v568 = vunpack.c.l.b16 %v523
  %v569 = vunpack.c.l.b16 %v524
  %v570 = vunpack.c.l.b16 %v525
  %v571 = vunpack.c.l.b16 %v526
  %v572 = vunpack.c.l.b16 %v527
  %v573 = vunpack.c.l.b16 %v528
  %v574 = vunpack.c.l.b16 %v529
  %v575 = vunpack.c.l.b16 %v530
  %v576 = vunpack.c.l.b16 %v531
  %v577 = vunpack.c.l.b16 %v532
  %v578 = vpack.c.b16 %v563, %v562
  %v579 = vpack.c.b16 %v565, %v564
  %v580 = vpack.c.b16 %v567, %v566
  %v581 = vpack.c.b16 %v569, %v568
  %v582 = vpack.c.b16 %v571, %v570
  %v583 = vpack.c.b16 %v573, %v572
  %v584 = vpack.c.b16 %v575, %v574
  %v585 = vpack.c.b16 %v577, %v576
  %594 = vmatpush.bf16.msra.mxu0 %v585
  %595 = vmatpush.bf16.msra.mxu0 %v584
  %596 = vmatpush.bf16.msra.mxu0 %v583
  %597 = vmatpush.bf16.msra.mxu0 %v582
  %598 = vmatpush.bf16.msra.mxu0 %v581
  %599 = vmatpush.bf16.msra.mxu0 %v580
  %600 = vmatpush.bf16.msra.mxu0 %v579
  %601 = vmatpush.bf16.msra.mxu0 %v578
  %602 = vmatmul.bf16.gmra.mxu0 %v544
  %v603 = vpop.f32.mrf.mxu0
  %v604 = vadd.f32 0.0, %v603
  %v605 = vpop.f32.mrf.mxu0
  %606 = vdwg.mxu0
  %v607 = vadd.f32 %v511, %v604
  %v608 = vld [vmem:[%s82] sm:$0x3]
  %v609 = vld [vmem:[%s82 + $0x2] sm:$0x3]
  %v610 = vld [vmem:[%s82 + $0x8] sm:$0x3]
  %v611 = vld [vmem:[%s82 + $0xa] sm:$0x3]
  %v616 = vrot.slane %v608, 1
  %v617 = vrot.slane %v608, 2
  %v618 = vrot.slane %v608, 3
  %v619 = vrot.slane %v609, 1
  %v620 = vrot.slane %v609, 2
  %v621 = vrot.slane %v609, 3
  %v622 = vrot.slane %v610, 1
  %v623 = vrot.slane %v610, 2
  %v624 = vrot.slane %v610, 3
  %v625 = vrot.slane %v611, 1
  %v626 = vrot.slane %v611, 2
  %v627 = vrot.slane %v611, 3
  %v630 = vsel %vm138, %v608, %v616
  %v633 = vsel %vm142, %v617, %v618
  %v634 = vsel %vm146, %v630, %v633
  %v635 = vsel %vm148, %v608, %v616
  %v636 = vsel %vm150, %v617, %v618
  %v637 = vsel %vm152, %v635, %v636
  %v639 = vrot.slane %v637, 1
  %v642 = vsel %vm138, %v609, %v619
  %v645 = vsel %vm142, %v620, %v621
  %v646 = vsel %vm146, %v642, %v645
  %v647 = vsel %vm148, %v609, %v619
  %v648 = vsel %vm150, %v620, %v621
  %v649 = vsel %vm152, %v647, %v648
  %v651 = vrot.slane %v649, 1
  %v654 = vsel %vm138, %v610, %v622
  %v657 = vsel %vm142, %v623, %v624
  %v658 = vsel %vm146, %v654, %v657
  %v659 = vsel %vm148, %v610, %v622
  %v660 = vsel %vm150, %v623, %v624
  %v661 = vsel %vm152, %v659, %v660
  %v663 = vrot.slane %v661, 1
  %v666 = vsel %vm138, %v611, %v625
  %v669 = vsel %vm142, %v626, %v627
  %v670 = vsel %vm146, %v666, %v669
  %v671 = vsel %vm148, %v611, %v625
  %v672 = vsel %vm150, %v626, %v627
  %v673 = vsel %vm152, %v671, %v672
  %v675 = vrot.slane %v673, 1
  %v676 = vshrl.u32 %v634, 16
  %v678 = vrot.slane %v676, 7
  %v679 = vrot.slane %v678, 1
  %v681 = vshll.u32 %v639, 16
  %v683 = vsel %vm206, %v679, %v681
  %v684 = vshrl.u32 %v646, 16
  %v686 = vrot.slane %v684, 7
  %v687 = vrot.slane %v686, 1
  %v689 = vshll.u32 %v651, 16
  %v691 = vsel %vm206, %v687, %v689
  %v692 = vshrl.u32 %v658, 16
  %v694 = vrot.slane %v692, 7
  %v695 = vrot.slane %v694, 1
  %v697 = vshll.u32 %v663, 16
  %v699 = vsel %vm206, %v695, %v697
  %v700 = vshrl.u32 %v670, 16
  %v702 = vrot.slane %v700, 7
  %v703 = vrot.slane %v702, 1
  %v705 = vshll.u32 %v675, 16
  %v707 = vsel %vm206, %v703, %v705
  %s708 = scalar_lea.vmem %s1, 256
  %v709 = vld [vmem:[%s708] sm:$0xf]
  %v710 = vld [vmem:[%s708 + $0x4] sm:$0xf]
  %v711 = vld [vmem:[%s708 + $0x8] sm:$0xf]
  %v712 = vld [vmem:[%s708 + $0xc] sm:$0xf]
  %v713 = vld [vmem:[%s708 + $0x10] sm:$0xf]
  %v714 = vld [vmem:[%s708 + $0x14] sm:$0xf]
  %v715 = vld [vmem:[%s708 + $0x18] sm:$0xf]
  %v716 = vld [vmem:[%s708 + $0x1c] sm:$0xf]
  %v717 = vld [vmem:[%s708 + $0x20] sm:$0xf]
  %v718 = vld [vmem:[%s708 + $0x24] sm:$0xf]
  %v719 = vld [vmem:[%s708 + $0x28] sm:$0xf]
  %v720 = vld [vmem:[%s708 + $0x2c] sm:$0xf]
  %v721 = vld [vmem:[%s708 + $0x30] sm:$0xf]
  %v722 = vld [vmem:[%s708 + $0x34] sm:$0xf]
  %v723 = vld [vmem:[%s708 + $0x38] sm:$0xf]
  %v724 = vld [vmem:[%s708 + $0x3c] sm:$0xf]
  %726 = vst [vmem:[#allocation1] ss:$9 sm:$0xff] %v683
  %s728 = scalar_lea.vmem [#allocation1], 1
  %729 = vst [vmem:[%s728] ss:$9 sm:$0xff] %v691
  %s731 = scalar_lea.vmem [#allocation1], 2
  %732 = vst [vmem:[%s731] ss:$9 sm:$0xff] %v699
  %s734 = scalar_lea.vmem [#allocation1], 3
  %735 = vst [vmem:[%s734] ss:$9 sm:$0xff] %v707
  %v736 = vld [vmem:[#allocation1] sm:$0xff]
  %v754 = vunpack.c.l.b16 %v709
  %v755 = vunpack.c.l.b16 %v710
  %v756 = vunpack.c.l.b16 %v711
  %v757 = vunpack.c.l.b16 %v712
  %v758 = vunpack.c.l.b16 %v713
  %v759 = vunpack.c.l.b16 %v714
  %v760 = vunpack.c.l.b16 %v715
  %v761 = vunpack.c.l.b16 %v716
  %v762 = vunpack.c.l.b16 %v717
  %v763 = vunpack.c.l.b16 %v718
  %v764 = vunpack.c.l.b16 %v719
  %v765 = vunpack.c.l.b16 %v720
  %v766 = vunpack.c.l.b16 %v721
  %v767 = vunpack.c.l.b16 %v722
  %v768 = vunpack.c.l.b16 %v723
  %v769 = vunpack.c.l.b16 %v724
  %v770 = vpack.c.b16 %v755, %v754
  %v771 = vpack.c.b16 %v757, %v756
  %v772 = vpack.c.b16 %v759, %v758
  %v773 = vpack.c.b16 %v761, %v760
  %v774 = vpack.c.b16 %v763, %v762
  %v775 = vpack.c.b16 %v765, %v764
  %v776 = vpack.c.b16 %v767, %v766
  %v777 = vpack.c.b16 %v769, %v768
  %786 = vmatpush.bf16.msra.mxu0 %v777
  %787 = vmatpush.bf16.msra.mxu0 %v776
  %788 = vmatpush.bf16.msra.mxu0 %v775
  %789 = vmatpush.bf16.msra.mxu0 %v774
  %790 = vmatpush.bf16.msra.mxu0 %v773
  %791 = vmatpush.bf16.msra.mxu0 %v772
  %792 = vmatpush.bf16.msra.mxu0 %v771
  %793 = vmatpush.bf16.msra.mxu0 %v770
  %794 = vmatmul.bf16.gmra.mxu0 %v736
  %v795 = vpop.f32.mrf.mxu0
  %v796 = vadd.f32 0.0, %v795
  %v797 = vpop.f32.mrf.mxu0
  %798 = vdwg.mxu0
  %v799 = vadd.f32 %v607, %v796
  %v800 = vld [vmem:[%s82] sm:$0x2]
  %v801 = vld [vmem:[%s82 + $0x2] sm:$0x2]
  %v802 = vld [vmem:[%s82 + $0x8] sm:$0x2]
  %v803 = vld [vmem:[%s82 + $0xa] sm:$0x2]
  %805 = vst [vmem:[#allocation1] sm:$0xff] %v800
  %s806 = scalar_lea.vmem [#allocation1], 1
  %v807 = vld [vmem:[%s806] ss:$2 sm:$0xff]
  %809 = vst [vmem:[#allocation1 + $0x10] sm:$0xff] %v801
  %s810 = scalar_lea.vmem [#allocation1], 17
  %v811 = vld [vmem:[%s810] ss:$2 sm:$0xff]
  %813 = vst [vmem:[#allocation1 + $0x20] sm:$0xff] %v802
  %s814 = scalar_lea.vmem [#allocation1], 33
  %v815 = vld [vmem:[%s814] ss:$2 sm:$0xff]
  %817 = vst [vmem:[#allocation1 + $0x30] sm:$0xff] %v803
  %s818 = scalar_lea.vmem [#allocation1], 49
  %v819 = vld [vmem:[%s818] ss:$2 sm:$0xff]
  %s820 = scalar_lea.vmem %s1, 320
  %v821 = vld [vmem:[%s820] sm:$0xf]
  %v822 = vld [vmem:[%s820 + $0x4] sm:$0xf]
  %v823 = vld [vmem:[%s820 + $0x8] sm:$0xf]
  %v824 = vld [vmem:[%s820 + $0xc] sm:$0xf]
  %v825 = vld [vmem:[%s820 + $0x10] sm:$0xf]
  %v826 = vld [vmem:[%s820 + $0x14] sm:$0xf]
  %v827 = vld [vmem:[%s820 + $0x18] sm:$0xf]
  %v828 = vld [vmem:[%s820 + $0x1c] sm:$0xf]
  %v829 = vld [vmem:[%s820 + $0x20] sm:$0xf]
  %v830 = vld [vmem:[%s820 + $0x24] sm:$0xf]
  %v831 = vld [vmem:[%s820 + $0x28] sm:$0xf]
  %v832 = vld [vmem:[%s820 + $0x2c] sm:$0xf]
  %v833 = vld [vmem:[%s820 + $0x30] sm:$0xf]
  %v834 = vld [vmem:[%s820 + $0x34] sm:$0xf]
  %v835 = vld [vmem:[%s820 + $0x38] sm:$0xf]
  %v836 = vld [vmem:[%s820 + $0x3c] sm:$0xf]
  %837 = vst [vmem:[#allocation1] ss:$9 sm:$0xff] %v807
  %s838 = scalar_lea.vmem [#allocation1], 1
  %839 = vst [vmem:[%s838] ss:$9 sm:$0xff] %v811
  %s840 = scalar_lea.vmem [#allocation1], 2
  %841 = vst [vmem:[%s840] ss:$9 sm:$0xff] %v815
  %s842 = scalar_lea.vmem [#allocation1], 3
  %843 = vst [vmem:[%s842] ss:$9 sm:$0xff] %v819
  %v844 = vld [vmem:[#allocation1] sm:$0xff]
  %v862 = vunpack.c.l.b16 %v821
  %v863 = vunpack.c.l.b16 %v822
  %v864 = vunpack.c.l.b16 %v823
  %v865 = vunpack.c.l.b16 %v824
  %v866 = vunpack.c.l.b16 %v825
  %v867 = vunpack.c.l.b16 %v826
  %v868 = vunpack.c.l.b16 %v827
  %v869 = vunpack.c.l.b16 %v828
  %v870 = vunpack.c.l.b16 %v829
  %v871 = vunpack.c.l.b16 %v830
  %v872 = vunpack.c.l.b16 %v831
  %v873 = vunpack.c.l.b16 %v832
  %v874 = vunpack.c.l.b16 %v833
  %v875 = vunpack.c.l.b16 %v834
  %v876 = vunpack.c.l.b16 %v835
  %v877 = vunpack.c.l.b16 %v836
  %v878 = vpack.c.b16 %v863, %v862
  %v879 = vpack.c.b16 %v865, %v864
  %v880 = vpack.c.b16 %v867, %v866
  %v881 = vpack.c.b16 %v869, %v868
  %v882 = vpack.c.b16 %v871, %v870
  %v883 = vpack.c.b16 %v873, %v872
  %v884 = vpack.c.b16 %v875, %v874
  %v885 = vpack.c.b16 %v877, %v876
  %894 = vmatpush.bf16.msra.mxu0 %v885
  %895 = vmatpush.bf16.msra.mxu0 %v884
  %896 = vmatpush.bf16.msra.mxu0 %v883
  %897 = vmatpush.bf16.msra.mxu0 %v882
  %898 = vmatpush.bf16.msra.mxu0 %v881
  %899 = vmatpush.bf16.msra.mxu0 %v880
  %900 = vmatpush.bf16.msra.mxu0 %v879
  %901 = vmatpush.bf16.msra.mxu0 %v878
  %902 = vmatmul.bf16.gmra.mxu0 %v844
  %v903 = vpop.f32.mrf.mxu0
  %v904 = vadd.f32 0.0, %v903
  %v905 = vpop.f32.mrf.mxu0
  %906 = vdwg.mxu0
  %v907 = vadd.f32 %v799, %v904
  %s908 = scalar_lea.vmem [#allocation2], 4
  %v909 = vld [vmem:[%s908] sm:$0x1]
  %v910 = vld [vmem:[%s908 + $0x2] sm:$0x1]
  %v911 = vld [vmem:[%s908 + $0x8] sm:$0x1]
  %v912 = vld [vmem:[%s908 + $0xa] sm:$0x1]
  %s913 = scalar_lea.vmem %s1, 384
  %v914 = vld [vmem:[%s913] sm:$0xf]
  %v915 = vld [vmem:[%s913 + $0x4] sm:$0xf]
  %v916 = vld [vmem:[%s913 + $0x8] sm:$0xf]
  %v917 = vld [vmem:[%s913 + $0xc] sm:$0xf]
  %v918 = vld [vmem:[%s913 + $0x10] sm:$0xf]
  %v919 = vld [vmem:[%s913 + $0x14] sm:$0xf]
  %v920 = vld [vmem:[%s913 + $0x18] sm:$0xf]
  %v921 = vld [vmem:[%s913 + $0x1c] sm:$0xf]
  %v922 = vld [vmem:[%s913 + $0x20] sm:$0xf]
  %v923 = vld [vmem:[%s913 + $0x24] sm:$0xf]
  %v924 = vld [vmem:[%s913 + $0x28] sm:$0xf]
  %v925 = vld [vmem:[%s913 + $0x2c] sm:$0xf]
  %v926 = vld [vmem:[%s913 + $0x30] sm:$0xf]
  %v927 = vld [vmem:[%s913 + $0x34] sm:$0xf]
  %v928 = vld [vmem:[%s913 + $0x38] sm:$0xf]
  %v929 = vld [vmem:[%s913 + $0x3c] sm:$0xf]
  %931 = vst [vmem:[#allocation1] ss:$9 sm:$0xff] %v909
  %s933 = scalar_lea.vmem [#allocation1], 1
  %934 = vst [vmem:[%s933] ss:$9 sm:$0xff] %v910
  %s936 = scalar_lea.vmem [#allocation1], 2
  %937 = vst [vmem:[%s936] ss:$9 sm:$0xff] %v911
  %s939 = scalar_lea.vmem [#allocation1], 3
  %940 = vst [vmem:[%s939] ss:$9 sm:$0xff] %v912
  %v941 = vld [vmem:[#allocation1] sm:$0xff]
  %v959 = vunpack.c.l.b16 %v914
  %v960 = vunpack.c.l.b16 %v915
  %v961 = vunpack.c.l.b16 %v916
  %v962 = vunpack.c.l.b16 %v917
  %v963 = vunpack.c.l.b16 %v918
  %v964 = vunpack.c.l.b16 %v919
  %v965 = vunpack.c.l.b16 %v920
  %v966 = vunpack.c.l.b16 %v921
  %v967 = vunpack.c.l.b16 %v922
  %v968 = vunpack.c.l.b16 %v923
  %v969 = vunpack.c.l.b16 %v924
  %v970 = vunpack.c.l.b16 %v925
  %v971 = vunpack.c.l.b16 %v926
  %v972 = vunpack.c.l.b16 %v927
  %v973 = vunpack.c.l.b16 %v928
  %v974 = vunpack.c.l.b16 %v929
  %v975 = vpack.c.b16 %v960, %v959
  %v976 = vpack.c.b16 %v962, %v961
  %v977 = vpack.c.b16 %v964, %v963
  %v978 = vpack.c.b16 %v966, %v965
  %v979 = vpack.c.b16 %v968, %v967
  %v980 = vpack.c.b16 %v970, %v969
  %v981 = vpack.c.b16 %v972, %v971
  %v982 = vpack.c.b16 %v974, %v973
  %991 = vmatpush.bf16.msra.mxu0 %v982
  %992 = vmatpush.bf16.msra.mxu0 %v981
  %993 = vmatpush.bf16.msra.mxu0 %v980
  %994 = vmatpush.bf16.msra.mxu0 %v979
  %995 = vmatpush.bf16.msra.mxu0 %v978
  %996 = vmatpush.bf16.msra.mxu0 %v977
  %997 = vmatpush.bf16.msra.mxu0 %v976
  %998 = vmatpush.bf16.msra.mxu0 %v975
  %999 = vmatmul.bf16.gmra.mxu0 %v941
  %v1000 = vpop.f32.mrf.mxu0
  %v1001 = vadd.f32 0.0, %v1000
  %v1002 = vpop.f32.mrf.mxu0
  %1003 = vdwg.mxu0
  %v1004 = vadd.f32 %v907, %v1001
  %v1005 = vld [vmem:[%s908] sm:$0x3]
  %v1006 = vld [vmem:[%s908 + $0x2] sm:$0x3]
  %v1007 = vld [vmem:[%s908 + $0x8] sm:$0x3]
  %v1008 = vld [vmem:[%s908 + $0xa] sm:$0x3]
  %v1013 = vrot.slane %v1005, 1
  %v1014 = vrot.slane %v1005, 2
  %v1015 = vrot.slane %v1005, 3
  %v1016 = vrot.slane %v1006, 1
  %v1017 = vrot.slane %v1006, 2
  %v1018 = vrot.slane %v1006, 3
  %v1019 = vrot.slane %v1007, 1
  %v1020 = vrot.slane %v1007, 2
  %v1021 = vrot.slane %v1007, 3
  %v1022 = vrot.slane %v1008, 1
  %v1023 = vrot.slane %v1008, 2
  %v1024 = vrot.slane %v1008, 3
  %v1027 = vsel %vm138, %v1005, %v1013
  %v1030 = vsel %vm142, %v1014, %v1015
  %v1031 = vsel %vm146, %v1027, %v1030
  %v1032 = vsel %vm148, %v1005, %v1013
  %v1033 = vsel %vm150, %v1014, %v1015
  %v1034 = vsel %vm152, %v1032, %v1033
  %v1036 = vrot.slane %v1034, 1
  %v1039 = vsel %vm138, %v1006, %v1016
  %v1042 = vsel %vm142, %v1017, %v1018
  %v1043 = vsel %vm146, %v1039, %v1042
  %v1044 = vsel %vm148, %v1006, %v1016
  %v1045 = vsel %vm150, %v1017, %v1018
  %v1046 = vsel %vm152, %v1044, %v1045
  %v1048 = vrot.slane %v1046, 1
  %v1051 = vsel %vm138, %v1007, %v1019
  %v1054 = vsel %vm142, %v1020, %v1021
  %v1055 = vsel %vm146, %v1051, %v1054
  %v1056 = vsel %vm148, %v1007, %v1019
  %v1057 = vsel %vm150, %v1020, %v1021
  %v1058 = vsel %vm152, %v1056, %v1057
  %v1060 = vrot.slane %v1058, 1
  %v1063 = vsel %vm138, %v1008, %v1022
  %v1066 = vsel %vm142, %v1023, %v1024
  %v1067 = vsel %vm146, %v1063, %v1066
  %v1068 = vsel %vm148, %v1008, %v1022
  %v1069 = vsel %vm150, %v1023, %v1024
  %v1070 = vsel %vm152, %v1068, %v1069
  %v1072 = vrot.slane %v1070, 1
  %v1073 = vshrl.u32 %v1031, 16
  %v1075 = vrot.slane %v1073, 7
  %v1076 = vrot.slane %v1075, 1
  %v1078 = vshll.u32 %v1036, 16
  %v1080 = vsel %vm206, %v1076, %v1078
  %v1081 = vshrl.u32 %v1043, 16
  %v1083 = vrot.slane %v1081, 7
  %v1084 = vrot.slane %v1083, 1
  %v1086 = vshll.u32 %v1048, 16
  %v1088 = vsel %vm206, %v1084, %v1086
  %v1089 = vshrl.u32 %v1055, 16
  %v1091 = vrot.slane %v1089, 7
  %v1092 = vrot.slane %v1091, 1
  %v1094 = vshll.u32 %v1060, 16
  %v1096 = vsel %vm206, %v1092, %v1094
  %v1097 = vshrl.u32 %v1067, 16
  %v1099 = vrot.slane %v1097, 7
  %v1100 = vrot.slane %v1099, 1
  %v1102 = vshll.u32 %v1072, 16
  %v1104 = vsel %vm206, %v1100, %v1102
  %s1105 = scalar_lea.vmem %s1, 448
  %v1106 = vld [vmem:[%s1105] sm:$0xf]
  %v1107 = vld [vmem:[%s1105 + $0x4] sm:$0xf]
  %v1108 = vld [vmem:[%s1105 + $0x8] sm:$0xf]
  %v1109 = vld [vmem:[%s1105 + $0xc] sm:$0xf]
  %v1110 = vld [vmem:[%s1105 + $0x10] sm:$0xf]
  %v1111 = vld [vmem:[%s1105 + $0x14] sm:$0xf]
  %v1112 = vld [vmem:[%s1105 + $0x18] sm:$0xf]
  %v1113 = vld [vmem:[%s1105 + $0x1c] sm:$0xf]
  %v1114 = vld [vmem:[%s1105 + $0x20] sm:$0xf]
  %v1115 = vld [vmem:[%s1105 + $0x24] sm:$0xf]
  %v1116 = vld [vmem:[%s1105 + $0x28] sm:$0xf]
  %v1117 = vld [vmem:[%s1105 + $0x2c] sm:$0xf]
  %v1118 = vld [vmem:[%s1105 + $0x30] sm:$0xf]
  %v1119 = vld [vmem:[%s1105 + $0x34] sm:$0xf]
  %v1120 = vld [vmem:[%s1105 + $0x38] sm:$0xf]
  %v1121 = vld [vmem:[%s1105 + $0x3c] sm:$0xf]
  %1123 = vst [vmem:[#allocation1] ss:$9 sm:$0xff] %v1080
  %s1125 = scalar_lea.vmem [#allocation1], 1
  %1126 = vst [vmem:[%s1125] ss:$9 sm:$0xff] %v1088
  %s1128 = scalar_lea.vmem [#allocation1], 2
  %1129 = vst [vmem:[%s1128] ss:$9 sm:$0xff] %v1096
  %s1131 = scalar_lea.vmem [#allocation1], 3
  %1132 = vst [vmem:[%s1131] ss:$9 sm:$0xff] %v1104
  %v1133 = vld [vmem:[#allocation1] sm:$0xff]
  %v1151 = vunpack.c.l.b16 %v1106
  %v1152 = vunpack.c.l.b16 %v1107
  %v1153 = vunpack.c.l.b16 %v1108
  %v1154 = vunpack.c.l.b16 %v1109
  %v1155 = vunpack.c.l.b16 %v1110
  %v1156 = vunpack.c.l.b16 %v1111
  %v1157 = vunpack.c.l.b16 %v1112
  %v1158 = vunpack.c.l.b16 %v1113
  %v1159 = vunpack.c.l.b16 %v1114
  %v1160 = vunpack.c.l.b16 %v1115
  %v1161 = vunpack.c.l.b16 %v1116
  %v1162 = vunpack.c.l.b16 %v1117
  %v1163 = vunpack.c.l.b16 %v1118
  %v1164 = vunpack.c.l.b16 %v1119
  %v1165 = vunpack.c.l.b16 %v1120
  %v1166 = vunpack.c.l.b16 %v1121
  %v1167 = vpack.c.b16 %v1152, %v1151
  %v1168 = vpack.c.b16 %v1154, %v1153
  %v1169 = vpack.c.b16 %v1156, %v1155
  %v1170 = vpack.c.b16 %v1158, %v1157
  %v1171 = vpack.c.b16 %v1160, %v1159
  %v1172 = vpack.c.b16 %v1162, %v1161
  %v1173 = vpack.c.b16 %v1164, %v1163
  %v1174 = vpack.c.b16 %v1166, %v1165
  %1183 = vmatpush.bf16.msra.mxu0 %v1174
  %1184 = vmatpush.bf16.msra.mxu0 %v1173
  %1185 = vmatpush.bf16.msra.mxu0 %v1172
  %1186 = vmatpush.bf16.msra.mxu0 %v1171
  %1187 = vmatpush.bf16.msra.mxu0 %v1170
  %1188 = vmatpush.bf16.msra.mxu0 %v1169
  %1189 = vmatpush.bf16.msra.mxu0 %v1168
  %1190 = vmatpush.bf16.msra.mxu0 %v1167
  %1191 = vmatmul.bf16.gmra.mxu0 %v1133
  %v1192 = vpop.f32.mrf.mxu0
  %v1193 = vadd.f32 0.0, %v1192
  %v1194 = vpop.f32.mrf.mxu0
  %1195 = vdwg.mxu0
  %v1196 = vadd.f32 %v1004, %v1193
  %v1197 = vld [vmem:[%s908] sm:$0x2]
  %v1198 = vld [vmem:[%s908 + $0x2] sm:$0x2]
  %v1199 = vld [vmem:[%s908 + $0x8] sm:$0x2]
  %v1200 = vld [vmem:[%s908 + $0xa] sm:$0x2]
  %1202 = vst [vmem:[#allocation1] sm:$0xff] %v1197
  %s1203 = scalar_lea.vmem [#allocation1], 1
  %v1204 = vld [vmem:[%s1203] ss:$2 sm:$0xff]
  %1206 = vst [vmem:[#allocation1 + $0x10] sm:$0xff] %v1198
  %s1207 = scalar_lea.vmem [#allocation1], 17
  %v1208 = vld [vmem:[%s1207] ss:$2 sm:$0xff]
  %1210 = vst [vmem:[#allocation1 + $0x20] sm:$0xff] %v1199
  %s1211 = scalar_lea.vmem [#allocation1], 33
  %v1212 = vld [vmem:[%s1211] ss:$2 sm:$0xff]
  %1214 = vst [vmem:[#allocation1 + $0x30] sm:$0xff] %v1200
  %s1215 = scalar_lea.vmem [#allocation1], 49
  %v1216 = vld [vmem:[%s1215] ss:$2 sm:$0xff]
  %s1217 = scalar_lea.vmem %s1, 512
  %v1218 = vld [vmem:[%s1217] sm:$0xf]
  %v1219 = vld [vmem:[%s1217 + $0x4] sm:$0xf]
  %v1220 = vld [vmem:[%s1217 + $0x8] sm:$0xf]
  %v1221 = vld [vmem:[%s1217 + $0xc] sm:$0xf]
  %v1222 = vld [vmem:[%s1217 + $0x10] sm:$0xf]
  %v1223 = vld [vmem:[%s1217 + $0x14] sm:$0xf]
  %v1224 = vld [vmem:[%s1217 + $0x18] sm:$0xf]
  %v1225 = vld [vmem:[%s1217 + $0x1c] sm:$0xf]
  %v1226 = vld [vmem:[%s1217 + $0x20] sm:$0xf]
  %v1227 = vld [vmem:[%s1217 + $0x24] sm:$0xf]
  %v1228 = vld [vmem:[%s1217 + $0x28] sm:$0xf]
  %v1229 = vld [vmem:[%s1217 + $0x2c] sm:$0xf]
  %v1230 = vld [vmem:[%s1217 + $0x30] sm:$0xf]
  %v1231 = vld [vmem:[%s1217 + $0x34] sm:$0xf]
  %v1232 = vld [vmem:[%s1217 + $0x38] sm:$0xf]
  %v1233 = vld [vmem:[%s1217 + $0x3c] sm:$0xf]
  %1234 = vst [vmem:[#allocation1] ss:$9 sm:$0xff] %v1204
  %s1235 = scalar_lea.vmem [#allocation1], 1
  %1236 = vst [vmem:[%s1235] ss:$9 sm:$0xff] %v1208
  %s1237 = scalar_lea.vmem [#allocation1], 2
  %1238 = vst [vmem:[%s1237] ss:$9 sm:$0xff] %v1212
  %s1239 = scalar_lea.vmem [#allocation1], 3
  %1240 = vst [vmem:[%s1239] ss:$9 sm:$0xff] %v1216
  %v1241 = vld [vmem:[#allocation1] sm:$0xff]
  %v1259 = vunpack.c.l.b16 %v1218
  %v1260 = vunpack.c.l.b16 %v1219
  %v1261 = vunpack.c.l.b16 %v1220
  %v1262 = vunpack.c.l.b16 %v1221
  %v1263 = vunpack.c.l.b16 %v1222
  %v1264 = vunpack.c.l.b16 %v1223
  %v1265 = vunpack.c.l.b16 %v1224
  %v1266 = vunpack.c.l.b16 %v1225
  %v1267 = vunpack.c.l.b16 %v1226
  %v1268 = vunpack.c.l.b16 %v1227
  %v1269 = vunpack.c.l.b16 %v1228
  %v1270 = vunpack.c.l.b16 %v1229
  %v1271 = vunpack.c.l.b16 %v1230
  %v1272 = vunpack.c.l.b16 %v1231
  %v1273 = vunpack.c.l.b16 %v1232
  %v1274 = vunpack.c.l.b16 %v1233
  %v1275 = vpack.c.b16 %v1260, %v1259
  %v1276 = vpack.c.b16 %v1262, %v1261
  %v1277 = vpack.c.b16 %v1264, %v1263
  %v1278 = vpack.c.b16 %v1266, %v1265
  %v1279 = vpack.c.b16 %v1268, %v1267
  %v1280 = vpack.c.b16 %v1270, %v1269
  %v1281 = vpack.c.b16 %v1272, %v1271
  %v1282 = vpack.c.b16 %v1274, %v1273
  %1291 = vmatpush.bf16.msra.mxu0 %v1282
  %1292 = vmatpush.bf16.msra.mxu0 %v1281
  %1293 = vmatpush.bf16.msra.mxu0 %v1280
  %1294 = vmatpush.bf16.msra.mxu0 %v1279
  %1295 = vmatpush.bf16.msra.mxu0 %v1278
  %1296 = vmatpush.bf16.msra.mxu0 %v1277
  %1297 = vmatpush.bf16.msra.mxu0 %v1276
  %1298 = vmatpush.bf16.msra.mxu0 %v1275
  %1299 = vmatmul.bf16.gmra.mxu0 %v1241
  %v1300 = vpop.f32.mrf.mxu0
  %v1301 = vadd.f32 0.0, %v1300
  %v1302 = vpop.f32.mrf.mxu0
  %1303 = vdwg.mxu0
  %v1304 = vadd.f32 %v1196, %v1301
  %v1305 = vrot.slane %v1304, 4
  %v1306 = vadd.f32 %v1304, %v1305
  %v1307 = vrot.slane %v1306, 2
  %v1308 = vadd.f32 %v1306, %v1307
  %v1309 = vrot.slane %v1308, 1
  %v1310 = vadd.f32 %v1308, %v1309
  %v1311 = vrcp.pop 8.0
  %v1312 = vmul.f32 8.0, %v1311
  %v1313 = vsub.f32 1.0, %v1312
  %v1314 = vmul.f32 %v1311, %v1313
  %v1315 = vadd.f32 %v1311, %v1314
  %vm1316 = vweird.f32 %v1311
  %v1317 = vsel %vm1316, %v1311, %v1315
  %v1318 = vmul.f32 %v1310, %v1317
  %v1319 = vmul.f32 %v1304, %v1304
  %v1320 = vrot.slane %v1319, 4
  %v1321 = vadd.f32 %v1319, %v1320
  %v1322 = vrot.slane %v1321, 2
  %v1323 = vadd.f32 %v1321, %v1322
  %v1324 = vrot.slane %v1323, 1
  %v1325 = vadd.f32 %v1323, %v1324
  %v1326 = vmul.f32 %v1325, %v1317
  %v1327 = vmul.f32 %v1318, %v1318
  %v1328 = vsub.f32 %v1326, %v1327
  %v1329 = vmax.f32 %v1328, 0.0
  %v1330 = vsub.f32 %v1304, %v1318
  %v1331 = vld [vmem:[%s3] sm:$0x1]
  %v1332 = vadd.f32 %v1329, 1e-05
  %v1333 = vrsqrt.pop %v1332
  %v1334 = vmul.f32 %v1333, %v1332
  %v1335 = vmul.f32 %v1334, %v1333
  %v1336 = vmul.f32 0.5, %v1335
  %v1337 = vsub.f32 1.5, %v1336
  %v1338 = vmul.f32 %v1333, %v1337
  %vm1339 = vweird.f32 %v1332
  %vm1340 = vweird.f32 %v1333
  %vm1341 = vmor %vm1339, %vm1340
  %v1342 = vsel %vm1341, %v1333, %v1338
  %v1343 = vmul.f32 %v1331, %v1342
  %v1345 = vperm.slane %v1343, 0
  %v1347 = vmul.f32 %v1330, %v1345
  %v1348 = vld [vmem:[%s4] sm:$0x1]
  %v1350 = vperm.slane %v1348, 0
  %v1352 = vadd.f32 %v1347, %v1350
  %vm1353 = vcmp.ge.f32.partialorder %v1352, 0.0
  %v1354 = vmul.f32 %v1352, 0.25
  %v1355 = vsel %vm1353, %v1352, %v1354
  %1356 = vst [vmem:[#allocation2] sm:$0x3] 0
  %1357 = vst [vmem:[#allocation2 + $0x2] sm:$0x3] 0
  %1358 = vst [vmem:[#allocation2 + $0x4] sm:$0x3] 0
  %1359 = vst [vmem:[#allocation2 + $0x6] sm:$0x3] 0
  %1360 = vst [vmem:[#allocation2 + $0x8] sm:$0x3] 0
  %1361 = vst [vmem:[#allocation2 + $0xa] sm:$0x3] 0
  %1362 = vst [vmem:[#allocation2 + $0xc] sm:$0x3] 0
  %1363 = vst [vmem:[#allocation2 + $0xe] sm:$0x3] 0
  %v1365 = vrot.slane %v1355, 2
  %v1366 = vrot.slane %v1355, 4
  %v1367 = vrot.slane %v1355, 6
  %v1371 = vpack.c.bf16 %v1355, %v1355
  %v1372 = vpack.c.bf16 %v1365, %v1365
  %v1373 = vpack.c.bf16 %v1366, %v1366
  %v1374 = vpack.c.bf16 %v1367, %v1367
  %v1379 = vrot.slane %v1371, 2
  %v1380 = vrot.slane %v1372, 2
  %v1381 = vrot.slane %v1373, 2
  %v1382 = vrot.slane %v1374, 2
  %v1385 = vsel %vm146, %v1371, %v1379
  %v1388 = vsel %vm146, %v1372, %v1380
  %v1391 = vsel %vm146, %v1373, %v1381
  %v1394 = vsel %vm146, %v1374, %v1382
  %v1395 = vshrl.u32 %v1385, 16
  %v1397 = vrot.slane %v1395, 7
  %v1398 = vshll.u32 %v1385, 16
  %v1400 = vor.u32 %v1397, %v1398
  %v1401 = vshrl.u32 %v1388, 16
  %v1403 = vrot.slane %v1401, 7
  %v1404 = vshll.u32 %v1388, 16
  %v1406 = vor.u32 %v1403, %v1404
  %v1407 = vshrl.u32 %v1391, 16
  %v1409 = vrot.slane %v1407, 7
  %v1410 = vshll.u32 %v1391, 16
  %v1412 = vor.u32 %v1409, %v1410
  %v1413 = vshrl.u32 %v1394, 16
  %v1415 = vrot.slane %v1413, 7
  %v1416 = vshll.u32 %v1394, 16
  %v1418 = vor.u32 %v1415, %v1416
  %v1423 = vld [vmem:[%s82] sm:$0x3]
  %v1424 = vsel %vm85, %v1400, %v1423
  %1425 = vst [vmem:[%s82] sm:$0x3] %v1424
  %v1426 = vld [vmem:[%s82 + $0x2] sm:$0x3]
  %v1427 = vsel %vm85, %v1406, %v1426
  %1428 = vst [vmem:[%s82 + $0x2] sm:$0x3] %v1427
  %v1429 = vld [vmem:[%s82 + $0x8] sm:$0x3]
  %v1430 = vsel %vm85, %v1412, %v1429
  %1431 = vst [vmem:[%s82 + $0x8] sm:$0x3] %v1430
  %v1432 = vld [vmem:[%s82 + $0xa] sm:$0x3]
  %v1433 = vsel %vm85, %v1418, %v1432
  %1434 = vst [vmem:[%s82 + $0xa] sm:$0x3] %v1433
  %v1435 = vld [vmem:[#allocation2] sm:$0x1]
  %v1436 = vld [vmem:[#allocation2 + $0x2] sm:$0x1]
  %v1437 = vld [vmem:[#allocation2 + $0x8] sm:$0x1]
  %v1438 = vld [vmem:[#allocation2 + $0xa] sm:$0x1]
  %v1439 = vld [vmem:[%s2] sm:$0xf]
  %v1440 = vld [vmem:[%s2 + $0x4] sm:$0xf]
  %v1441 = vld [vmem:[%s2 + $0x8] sm:$0xf]
  %v1442 = vld [vmem:[%s2 + $0xc] sm:$0xf]
  %v1443 = vld [vmem:[%s2 + $0x10] sm:$0xf]
  %v1444 = vld [vmem:[%s2 + $0x14] sm:$0xf]
  %v1445 = vld [vmem:[%s2 + $0x18] sm:$0xf]
  %v1446 = vld [vmem:[%s2 + $0x1c] sm:$0xf]
  %v1447 = vld [vmem:[%s2 + $0x20] sm:$0xf]
  %v1448 = vld [vmem:[%s2 + $0x24] sm:$0xf]
  %v1449 = vld [vmem:[%s2 + $0x28] sm:$0xf]
  %v1450 = vld [vmem:[%s2 + $0x2c] sm:$0xf]
  %v1451 = vld [vmem:[%s2 + $0x30] sm:$0xf]
  %v1452 = vld [vmem:[%s2 + $0x34] sm:$0xf]
  %v1453 = vld [vmem:[%s2 + $0x38] sm:$0xf]
  %v1454 = vld [vmem:[%s2 + $0x3c] sm:$0xf]
  %v1455 = vld [vmem:[#allocation2] sm:$0x3]
  %v1456 = vld [vmem:[#allocation2 + $0x2] sm:$0x3]
  %v1457 = vld [vmem:[#allocation2 + $0x8] sm:$0x3]
  %v1458 = vld [vmem:[#allocation2 + $0xa] sm:$0x3]
  %v1463 = vrot.slane %v1455, 1
  %v1464 = vrot.slane %v1455, 2
  %v1465 = vrot.slane %v1455, 3
  %v1466 = vrot.slane %v1456, 1
  %v1467 = vrot.slane %v1456, 2
  %v1468 = vrot.slane %v1456, 3
  %v1469 = vrot.slane %v1457, 1
  %v1470 = vrot.slane %v1457, 2
  %v1471 = vrot.slane %v1457, 3
  %v1472 = vrot.slane %v1458, 1
  %v1473 = vrot.slane %v1458, 2
  %v1474 = vrot.slane %v1458, 3
  %v1477 = vsel %vm138, %v1455, %v1463
  %v1480 = vsel %vm142, %v1464, %v1465
  %v1481 = vsel %vm146, %v1477, %v1480
  %v1482 = vsel %vm148, %v1455, %v1463
  %v1483 = vsel %vm150, %v1464, %v1465
  %v1484 = vsel %vm152, %v1482, %v1483
  %v1486 = vrot.slane %v1484, 1
  %v1489 = vsel %vm138, %v1456, %v1466
  %v1492 = vsel %vm142, %v1467, %v1468
  %v1493 = vsel %vm146, %v1489, %v1492
  %v1494 = vsel %vm148, %v1456, %v1466
  %v1495 = vsel %vm150, %v1467, %v1468
  %v1496 = vsel %vm152, %v1494, %v1495
  %v1498 = vrot.slane %v1496, 1
  %v1501 = vsel %vm138, %v1457, %v1469
  %v1504 = vsel %vm142, %v1470, %v1471
  %v1505 = vsel %vm146, %v1501, %v1504
  %v1506 = vsel %vm148, %v1457, %v1469
  %v1507 = vsel %vm150, %v1470, %v1471
  %v1508 = vsel %vm152, %v1506, %v1507
  %v1510 = vrot.slane %v1508, 1
  %v1513 = vsel %vm138, %v1458, %v1472
  %v1516 = vsel %vm142, %v1473, %v1474
  %v1517 = vsel %vm146, %v1513, %v1516
  %v1518 = vsel %vm148, %v1458, %v1472
  %v1519 = vsel %vm150, %v1473, %v1474
  %v1520 = vsel %vm152, %v1518, %v1519
  %v1522 = vrot.slane %v1520, 1
  %v1523 = vshrl.u32 %v1481, 16
  %v1525 = vrot.slane %v1523, 7
  %v1526 = vrot.slane %v1525, 1
  %v1528 = vshll.u32 %v1486, 16
  %v1530 = vsel %vm206, %v1526, %v1528
  %v1531 = vshrl.u32 %v1493, 16
  %v1533 = vrot.slane %v1531, 7
  %v1534 = vrot.slane %v1533, 1
  %v1536 = vshll.u32 %v1498, 16
  %v1538 = vsel %vm206, %v1534, %v1536
  %v1539 = vshrl.u32 %v1505, 16
  %v1541 = vrot.slane %v1539, 7
  %v1542 = vrot.slane %v1541, 1
  %v1544 = vshll.u32 %v1510, 16
  %v1546 = vsel %vm206, %v1542, %v1544
  %v1547 = vshrl.u32 %v1517, 16
  %v1549 = vrot.slane %v1547, 7
  %v1550 = vrot.slane %v1549, 1
  %v1552 = vshll.u32 %v1522, 16
  %v1554 = vsel %vm206, %v1550, %v1552
  %s1555 = scalar_lea.vmem %s2, 64
  %v1556 = vld [vmem:[%s1555] sm:$0xf]
  %v1557 = vld [vmem:[%s1555 + $0x4] sm:$0xf]
  %v1558 = vld [vmem:[%s1555 + $0x8] sm:$0xf]
  %v1559 = vld [vmem:[%s1555 + $0xc] sm:$0xf]
  %v1560 = vld [vmem:[%s1555 + $0x10] sm:$0xf]
  %v1561 = vld [vmem:[%s1555 + $0x14] sm:$0xf]
  %v1562 = vld [vmem:[%s1555 + $0x18] sm:$0xf]
  %v1563 = vld [vmem:[%s1555 + $0x1c] sm:$0xf]
  %v1564 = vld [vmem:[%s1555 + $0x20] sm:$0xf]
  %v1565 = vld [vmem:[%s1555 + $0x24] sm:$0xf]
  %v1566 = vld [vmem:[%s1555 + $0x28] sm:$0xf]
  %v1567 = vld [vmem:[%s1555 + $0x2c] sm:$0xf]
  %v1568 = vld [vmem:[%s1555 + $0x30] sm:$0xf]
  %v1569 = vld [vmem:[%s1555 + $0x34] sm:$0xf]
  %v1570 = vld [vmem:[%s1555 + $0x38] sm:$0xf]
  %v1571 = vld [vmem:[%s1555 + $0x3c] sm:$0xf]
  %1573 = vst [vmem:[#allocation1] ss:$9 sm:$0xff] %v1530
  %s1575 = scalar_lea.vmem [#allocation1], 1
  %1576 = vst [vmem:[%s1575] ss:$9 sm:$0xff] %v1538
  %s1578 = scalar_lea.vmem [#allocation1], 2
  %1579 = vst [vmem:[%s1578] ss:$9 sm:$0xff] %v1546
  %s1581 = scalar_lea.vmem [#allocation1], 3
  %1582 = vst [vmem:[%s1581] ss:$9 sm:$0xff] %v1554
  %v1583 = vld [vmem:[#allocation1] sm:$0xff]
  %v1601 = vunpack.c.l.b16 %v1556
  %v1602 = vunpack.c.l.b16 %v1557
  %v1603 = vunpack.c.l.b16 %v1558
  %v1604 = vunpack.c.l.b16 %v1559
  %v1605 = vunpack.c.l.b16 %v1560
  %v1606 = vunpack.c.l.b16 %v1561
  %v1607 = vunpack.c.l.b16 %v1562
  %v1608 = vunpack.c.l.b16 %v1563
  %v1609 = vunpack.c.l.b16 %v1564
  %v1610 = vunpack.c.l.b16 %v1565
  %v1611 = vunpack.c.l.b16 %v1566
  %v1612 = vunpack.c.l.b16 %v1567
  %v1613 = vunpack.c.l.b16 %v1568
  %v1614 = vunpack.c.l.b16 %v1569
  %v1615 = vunpack.c.l.b16 %v1570
  %v1616 = vunpack.c.l.b16 %v1571
  %v1617 = vpack.c.b16 %v1602, %v1601
  %v1618 = vpack.c.b16 %v1604, %v1603
  %v1619 = vpack.c.b16 %v1606, %v1605
  %v1620 = vpack.c.b16 %v1608, %v1607
  %v1621 = vpack.c.b16 %v1610, %v1609
  %v1622 = vpack.c.b16 %v1612, %v1611
  %v1623 = vpack.c.b16 %v1614, %v1613
  %v1624 = vpack.c.b16 %v1616, %v1615
  %1633 = vmatpush.bf16.msra.mxu0 %v1624
  %1634 = vmatpush.bf16.msra.mxu0 %v1623
  %1635 = vmatpush.bf16.msra.mxu0 %v1622
  %1636 = vmatpush.bf16.msra.mxu0 %v1621
  %1637 = vmatpush.bf16.msra.mxu0 %v1620
  %1638 = vmatpush.bf16.msra.mxu0 %v1619
  %1639 = vmatpush.bf16.msra.mxu0 %v1618
  %1640 = vmatpush.bf16.msra.mxu0 %v1617
  %1641 = vmatmul.bf16.gmra.mxu0 %v1583
  %v1642 = vpop.f32.mrf.mxu0
  %v1643 = vadd.f32 0.0, %v1642
  %v1644 = vpop.f32.mrf.mxu0
  %1645 = vdwg.mxu0
  %1647 = vst [vmem:[#allocation1] ss:$9 sm:$0xff] %v1435
  %s1649 = scalar_lea.vmem [#allocation1], 1
  %1650 = vst [vmem:[%s1649] ss:$9 sm:$0xff] %v1436
  %s1652 = scalar_lea.vmem [#allocation1], 2
  %1653 = vst [vmem:[%s1652] ss:$9 sm:$0xff] %v1437
  %s1655 = scalar_lea.vmem [#allocation1], 3
  %1656 = vst [vmem:[%s1655] ss:$9 sm:$0xff] %v1438
  %v1657 = vld [vmem:[#allocation1] sm:$0xff]
  %v1675 = vunpack.c.l.b16 %v1439
  %v1676 = vunpack.c.l.b16 %v1440
  %v1677 = vunpack.c.l.b16 %v1441
  %v1678 = vunpack.c.l.b16 %v1442
  %v1679 = vunpack.c.l.b16 %v1443
  %v1680 = vunpack.c.l.b16 %v1444
  %v1681 = vunpack.c.l.b16 %v1445
  %v1682 = vunpack.c.l.b16 %v1446
  %v1683 = vunpack.c.l.b16 %v1447
  %v1684 = vunpack.c.l.b16 %v1448
  %v1685 = vunpack.c.l.b16 %v1449
  %v1686 = vunpack.c.l.b16 %v1450
  %v1687 = vunpack.c.l.b16 %v1451
  %v1688 = vunpack.c.l.b16 %v1452
  %v1689 = vunpack.c.l.b16 %v1453
  %v1690 = vunpack.c.l.b16 %v1454
  %v1691 = vpack.c.b16 %v1676, %v1675
  %v1692 = vpack.c.b16 %v1678, %v1677
  %v1693 = vpack.c.b16 %v1680, %v1679
  %v1694 = vpack.c.b16 %v1682, %v1681
  %v1695 = vpack.c.b16 %v1684, %v1683
  %v1696 = vpack.c.b16 %v1686, %v1685
  %v1697 = vpack.c.b16 %v1688, %v1687
  %v1698 = vpack.c.b16 %v1690, %v1689
  %1707 = vmatpush.bf16.msra.mxu0 %v1698
  %1708 = vmatpush.bf16.msra.mxu0 %v1697
  %1709 = vmatpush.bf16.msra.mxu0 %v1696
  %1710 = vmatpush.bf16.msra.mxu0 %v1695
  %1711 = vmatpush.bf16.msra.mxu0 %v1694
  %1712 = vmatpush.bf16.msra.mxu0 %v1693
  %1713 = vmatpush.bf16.msra.mxu0 %v1692
  %1714 = vmatpush.bf16.msra.mxu0 %v1691
  %1715 = vmatmul.bf16.gmra.mxu0 %v1657
  %v1716 = vpop.f32.mrf.mxu0
  %v1717 = vadd.f32 %v1643, %v1716
  %v1718 = vpop.f32.mrf.mxu0
  %1719 = vdwg.mxu0
  %v1720 = vld [vmem:[#allocation2] sm:$0x2]
  %v1721 = vld [vmem:[#allocation2 + $0x2] sm:$0x2]
  %v1722 = vld [vmem:[#allocation2 + $0x8] sm:$0x2]
  %v1723 = vld [vmem:[#allocation2 + $0xa] sm:$0x2]
  %1725 = vst [vmem:[#allocation1] sm:$0xff] %v1720
  %s1726 = scalar_lea.vmem [#allocation1], 1
  %v1727 = vld [vmem:[%s1726] ss:$2 sm:$0xff]
  %1729 = vst [vmem:[#allocation1 + $0x10] sm:$0xff] %v1721
  %s1730 = scalar_lea.vmem [#allocation1], 17
  %v1731 = vld [vmem:[%s1730] ss:$2 sm:$0xff]
  %1733 = vst [vmem:[#allocation1 + $0x20] sm:$0xff] %v1722
  %s1734 = scalar_lea.vmem [#allocation1], 33
  %v1735 = vld [vmem:[%s1734] ss:$2 sm:$0xff]
  %1737 = vst [vmem:[#allocation1 + $0x30] sm:$0xff] %v1723
  %s1738 = scalar_lea.vmem [#allocation1], 49
  %v1739 = vld [vmem:[%s1738] ss:$2 sm:$0xff]
  %s1740 = scalar_lea.vmem %s2, 128
  %v1741 = vld [vmem:[%s1740] sm:$0xf]
  %v1742 = vld [vmem:[%s1740 + $0x4] sm:$0xf]
  %v1743 = vld [vmem:[%s1740 + $0x8] sm:$0xf]
  %v1744 = vld [vmem:[%s1740 + $0xc] sm:$0xf]
  %v1745 = vld [vmem:[%s1740 + $0x10] sm:$0xf]
  %v1746 = vld [vmem:[%s1740 + $0x14] sm:$0xf]
  %v1747 = vld [vmem:[%s1740 + $0x18] sm:$0xf]
  %v1748 = vld [vmem:[%s1740 + $0x1c] sm:$0xf]
  %v1749 = vld [vmem:[%s1740 + $0x20] sm:$0xf]
  %v1750 = vld [vmem:[%s1740 + $0x24] sm:$0xf]
  %v1751 = vld [vmem:[%s1740 + $0x28] sm:$0xf]
  %v1752 = vld [vmem:[%s1740 + $0x2c] sm:$0xf]
  %v1753 = vld [vmem:[%s1740 + $0x30] sm:$0xf]
  %v1754 = vld [vmem:[%s1740 + $0x34] sm:$0xf]
  %v1755 = vld [vmem:[%s1740 + $0x38] sm:$0xf]
  %v1756 = vld [vmem:[%s1740 + $0x3c] sm:$0xf]
  %1757 = vst [vmem:[#allocation1] ss:$9 sm:$0xff] %v1727
  %s1758 = scalar_lea.vmem [#allocation1], 1
  %1759 = vst [vmem:[%s1758] ss:$9 sm:$0xff] %v1731
  %s1760 = scalar_lea.vmem [#allocation1], 2
  %1761 = vst [vmem:[%s1760] ss:$9 sm:$0xff] %v1735
  %s1762 = scalar_lea.vmem [#allocation1], 3
  %1763 = vst [vmem:[%s1762] ss:$9 sm:$0xff] %v1739
  %v1764 = vld [vmem:[#allocation1] sm:$0xff]
  %v1782 = vunpack.c.l.b16 %v1741
  %v1783 = vunpack.c.l.b16 %v1742
  %v1784 = vunpack.c.l.b16 %v1743
  %v1785 = vunpack.c.l.b16 %v1744
  %v1786 = vunpack.c.l.b16 %v1745
  %v1787 = vunpack.c.l.b16 %v1746
  %v1788 = vunpack.c.l.b16 %v1747
  %v1789 = vunpack.c.l.b16 %v1748
  %v1790 = vunpack.c.l.b16 %v1749
  %v1791 = vunpack.c.l.b16 %v1750
  %v1792 = vunpack.c.l.b16 %v1751
  %v1793 = vunpack.c.l.b16 %v1752
  %v1794 = vunpack.c.l.b16 %v1753
  %v1795 = vunpack.c.l.b16 %v1754
  %v1796 = vunpack.c.l.b16 %v1755
  %v1797 = vunpack.c.l.b16 %v1756
  %v1798 = vpack.c.b16 %v1783, %v1782
  %v1799 = vpack.c.b16 %v1785, %v1784
  %v1800 = vpack.c.b16 %v1787, %v1786
  %v1801 = vpack.c.b16 %v1789, %v1788
  %v1802 = vpack.c.b16 %v1791, %v1790
  %v1803 = vpack.c.b16 %v1793, %v1792
  %v1804 = vpack.c.b16 %v1795, %v1794
  %v1805 = vpack.c.b16 %v1797, %v1796
  %1814 = vmatpush.bf16.msra.mxu0 %v1805
  %1815 = vmatpush.bf16.msra.mxu0 %v1804
  %1816 = vmatpush.bf16.msra.mxu0 %v1803
  %1817 = vmatpush.bf16.msra.mxu0 %v1802
  %1818 = vmatpush.bf16.msra.mxu0 %v1801
  %1819 = vmatpush.bf16.msra.mxu0 %v1800
  %1820 = vmatpush.bf16.msra.mxu0 %v1799
  %1821 = vmatpush.bf16.msra.mxu0 %v1798
  %1822 = vmatmul.bf16.gmra.mxu0 %v1764
  %v1823 = vpop.f32.mrf.mxu0
  %v1824 = vadd.f32 0.0, %v1823
  %v1825 = vpop.f32.mrf.mxu0
  %1826 = vdwg.mxu0
  %v1827 = vadd.f32 %v1717, %v1824
  %v1828 = vld [vmem:[%s82] sm:$0x1]
  %v1829 = vld [vmem:[%s82 + $0x2] sm:$0x1]
  %v1830 = vld [vmem:[%s82 + $0x8] sm:$0x1]
  %v1831 = vld [vmem:[%s82 + $0xa] sm:$0x1]
  %s1832 = scalar_lea.vmem %s2, 192
  %v1833 = vld [vmem:[%s1832] sm:$0xf]
  %v1834 = vld [vmem:[%s1832 + $0x4] sm:$0xf]
  %v1835 = vld [vmem:[%s1832 + $0x8] sm:$0xf]
  %v1836 = vld [vmem:[%s1832 + $0xc] sm:$0xf]
  %v1837 = vld [vmem:[%s1832 + $0x10] sm:$0xf]
  %v1838 = vld [vmem:[%s1832 + $0x14] sm:$0xf]
  %v1839 = vld [vmem:[%s1832 + $0x18] sm:$0xf]
  %v1840 = vld [vmem:[%s1832 + $0x1c] sm:$0xf]
  %v1841 = vld [vmem:[%s1832 + $0x20] sm:$0xf]
  %v1842 = vld [vmem:[%s1832 + $0x24] sm:$0xf]
  %v1843 = vld [vmem:[%s1832 + $0x28] sm:$0xf]
  %v1844 = vld [vmem:[%s1832 + $0x2c] sm:$0xf]
  %v1845 = vld [vmem:[%s1832 + $0x30] sm:$0xf]
  %v1846 = vld [vmem:[%s1832 + $0x34] sm:$0xf]
  %v1847 = vld [vmem:[%s1832 + $0x38] sm:$0xf]
  %v1848 = vld [vmem:[%s1832 + $0x3c] sm:$0xf]
  %1850 = vst [vmem:[#allocation1] ss:$9 sm:$0xff] %v1828
  %s1852 = scalar_lea.vmem [#allocation1], 1
  %1853 = vst [vmem:[%s1852] ss:$9 sm:$0xff] %v1829
  %s1855 = scalar_lea.vmem [#allocation1], 2
  %1856 = vst [vmem:[%s1855] ss:$9 sm:$0xff] %v1830
  %s1858 = scalar_lea.vmem [#allocation1], 3
  %1859 = vst [vmem:[%s1858] ss:$9 sm:$0xff] %v1831
  %v1860 = vld [vmem:[#allocation1] sm:$0xff]
  %v1878 = vunpack.c.l.b16 %v1833
  %v1879 = vunpack.c.l.b16 %v1834
  %v1880 = vunpack.c.l.b16 %v1835
  %v1881 = vunpack.c.l.b16 %v1836
  %v1882 = vunpack.c.l.b16 %v1837
  %v1883 = vunpack.c.l.b16 %v1838
  %v1884 = vunpack.c.l.b16 %v1839
  %v1885 = vunpack.c.l.b16 %v1840
  %v1886 = vunpack.c.l.b16 %v1841
  %v1887 = vunpack.c.l.b16 %v1842
  %v1888 = vunpack.c.l.b16 %v1843
  %v1889 = vunpack.c.l.b16 %v1844
  %v1890 = vunpack.c.l.b16 %v1845
  %v1891 = vunpack.c.l.b16 %v1846
  %v1892 = vunpack.c.l.b16 %v1847
  %v1893 = vunpack.c.l.b16 %v1848
  %v1894 = vpack.c.b16 %v1879, %v1878
  %v1895 = vpack.c.b16 %v1881, %v1880
  %v1896 = vpack.c.b16 %v1883, %v1882
  %v1897 = vpack.c.b16 %v1885, %v1884
  %v1898 = vpack.c.b16 %v1887, %v1886
  %v1899 = vpack.c.b16 %v1889, %v1888
  %v1900 = vpack.c.b16 %v1891, %v1890
  %v1901 = vpack.c.b16 %v1893, %v1892
  %1910 = vmatpush.bf16.msra.mxu0 %v1901
  %1911 = vmatpush.bf16.msra.mxu0 %v1900
  %1912 = vmatpush.bf16.msra.mxu0 %v1899
  %1913 = vmatpush.bf16.msra.mxu0 %v1898
  %1914 = vmatpush.bf16.msra.mxu0 %v1897
  %1915 = vmatpush.bf16.msra.mxu0 %v1896
  %1916 = vmatpush.bf16.msra.mxu0 %v1895
  %1917 = vmatpush.bf16.msra.mxu0 %v1894
  %1918 = vmatmul.bf16.gmra.mxu0 %v1860
  %v1919 = vpop.f32.mrf.mxu0
  %v1920 = vadd.f32 0.0, %v1919
  %v1921 = vpop.f32.mrf.mxu0
  %1922 = vdwg.mxu0
  %v1923 = vadd.f32 %v1827, %v1920
  %v1924 = vld [vmem:[%s82] sm:$0x3]
  %v1925 = vld [vmem:[%s82 + $0x2] sm:$0x3]
  %v1926 = vld [vmem:[%s82 + $0x8] sm:$0x3]
  %v1927 = vld [vmem:[%s82 + $0xa] sm:$0x3]
  %v1932 = vrot.slane %v1924, 1
  %v1933 = vrot.slane %v1924, 2
  %v1934 = vrot.slane %v1924, 3
  %v1935 = vrot.slane %v1925, 1
  %v1936 = vrot.slane %v1925, 2
  %v1937 = vrot.slane %v1925, 3
  %v1938 = vrot.slane %v1926, 1
  %v1939 = vrot.slane %v1926, 2
  %v1940 = vrot.slane %v1926, 3
  %v1941 = vrot.slane %v1927, 1
  %v1942 = vrot.slane %v1927, 2
  %v1943 = vrot.slane %v1927, 3
  %v1946 = vsel %vm138, %v1924, %v1932
  %v1949 = vsel %vm142, %v1933, %v1934
  %v1950 = vsel %vm146, %v1946, %v1949
  %v1951 = vsel %vm148, %v1924, %v1932
  %v1952 = vsel %vm150, %v1933, %v1934
  %v1953 = vsel %vm152, %v1951, %v1952
  %v1955 = vrot.slane %v1953, 1
  %v1958 = vsel %vm138, %v1925, %v1935
  %v1961 = vsel %vm142, %v1936, %v1937
  %v1962 = vsel %vm146, %v1958, %v1961
  %v1963 = vsel %vm148, %v1925, %v1935
  %v1964 = vsel %vm150, %v1936, %v1937
  %v1965 = vsel %vm152, %v1963, %v1964
  %v1967 = vrot.slane %v1965, 1
  %v1970 = vsel %vm138, %v1926, %v1938
  %v1973 = vsel %vm142, %v1939, %v1940
  %v1974 = vsel %vm146, %v1970, %v1973
  %v1975 = vsel %vm148, %v1926, %v1938
  %v1976 = vsel %vm150, %v1939, %v1940
  %v1977 = vsel %vm152, %v1975, %v1976
  %v1979 = vrot.slane %v1977, 1
  %v1982 = vsel %vm138, %v1927, %v1941
  %v1985 = vsel %vm142, %v1942, %v1943
  %v1986 = vsel %vm146, %v1982, %v1985
  %v1987 = vsel %vm148, %v1927, %v1941
  %v1988 = vsel %vm150, %v1942, %v1943
  %v1989 = vsel %vm152, %v1987, %v1988
  %v1991 = vrot.slane %v1989, 1
  %v1992 = vshrl.u32 %v1950, 16
  %v1994 = vrot.slane %v1992, 7
  %v1995 = vrot.slane %v1994, 1
  %v1997 = vshll.u32 %v1955, 16
  %v1999 = vsel %vm206, %v1995, %v1997
  %v2000 = vshrl.u32 %v1962, 16
  %v2002 = vrot.slane %v2000, 7
  %v2003 = vrot.slane %v2002, 1
  %v2005 = vshll.u32 %v1967, 16
  %v2007 = vsel %vm206, %v2003, %v2005
  %v2008 = vshrl.u32 %v1974, 16
  %v2010 = vrot.slane %v2008, 7
  %v2011 = vrot.slane %v2010, 1
  %v2013 = vshll.u32 %v1979, 16
  %v2015 = vsel %vm206, %v2011, %v2013
  %v2016 = vshrl.u32 %v1986, 16
  %v2018 = vrot.slane %v2016, 7
  %v2019 = vrot.slane %v2018, 1
  %v2021 = vshll.u32 %v1991, 16
  %v2023 = vsel %vm206, %v2019, %v2021
  %s2024 = scalar_lea.vmem %s2, 256
  %v2025 = vld [vmem:[%s2024] sm:$0xf]
  %v2026 = vld [vmem:[%s2024 + $0x4] sm:$0xf]
  %v2027 = vld [vmem:[%s2024 + $0x8] sm:$0xf]
  %v2028 = vld [vmem:[%s2024 + $0xc] sm:$0xf]
  %v2029 = vld [vmem:[%s2024 + $0x10] sm:$0xf]
  %v2030 = vld [vmem:[%s2024 + $0x14] sm:$0xf]
  %v2031 = vld [vmem:[%s2024 + $0x18] sm:$0xf]
  %v2032 = vld [vmem:[%s2024 + $0x1c] sm:$0xf]
  %v2033 = vld [vmem:[%s2024 + $0x20] sm:$0xf]
  %v2034 = vld [vmem:[%s2024 + $0x24] sm:$0xf]
  %v2035 = vld [vmem:[%s2024 + $0x28] sm:$0xf]
  %v2036 = vld [vmem:[%s2024 + $0x2c] sm:$0xf]
  %v2037 = vld [vmem:[%s2024 + $0x30] sm:$0xf]
  %v2038 = vld [vmem:[%s2024 + $0x34] sm:$0xf]
  %v2039 = vld [vmem:[%s2024 + $0x38] sm:$0xf]
  %v2040 = vld [vmem:[%s2024 + $0x3c] sm:$0xf]
  %2042 = vst [vmem:[#allocation1] ss:$9 sm:$0xff] %v1999
  %s2044 = scalar_lea.vmem [#allocation1], 1
  %2045 = vst [vmem:[%s2044] ss:$9 sm:$0xff] %v2007
  %s2047 = scalar_lea.vmem [#allocation1], 2
  %2048 = vst [vmem:[%s2047] ss:$9 sm:$0xff] %v2015
  %s2050 = scalar_lea.vmem [#allocation1], 3
  %2051 = vst [vmem:[%s2050] ss:$9 sm:$0xff] %v2023
  %v2052 = vld [vmem:[#allocation1] sm:$0xff]
  %v2070 = vunpack.c.l.b16 %v2025
  %v2071 = vunpack.c.l.b16 %v2026
  %v2072 = vunpack.c.l.b16 %v2027
  %v2073 = vunpack.c.l.b16 %v2028
  %v2074 = vunpack.c.l.b16 %v2029
  %v2075 = vunpack.c.l.b16 %v2030
  %v2076 = vunpack.c.l.b16 %v2031
  %v2077 = vunpack.c.l.b16 %v2032
  %v2078 = vunpack.c.l.b16 %v2033
  %v2079 = vunpack.c.l.b16 %v2034
  %v2080 = vunpack.c.l.b16 %v2035
  %v2081 = vunpack.c.l.b16 %v2036
  %v2082 = vunpack.c.l.b16 %v2037
  %v2083 = vunpack.c.l.b16 %v2038
  %v2084 = vunpack.c.l.b16 %v2039
  %v2085 = vunpack.c.l.b16 %v2040
  %v2086 = vpack.c.b16 %v2071, %v2070
  %v2087 = vpack.c.b16 %v2073, %v2072
  %v2088 = vpack.c.b16 %v2075, %v2074
  %v2089 = vpack.c.b16 %v2077, %v2076
  %v2090 = vpack.c.b16 %v2079, %v2078
  %v2091 = vpack.c.b16 %v2081, %v2080
  %v2092 = vpack.c.b16 %v2083, %v2082
  %v2093 = vpack.c.b16 %v2085, %v2084
  %2102 = vmatpush.bf16.msra.mxu0 %v2093
  %2103 = vmatpush.bf16.msra.mxu0 %v2092
  %2104 = vmatpush.bf16.msra.mxu0 %v2091
  %2105 = vmatpush.bf16.msra.mxu0 %v2090
  %2106 = vmatpush.bf16.msra.mxu0 %v2089
  %2107 = vmatpush.bf16.msra.mxu0 %v2088
  %2108 = vmatpush.bf16.msra.mxu0 %v2087
  %2109 = vmatpush.bf16.msra.mxu0 %v2086
  %2110 = vmatmul.bf16.gmra.mxu0 %v2052
  %v2111 = vpop.f32.mrf.mxu0
  %v2112 = vadd.f32 0.0, %v2111
  %v2113 = vpop.f32.mrf.mxu0
  %2114 = vdwg.mxu0
  %v2115 = vadd.f32 %v1923, %v2112
  %v2116 = vld [vmem:[%s82] sm:$0x2]
  %v2117 = vld [vmem:[%s82 + $0x2] sm:$0x2]
  %v2118 = vld [vmem:[%s82 + $0x8] sm:$0x2]
  %v2119 = vld [vmem:[%s82 + $0xa] sm:$0x2]
  %2121 = vst [vmem:[#allocation1] sm:$0xff] %v2116
  %s2122 = scalar_lea.vmem [#allocation1], 1
  %v2123 = vld [vmem:[%s2122] ss:$2 sm:$0xff]
  %2125 = vst [vmem:[#allocation1 + $0x10] sm:$0xff] %v2117
  %s2126 = scalar_lea.vmem [#allocation1], 17
  %v2127 = vld [vmem:[%s2126] ss:$2 sm:$0xff]
  %2129 = vst [vmem:[#allocation1 + $0x20] sm:$0xff] %v2118
  %s2130 = scalar_lea.vmem [#allocation1], 33
  %v2131 = vld [vmem:[%s2130] ss:$2 sm:$0xff]
  %2133 = vst [vmem:[#allocation1 + $0x30] sm:$0xff] %v2119
  %s2134 = scalar_lea.vmem [#allocation1], 49
  %v2135 = vld [vmem:[%s2134] ss:$2 sm:$0xff]
  %s2136 = scalar_lea.vmem %s2, 320
  %v2137 = vld [vmem:[%s2136] sm:$0xf]
  %v2138 = vld [vmem:[%s2136 + $0x4] sm:$0xf]
  %v2139 = vld [vmem:[%s2136 + $0x8] sm:$0xf]
  %v2140 = vld [vmem:[%s2136 + $0xc] sm:$0xf]
  %v2141 = vld [vmem:[%s2136 + $0x10] sm:$0xf]
  %v2142 = vld [vmem:[%s2136 + $0x14] sm:$0xf]
  %v2143 = vld [vmem:[%s2136 + $0x18] sm:$0xf]
  %v2144 = vld [vmem:[%s2136 + $0x1c] sm:$0xf]
  %v2145 = vld [vmem:[%s2136 + $0x20] sm:$0xf]
  %v2146 = vld [vmem:[%s2136 + $0x24] sm:$0xf]
  %v2147 = vld [vmem:[%s2136 + $0x28] sm:$0xf]
  %v2148 = vld [vmem:[%s2136 + $0x2c] sm:$0xf]
  %v2149 = vld [vmem:[%s2136 + $0x30] sm:$0xf]
  %v2150 = vld [vmem:[%s2136 + $0x34] sm:$0xf]
  %v2151 = vld [vmem:[%s2136 + $0x38] sm:$0xf]
  %v2152 = vld [vmem:[%s2136 + $0x3c] sm:$0xf]
  %2153 = vst [vmem:[#allocation1] ss:$9 sm:$0xff] %v2123
  %s2154 = scalar_lea.vmem [#allocation1], 1
  %2155 = vst [vmem:[%s2154] ss:$9 sm:$0xff] %v2127
  %s2156 = scalar_lea.vmem [#allocation1], 2
  %2157 = vst [vmem:[%s2156] ss:$9 sm:$0xff] %v2131
  %s2158 = scalar_lea.vmem [#allocation1], 3
  %2159 = vst [vmem:[%s2158] ss:$9 sm:$0xff] %v2135
  %v2160 = vld [vmem:[#allocation1] sm:$0xff]
  %v2178 = vunpack.c.l.b16 %v2137
  %v2179 = vunpack.c.l.b16 %v2138
  %v2180 = vunpack.c.l.b16 %v2139
  %v2181 = vunpack.c.l.b16 %v2140
  %v2182 = vunpack.c.l.b16 %v2141
  %v2183 = vunpack.c.l.b16 %v2142
  %v2184 = vunpack.c.l.b16 %v2143
  %v2185 = vunpack.c.l.b16 %v2144
  %v2186 = vunpack.c.l.b16 %v2145
  %v2187 = vunpack.c.l.b16 %v2146
  %v2188 = vunpack.c.l.b16 %v2147
  %v2189 = vunpack.c.l.b16 %v2148
  %v2190 = vunpack.c.l.b16 %v2149
  %v2191 = vunpack.c.l.b16 %v2150
  %v2192 = vunpack.c.l.b16 %v2151
  %v2193 = vunpack.c.l.b16 %v2152
  %v2194 = vpack.c.b16 %v2179, %v2178
  %v2195 = vpack.c.b16 %v2181, %v2180
  %v2196 = vpack.c.b16 %v2183, %v2182
  %v2197 = vpack.c.b16 %v2185, %v2184
  %v2198 = vpack.c.b16 %v2187, %v2186
  %v2199 = vpack.c.b16 %v2189, %v2188
  %v2200 = vpack.c.b16 %v2191, %v2190
  %v2201 = vpack.c.b16 %v2193, %v2192
  %2210 = vmatpush.bf16.msra.mxu0 %v2201
  %2211 = vmatpush.bf16.msra.mxu0 %v2200
  %2212 = vmatpush.bf16.msra.mxu0 %v2199
  %2213 = vmatpush.bf16.msra.mxu0 %v2198
  %2214 = vmatpush.bf16.msra.mxu0 %v2197
  %2215 = vmatpush.bf16.msra.mxu0 %v2196
  %2216 = vmatpush.bf16.msra.mxu0 %v2195
  %2217 = vmatpush.bf16.msra.mxu0 %v2194
  %2218 = vmatmul.bf16.gmra.mxu0 %v2160
  %v2219 = vpop.f32.mrf.mxu0
  %v2220 = vadd.f32 0.0, %v2219
  %v2221 = vpop.f32.mrf.mxu0
  %2222 = vdwg.mxu0
  %v2223 = vadd.f32 %v2115, %v2220
  %v2224 = vld [vmem:[%s908] sm:$0x1]
  %v2225 = vld [vmem:[%s908 + $0x2] sm:$0x1]
  %v2226 = vld [vmem:[%s908 + $0x8] sm:$0x1]
  %v2227 = vld [vmem:[%s908 + $0xa] sm:$0x1]
  %s2228 = scalar_lea.vmem %s2, 384
  %v2229 = vld [vmem:[%s2228] sm:$0xf]
  %v2230 = vld [vmem:[%s2228 + $0x4] sm:$0xf]
  %v2231 = vld [vmem:[%s2228 + $0x8] sm:$0xf]
  %v2232 = vld [vmem:[%s2228 + $0xc] sm:$0xf]
  %v2233 = vld [vmem:[%s2228 + $0x10] sm:$0xf]
  %v2234 = vld [vmem:[%s2228 + $0x14] sm:$0xf]
  %v2235 = vld [vmem:[%s2228 + $0x18] sm:$0xf]
  %v2236 = vld [vmem:[%s2228 + $0x1c] sm:$0xf]
  %v2237 = vld [vmem:[%s2228 + $0x20] sm:$0xf]
  %v2238 = vld [vmem:[%s2228 + $0x24] sm:$0xf]
  %v2239 = vld [vmem:[%s2228 + $0x28] sm:$0xf]
  %v2240 = vld [vmem:[%s2228 + $0x2c] sm:$0xf]
  %v2241 = vld [vmem:[%s2228 + $0x30] sm:$0xf]
  %v2242 = vld [vmem:[%s2228 + $0x34] sm:$0xf]
  %v2243 = vld [vmem:[%s2228 + $0x38] sm:$0xf]
  %v2244 = vld [vmem:[%s2228 + $0x3c] sm:$0xf]
  %2246 = vst [vmem:[#allocation1] ss:$9 sm:$0xff] %v2224
  %s2248 = scalar_lea.vmem [#allocation1], 1
  %2249 = vst [vmem:[%s2248] ss:$9 sm:$0xff] %v2225
  %s2251 = scalar_lea.vmem [#allocation1], 2
  %2252 = vst [vmem:[%s2251] ss:$9 sm:$0xff] %v2226
  %s2254 = scalar_lea.vmem [#allocation1], 3
  %2255 = vst [vmem:[%s2254] ss:$9 sm:$0xff] %v2227
  %v2256 = vld [vmem:[#allocation1] sm:$0xff]
  %v2274 = vunpack.c.l.b16 %v2229
  %v2275 = vunpack.c.l.b16 %v2230
  %v2276 = vunpack.c.l.b16 %v2231
  %v2277 = vunpack.c.l.b16 %v2232
  %v2278 = vunpack.c.l.b16 %v2233
  %v2279 = vunpack.c.l.b16 %v2234
  %v2280 = vunpack.c.l.b16 %v2235
  %v2281 = vunpack.c.l.b16 %v2236
  %v2282 = vunpack.c.l.b16 %v2237
  %v2283 = vunpack.c.l.b16 %v2238
  %v2284 = vunpack.c.l.b16 %v2239
  %v2285 = vunpack.c.l.b16 %v2240
  %v2286 = vunpack.c.l.b16 %v2241
  %v2287 = vunpack.c.l.b16 %v2242
  %v2288 = vunpack.c.l.b16 %v2243
  %v2289 = vunpack.c.l.b16 %v2244
  %v2290 = vpack.c.b16 %v2275, %v2274
  %v2291 = vpack.c.b16 %v2277, %v2276
  %v2292 = vpack.c.b16 %v2279, %v2278
  %v2293 = vpack.c.b16 %v2281, %v2280
  %v2294 = vpack.c.b16 %v2283, %v2282
  %v2295 = vpack.c.b16 %v2285, %v2284
  %v2296 = vpack.c.b16 %v2287, %v2286
  %v2297 = vpack.c.b16 %v2289, %v2288
  %2306 = vmatpush.bf16.msra.mxu0 %v2297
  %2307 = vmatpush.bf16.msra.mxu0 %v2296
  %2308 = vmatpush.bf16.msra.mxu0 %v2295
  %2309 = vmatpush.bf16.msra.mxu0 %v2294
  %2310 = vmatpush.bf16.msra.mxu0 %v2293
  %2311 = vmatpush.bf16.msra.mxu0 %v2292
  %2312 = vmatpush.bf16.msra.mxu0 %v2291
  %2313 = vmatpush.bf16.msra.mxu0 %v2290
  %2314 = vmatmul.bf16.gmra.mxu0 %v2256
  %v2315 = vpop.f32.mrf.mxu0
  %v2316 = vadd.f32 0.0, %v2315
  %v2317 = vpop.f32.mrf.mxu0
  %2318 = vdwg.mxu0
  %v2319 = vadd.f32 %v2223, %v2316
  %v2320 = vld [vmem:[%s908] sm:$0x3]
  %v2321 = vld [vmem:[%s908 + $0x2] sm:$0x3]
  %v2322 = vld [vmem:[%s908 + $0x8] sm:$0x3]
  %v2323 = vld [vmem:[%s908 + $0xa] sm:$0x3]
  %v2328 = vrot.slane %v2320, 1
  %v2329 = vrot.slane %v2320, 2
  %v2330 = vrot.slane %v2320, 3
  %v2331 = vrot.slane %v2321, 1
  %v2332 = vrot.slane %v2321, 2
  %v2333 = vrot.slane %v2321, 3
  %v2334 = vrot.slane %v2322, 1
  %v2335 = vrot.slane %v2322, 2
  %v2336 = vrot.slane %v2322, 3
  %v2337 = vrot.slane %v2323, 1
  %v2338 = vrot.slane %v2323, 2
  %v2339 = vrot.slane %v2323, 3
  %v2342 = vsel %vm138, %v2320, %v2328
  %v2345 = vsel %vm142, %v2329, %v2330
  %v2346 = vsel %vm146, %v2342, %v2345
  %v2347 = vsel %vm148, %v2320, %v2328
  %v2348 = vsel %vm150, %v2329, %v2330
  %v2349 = vsel %vm152, %v2347, %v2348
  %v2351 = vrot.slane %v2349, 1
  %v2354 = vsel %vm138, %v2321, %v2331
  %v2357 = vsel %vm142, %v2332, %v2333
  %v2358 = vsel %vm146, %v2354, %v2357
  %v2359 = vsel %vm148, %v2321, %v2331
  %v2360 = vsel %vm150, %v2332, %v2333
  %v2361 = vsel %vm152, %v2359, %v2360
  %v2363 = vrot.slane %v2361, 1
  %v2366 = vsel %vm138, %v2322, %v2334
  %v2369 = vsel %vm142, %v2335, %v2336
  %v2370 = vsel %vm146, %v2366, %v2369
  %v2371 = vsel %vm148, %v2322, %v2334
  %v2372 = vsel %vm150, %v2335, %v2336
  %v2373 = vsel %vm152, %v2371, %v2372
  %v2375 = vrot.slane %v2373, 1
  %v2378 = vsel %vm138, %v2323, %v2337
  %v2381 = vsel %vm142, %v2338, %v2339
  %v2382 = vsel %vm146, %v2378, %v2381
  %v2383 = vsel %vm148, %v2323, %v2337
  %v2384 = vsel %vm150, %v2338, %v2339
  %v2385 = vsel %vm152, %v2383, %v2384
  %v2387 = vrot.slane %v2385, 1
  %v2388 = vshrl.u32 %v2346, 16
  %v2390 = vrot.slane %v2388, 7
  %v2391 = vrot.slane %v2390, 1
  %v2393 = vshll.u32 %v2351, 16
  %v2395 = vsel %vm206, %v2391, %v2393
  %v2396 = vshrl.u32 %v2358, 16
  %v2398 = vrot.slane %v2396, 7
  %v2399 = vrot.slane %v2398, 1
  %v2401 = vshll.u32 %v2363, 16
  %v2403 = vsel %vm206, %v2399, %v2401
  %v2404 = vshrl.u32 %v2370, 16
  %v2406 = vrot.slane %v2404, 7
  %v2407 = vrot.slane %v2406, 1
  %v2409 = vshll.u32 %v2375, 16
  %v2411 = vsel %vm206, %v2407, %v2409
  %v2412 = vshrl.u32 %v2382, 16
  %v2414 = vrot.slane %v2412, 7
  %v2415 = vrot.slane %v2414, 1
  %v2417 = vshll.u32 %v2387, 16
  %v2419 = vsel %vm206, %v2415, %v2417
  %s2420 = scalar_lea.vmem %s2, 448
  %v2421 = vld [vmem:[%s2420] sm:$0xf]
  %v2422 = vld [vmem:[%s2420 + $0x4] sm:$0xf]
  %v2423 = vld [vmem:[%s2420 + $0x8] sm:$0xf]
  %v2424 = vld [vmem:[%s2420 + $0xc] sm:$0xf]
  %v2425 = vld [vmem:[%s2420 + $0x10] sm:$0xf]
  %v2426 = vld [vmem:[%s2420 + $0x14] sm:$0xf]
  %v2427 = vld [vmem:[%s2420 + $0x18] sm:$0xf]
  %v2428 = vld [vmem:[%s2420 + $0x1c] sm:$0xf]
  %v2429 = vld [vmem:[%s2420 + $0x20] sm:$0xf]
  %v2430 = vld [vmem:[%s2420 + $0x24] sm:$0xf]
  %v2431 = vld [vmem:[%s2420 + $0x28] sm:$0xf]
  %v2432 = vld [vmem:[%s2420 + $0x2c] sm:$0xf]
  %v2433 = vld [vmem:[%s2420 + $0x30] sm:$0xf]
  %v2434 = vld [vmem:[%s2420 + $0x34] sm:$0xf]
  %v2435 = vld [vmem:[%s2420 + $0x38] sm:$0xf]
  %v2436 = vld [vmem:[%s2420 + $0x3c] sm:$0xf]
  %2438 = vst [vmem:[#allocation1] ss:$9 sm:$0xff] %v2395
  %s2440 = scalar_lea.vmem [#allocation1], 1
  %2441 = vst [vmem:[%s2440] ss:$9 sm:$0xff] %v2403
  %s2443 = scalar_lea.vmem [#allocation1], 2
  %2444 = vst [vmem:[%s2443] ss:$9 sm:$0xff] %v2411
  %s2446 = scalar_lea.vmem [#allocation1], 3
  %2447 = vst [vmem:[%s2446] ss:$9 sm:$0xff] %v2419
  %v2448 = vld [vmem:[#allocation1] sm:$0xff]
  %v2466 = vunpack.c.l.b16 %v2421
  %v2467 = vunpack.c.l.b16 %v2422
  %v2468 = vunpack.c.l.b16 %v2423
  %v2469 = vunpack.c.l.b16 %v2424
  %v2470 = vunpack.c.l.b16 %v2425
  %v2471 = vunpack.c.l.b16 %v2426
  %v2472 = vunpack.c.l.b16 %v2427
  %v2473 = vunpack.c.l.b16 %v2428
  %v2474 = vunpack.c.l.b16 %v2429
  %v2475 = vunpack.c.l.b16 %v2430
  %v2476 = vunpack.c.l.b16 %v2431
  %v2477 = vunpack.c.l.b16 %v2432
  %v2478 = vunpack.c.l.b16 %v2433
  %v2479 = vunpack.c.l.b16 %v2434
  %v2480 = vunpack.c.l.b16 %v2435
  %v2481 = vunpack.c.l.b16 %v2436
  %v2482 = vpack.c.b16 %v2467, %v2466
  %v2483 = vpack.c.b16 %v2469, %v2468
  %v2484 = vpack.c.b16 %v2471, %v2470
  %v2485 = vpack.c.b16 %v2473, %v2472
  %v2486 = vpack.c.b16 %v2475, %v2474
  %v2487 = vpack.c.b16 %v2477, %v2476
  %v2488 = vpack.c.b16 %v2479, %v2478
  %v2489 = vpack.c.b16 %v2481, %v2480
  %2498 = vmatpush.bf16.msra.mxu0 %v2489
  %2499 = vmatpush.bf16.msra.mxu0 %v2488
  %2500 = vmatpush.bf16.msra.mxu0 %v2487
  %2501 = vmatpush.bf16.msra.mxu0 %v2486
  %2502 = vmatpush.bf16.msra.mxu0 %v2485
  %2503 = vmatpush.bf16.msra.mxu0 %v2484
  %2504 = vmatpush.bf16.msra.mxu0 %v2483
  %2505 = vmatpush.bf16.msra.mxu0 %v2482
  %2506 = vmatmul.bf16.gmra.mxu0 %v2448
  %v2507 = vpop.f32.mrf.mxu0
  %v2508 = vadd.f32 0.0, %v2507
  %v2509 = vpop.f32.mrf.mxu0
  %2510 = vdwg.mxu0
  %v2511 = vadd.f32 %v2319, %v2508
  %v2512 = vld [vmem:[%s908] sm:$0x2]
  %v2513 = vld [vmem:[%s908 + $0x2] sm:$0x2]
  %v2514 = vld [vmem:[%s908 + $0x8] sm:$0x2]
  %v2515 = vld [vmem:[%s908 + $0xa] sm:$0x2]
  %2517 = vst [vmem:[#allocation1] sm:$0xff] %v2512
  %s2518 = scalar_lea.vmem [#allocation1], 1
  %v2519 = vld [vmem:[%s2518] ss:$2 sm:$0xff]
  %2521 = vst [vmem:[#allocation1 + $0x10] sm:$0xff] %v2513
  %s2522 = scalar_lea.vmem [#allocation1], 17
  %v2523 = vld [vmem:[%s2522] ss:$2 sm:$0xff]
  %2525 = vst [vmem:[#allocation1 + $0x20] sm:$0xff] %v2514
  %s2526 = scalar_lea.vmem [#allocation1], 33
  %v2527 = vld [vmem:[%s2526] ss:$2 sm:$0xff]
  %2529 = vst [vmem:[#allocation1 + $0x30] sm:$0xff] %v2515
  %s2530 = scalar_lea.vmem [#allocation1], 49
  %v2531 = vld [vmem:[%s2530] ss:$2 sm:$0xff]
  %s2532 = scalar_lea.vmem %s2, 512
  %v2533 = vld [vmem:[%s2532] sm:$0xf]
  %v2534 = vld [vmem:[%s2532 + $0x4] sm:$0xf]
  %v2535 = vld [vmem:[%s2532 + $0x8] sm:$0xf]
  %v2536 = vld [vmem:[%s2532 + $0xc] sm:$0xf]
  %v2537 = vld [vmem:[%s2532 + $0x10] sm:$0xf]
  %v2538 = vld [vmem:[%s2532 + $0x14] sm:$0xf]
  %v2539 = vld [vmem:[%s2532 + $0x18] sm:$0xf]
  %v2540 = vld [vmem:[%s2532 + $0x1c] sm:$0xf]
  %v2541 = vld [vmem:[%s2532 + $0x20] sm:$0xf]
  %v2542 = vld [vmem:[%s2532 + $0x24] sm:$0xf]
  %v2543 = vld [vmem:[%s2532 + $0x28] sm:$0xf]
  %v2544 = vld [vmem:[%s2532 + $0x2c] sm:$0xf]
  %v2545 = vld [vmem:[%s2532 + $0x30] sm:$0xf]
  %v2546 = vld [vmem:[%s2532 + $0x34] sm:$0xf]
  %v2547 = vld [vmem:[%s2532 + $0x38] sm:$0xf]
  %v2548 = vld [vmem:[%s2532 + $0x3c] sm:$0xf]
  %2549 = vst [vmem:[#allocation1] ss:$9 sm:$0xff] %v2519
  %s2550 = scalar_lea.vmem [#allocation1], 1
  %2551 = vst [vmem:[%s2550] ss:$9 sm:$0xff] %v2523
  %s2552 = scalar_lea.vmem [#allocation1], 2
  %2553 = vst [vmem:[%s2552] ss:$9 sm:$0xff] %v2527
  %s2554 = scalar_lea.vmem [#allocation1], 3
  %2555 = vst [vmem:[%s2554] ss:$9 sm:$0xff] %v2531
  %v2556 = vld [vmem:[#allocation1] sm:$0xff]
  %v2574 = vunpack.c.l.b16 %v2533
  %v2575 = vunpack.c.l.b16 %v2534
  %v2576 = vunpack.c.l.b16 %v2535
  %v2577 = vunpack.c.l.b16 %v2536
  %v2578 = vunpack.c.l.b16 %v2537
  %v2579 = vunpack.c.l.b16 %v2538
  %v2580 = vunpack.c.l.b16 %v2539
  %v2581 = vunpack.c.l.b16 %v2540
  %v2582 = vunpack.c.l.b16 %v2541
  %v2583 = vunpack.c.l.b16 %v2542
  %v2584 = vunpack.c.l.b16 %v2543
  %v2585 = vunpack.c.l.b16 %v2544
  %v2586 = vunpack.c.l.b16 %v2545
  %v2587 = vunpack.c.l.b16 %v2546
  %v2588 = vunpack.c.l.b16 %v2547
  %v2589 = vunpack.c.l.b16 %v2548
  %v2590 = vpack.c.b16 %v2575, %v2574
  %v2591 = vpack.c.b16 %v2577, %v2576
  %v2592 = vpack.c.b16 %v2579, %v2578
  %v2593 = vpack.c.b16 %v2581, %v2580
  %v2594 = vpack.c.b16 %v2583, %v2582
  %v2595 = vpack.c.b16 %v2585, %v2584
  %v2596 = vpack.c.b16 %v2587, %v2586
  %v2597 = vpack.c.b16 %v2589, %v2588
  %2606 = vmatpush.bf16.msra.mxu0 %v2597
  %2607 = vmatpush.bf16.msra.mxu0 %v2596
  %2608 = vmatpush.bf16.msra.mxu0 %v2595
  %2609 = vmatpush.bf16.msra.mxu0 %v2594
  %2610 = vmatpush.bf16.msra.mxu0 %v2593
  %2611 = vmatpush.bf16.msra.mxu0 %v2592
  %2612 = vmatpush.bf16.msra.mxu0 %v2591
  %2613 = vmatpush.bf16.msra.mxu0 %v2590
  %2614 = vmatmul.bf16.gmra.mxu0 %v2556
  %v2615 = vpop.f32.mrf.mxu0
  %v2616 = vadd.f32 0.0, %v2615
  %v2617 = vpop.f32.mrf.mxu0
  %2618 = vdwg.mxu0
  %v2619 = vadd.f32 %v2511, %v2616
  %v2620 = vrot.slane %v2619, 4
  %v2621 = vadd.f32 %v2619, %v2620
  %v2622 = vrot.slane %v2621, 2
  %v2623 = vadd.f32 %v2621, %v2622
  %v2624 = vrot.slane %v2623, 1
  %v2625 = vadd.f32 %v2623, %v2624
  %v2626 = vmul.f32 %v2625, %v1317
  %v2627 = vmul.f32 %v2619, %v2619
  %v2628 = vrot.slane %v2627, 4
  %v2629 = vadd.f32 %v2627, %v2628
  %v2630 = vrot.slane %v2629, 2
  %v2631 = vadd.f32 %v2629, %v2630
  %v2632 = vrot.slane %v2631, 1
  %v2633 = vadd.f32 %v2631, %v2632
  %v2634 = vmul.f32 %v2633, %v1317
  %v2635 = vmul.f32 %v2626, %v2626
  %v2636 = vsub.f32 %v2634, %v2635
  %v2637 = vmax.f32 %v2636, 0.0
  %v2638 = vsub.f32 %v2619, %v2626
  %v2639 = vld [vmem:[%s5] sm:$0x1]
  %v2640 = vadd.f32 %v2637, 1e-05
  %v2641 = vrsqrt.pop %v2640
  %v2642 = vmul.f32 %v2641, %v2640
  %v2643 = vmul.f32 %v2642, %v2641
  %v2644 = vmul.f32 0.5, %v2643
  %v2645 = vsub.f32 1.5, %v2644
  %v2646 = vmul.f32 %v2641, %v2645
  %vm2647 = vweird.f32 %v2640
  %vm2648 = vweird.f32 %v2641
  %vm2649 = vmor %vm2647, %vm2648
  %v2650 = vsel %vm2649, %v2641, %v2646
  %v2651 = vmul.f32 %v2639, %v2650
  %v2653 = vperm.slane %v2651, 0
  %v2655 = vmul.f32 %v2638, %v2653
  %v2656 = vld [vmem:[%s6] sm:$0x1]
  %v2658 = vperm.slane %v2656, 0
  %v2660 = vadd.f32 %v2655, %v2658
  %v2661 = vunpack.c.l.bf16 %v27
  %v2662 = vunpack.c.l.bf16 %v28
  %v2663 = vunpack.c.l.bf16 %v29
  %v2664 = vunpack.c.l.bf16 %v30
  %v2666 = vrot.slane %v2660, 2
  %v2667 = vrot.slane %v2660, 4
  %v2668 = vrot.slane %v2660, 6
  %v2672 = vadd.f32 %v2661, %v2660
  %v2673 = vadd.f32 %v2662, %v2666
  %v2674 = vadd.f32 %v2663, %v2667
  %v2675 = vadd.f32 %v2664, %v2668
  %v2676 = vpack.c.bf16 %v2672, %v2672
  %v2677 = vpack.c.bf16 %v2673, %v2673
  %v2678 = vpack.c.bf16 %v2674, %v2674
  %v2679 = vpack.c.bf16 %v2675, %v2675
  %2680 = vst [vmem:[%s7] sm:$0x1] %v2676
  %2681 = vst [vmem:[%s7 + $0x1] sm:$0x1] %v2677
  %2682 = vst [vmem:[%s7 + $0x2] sm:$0x1] %v2678
  %2683 = vst [vmem:[%s7 + $0x3] sm:$0x1] %v2679
  // Predicated region
  $region30: #{_lambda_.18} parent=0 // pred_check
    _
  $region31: #{_lambda_.18} parent=0 // pred_check_branch
    %2685 = sbr.rel (0) target = $region33
  $region32: #{_lambda_.18} parent=0 // pred_region
    _
  $region33: #{_lambda_.18} parent=0 // pred_fallthru
    _
  // Predicated region
  $region34: #{_lambda_.18} parent=0 // pred_check
    _
  $region35: #{_lambda_.18} parent=0 // pred_check_branch
    %2687 = sbr.rel (0) target = $region37
  $region36: #{_lambda_.18} parent=0 // pred_region
    _
  $region37: #{_lambda_.18} parent=0 // pred_fallthru
    _

// kernel: _lambda_.19
$region0: #{_lambda_.19}
  #allocation0 [shape = 'u32[]', space=smem, size = 0x4, offset = 0x4, fixed_abs, tag = 'smem constant byte address 0x4 - core index']
  #allocation1 [shape = 'u32[72,128]{1,0:T(1,128)}', space=vmem, size = 0x9000, scoped, tag = 'internal scratch']
  %s0 = inlined_call_operand.vmem [shape: bf16[8,128], index: 0, kind: input, shape index: {}]
  %s1 = inlined_call_operand.vmem [shape: bf16[128,256], index: 1, kind: input, shape index: {}]
  %s2 = inlined_call_operand.vmem [shape: f32[1,256], index: 2, kind: input, shape index: {}]
  %s3 = inlined_call_operand.vmem [shape: bf16[8,256], index: 3, kind: input, shape index: {}]
  %s4 = inlined_call_operand.vmem [shape: bf16[8,256], index: 4, kind: output, shape index: {}]
  %s5 = sld [smem:[#allocation0]]
  $region26: #{_lambda_.19} parent=0
    _
  %s7 = ssub.s32 1, %s5
  %s8 = scalar_select 0, %s7, %s5
  // Predicated region
  $region2: #{_lambda_.19} parent=0 // pred_check
    _
  $region3: #{_lambda_.19} parent=0 // pred_check_branch
    %10 = sbr.rel (0) target = $region5
  $region4: #{_lambda_.19} parent=0 // pred_region
    _
  $region5: #{_lambda_.19} parent=0 // pred_fallthru
    _
  // Predicated region
  $region6: #{_lambda_.19} parent=0 // pred_check
    _
  $region7: #{_lambda_.19} parent=0 // pred_check_branch
    %12 = sbr.rel (0) target = $region9
  $region8: #{_lambda_.19} parent=0 // pred_region
    _
  $region9: #{_lambda_.19} parent=0 // pred_fallthru
    _
  // Predicated region
  $region10: #{_lambda_.19} parent=0 // pred_check
    _
  $region11: #{_lambda_.19} parent=0 // pred_check_branch
    %14 = sbr.rel (0) target = $region13
  $region12: #{_lambda_.19} parent=0 // pred_region
    _
  $region13: #{_lambda_.19} parent=0 // pred_fallthru
    _
  // Predicated region
  $region14: #{_lambda_.19} parent=0 // pred_check
    _
  $region15: #{_lambda_.19} parent=0 // pred_check_branch
    %16 = sbr.rel (0) target = $region17
  $region16: #{_lambda_.19} parent=0 // pred_region
    _
  $region17: #{_lambda_.19} parent=0 // pred_fallthru
    _
  %v17 = vld [vmem:[%s0] sm:$0xf]
  %v18 = vld [vmem:[%s1] sm:$0xff]
  %v19 = vld [vmem:[%s1 + $0x8] sm:$0xff]
  %v20 = vld [vmem:[%s1 + $0x10] sm:$0xff]
  %v21 = vld [vmem:[%s1 + $0x18] sm:$0xff]
  %v22 = vld [vmem:[%s1 + $0x20] sm:$0xff]
  %v23 = vld [vmem:[%s1 + $0x28] sm:$0xff]
  %v24 = vld [vmem:[%s1 + $0x30] sm:$0xff]
  %v25 = vld [vmem:[%s1 + $0x38] sm:$0xff]
  %v26 = vld [vmem:[%s1 + $0x40] sm:$0xff]
  %v27 = vld [vmem:[%s1 + $0x48] sm:$0xff]
  %v28 = vld [vmem:[%s1 + $0x50] sm:$0xff]
  %v29 = vld [vmem:[%s1 + $0x58] sm:$0xff]
  %v30 = vld [vmem:[%s1 + $0x60] sm:$0xff]
  %v31 = vld [vmem:[%s1 + $0x68] sm:$0xff]
  %v32 = vld [vmem:[%s1 + $0x70] sm:$0xff]
  %v33 = vld [vmem:[%s1 + $0x78] sm:$0xff]
  %v34 = vld [vmem:[%s2] sm:$0x3]
  %v36 = vperm.slane %v34, 0
  %v37 = vperm.slane %v34, 1
  %v56 = vunpack.c.l.b16 %v18
  %v57 = vunpack.c.h.b16 %v18
  %v58 = vunpack.c.l.b16 %v19
  %v59 = vunpack.c.h.b16 %v19
  %v60 = vunpack.c.l.b16 %v20
  %v61 = vunpack.c.h.b16 %v20
  %v62 = vunpack.c.l.b16 %v21
  %v63 = vunpack.c.h.b16 %v21
  %v64 = vunpack.c.l.b16 %v22
  %v65 = vunpack.c.h.b16 %v22
  %v66 = vunpack.c.l.b16 %v23
  %v67 = vunpack.c.h.b16 %v23
  %v68 = vunpack.c.l.b16 %v24
  %v69 = vunpack.c.h.b16 %v24
  %v70 = vunpack.c.l.b16 %v25
  %v71 = vunpack.c.h.b16 %v25
  %v72 = vunpack.c.l.b16 %v26
  %v73 = vunpack.c.h.b16 %v26
  %v74 = vunpack.c.l.b16 %v27
  %v75 = vunpack.c.h.b16 %v27
  %v76 = vunpack.c.l.b16 %v28
  %v77 = vunpack.c.h.b16 %v28
  %v78 = vunpack.c.l.b16 %v29
  %v79 = vunpack.c.h.b16 %v29
  %v80 = vunpack.c.l.b16 %v30
  %v81 = vunpack.c.h.b16 %v30
  %v82 = vunpack.c.l.b16 %v31
  %v83 = vunpack.c.h.b16 %v31
  %v84 = vunpack.c.l.b16 %v32
  %v85 = vunpack.c.h.b16 %v32
  %v86 = vunpack.c.l.b16 %v33
  %v87 = vunpack.c.h.b16 %v33
  %v88 = vpack.c.b16 %v58, %v56
  %v89 = vpack.c.b16 %v59, %v57
  %v90 = vpack.c.b16 %v62, %v60
  %v91 = vpack.c.b16 %v63, %v61
  %v92 = vpack.c.b16 %v66, %v64
  %v93 = vpack.c.b16 %v67, %v65
  %v94 = vpack.c.b16 %v70, %v68
  %v95 = vpack.c.b16 %v71, %v69
  %v96 = vpack.c.b16 %v74, %v72
  %v97 = vpack.c.b16 %v75, %v73
  %v98 = vpack.c.b16 %v78, %v76
  %v99 = vpack.c.b16 %v79, %v77
  %v100 = vpack.c.b16 %v82, %v80
  %v101 = vpack.c.b16 %v83, %v81
  %v102 = vpack.c.b16 %v86, %v84
  %v103 = vpack.c.b16 %v87, %v85
  %120 = vmatpush.bf16.msra.mxu0 %v102
  %121 = vmatpush.bf16.msra.mxu0 %v100
  %122 = vmatpush.bf16.msra.mxu0 %v98
  %123 = vmatpush.bf16.msra.mxu0 %v96
  %124 = vmatpush.bf16.msra.mxu0 %v94
  %125 = vmatpush.bf16.msra.mxu0 %v92
  %126 = vmatpush.bf16.msra.mxu0 %v90
  %127 = vmatpush.bf16.msra.mxu0 %v88
  %128 = vmatmul.bf16.gmra.mxu0 %v17
  %v129 = vpop.f32.mrf.mxu0
  %v130 = vadd.f32 %v36, %v129
  %v131 = vpop.f32.mrf.mxu0
  %132 = vdwg.mxu0
  %133 = vmatpush.bf16.msra.mxu0 %v103
  %134 = vmatpush.bf16.msra.mxu0 %v101
  %135 = vmatpush.bf16.msra.mxu0 %v99
  %136 = vmatpush.bf16.msra.mxu0 %v97
  %137 = vmatpush.bf16.msra.mxu0 %v95
  %138 = vmatpush.bf16.msra.mxu0 %v93
  %139 = vmatpush.bf16.msra.mxu0 %v91
  %140 = vmatpush.bf16.msra.mxu0 %v89
  %141 = vmatmul.bf16.gmra.mxu0 %v17
  %v142 = vpop.f32.mrf.mxu0
  %v143 = vadd.f32 %v37, %v142
  %v144 = vpop.f32.mrf.mxu0
  %145 = vdwg.mxu0
  %v146 = vld [vmem:[%s3] sm:$0xff]
  %v147 = vunpack.c.l.bf16 %v146
  %v148 = vunpack.c.h.bf16 %v146
  %v149 = vadd.f32 %v130, %v147
  %v150 = vadd.f32 %v143, %v148
  %v151 = vmax.f32 %v149, 0.0
  %v152 = vmax.f32 %v150, 0.0
  %v153 = vpack.c.bf16 %v152, %v151
  %154 = vst [vmem:[%s4] sm:$0xff] %v153
  // Predicated region
  $region18: #{_lambda_.19} parent=0 // pred_check
    _
  $region19: #{_lambda_.19} parent=0 // pred_check_branch
    %156 = sbr.rel (0) target = $region21
  $region20: #{_lambda_.19} parent=0 // pred_region
    _
  $region21: #{_lambda_.19} parent=0 // pred_fallthru
    _
  // Predicated region
  $region22: #{_lambda_.19} parent=0 // pred_check
    _
  $region23: #{_lambda_.19} parent=0 // pred_check_branch
    %158 = sbr.rel (0) target = $region25
  $region24: #{_lambda_.19} parent=0 // pred_region
    _
  $region25: #{_lambda_.19} parent=0 // pred_fallthru
    _

// kernel: _lambda_.20
$region0: #{_lambda_.20}
  #allocation0 [shape = 'u32[]', space=smem, size = 0x4, offset = 0x4, fixed_abs, tag = 'smem constant byte address 0x4 - core index']
  #allocation1 [shape = 'u32[72,128]{1,0:T(1,128)}', space=vmem, size = 0x9000, scoped, tag = 'internal scratch']
  %s0 = inlined_call_operand.vmem [shape: bf16[32,64], index: 0, kind: input, shape index: {}]
  %s1 = inlined_call_operand.vmem [shape: bf16[64,128], index: 1, kind: input, shape index: {}]
  %s2 = inlined_call_operand.vmem [shape: f32[1,128], index: 2, kind: input, shape index: {}]
  %s3 = inlined_call_operand.vmem [shape: bf16[32,128], index: 3, kind: input, shape index: {}]
  %s4 = inlined_call_operand.vmem [shape: bf16[32,128], index: 4, kind: output, shape index: {}]
  %s5 = sld [smem:[#allocation0]]
  $region26: #{_lambda_.20} parent=0
    _
  %s7 = ssub.s32 1, %s5
  %s8 = scalar_select 0, %s7, %s5
  // Predicated region
  $region2: #{_lambda_.20} parent=0 // pred_check
    _
  $region3: #{_lambda_.20} parent=0 // pred_check_branch
    %10 = sbr.rel (0) target = $region5
  $region4: #{_lambda_.20} parent=0 // pred_region
    _
  $region5: #{_lambda_.20} parent=0 // pred_fallthru
    _
  // Predicated region
  $region6: #{_lambda_.20} parent=0 // pred_check
    _
  $region7: #{_lambda_.20} parent=0 // pred_check_branch
    %12 = sbr.rel (0) target = $region9
  $region8: #{_lambda_.20} parent=0 // pred_region
    _
  $region9: #{_lambda_.20} parent=0 // pred_fallthru
    _
  // Predicated region
  $region10: #{_lambda_.20} parent=0 // pred_check
    _
  $region11: #{_lambda_.20} parent=0 // pred_check_branch
    %14 = sbr.rel (0) target = $region13
  $region12: #{_lambda_.20} parent=0 // pred_region
    _
  $region13: #{_lambda_.20} parent=0 // pred_fallthru
    _
  // Predicated region
  $region14: #{_lambda_.20} parent=0 // pred_check
    _
  $region15: #{_lambda_.20} parent=0 // pred_check_branch
    %16 = sbr.rel (0) target = $region17
  $region16: #{_lambda_.20} parent=0 // pred_region
    _
  $region17: #{_lambda_.20} parent=0 // pred_fallthru
    _
  %v18 = vld [vmem:[%s0] sm:$0xf]
  %v19 = vld [vmem:[%s0 + $0x4] sm:$0xf]
  %v20 = vld [vmem:[%s0 + $0x8] sm:$0xf]
  %v21 = vld [vmem:[%s0 + $0xc] sm:$0xf]
  %v22 = vld [vmem:[%s1] sm:$0xf]
  %v23 = vld [vmem:[%s1 + $0x4] sm:$0xf]
  %v24 = vld [vmem:[%s1 + $0x8] sm:$0xf]
  %v25 = vld [vmem:[%s1 + $0xc] sm:$0xf]
  %v26 = vld [vmem:[%s1 + $0x10] sm:$0xf]
  %v27 = vld [vmem:[%s1 + $0x14] sm:$0xf]
  %v28 = vld [vmem:[%s1 + $0x18] sm:$0xf]
  %v29 = vld [vmem:[%s1 + $0x1c] sm:$0xf]
  %v30 = vld [vmem:[%s2] sm:$0x1]
  %v32 = vperm.slane %v30, 0
  %v38 = vunpack.c.l.b16 %v18
  %v39 = vunpack.c.l.b16 %v19
  %v40 = vunpack.c.l.b16 %v20
  %v41 = vunpack.c.l.b16 %v21
  %v42 = vpack.c.b16 %v39, %v38
  %v43 = vpack.c.b16 %v41, %v40
  %v52 = vunpack.c.l.b16 %v22
  %v53 = vunpack.c.l.b16 %v23
  %v54 = vunpack.c.l.b16 %v24
  %v55 = vunpack.c.l.b16 %v25
  %v56 = vunpack.c.l.b16 %v26
  %v57 = vunpack.c.l.b16 %v27
  %v58 = vunpack.c.l.b16 %v28
  %v59 = vunpack.c.l.b16 %v29
  %v60 = vpack.c.b16 %v53, %v52
  %v61 = vpack.c.b16 %v55, %v54
  %v62 = vpack.c.b16 %v57, %v56
  %v63 = vpack.c.b16 %v59, %v58
  %vm68 = vcmask 523264
  %v70 = vsel %vm68, %v42, 0
  %v73 = vsel %vm68, %v43, 0
  %75 = vmatpush.bf16.msra.mxu0 0
  %76 = vmatpush.bf16.msra.mxu0 0
  %77 = vmatpush.bf16.msra.mxu0 0
  %78 = vmatpush.bf16.msra.mxu0 0
  %79 = vmatpush.bf16.msra.mxu0 %v63
  %80 = vmatpush.bf16.msra.mxu0 %v62
  %81 = vmatpush.bf16.msra.mxu0 %v61
  %82 = vmatpush.bf16.msra.mxu0 %v60
  %83 = vmatmul.bf16.gmra.mxu0 %v70
  %v84 = vpop.f32.mrf.mxu0
  %v85 = vadd.f32 %v32, %v84
  %v86 = vpop.f32.mrf.mxu0
  %v87 = vadd.f32 %v32, %v86
  %88 = vmatmul.bf16.gmra.mxu0 %v73
  %v89 = vpop.f32.mrf.mxu0
  %v90 = vadd.f32 %v32, %v89
  %v91 = vpop.f32.mrf.mxu0
  %v92 = vadd.f32 %v32, %v91
  %93 = vdwg.mxu0
  %v94 = vld [vmem:[%s3] sm:$0xf]
  %v95 = vld [vmem:[%s3 + $0x4] sm:$0xf]
  %v96 = vld [vmem:[%s3 + $0x8] sm:$0xf]
  %v97 = vld [vmem:[%s3 + $0xc] sm:$0xf]
  %v98 = vunpack.c.l.bf16 %v94
  %v99 = vunpack.c.l.bf16 %v95
  %v100 = vunpack.c.l.bf16 %v96
  %v101 = vunpack.c.l.bf16 %v97
  %v102 = vadd.f32 %v85, %v98
  %v103 = vadd.f32 %v87, %v99
  %v104 = vadd.f32 %v90, %v100
  %v105 = vadd.f32 %v92, %v101
  %v106 = vmax.f32 %v102, 0.0
  %v107 = vmax.f32 %v103, 0.0
  %v108 = vmax.f32 %v104, 0.0
  %v109 = vmax.f32 %v105, 0.0
  %v110 = vpack.c.bf16 %v106, %v106
  %v111 = vpack.c.bf16 %v107, %v107
  %v112 = vpack.c.bf16 %v108, %v108
  %v113 = vpack.c.bf16 %v109, %v109
  %114 = vst [vmem:[%s4] sm:$0xf] %v110
  %115 = vst [vmem:[%s4 + $0x4] sm:$0xf] %v111
  %116 = vst [vmem:[%s4 + $0x8] sm:$0xf] %v112
  %117 = vst [vmem:[%s4 + $0xc] sm:$0xf] %v113
  // Predicated region
  $region18: #{_lambda_.20} parent=0 // pred_check
    _
  $region19: #{_lambda_.20} parent=0 // pred_check_branch
    %119 = sbr.rel (0) target = $region21
  $region20: #{_lambda_.20} parent=0 // pred_region
    _
  $region21: #{_lambda_.20} parent=0 // pred_fallthru
    _
  // Predicated region
  $region22: #{_lambda_.20} parent=0 // pred_check
    _
  $region23: #{_lambda_.20} parent=0 // pred_check_branch
    %121 = sbr.rel (0) target = $region25
  $region24: #{_lambda_.20} parent=0 // pred_region
    _
  $region25: #{_lambda_.20} parent=0 // pred_fallthru
    _

// kernel: _lambda_.21
$region0: #{_lambda_.21}
  #allocation0 [shape = 'u32[]', space=smem, size = 0x4, offset = 0x4, fixed_abs, tag = 'smem constant byte address 0x4 - core index']
  #allocation1 [shape = 'u32[72,128]{1,0:T(1,128)}', space=vmem, size = 0x9000, scoped, tag = 'internal scratch']
  %s0 = inlined_call_operand.vmem [shape: bf16[128,32], index: 0, kind: input, shape index: {}]
  %s1 = inlined_call_operand.vmem [shape: bf16[32,12], index: 1, kind: input, shape index: {}]
  %s2 = inlined_call_operand.vmem [shape: f32[1,12], index: 2, kind: input, shape index: {}]
  %s3 = inlined_call_operand.vmem [shape: bf16[128,12], index: 3, kind: input, shape index: {}]
  %s4 = inlined_call_operand.vmem [shape: f32[128,12], index: 4, kind: output, shape index: {}]
  %s5 = sld [smem:[#allocation0]]
  $region26: #{_lambda_.21} parent=0
    _
  %s7 = ssub.s32 1, %s5
  %s8 = scalar_select 0, %s7, %s5
  // Predicated region
  $region2: #{_lambda_.21} parent=0 // pred_check
    _
  $region3: #{_lambda_.21} parent=0 // pred_check_branch
    %10 = sbr.rel (0) target = $region5
  $region4: #{_lambda_.21} parent=0 // pred_region
    _
  $region5: #{_lambda_.21} parent=0 // pred_fallthru
    _
  // Predicated region
  $region6: #{_lambda_.21} parent=0 // pred_check
    _
  $region7: #{_lambda_.21} parent=0 // pred_check_branch
    %12 = sbr.rel (0) target = $region9
  $region8: #{_lambda_.21} parent=0 // pred_region
    _
  $region9: #{_lambda_.21} parent=0 // pred_fallthru
    _
  // Predicated region
  $region10: #{_lambda_.21} parent=0 // pred_check
    _
  $region11: #{_lambda_.21} parent=0 // pred_check_branch
    %14 = sbr.rel (0) target = $region13
  $region12: #{_lambda_.21} parent=0 // pred_region
    _
  $region13: #{_lambda_.21} parent=0 // pred_fallthru
    _
  // Predicated region
  $region14: #{_lambda_.21} parent=0 // pred_check
    _
  $region15: #{_lambda_.21} parent=0 // pred_check_branch
    %16 = sbr.rel (0) target = $region17
  $region16: #{_lambda_.21} parent=0 // pred_region
    _
  $region17: #{_lambda_.21} parent=0 // pred_fallthru
    _
  %v18 = vld [vmem:[%s0] sm:$0xf]
  %v19 = vld [vmem:[%s0 + $0x4] sm:$0xf]
  %v20 = vld [vmem:[%s0 + $0x8] sm:$0xf]
  %v21 = vld [vmem:[%s0 + $0xc] sm:$0xf]
  %v22 = vld [vmem:[%s0 + $0x10] sm:$0xf]
  %v23 = vld [vmem:[%s0 + $0x14] sm:$0xf]
  %v24 = vld [vmem:[%s0 + $0x18] sm:$0xf]
  %v25 = vld [vmem:[%s0 + $0x1c] sm:$0xf]
  %v26 = vld [vmem:[%s0 + $0x20] sm:$0xf]
  %v27 = vld [vmem:[%s0 + $0x24] sm:$0xf]
  %v28 = vld [vmem:[%s0 + $0x28] sm:$0xf]
  %v29 = vld [vmem:[%s0 + $0x2c] sm:$0xf]
  %v30 = vld [vmem:[%s0 + $0x30] sm:$0xf]
  %v31 = vld [vmem:[%s0 + $0x34] sm:$0xf]
  %v32 = vld [vmem:[%s0 + $0x38] sm:$0xf]
  %v33 = vld [vmem:[%s0 + $0x3c] sm:$0xf]
  %v34 = vld [vmem:[%s1] sm:$0xf]
  %v35 = vld [vmem:[%s1 + $0x4] sm:$0xf]
  %v36 = vld [vmem:[%s1 + $0x8] sm:$0xf]
  %v37 = vld [vmem:[%s1 + $0xc] sm:$0xf]
  %v38 = vld [vmem:[%s2] sm:$0x1]
  %v40 = vperm.slane %v38, 0
  %v58 = vunpack.c.l.b16 %v18
  %v59 = vunpack.c.l.b16 %v19
  %v60 = vunpack.c.l.b16 %v20
  %v61 = vunpack.c.l.b16 %v21
  %v62 = vunpack.c.l.b16 %v22
  %v63 = vunpack.c.l.b16 %v23
  %v64 = vunpack.c.l.b16 %v24
  %v65 = vunpack.c.l.b16 %v25
  %v66 = vunpack.c.l.b16 %v26
  %v67 = vunpack.c.l.b16 %v27
  %v68 = vunpack.c.l.b16 %v28
  %v69 = vunpack.c.l.b16 %v29
  %v70 = vunpack.c.l.b16 %v30
  %v71 = vunpack.c.l.b16 %v31
  %v72 = vunpack.c.l.b16 %v32
  %v73 = vunpack.c.l.b16 %v33
  %v74 = vpack.c.b16 %v59, %v58
  %v75 = vpack.c.b16 %v61, %v60
  %v76 = vpack.c.b16 %v63, %v62
  %v77 = vpack.c.b16 %v65, %v64
  %v78 = vpack.c.b16 %v67, %v66
  %v79 = vpack.c.b16 %v69, %v68
  %v80 = vpack.c.b16 %v71, %v70
  %v81 = vpack.c.b16 %v73, %v72
  %v86 = vunpack.c.l.b16 %v34
  %v87 = vunpack.c.l.b16 %v35
  %v88 = vunpack.c.l.b16 %v36
  %v89 = vunpack.c.l.b16 %v37
  %v90 = vpack.c.b16 %v87, %v86
  %v91 = vpack.c.b16 %v89, %v88
  %vm94 = vcmask 261120
  %v96 = vsel %vm94, %v74, 0
  %v99 = vsel %vm94, %v75, 0
  %v102 = vsel %vm94, %v76, 0
  %v105 = vsel %vm94, %v77, 0
  %v108 = vsel %vm94, %v78, 0
  %v111 = vsel %vm94, %v79, 0
  %v114 = vsel %vm94, %v80, 0
  %v117 = vsel %vm94, %v81, 0
  %119 = vmatpush.bf16.msra.mxu0 0
  %120 = vmatpush.bf16.msra.mxu0 0
  %121 = vmatpush.bf16.msra.mxu0 0
  %122 = vmatpush.bf16.msra.mxu0 0
  %123 = vmatpush.bf16.msra.mxu0 0
  %124 = vmatpush.bf16.msra.mxu0 0
  %125 = vmatpush.bf16.msra.mxu0 %v91
  %126 = vmatpush.bf16.msra.mxu0 %v90
  %127 = vmatmul.bf16.gmra.mxu0 %v96
  %v128 = vpop.f32.mrf.mxu0
  %v129 = vadd.f32 %v40, %v128
  %v130 = vpop.f32.mrf.mxu0
  %v131 = vadd.f32 %v40, %v130
  %132 = vmatmul.bf16.gmra.mxu0 %v99
  %v133 = vpop.f32.mrf.mxu0
  %v134 = vadd.f32 %v40, %v133
  %v135 = vpop.f32.mrf.mxu0
  %v136 = vadd.f32 %v40, %v135
  %137 = vmatmul.bf16.gmra.mxu0 %v102
  %v138 = vpop.f32.mrf.mxu0
  %v139 = vadd.f32 %v40, %v138
  %v140 = vpop.f32.mrf.mxu0
  %v141 = vadd.f32 %v40, %v140
  %142 = vmatmul.bf16.gmra.mxu0 %v105
  %v143 = vpop.f32.mrf.mxu0
  %v144 = vadd.f32 %v40, %v143
  %v145 = vpop.f32.mrf.mxu0
  %v146 = vadd.f32 %v40, %v145
  %147 = vmatmul.bf16.gmra.mxu0 %v108
  %v148 = vpop.f32.mrf.mxu0
  %v149 = vadd.f32 %v40, %v148
  %v150 = vpop.f32.mrf.mxu0
  %v151 = vadd.f32 %v40, %v150
  %152 = vmatmul.bf16.gmra.mxu0 %v111
  %v153 = vpop.f32.mrf.mxu0
  %v154 = vadd.f32 %v40, %v153
  %v155 = vpop.f32.mrf.mxu0
  %v156 = vadd.f32 %v40, %v155
  %157 = vmatmul.bf16.gmra.mxu0 %v114
  %v158 = vpop.f32.mrf.mxu0
  %v159 = vadd.f32 %v40, %v158
  %v160 = vpop.f32.mrf.mxu0
  %v161 = vadd.f32 %v40, %v160
  %162 = vmatmul.bf16.gmra.mxu0 %v117
  %v163 = vpop.f32.mrf.mxu0
  %v164 = vadd.f32 %v40, %v163
  %v165 = vpop.f32.mrf.mxu0
  %v166 = vadd.f32 %v40, %v165
  %167 = vdwg.mxu0
  %v168 = vld [vmem:[%s3] sm:$0xf]
  %v169 = vld [vmem:[%s3 + $0x4] sm:$0xf]
  %v170 = vld [vmem:[%s3 + $0x8] sm:$0xf]
  %v171 = vld [vmem:[%s3 + $0xc] sm:$0xf]
  %v172 = vld [vmem:[%s3 + $0x10] sm:$0xf]
  %v173 = vld [vmem:[%s3 + $0x14] sm:$0xf]
  %v174 = vld [vmem:[%s3 + $0x18] sm:$0xf]
  %v175 = vld [vmem:[%s3 + $0x1c] sm:$0xf]
  %v176 = vld [vmem:[%s3 + $0x20] sm:$0xf]
  %v177 = vld [vmem:[%s3 + $0x24] sm:$0xf]
  %v178 = vld [vmem:[%s3 + $0x28] sm:$0xf]
  %v179 = vld [vmem:[%s3 + $0x2c] sm:$0xf]
  %v180 = vld [vmem:[%s3 + $0x30] sm:$0xf]
  %v181 = vld [vmem:[%s3 + $0x34] sm:$0xf]
  %v182 = vld [vmem:[%s3 + $0x38] sm:$0xf]
  %v183 = vld [vmem:[%s3 + $0x3c] sm:$0xf]
  %v184 = vunpack.c.l.bf16 %v168
  %v185 = vunpack.c.l.bf16 %v169
  %v186 = vunpack.c.l.bf16 %v170
  %v187 = vunpack.c.l.bf16 %v171
  %v188 = vunpack.c.l.bf16 %v172
  %v189 = vunpack.c.l.bf16 %v173
  %v190 = vunpack.c.l.bf16 %v174
  %v191 = vunpack.c.l.bf16 %v175
  %v192 = vunpack.c.l.bf16 %v176
  %v193 = vunpack.c.l.bf16 %v177
  %v194 = vunpack.c.l.bf16 %v178
  %v195 = vunpack.c.l.bf16 %v179
  %v196 = vunpack.c.l.bf16 %v180
  %v197 = vunpack.c.l.bf16 %v181
  %v198 = vunpack.c.l.bf16 %v182
  %v199 = vunpack.c.l.bf16 %v183
  %v200 = vadd.f32 %v129, %v184
  %v201 = vadd.f32 %v131, %v185
  %v202 = vadd.f32 %v134, %v186
  %v203 = vadd.f32 %v136, %v187
  %v204 = vadd.f32 %v139, %v188
  %v205 = vadd.f32 %v141, %v189
  %v206 = vadd.f32 %v144, %v190
  %v207 = vadd.f32 %v146, %v191
  %v208 = vadd.f32 %v149, %v192
  %v209 = vadd.f32 %v151, %v193
  %v210 = vadd.f32 %v154, %v194
  %v211 = vadd.f32 %v156, %v195
  %v212 = vadd.f32 %v159, %v196
  %v213 = vadd.f32 %v161, %v197
  %v214 = vadd.f32 %v164, %v198
  %v215 = vadd.f32 %v166, %v199
  %v216 = vmax.f32 %v200, 0.0
  %v217 = vmax.f32 %v201, 0.0
  %v218 = vmax.f32 %v202, 0.0
  %v219 = vmax.f32 %v203, 0.0
  %v220 = vmax.f32 %v204, 0.0
  %v221 = vmax.f32 %v205, 0.0
  %v222 = vmax.f32 %v206, 0.0
  %v223 = vmax.f32 %v207, 0.0
  %v224 = vmax.f32 %v208, 0.0
  %v225 = vmax.f32 %v209, 0.0
  %v226 = vmax.f32 %v210, 0.0
  %v227 = vmax.f32 %v211, 0.0
  %v228 = vmax.f32 %v212, 0.0
  %v229 = vmax.f32 %v213, 0.0
  %v230 = vmax.f32 %v214, 0.0
  %v231 = vmax.f32 %v215, 0.0
  %v232 = vmin.f32 %v216, 1.0
  %v233 = vmin.f32 %v217, 1.0
  %v234 = vmin.f32 %v218, 1.0
  %v235 = vmin.f32 %v219, 1.0
  %v236 = vmin.f32 %v220, 1.0
  %v237 = vmin.f32 %v221, 1.0
  %v238 = vmin.f32 %v222, 1.0
  %v239 = vmin.f32 %v223, 1.0
  %v240 = vmin.f32 %v224, 1.0
  %v241 = vmin.f32 %v225, 1.0
  %v242 = vmin.f32 %v226, 1.0
  %v243 = vmin.f32 %v227, 1.0
  %v244 = vmin.f32 %v228, 1.0
  %v245 = vmin.f32 %v229, 1.0
  %v246 = vmin.f32 %v230, 1.0
  %v247 = vmin.f32 %v231, 1.0
  %vm248 = vcmask 97280
  %249 = vst.msk [vmem:[%s4] sm:$0xff] %vm248, %v232
  %250 = vst.msk [vmem:[%s4 + $0x8] sm:$0xff] %vm248, %v233
  %251 = vst.msk [vmem:[%s4 + $0x10] sm:$0xff] %vm248, %v234
  %252 = vst.msk [vmem:[%s4 + $0x18] sm:$0xff] %vm248, %v235
  %253 = vst.msk [vmem:[%s4 + $0x20] sm:$0xff] %vm248, %v236
  %254 = vst.msk [vmem:[%s4 + $0x28] sm:$0xff] %vm248, %v237
  %255 = vst.msk [vmem:[%s4 + $0x30] sm:$0xff] %vm248, %v238
  %256 = vst.msk [vmem:[%s4 + $0x38] sm:$0xff] %vm248, %v239
  %257 = vst.msk [vmem:[%s4 + $0x40] sm:$0xff] %vm248, %v240
  %258 = vst.msk [vmem:[%s4 + $0x48] sm:$0xff] %vm248, %v241
  %259 = vst.msk [vmem:[%s4 + $0x50] sm:$0xff] %vm248, %v242
  %260 = vst.msk [vmem:[%s4 + $0x58] sm:$0xff] %vm248, %v243
  %261 = vst.msk [vmem:[%s4 + $0x60] sm:$0xff] %vm248, %v244
  %262 = vst.msk [vmem:[%s4 + $0x68] sm:$0xff] %vm248, %v245
  %263 = vst.msk [vmem:[%s4 + $0x70] sm:$0xff] %vm248, %v246
  %264 = vst.msk [vmem:[%s4 + $0x78] sm:$0xff] %vm248, %v247
  // Predicated region
  $region18: #{_lambda_.21} parent=0 // pred_check
    _
  $region19: #{_lambda_.21} parent=0 // pred_check_branch
    %266 = sbr.rel (0) target = $region21
  $region20: #{_lambda_.21} parent=0 // pred_region
    _
  $region21: #{_lambda_.21} parent=0 // pred_fallthru
    _
  // Predicated region
  $region22: #{_lambda_.21} parent=0 // pred_check
    _
  $region23: #{_lambda_.21} parent=0 // pred_check_branch
    %268 = sbr.rel (0) target = $region25
  $region24: #{_lambda_.21} parent=0 // pred_region
    _
  $region25: #{_lambda_.21} parent=0 // pred_fallthru
    _

</llo_original>
